<compile_context>
chip_gen: v7x
topology: tpu7x:2x2x1
jax: 0.10.0
libtpu: 0.0.40
codegen_flags: <defaults>
</compile_context>

<pallas_src>
import numpy as np
import jax
import jax.numpy as jnp
from jax.experimental import pallas as pl
from jax.experimental.pallas import tpu as pltpu


# ----------------------------- host-side parameter setup -----------------------------

def compute_propagator(Nx, Ny, z, wavelength, deltaX, deltaY):
    """Same math as PropagationLoss._compute_propagator (numpy, float64)."""
    k = 1.0 / wavelength
    x = np.expand_dims(
        np.arange(np.ceil(-Nx / 2), np.ceil(Nx / 2), 1) * (1.0 / (Nx * deltaX)), axis=0)
    y = np.expand_dims(
        np.arange(np.ceil(-Ny / 2), np.ceil(Ny / 2), 1) * (1.0 / (Ny * deltaY)), axis=1)
    y_new = np.repeat(y, Nx, axis=1)
    x_new = np.repeat(x, Ny, axis=0)
    term = k ** 2 - (y_new ** 2 + x_new ** 2)
    term = np.maximum(term, 0)
    phase = np.exp(1j * 2 * np.pi * z * np.sqrt(term))
    return np.real(phase), np.imag(phase)  # each (Ny, Nx)


def dft_matrices(N):
    """Ortho forward DFT matrix split into real/imag.  Inverse is conj(W)."""
    n = np.arange(N)
    ang = 2.0 * np.pi * np.outer(n, n) / N
    scale = 1.0 / np.sqrt(N)
    Wr = (np.cos(ang) * scale).astype(np.float32)   # forward: exp(-i ang)
    Wi = (-np.sin(ang) * scale).astype(np.float32)
    return Wr, Wi


def _split_hi_lo(a_f32):
    hi = a_f32.astype(jnp.bfloat16)
    lo = (a_f32 - hi.astype(jnp.float32)).astype(jnp.bfloat16)
    return hi, lo


def build_constants(N, z, wavelength, dX, dY):
    """Pre-split bf16 DFT matrices + ifftshift-absorbed propagator (built once)."""
    Pr_np, Pi_np = compute_propagator(N, N, z, wavelength, dX, dY)
    prop = jnp.asarray(
        np.stack([np.fft.ifftshift(Pr_np), np.fft.ifftshift(Pi_np)]).astype(np.float32))
    Wr_np, Wi_np = dft_matrices(N)
    wr_h, wr_l = _split_hi_lo(jnp.asarray(Wr_np))
    wi_h, wi_l = _split_hi_lo(jnp.asarray(Wi_np))
    whl = jnp.stack([wr_h, wr_l, wi_h, wi_l])        # (4, N, N) bf16
    Pr = jnp.asarray(Pr_np, dtype=jnp.float32)
    Pi = jnp.asarray(Pi_np, dtype=jnp.float32)
    return whl, prop, Pr, Pi


# ----------------------------- Pallas kernel -----------------------------

def _split(a):
    """Split an f32 array into bf16 hi/lo parts (a ~= hi + lo)."""
    hi = a.astype(jnp.bfloat16)
    lo = (a - hi.astype(jnp.float32)).astype(jnp.bfloat16)
    return hi, lo


def _mm3(a_h, a_l, b_h, b_l):
    """(a_h+a_l) @ (b_h+b_l): 3-pass bf16 matmul (~Precision.HIGH), f32 accum."""
    def d(u, v):
        return jnp.dot(u, v, preferred_element_type=jnp.float32)
    return d(a_h, b_h) + d(a_h, b_l) + d(a_l, b_h)


def propagation_loss_kernel(x_ref, y_ref, w_ref, prop_ref, out_ref, acc_ref):
    j = pl.program_id(1)                       # reduction ("arbitrary") axis
    n = y_ref.shape[-1]                        # N

    @pl.when(j == 0)
    def _():
        acc_ref[...] = jnp.zeros_like(acc_ref)

    xs = x_ref[...]                            # (2N, N) f32 = [x0; x1]
    y0 = y_ref[...]                            # (N, N) f32, target (real channel)
    wr_h = w_ref[0]                            # bf16 constants, pre-split on host
    wr_l = w_ref[1]
    wi_h = w_ref[2]
    wi_l = w_ref[3]
    pr = prop_ref[0]                           # ifftshift(Pr), f32
    pi = prop_ref[1]                           # ifftshift(Pi), f32

    # ---- forward FFT of the packed complex field u = x0 + i*x1:  U = W u W ----
    # stage 1 (right-mult by W), both channels fused via the (2N, N) slab
    xs_h, xs_l = _split(xs)
    tr = _mm3(xs_h, xs_l, wr_h, wr_l)          # [x0 Wr; x1 Wr]
    ti = _mm3(xs_h, xs_l, wi_h, wi_l)          # [x0 Wi; x1 Wi]
    ar = tr[:n] - ti[n:]                       # Re(u W)
    ai = ti[:n] + tr[n:]                       # Im(u W)

    # stage 2 (left-mult by W)
    ar_h, ar_l = _split(ar)
    ai_h, ai_l = _split(ai)
    ur = _mm3(wr_h, wr_l, ar_h, ar_l) - _mm3(wi_h, wi_l, ai_h, ai_l)
    ui = _mm3(wr_h, wr_l, ai_h, ai_l) + _mm3(wi_h, wi_l, ar_h, ar_l)

    # ---- complex multiply with the (ifftshift-absorbed) propagator ----
    # The propagator is even in frequency, so G = F0*pr - F1*pi is Hermitian and
    # Se = Re(IFFT2(U * (pr + i*pi))) exactly (imag part is identically zero).
    gr = ur * pr - ui * pi
    gi = ur * pi + ui * pr

    # ---- inverse ortho FFT, real part only: Se = Re(conj(W) g conj(W)) ----
    gr_h, gr_l = _split(gr)
    gi_h, gi_l = _split(gi)
    cr = _mm3(wr_h, wr_l, gr_h, gr_l) + _mm3(wi_h, wi_l, gi_h, gi_l)
    ci = _mm3(wr_h, wr_l, gi_h, gi_l) - _mm3(wi_h, wi_l, gr_h, gr_l)

    # TODO(synk): 2-pass variant for these last stages pending N=600 validation.
    cr_h, cr_l = _split(cr)
    ci_h, ci_l = _split(ci)
    se = _mm3(cr_h, cr_l, wr_h, wr_l) + _mm3(ci_h, ci_l, wi_h, wi_l)

    # ---- sum |Se - y0|, accumulated in VMEM scratch ----
    acc_ref[...] += jnp.sum(jnp.abs(se - y0))

    @pl.when(j == pl.num_programs(1) - 1)
    def _():
        out_ref[...] = acc_ref[...]            # one lane-dense write per split


# ----------------------------- wrapper -----------------------------

def _tpu_info():
    try:
        return pltpu.get_tpu_info()
    except Exception:
        return None


def _vmem_capacity_bytes():
    info = _tpu_info()
    if info is not None:
        for name in ("vmem_capacity_bytes", "vmem_bytes", "vmem_size_bytes"):
            v = getattr(info, name, None)
            if isinstance(v, (int, np.integer)) and int(v) > 0:
                return int(v)
    return 64 * 2 ** 20      # conservative default (v7x per-TensorCore)


def _num_tensorcores():
    info = _tpu_info()
    if info is not None:
        for name in ("num_cores", "core_count", "num_tensorcores",
                     "tensorcore_count", "cores_per_chip"):
            v = getattr(info, name, None)
            if isinstance(v, (int, np.integer)) and int(v) > 1:
                return int(v)
    return 1


def _run_pallas(x3, y5, whl, prop, nsplit, N, vmem_limit,
                single_buffer_consts, core_parallel, with_cost):
    Bp = x3.shape[0]
    per = Bp // nsplit
    const_kw = {"pipeline_mode": pl.Buffered(1)} if single_buffer_consts else {}

    x_spec = pl.BlockSpec((None, 2 * N, N), lambda c, j: (c * per + j, 0, 0))
    y_spec = pl.BlockSpec((None, None, None, N, N),
                          lambda c, j: (c * per + j, 0, 0, 0, 0))   # channel 0 only
    w_spec = pl.BlockSpec((4, N, N), lambda c, j: (0, 0, 0), **const_kw)
    p_spec = pl.BlockSpec((2, N, N), lambda c, j: (0, 0, 0), **const_kw)

    sem0 = pltpu.CORE_PARALLEL if core_parallel else pltpu.PARALLEL

    extra = {}
    if with_cost:
        flops = int(Bp) * 14 * 3 * 2 * int(N) ** 3          # 42 bf16 NxN passes/img
        bytes_accessed = int(x3.size) * 4 + int(Bp) * N * N * 4 \
            + int(whl.size) * 2 + int(prop.size) * 4 + nsplit * 8 * 128 * 4
        extra["cost_estimate"] = pl.CostEstimate(
            flops=flops, transcendentals=0, bytes_accessed=bytes_accessed)

    return pl.pallas_call(
        propagation_loss_kernel,
        out_shape=jax.ShapeDtypeStruct((8 * nsplit, 128), jnp.float32),
        grid_spec=pltpu.PrefetchScalarGridSpec(
            num_scalar_prefetch=0,
            grid=(nsplit, per),
            in_specs=[x_spec, y_spec, w_spec, p_spec],
            out_specs=pl.BlockSpec((8, 128), lambda c, j: (c, 0)),
            scratch_shapes=[pltpu.VMEM((8, 128), jnp.float32)],
        ),
        compiler_params=pltpu.CompilerParams(
            dimension_semantics=(sem0, pltpu.ARBITRARY),
            vmem_limit_bytes=vmem_limit,
        ),
        **extra,
    )(x3, y5, whl, prop)


def propagation_loss(x, y, whl, prop):
    """x, y: [B, 2, 1, N, N] f32.  whl: (4,N,N) bf16.  prop: (2,N,N) f32.  Scalar."""
    B = x.shape[0]
    N = x.shape[-1]

    # Free, contiguous reshape: the two channel planes stacked along sublanes.
    x3 = x.reshape(B, 2 * N, N)

    ncores = _num_tensorcores()

    # VMEM budget: live intermediates (~a dozen NxN f32 planes + bf16 hi/lo) plus
    # double-buffered image pipelines, clamped to 3/4 of physical VMEM (v7x: 64 MiB).
    ns = ((N + 7) // 8) * 8
    nl = ((N + 127) // 128) * 128
    plane = ns * nl * 4
    vmem_limit = int(min(max(44 * plane, 32 * 2 ** 20),
                         (3 * _vmem_capacity_bytes()) // 4))

    # Fallback ladder: most aggressive config first, each later one strictly more
    # conservative; the last matches a structure known to lower on all chips.
    configs = []
    if ncores > 1:
        configs.append((ncores, True, True, True))
        configs.append((ncores, False, True, True))
    configs.append((1, True, False, True))
    configs.append((1, False, False, True))
    configs.append((1, False, False, False))

    partial = None
    last_err = None
    for nsplit, single_buf, core_par, with_cost in configs:
        Bp = ((B + nsplit - 1) // nsplit) * nsplit
        if Bp != B:                      # zero images contribute exactly 0
            x3p = jnp.concatenate(
                [x3, jnp.zeros((Bp - B, 2 * N, N), x3.dtype)], axis=0)
            y5p = jnp.concatenate(
                [y, jnp.zeros((Bp - B,) + y.shape[1:], y.dtype)], axis=0)
        else:
            x3p, y5p = x3, y
        try:
            partial = _run_pallas(x3p, y5p, whl, prop, nsplit, N, vmem_limit,
                                  single_buf, core_par, with_cost)
            break
        except Exception as e:           # keep the most aggressive config that lowers
            last_err = e
    if partial is None:
        raise last_err

    nsplit_used = partial.shape[0] // 8
    psum = jnp.sum(partial.reshape(nsplit_used, 8, 128)[:, 0, 0])
    return psum / (2.0 * B * N * N)      # mean(|Se - y0|) / 2, original B


# ----------------------------- reference (plain JAX) -----------------------------

def reference_loss(x, y, Pr, Pi):
    x0 = x[:, 0, 0]; x1 = x[:, 1, 0]; y0 = y[:, 0, 0]
    F0 = jnp.fft.fftshift(jnp.fft.fftn(x0, axes=(1, 2), norm='ortho'), axes=(1, 2))
    F1 = jnp.fft.fftshift(jnp.fft.fftn(x1, axes=(1, 2), norm='ortho'), axes=(1, 2))
    G = F0 * Pr[None] - F1 * Pi[None]
    Se = jnp.fft.ifftn(jnp.fft.ifftshift(G, axes=(1, 2)), axes=(1, 2), norm='ortho')
    return jnp.mean(jnp.abs(Se - y0)) / 2


# ----------------------------- main -----------------------------

if __name__ == "__main__":
    B, C, N = 2, 2, 16          # small shapes (module default is N=600)
    z, wavelength, dX, dY = 200000.0, 0.6328, 5.3, 5.3

    whl, prop, Pr, Pi = build_constants(N, z, wavelength, dX, dY)

    key = jax.random.PRNGKey(0)
    kx, ky = jax.random.split(key)
    x = jax.random.normal(kx, (B, C, 1, N, N), dtype=jnp.float32)
    y = jax.random.normal(ky, (B, C, 1, N, N), dtype=jnp.float32)

    loss = jax.block_until_ready(propagation_loss(x, y, whl, prop))
    ref = jax.block_until_ready(reference_loss(x, y, Pr, Pi))
    np.testing.assert_allclose(np.asarray(loss), np.asarray(ref), rtol=1e-3, atol=1e-3)

    print("KERNEL_OK")
</pallas_src>

<mosaic_0001>
module attributes {stable_mosaic.version = 11 : i64} {
  func.func @propagation_loss_kernel(%arg0: i32, %arg1: i32, %arg2: memref<1x32x16xf32, #tpu.memory_space<vmem>>, %arg3: memref<1x1x1x16x16xf32, #tpu.memory_space<vmem>>, %arg4: memref<4x16x16xbf16, #tpu.memory_space<vmem>>, %arg5: memref<2x16x16xf32, #tpu.memory_space<vmem>>, %arg6: memref<8x128xf32, #tpu.memory_space<vmem>>, %arg7: memref<8x128xf32, #tpu.memory_space<vmem>>) attributes {dimension_semantics = [#tpu.dimension_semantics<parallel>, #tpu.dimension_semantics<arbitrary>], iteration_bounds = array<i64: 1, 2>, scalar_prefetch = 0 : i64, scratch_operands = 1 : i64, tpu.core_type = #tpu.core_type<tc>, window_params = [{transform_indices = @transform_0, window_bounds = array<i64: 1, 32, 16>}, {transform_indices = @transform_1, window_bounds = array<i64: 1, 1, 1, 16, 16>}, {pipeline_mode = #tpu.pipeline_mode<synchronous>, transform_indices = @transform_2, window_bounds = array<i64: 4, 16, 16>}, {pipeline_mode = #tpu.pipeline_mode<synchronous>, transform_indices = @transform_3, window_bounds = array<i64: 2, 16, 16>}, {transform_indices = @transform_4, window_bounds = array<i64: 8, 128>}]} {
    %c0_i32 = arith.constant 0 : i32
    %0 = arith.cmpi eq, %arg1, %c0_i32 : i32
    %1 = arith.extui %0 : i1 to i32
    %c0_i32_0 = arith.constant 0 : i32
    %2 = arith.cmpi ne, %1, %c0_i32_0 : i32
    scf.if %2 {
      %cst_64 = arith.constant 0.000000e+00 : f32
      %137 = vector.broadcast %cst_64 : f32 to vector<8x128xf32>
      %c0_65 = arith.constant 0 : index
      %c0_66 = arith.constant 0 : index
      %138 = vector.load %arg7[%c0_65, %c0_66] : memref<8x128xf32, #tpu.memory_space<vmem>>, vector<8x128xf32>
      tpu.vector_store %arg7[%c0_65, %c0_66], %137 {strides = array<i32>} : memref<8x128xf32, #tpu.memory_space<vmem>>, vector<8x128xf32>,
    } else {
    }
    %c0 = arith.constant 0 : index
    %c0_1 = arith.constant 0 : index
    %c0_2 = arith.constant 0 : index
    %3 = vector.load %arg2[%c0, %c0_1, %c0_2] : memref<1x32x16xf32, #tpu.memory_space<vmem>>, vector<1x32x16xf32>
    %4 = vector.shape_cast %3 : vector<1x32x16xf32> to vector<32x16xf32>
    %c0_3 = arith.constant 0 : index
    %c0_4 = arith.constant 0 : index
    %c0_5 = arith.constant 0 : index
    %c0_6 = arith.constant 0 : index
    %c0_7 = arith.constant 0 : index
    %5 = vector.load %arg3[%c0_3, %c0_4, %c0_5, %c0_6, %c0_7] : memref<1x1x1x16x16xf32, #tpu.memory_space<vmem>>, vector<1x1x1x16x16xf32>
    %6 = vector.shape_cast %5 : vector<1x1x1x16x16xf32> to vector<16x16xf32>
    %c0_8 = arith.constant 0 : index
    %c0_9 = arith.constant 0 : index
    %c0_10 = arith.constant 0 : index
    %7 = vector.load %arg4[%c0_8, %c0_9, %c0_10] : memref<4x16x16xbf16, #tpu.memory_space<vmem>>, vector<1x16x16xbf16>
    %8 = vector.shape_cast %7 : vector<1x16x16xbf16> to vector<16x16xbf16>
    %c1 = arith.constant 1 : index
    %c0_11 = arith.constant 0 : index
    %c0_12 = arith.constant 0 : index
    %9 = vector.load %arg4[%c1, %c0_11, %c0_12] : memref<4x16x16xbf16, #tpu.memory_space<vmem>>, vector<1x16x16xbf16>
    %10 = vector.shape_cast %9 : vector<1x16x16xbf16> to vector<16x16xbf16>
    %c2 = arith.constant 2 : index
    %c0_13 = arith.constant 0 : index
    %c0_14 = arith.constant 0 : index
    %11 = vector.load %arg4[%c2, %c0_13, %c0_14] : memref<4x16x16xbf16, #tpu.memory_space<vmem>>, vector<1x16x16xbf16>
    %12 = vector.shape_cast %11 : vector<1x16x16xbf16> to vector<16x16xbf16>
    %c3 = arith.constant 3 : index
    %c0_15 = arith.constant 0 : index
    %c0_16 = arith.constant 0 : index
    %13 = vector.load %arg4[%c3, %c0_15, %c0_16] : memref<4x16x16xbf16, #tpu.memory_space<vmem>>, vector<1x16x16xbf16>
    %14 = vector.shape_cast %13 : vector<1x16x16xbf16> to vector<16x16xbf16>
    %c0_17 = arith.constant 0 : index
    %c0_18 = arith.constant 0 : index
    %c0_19 = arith.constant 0 : index
    %15 = vector.load %arg5[%c0_17, %c0_18, %c0_19] : memref<2x16x16xf32, #tpu.memory_space<vmem>>, vector<1x16x16xf32>
    %16 = vector.shape_cast %15 : vector<1x16x16xf32> to vector<16x16xf32>
    %c1_20 = arith.constant 1 : index
    %c0_21 = arith.constant 0 : index
    %c0_22 = arith.constant 0 : index
    %17 = vector.load %arg5[%c1_20, %c0_21, %c0_22] : memref<2x16x16xf32, #tpu.memory_space<vmem>>, vector<1x16x16xf32>
    %18 = vector.shape_cast %17 : vector<1x16x16xf32> to vector<16x16xf32>
    %19 = arith.truncf %4 : vector<32x16xf32> to vector<32x16xbf16>
    %20 = arith.extf %19 : vector<32x16xbf16> to vector<32x16xf32>
    %21 = arith.subf %4, %20 : vector<32x16xf32>
    %22 = arith.truncf %21 : vector<32x16xf32> to vector<32x16xbf16>
    %cst = arith.constant dense<0.000000e+00> : vector<32x16xf32>
    %23 = tpu.matmul %19, %8, %cst {dimension_numbers = #tpu.dot_dimension_numbers<[1], [0], [0], [1], [0, 0, 1, 1], [], []>} : vector<32x16xbf16>, vector<16x16xbf16>, vector<32x16xf32> -> vector<32x16xf32>
    %cst_23 = arith.constant dense<0.000000e+00> : vector<32x16xf32>
    %24 = tpu.matmul %19, %10, %cst_23 {dimension_numbers = #tpu.dot_dimension_numbers<[1], [0], [0], [1], [0, 0, 1, 1], [], []>} : vector<32x16xbf16>, vector<16x16xbf16>, vector<32x16xf32> -> vector<32x16xf32>
    %25 = arith.addf %23, %24 : vector<32x16xf32>
    %cst_24 = arith.constant dense<0.000000e+00> : vector<32x16xf32>
    %26 = tpu.matmul %22, %8, %cst_24 {dimension_numbers = #tpu.dot_dimension_numbers<[1], [0], [0], [1], [0, 0, 1, 1], [], []>} : vector<32x16xbf16>, vector<16x16xbf16>, vector<32x16xf32> -> vector<32x16xf32>
    %27 = arith.addf %25, %26 : vector<32x16xf32>
    %cst_25 = arith.constant dense<0.000000e+00> : vector<32x16xf32>
    %28 = tpu.matmul %19, %12, %cst_25 {dimension_numbers = #tpu.dot_dimension_numbers<[1], [0], [0], [1], [0, 0, 1, 1], [], []>} : vector<32x16xbf16>, vector<16x16xbf16>, vector<32x16xf32> -> vector<32x16xf32>
    %cst_26 = arith.constant dense<0.000000e+00> : vector<32x16xf32>
    %29 = tpu.matmul %19, %14, %cst_26 {dimension_numbers = #tpu.dot_dimension_numbers<[1], [0], [0], [1], [0, 0, 1, 1], [], []>} : vector<32x16xbf16>, vector<16x16xbf16>, vector<32x16xf32> -> vector<32x16xf32>
    %30 = arith.addf %28, %29 : vector<32x16xf32>
    %cst_27 = arith.constant dense<0.000000e+00> : vector<32x16xf32>
    %31 = tpu.matmul %22, %12, %cst_27 {dimension_numbers = #tpu.dot_dimension_numbers<[1], [0], [0], [1], [0, 0, 1, 1], [], []>} : vector<32x16xbf16>, vector<16x16xbf16>, vector<32x16xf32> -> vector<32x16xf32>
    %32 = arith.addf %30, %31 : vector<32x16xf32>
    %33 = vector.extract_strided_slice %27 {offsets = [0, 0], sizes = [16, 16], strides = [1, 1]} : vector<32x16xf32> to vector<16x16xf32>
    %34 = vector.extract_strided_slice %32 {offsets = [16, 0], sizes = [16, 16], strides = [1, 1]} : vector<32x16xf32> to vector<16x16xf32>
    %35 = arith.subf %33, %34 : vector<16x16xf32>
    %36 = vector.extract_strided_slice %32 {offsets = [0, 0], sizes = [16, 16], strides = [1, 1]} : vector<32x16xf32> to vector<16x16xf32>
    %37 = vector.extract_strided_slice %27 {offsets = [16, 0], sizes = [16, 16], strides = [1, 1]} : vector<32x16xf32> to vector<16x16xf32>
    %38 = arith.addf %36, %37 : vector<16x16xf32>
    %39 = arith.truncf %35 : vector<16x16xf32> to vector<16x16xbf16>
    %40 = arith.extf %39 : vector<16x16xbf16> to vector<16x16xf32>
    %41 = arith.subf %35, %40 : vector<16x16xf32>
    %42 = arith.truncf %41 : vector<16x16xf32> to vector<16x16xbf16>
    %43 = arith.truncf %38 : vector<16x16xf32> to vector<16x16xbf16>
    %44 = arith.extf %43 : vector<16x16xbf16> to vector<16x16xf32>
    %45 = arith.subf %38, %44 : vector<16x16xf32>
    %46 = arith.truncf %45 : vector<16x16xf32> to vector<16x16xbf16>
    %cst_28 = arith.constant dense<0.000000e+00> : vector<16x16xf32>
    %47 = tpu.matmul %8, %39, %cst_28 {dimension_numbers = #tpu.dot_dimension_numbers<[1], [0], [0], [1], [0, 0, 1, 1], [], []>} : vector<16x16xbf16>, vector<16x16xbf16>, vector<16x16xf32> -> vector<16x16xf32>
    %cst_29 = arith.constant dense<0.000000e+00> : vector<16x16xf32>
    %48 = tpu.matmul %8, %42, %cst_29 {dimension_numbers = #tpu.dot_dimension_numbers<[1], [0], [0], [1], [0, 0, 1, 1], [], []>} : vector<16x16xbf16>, vector<16x16xbf16>, vector<16x16xf32> -> vector<16x16xf32>
    %49 = arith.addf %47, %48 : vector<16x16xf32>
    %cst_30 = arith.constant dense<0.000000e+00> : vector<16x16xf32>
    %50 = tpu.matmul %10, %39, %cst_30 {dimension_numbers = #tpu.dot_dimension_numbers<[1], [0], [0], [1], [0, 0, 1, 1], [], []>} : vector<16x16xbf16>, vector<16x16xbf16>, vector<16x16xf32> -> vector<16x16xf32>
    %51 = arith.addf %49, %50 : vector<16x16xf32>
    %cst_31 = arith.constant dense<0.000000e+00> : vector<16x16xf32>
    %52 = tpu.matmul %12, %43, %cst_31 {dimension_numbers = #tpu.dot_dimension_numbers<[1], [0], [0], [1], [0, 0, 1, 1], [], []>} : vector<16x16xbf16>, vector<16x16xbf16>, vector<16x16xf32> -> vector<16x16xf32>
    %cst_32 = arith.constant dense<0.000000e+00> : vector<16x16xf32>
    %53 = tpu.matmul %12, %46, %cst_32 {dimension_numbers = #tpu.dot_dimension_numbers<[1], [0], [0], [1], [0, 0, 1, 1], [], []>} : vector<16x16xbf16>, vector<16x16xbf16>, vector<16x16xf32> -> vector<16x16xf32>
    %54 = arith.addf %52, %53 : vector<16x16xf32>
    %cst_33 = arith.constant dense<0.000000e+00> : vector<16x16xf32>
    %55 = tpu.matmul %14, %43, %cst_33 {dimension_numbers = #tpu.dot_dimension_numbers<[1], [0], [0], [1], [0, 0, 1, 1], [], []>} : vector<16x16xbf16>, vector<16x16xbf16>, vector<16x16xf32> -> vector<16x16xf32>
    %56 = arith.addf %54, %55 : vector<16x16xf32>
    %57 = arith.subf %51, %56 : vector<16x16xf32>
    %cst_34 = arith.constant dense<0.000000e+00> : vector<16x16xf32>
    %58 = tpu.matmul %8, %43, %cst_34 {dimension_numbers = #tpu.dot_dimension_numbers<[1], [0], [0], [1], [0, 0, 1, 1], [], []>} : vector<16x16xbf16>, vector<16x16xbf16>, vector<16x16xf32> -> vector<16x16xf32>
    %cst_35 = arith.constant dense<0.000000e+00> : vector<16x16xf32>
    %59 = tpu.matmul %8, %46, %cst_35 {dimension_numbers = #tpu.dot_dimension_numbers<[1], [0], [0], [1], [0, 0, 1, 1], [], []>} : vector<16x16xbf16>, vector<16x16xbf16>, vector<16x16xf32> -> vector<16x16xf32>
    %60 = arith.addf %58, %59 : vector<16x16xf32>
    %cst_36 = arith.constant dense<0.000000e+00> : vector<16x16xf32>
    %61 = tpu.matmul %10, %43, %cst_36 {dimension_numbers = #tpu.dot_dimension_numbers<[1], [0], [0], [1], [0, 0, 1, 1], [], []>} : vector<16x16xbf16>, vector<16x16xbf16>, vector<16x16xf32> -> vector<16x16xf32>
    %62 = arith.addf %60, %61 : vector<16x16xf32>
    %cst_37 = arith.constant dense<0.000000e+00> : vector<16x16xf32>
    %63 = tpu.matmul %12, %39, %cst_37 {dimension_numbers = #tpu.dot_dimension_numbers<[1], [0], [0], [1], [0, 0, 1, 1], [], []>} : vector<16x16xbf16>, vector<16x16xbf16>, vector<16x16xf32> -> vector<16x16xf32>
    %cst_38 = arith.constant dense<0.000000e+00> : vector<16x16xf32>
    %64 = tpu.matmul %12, %42, %cst_38 {dimension_numbers = #tpu.dot_dimension_numbers<[1], [0], [0], [1], [0, 0, 1, 1], [], []>} : vector<16x16xbf16>, vector<16x16xbf16>, vector<16x16xf32> -> vector<16x16xf32>
    %65 = arith.addf %63, %64 : vector<16x16xf32>
    %cst_39 = arith.constant dense<0.000000e+00> : vector<16x16xf32>
    %66 = tpu.matmul %14, %39, %cst_39 {dimension_numbers = #tpu.dot_dimension_numbers<[1], [0], [0], [1], [0, 0, 1, 1], [], []>} : vector<16x16xbf16>, vector<16x16xbf16>, vector<16x16xf32> -> vector<16x16xf32>
    %67 = arith.addf %65, %66 : vector<16x16xf32>
    %68 = arith.addf %62, %67 : vector<16x16xf32>
    %69 = arith.mulf %57, %16 : vector<16x16xf32>
    %70 = arith.mulf %68, %18 : vector<16x16xf32>
    %71 = arith.subf %69, %70 : vector<16x16xf32>
    %72 = arith.mulf %57, %18 : vector<16x16xf32>
    %73 = arith.mulf %68, %16 : vector<16x16xf32>
    %74 = arith.addf %72, %73 : vector<16x16xf32>
    %75 = arith.truncf %71 : vector<16x16xf32> to vector<16x16xbf16>
    %76 = arith.extf %75 : vector<16x16xbf16> to vector<16x16xf32>
    %77 = arith.subf %71, %76 : vector<16x16xf32>
    %78 = arith.truncf %77 : vector<16x16xf32> to vector<16x16xbf16>
    %79 = arith.truncf %74 : vector<16x16xf32> to vector<16x16xbf16>
    %80 = arith.extf %79 : vector<16x16xbf16> to vector<16x16xf32>
    %81 = arith.subf %74, %80 : vector<16x16xf32>
    %82 = arith.truncf %81 : vector<16x16xf32> to vector<16x16xbf16>
    %cst_40 = arith.constant dense<0.000000e+00> : vector<16x16xf32>
    %83 = tpu.matmul %8, %75, %cst_40 {dimension_numbers = #tpu.dot_dimension_numbers<[1], [0], [0], [1], [0, 0, 1, 1], [], []>} : vector<16x16xbf16>, vector<16x16xbf16>, vector<16x16xf32> -> vector<16x16xf32>
    %cst_41 = arith.constant dense<0.000000e+00> : vector<16x16xf32>
    %84 = tpu.matmul %8, %78, %cst_41 {dimension_numbers = #tpu.dot_dimension_numbers<[1], [0], [0], [1], [0, 0, 1, 1], [], []>} : vector<16x16xbf16>, vector<16x16xbf16>, vector<16x16xf32> -> vector<16x16xf32>
    %85 = arith.addf %83, %84 : vector<16x16xf32>
    %cst_42 = arith.constant dense<0.000000e+00> : vector<16x16xf32>
    %86 = tpu.matmul %10, %75, %cst_42 {dimension_numbers = #tpu.dot_dimension_numbers<[1], [0], [0], [1], [0, 0, 1, 1], [], []>} : vector<16x16xbf16>, vector<16x16xbf16>, vector<16x16xf32> -> vector<16x16xf32>
    %87 = arith.addf %85, %86 : vector<16x16xf32>
    %cst_43 = arith.constant dense<0.000000e+00> : vector<16x16xf32>
    %88 = tpu.matmul %12, %79, %cst_43 {dimension_numbers = #tpu.dot_dimension_numbers<[1], [0], [0], [1], [0, 0, 1, 1], [], []>} : vector<16x16xbf16>, vector<16x16xbf16>, vector<16x16xf32> -> vector<16x16xf32>
    %cst_44 = arith.constant dense<0.000000e+00> : vector<16x16xf32>
    %89 = tpu.matmul %12, %82, %cst_44 {dimension_numbers = #tpu.dot_dimension_numbers<[1], [0], [0], [1], [0, 0, 1, 1], [], []>} : vector<16x16xbf16>, vector<16x16xbf16>, vector<16x16xf32> -> vector<16x16xf32>
    %90 = arith.addf %88, %89 : vector<16x16xf32>
    %cst_45 = arith.constant dense<0.000000e+00> : vector<16x16xf32>
    %91 = tpu.matmul %14, %79, %cst_45 {dimension_numbers = #tpu.dot_dimension_numbers<[1], [0], [0], [1], [0, 0, 1, 1], [], []>} : vector<16x16xbf16>, vector<16x16xbf16>, vector<16x16xf32> -> vector<16x16xf32>
    %92 = arith.addf %90, %91 : vector<16x16xf32>
    %93 = arith.addf %87, %92 : vector<16x16xf32>
    %cst_46 = arith.constant dense<0.000000e+00> : vector<16x16xf32>
    %94 = tpu.matmul %8, %79, %cst_46 {dimension_numbers = #tpu.dot_dimension_numbers<[1], [0], [0], [1], [0, 0, 1, 1], [], []>} : vector<16x16xbf16>, vector<16x16xbf16>, vector<16x16xf32> -> vector<16x16xf32>
    %cst_47 = arith.constant dense<0.000000e+00> : vector<16x16xf32>
    %95 = tpu.matmul %8, %82, %cst_47 {dimension_numbers = #tpu.dot_dimension_numbers<[1], [0], [0], [1], [0, 0, 1, 1], [], []>} : vector<16x16xbf16>, vector<16x16xbf16>, vector<16x16xf32> -> vector<16x16xf32>
    %96 = arith.addf %94, %95 : vector<16x16xf32>
    %cst_48 = arith.constant dense<0.000000e+00> : vector<16x16xf32>
    %97 = tpu.matmul %10, %79, %cst_48 {dimension_numbers = #tpu.dot_dimension_numbers<[1], [0], [0], [1], [0, 0, 1, 1], [], []>} : vector<16x16xbf16>, vector<16x16xbf16>, vector<16x16xf32> -> vector<16x16xf32>
    %98 = arith.addf %96, %97 : vector<16x16xf32>
    %cst_49 = arith.constant dense<0.000000e+00> : vector<16x16xf32>
    %99 = tpu.matmul %12, %75, %cst_49 {dimension_numbers = #tpu.dot_dimension_numbers<[1], [0], [0], [1], [0, 0, 1, 1], [], []>} : vector<16x16xbf16>, vector<16x16xbf16>, vector<16x16xf32> -> vector<16x16xf32>
    %cst_50 = arith.constant dense<0.000000e+00> : vector<16x16xf32>
    %100 = tpu.matmul %12, %78, %cst_50 {dimension_numbers = #tpu.dot_dimension_numbers<[1], [0], [0], [1], [0, 0, 1, 1], [], []>} : vector<16x16xbf16>, vector<16x16xbf16>, vector<16x16xf32> -> vector<16x16xf32>
    %101 = arith.addf %99, %100 : vector<16x16xf32>
    %cst_51 = arith.constant dense<0.000000e+00> : vector<16x16xf32>
    %102 = tpu.matmul %14, %75, %cst_51 {dimension_numbers = #tpu.dot_dimension_numbers<[1], [0], [0], [1], [0, 0, 1, 1], [], []>} : vector<16x16xbf16>, vector<16x16xbf16>, vector<16x16xf32> -> vector<16x16xf32>
    %103 = arith.addf %101, %102 : vector<16x16xf32>
    %104 = arith.subf %98, %103 : vector<16x16xf32>
    %105 = arith.truncf %93 : vector<16x16xf32> to vector<16x16xbf16>
    %106 = arith.extf %105 : vector<16x16xbf16> to vector<16x16xf32>
    %107 = arith.subf %93, %106 : vector<16x16xf32>
    %108 = arith.truncf %107 : vector<16x16xf32> to vector<16x16xbf16>
    %109 = arith.truncf %104 : vector<16x16xf32> to vector<16x16xbf16>
    %110 = arith.extf %109 : vector<16x16xbf16> to vector<16x16xf32>
    %111 = arith.subf %104, %110 : vector<16x16xf32>
    %112 = arith.truncf %111 : vector<16x16xf32> to vector<16x16xbf16>
    %cst_52 = arith.constant dense<0.000000e+00> : vector<16x16xf32>
    %113 = tpu.matmul %105, %8, %cst_52 {dimension_numbers = #tpu.dot_dimension_numbers<[1], [0], [0], [1], [0, 0, 1, 1], [], []>} : vector<16x16xbf16>, vector<16x16xbf16>, vector<16x16xf32> -> vector<16x16xf32>
    %cst_53 = arith.constant dense<0.000000e+00> : vector<16x16xf32>
    %114 = tpu.matmul %105, %10, %cst_53 {dimension_numbers = #tpu.dot_dimension_numbers<[1], [0], [0], [1], [0, 0, 1, 1], [], []>} : vector<16x16xbf16>, vector<16x16xbf16>, vector<16x16xf32> -> vector<16x16xf32>
    %115 = arith.addf %113, %114 : vector<16x16xf32>
    %cst_54 = arith.constant dense<0.000000e+00> : vector<16x16xf32>
    %116 = tpu.matmul %108, %8, %cst_54 {dimension_numbers = #tpu.dot_dimension_numbers<[1], [0], [0], [1], [0, 0, 1, 1], [], []>} : vector<16x16xbf16>, vector<16x16xbf16>, vector<16x16xf32> -> vector<16x16xf32>
    %117 = arith.addf %115, %116 : vector<16x16xf32>
    %cst_55 = arith.constant dense<0.000000e+00> : vector<16x16xf32>
    %118 = tpu.matmul %109, %12, %cst_55 {dimension_numbers = #tpu.dot_dimension_numbers<[1], [0], [0], [1], [0, 0, 1, 1], [], []>} : vector<16x16xbf16>, vector<16x16xbf16>, vector<16x16xf32> -> vector<16x16xf32>
    %cst_56 = arith.constant dense<0.000000e+00> : vector<16x16xf32>
    %119 = tpu.matmul %109, %14, %cst_56 {dimension_numbers = #tpu.dot_dimension_numbers<[1], [0], [0], [1], [0, 0, 1, 1], [], []>} : vector<16x16xbf16>, vector<16x16xbf16>, vector<16x16xf32> -> vector<16x16xf32>
    %120 = arith.addf %118, %119 : vector<16x16xf32>
    %cst_57 = arith.constant dense<0.000000e+00> : vector<16x16xf32>
    %121 = tpu.matmul %112, %12, %cst_57 {dimension_numbers = #tpu.dot_dimension_numbers<[1], [0], [0], [1], [0, 0, 1, 1], [], []>} : vector<16x16xbf16>, vector<16x16xbf16>, vector<16x16xf32> -> vector<16x16xf32>
    %122 = arith.addf %120, %121 : vector<16x16xf32>
    %123 = arith.addf %117, %122 : vector<16x16xf32>
    %c0_58 = arith.constant 0 : index
    %c0_59 = arith.constant 0 : index
    %124 = vector.load %arg7[%c0_58, %c0_59] : memref<8x128xf32, #tpu.memory_space<vmem>>, vector<8x128xf32>
    %125 = arith.subf %123, %6 : vector<16x16xf32>
    %126 = math.absf %125 : vector<16x16xf32>
    %127 = vector.shape_cast %126 : vector<16x16xf32> to vector<1x16x16xf32>
    %cst_60 = arith.constant dense<0.000000e+00> : vector<1xf32>
    %128 = vector.multi_reduction <add>, %127, %cst_60 [1, 2] : vector<1x16x16xf32> to vector<1xf32>
    %129 = vector.shape_cast %128 : vector<1xf32> to vector<1x1x1xf32>
    %130 = vector.extract %129[0, 0, 0] : f32 from vector<1x1x1xf32>
    %131 = vector.broadcast %130 : f32 to vector<8x128xf32>
    %132 = arith.addf %124, %131 : vector<8x128xf32>
    %c0_61 = arith.constant 0 : index
    %c0_62 = arith.constant 0 : index
    %133 = vector.load %arg7[%c0_61, %c0_62] : memref<8x128xf32, #tpu.memory_space<vmem>>, vector<8x128xf32>
    tpu.vector_store %arg7[%c0_61, %c0_62], %132 {strides = array<i32>} : memref<8x128xf32, #tpu.memory_space<vmem>>, vector<8x128xf32>,
    %c1_i32 = arith.constant 1 : i32
    %134 = arith.cmpi eq, %arg1, %c1_i32 : i32
    %135 = arith.extui %134 : i1 to i32
    %c0_i32_63 = arith.constant 0 : i32
    %136 = arith.cmpi ne, %135, %c0_i32_63 : i32
    scf.if %136 {
      %c0_64 = arith.constant 0 : index
      %c0_65 = arith.constant 0 : index
      %137 = vector.load %arg7[%c0_64, %c0_65] : memref<8x128xf32, #tpu.memory_space<vmem>>, vector<8x128xf32>
      %c0_66 = arith.constant 0 : index
      %c0_67 = arith.constant 0 : index
      %138 = vector.load %arg6[%c0_66, %c0_67] : memref<8x128xf32, #tpu.memory_space<vmem>>, vector<8x128xf32>
      tpu.vector_store %arg6[%c0_66, %c0_67], %137 {strides = array<i32>} : memref<8x128xf32, #tpu.memory_space<vmem>>, vector<8x128xf32>,
    } else {
    }
    return
  }
  func.func @transform_0(%arg0: i32, %arg1: i32) -> (i32, i32, i32) {
    %c2_i32 = arith.constant 2 : i32
    %0 = arith.muli %arg0, %c2_i32 : i32
    %1 = arith.addi %0, %arg1 : i32
    %c0_i32 = arith.constant 0 : i32
    %c0_i32_0 = arith.constant 0 : i32
    %c0_i32_1 = arith.constant 0 : i32
    return %1, %c0_i32, %c0_i32_0 : i32, i32, i32
  }
  func.func @transform_1(%arg0: i32, %arg1: i32) -> (i32, i32, i32, i32, i32) {
    %c2_i32 = arith.constant 2 : i32
    %0 = arith.muli %arg0, %c2_i32 : i32
    %1 = arith.addi %0, %arg1 : i32
    %c0_i32 = arith.constant 0 : i32
    %c0_i32_0 = arith.constant 0 : i32
    %c0_i32_1 = arith.constant 0 : i32
    %c0_i32_2 = arith.constant 0 : i32
    %c0_i32_3 = arith.constant 0 : i32
    return %1, %c0_i32, %c0_i32_0, %c0_i32_1, %c0_i32_2 : i32, i32, i32, i32, i32
  }
  func.func @transform_2(%arg0: i32, %arg1: i32) -> (i32, i32, i32) {
    %c0_i32 = arith.constant 0 : i32
    %c0_i32_0 = arith.constant 0 : i32
    %c0_i32_1 = arith.constant 0 : i32
    %c0_i32_2 = arith.constant 0 : i32
    return %c0_i32, %c0_i32_0, %c0_i32_1 : i32, i32, i32
  }
  func.func @transform_3(%arg0: i32, %arg1: i32) -> (i32, i32, i32) {
    %c0_i32 = arith.constant 0 : i32
    %c0_i32_0 = arith.constant 0 : i32
    %c0_i32_1 = arith.constant 0 : i32
    %c0_i32_2 = arith.constant 0 : i32
    return %c0_i32, %c0_i32_0, %c0_i32_1 : i32, i32, i32
  }
  func.func @transform_4(%arg0: i32, %arg1: i32) -> (i32, i32) {
    %c0_i32 = arith.constant 0 : i32
    %c0_i32_0 = arith.constant 0 : i32
    return %arg0, %c0_i32 : i32, i32
  }
}

module attributes {stable_mosaic.version = 11 : i64} {
  func.func @propagation_loss_kernel(%arg0: i32, %arg1: i32, %arg2: memref<1x32x16xf32, #tpu.memory_space<vmem>>, %arg3: memref<1x1x1x16x16xf32, #tpu.memory_space<vmem>>, %arg4: memref<4x16x16xbf16, #tpu.memory_space<vmem>>, %arg5: memref<2x16x16xf32, #tpu.memory_space<vmem>>, %arg6: memref<8x128xf32, #tpu.memory_space<vmem>>, %arg7: memref<8x128xf32, #tpu.memory_space<vmem>>) attributes {dimension_semantics = [#tpu.dimension_semantics<parallel>, #tpu.dimension_semantics<arbitrary>], iteration_bounds = array<i64: 1, 2>, scalar_prefetch = 0 : i64, scratch_operands = 1 : i64, tpu.core_type = #tpu.core_type<tc>, window_params = [{transform_indices = @transform_0, window_bounds = array<i64: 1, 32, 16>}, {transform_indices = @transform_1, window_bounds = array<i64: 1, 1, 1, 16, 16>}, {pipeline_mode = #tpu.pipeline_mode<synchronous>, transform_indices = @transform_2, window_bounds = array<i64: 4, 16, 16>}, {pipeline_mode = #tpu.pipeline_mode<synchronous>, transform_indices = @transform_3, window_bounds = array<i64: 2, 16, 16>}, {transform_indices = @transform_4, window_bounds = array<i64: 8, 128>}]} {
    %c0_i32 = arith.constant 0 : i32
    %0 = arith.cmpi eq, %arg1, %c0_i32 : i32
    %1 = arith.extui %0 : i1 to i32
    %c0_i32_0 = arith.constant 0 : i32
    %2 = arith.cmpi ne, %1, %c0_i32_0 : i32
    scf.if %2 {
      %cst_64 = arith.constant 0.000000e+00 : f32
      %137 = vector.broadcast %cst_64 : f32 to vector<8x128xf32>
      %c0_65 = arith.constant 0 : index
      %c0_66 = arith.constant 0 : index
      %138 = vector.load %arg7[%c0_65, %c0_66] : memref<8x128xf32, #tpu.memory_space<vmem>>, vector<8x128xf32>
      tpu.vector_store %arg7[%c0_65, %c0_66], %137 {strides = array<i32>} : memref<8x128xf32, #tpu.memory_space<vmem>>, vector<8x128xf32>,
    } else {
    }
    %c0 = arith.constant 0 : index
    %c0_1 = arith.constant 0 : index
    %c0_2 = arith.constant 0 : index
    %3 = vector.load %arg2[%c0, %c0_1, %c0_2] : memref<1x32x16xf32, #tpu.memory_space<vmem>>, vector<1x32x16xf32>
    %4 = vector.shape_cast %3 : vector<1x32x16xf32> to vector<32x16xf32>
    %c0_3 = arith.constant 0 : index
    %c0_4 = arith.constant 0 : index
    %c0_5 = arith.constant 0 : index
    %c0_6 = arith.constant 0 : index
    %c0_7 = arith.constant 0 : index
    %5 = vector.load %arg3[%c0_3, %c0_4, %c0_5, %c0_6, %c0_7] : memref<1x1x1x16x16xf32, #tpu.memory_space<vmem>>, vector<1x1x1x16x16xf32>
    %6 = vector.shape_cast %5 : vector<1x1x1x16x16xf32> to vector<16x16xf32>
    %c0_8 = arith.constant 0 : index
    %c0_9 = arith.constant 0 : index
    %c0_10 = arith.constant 0 : index
    %7 = vector.load %arg4[%c0_8, %c0_9, %c0_10] : memref<4x16x16xbf16, #tpu.memory_space<vmem>>, vector<1x16x16xbf16>
    %8 = vector.shape_cast %7 : vector<1x16x16xbf16> to vector<16x16xbf16>
    %c1 = arith.constant 1 : index
    %c0_11 = arith.constant 0 : index
    %c0_12 = arith.constant 0 : index
    %9 = vector.load %arg4[%c1, %c0_11, %c0_12] : memref<4x16x16xbf16, #tpu.memory_space<vmem>>, vector<1x16x16xbf16>
    %10 = vector.shape_cast %9 : vector<1x16x16xbf16> to vector<16x16xbf16>
    %c2 = arith.constant 2 : index
    %c0_13 = arith.constant 0 : index
    %c0_14 = arith.constant 0 : index
    %11 = vector.load %arg4[%c2, %c0_13, %c0_14] : memref<4x16x16xbf16, #tpu.memory_space<vmem>>, vector<1x16x16xbf16>
    %12 = vector.shape_cast %11 : vector<1x16x16xbf16> to vector<16x16xbf16>
    %c3 = arith.constant 3 : index
    %c0_15 = arith.constant 0 : index
    %c0_16 = arith.constant 0 : index
    %13 = vector.load %arg4[%c3, %c0_15, %c0_16] : memref<4x16x16xbf16, #tpu.memory_space<vmem>>, vector<1x16x16xbf16>
    %14 = vector.shape_cast %13 : vector<1x16x16xbf16> to vector<16x16xbf16>
    %c0_17 = arith.constant 0 : index
    %c0_18 = arith.constant 0 : index
    %c0_19 = arith.constant 0 : index
    %15 = vector.load %arg5[%c0_17, %c0_18, %c0_19] : memref<2x16x16xf32, #tpu.memory_space<vmem>>, vector<1x16x16xf32>
    %16 = vector.shape_cast %15 : vector<1x16x16xf32> to vector<16x16xf32>
    %c1_20 = arith.constant 1 : index
    %c0_21 = arith.constant 0 : index
    %c0_22 = arith.constant 0 : index
    %17 = vector.load %arg5[%c1_20, %c0_21, %c0_22] : memref<2x16x16xf32, #tpu.memory_space<vmem>>, vector<1x16x16xf32>
    %18 = vector.shape_cast %17 : vector<1x16x16xf32> to vector<16x16xf32>
    %19 = arith.truncf %4 : vector<32x16xf32> to vector<32x16xbf16>
    %20 = arith.extf %19 : vector<32x16xbf16> to vector<32x16xf32>
    %21 = arith.subf %4, %20 : vector<32x16xf32>
    %22 = arith.truncf %21 : vector<32x16xf32> to vector<32x16xbf16>
    %cst = arith.constant dense<0.000000e+00> : vector<32x16xf32>
    %23 = tpu.matmul %19, %8, %cst {dimension_numbers = #tpu.dot_dimension_numbers<[1], [0], [0], [1], [0, 0, 1, 1], [], []>} : vector<32x16xbf16>, vector<16x16xbf16>, vector<32x16xf32> -> vector<32x16xf32>
    %cst_23 = arith.constant dense<0.000000e+00> : vector<32x16xf32>
    %24 = tpu.matmul %19, %10, %cst_23 {dimension_numbers = #tpu.dot_dimension_numbers<[1], [0], [0], [1], [0, 0, 1, 1], [], []>} : vector<32x16xbf16>, vector<16x16xbf16>, vector<32x16xf32> -> vector<32x16xf32>
    %25 = arith.addf %23, %24 : vector<32x16xf32>
    %cst_24 = arith.constant dense<0.000000e+00> : vector<32x16xf32>
    %26 = tpu.matmul %22, %8, %cst_24 {dimension_numbers = #tpu.dot_dimension_numbers<[1], [0], [0], [1], [0, 0, 1, 1], [], []>} : vector<32x16xbf16>, vector<16x16xbf16>, vector<32x16xf32> -> vector<32x16xf32>
    %27 = arith.addf %25, %26 : vector<32x16xf32>
    %cst_25 = arith.constant dense<0.000000e+00> : vector<32x16xf32>
    %28 = tpu.matmul %19, %12, %cst_25 {dimension_numbers = #tpu.dot_dimension_numbers<[1], [0], [0], [1], [0, 0, 1, 1], [], []>} : vector<32x16xbf16>, vector<16x16xbf16>, vector<32x16xf32> -> vector<32x16xf32>
    %cst_26 = arith.constant dense<0.000000e+00> : vector<32x16xf32>
    %29 = tpu.matmul %19, %14, %cst_26 {dimension_numbers = #tpu.dot_dimension_numbers<[1], [0], [0], [1], [0, 0, 1, 1], [], []>} : vector<32x16xbf16>, vector<16x16xbf16>, vector<32x16xf32> -> vector<32x16xf32>
    %30 = arith.addf %28, %29 : vector<32x16xf32>
    %cst_27 = arith.constant dense<0.000000e+00> : vector<32x16xf32>
    %31 = tpu.matmul %22, %12, %cst_27 {dimension_numbers = #tpu.dot_dimension_numbers<[1], [0], [0], [1], [0, 0, 1, 1], [], []>} : vector<32x16xbf16>, vector<16x16xbf16>, vector<32x16xf32> -> vector<32x16xf32>
    %32 = arith.addf %30, %31 : vector<32x16xf32>
    %33 = vector.extract_strided_slice %27 {offsets = [0, 0], sizes = [16, 16], strides = [1, 1]} : vector<32x16xf32> to vector<16x16xf32>
    %34 = vector.extract_strided_slice %32 {offsets = [16, 0], sizes = [16, 16], strides = [1, 1]} : vector<32x16xf32> to vector<16x16xf32>
    %35 = arith.subf %33, %34 : vector<16x16xf32>
    %36 = vector.extract_strided_slice %32 {offsets = [0, 0], sizes = [16, 16], strides = [1, 1]} : vector<32x16xf32> to vector<16x16xf32>
    %37 = vector.extract_strided_slice %27 {offsets = [16, 0], sizes = [16, 16], strides = [1, 1]} : vector<32x16xf32> to vector<16x16xf32>
    %38 = arith.addf %36, %37 : vector<16x16xf32>
    %39 = arith.truncf %35 : vector<16x16xf32> to vector<16x16xbf16>
    %40 = arith.extf %39 : vector<16x16xbf16> to vector<16x16xf32>
    %41 = arith.subf %35, %40 : vector<16x16xf32>
    %42 = arith.truncf %41 : vector<16x16xf32> to vector<16x16xbf16>
    %43 = arith.truncf %38 : vector<16x16xf32> to vector<16x16xbf16>
    %44 = arith.extf %43 : vector<16x16xbf16> to vector<16x16xf32>
    %45 = arith.subf %38, %44 : vector<16x16xf32>
    %46 = arith.truncf %45 : vector<16x16xf32> to vector<16x16xbf16>
    %cst_28 = arith.constant dense<0.000000e+00> : vector<16x16xf32>
    %47 = tpu.matmul %8, %39, %cst_28 {dimension_numbers = #tpu.dot_dimension_numbers<[1], [0], [0], [1], [0, 0, 1, 1], [], []>} : vector<16x16xbf16>, vector<16x16xbf16>, vector<16x16xf32> -> vector<16x16xf32>
    %cst_29 = arith.constant dense<0.000000e+00> : vector<16x16xf32>
    %48 = tpu.matmul %8, %42, %cst_29 {dimension_numbers = #tpu.dot_dimension_numbers<[1], [0], [0], [1], [0, 0, 1, 1], [], []>} : vector<16x16xbf16>, vector<16x16xbf16>, vector<16x16xf32> -> vector<16x16xf32>
    %49 = arith.addf %47, %48 : vector<16x16xf32>
    %cst_30 = arith.constant dense<0.000000e+00> : vector<16x16xf32>
    %50 = tpu.matmul %10, %39, %cst_30 {dimension_numbers = #tpu.dot_dimension_numbers<[1], [0], [0], [1], [0, 0, 1, 1], [], []>} : vector<16x16xbf16>, vector<16x16xbf16>, vector<16x16xf32> -> vector<16x16xf32>
    %51 = arith.addf %49, %50 : vector<16x16xf32>
    %cst_31 = arith.constant dense<0.000000e+00> : vector<16x16xf32>
    %52 = tpu.matmul %12, %43, %cst_31 {dimension_numbers = #tpu.dot_dimension_numbers<[1], [0], [0], [1], [0, 0, 1, 1], [], []>} : vector<16x16xbf16>, vector<16x16xbf16>, vector<16x16xf32> -> vector<16x16xf32>
    %cst_32 = arith.constant dense<0.000000e+00> : vector<16x16xf32>
    %53 = tpu.matmul %12, %46, %cst_32 {dimension_numbers = #tpu.dot_dimension_numbers<[1], [0], [0], [1], [0, 0, 1, 1], [], []>} : vector<16x16xbf16>, vector<16x16xbf16>, vector<16x16xf32> -> vector<16x16xf32>
    %54 = arith.addf %52, %53 : vector<16x16xf32>
    %cst_33 = arith.constant dense<0.000000e+00> : vector<16x16xf32>
    %55 = tpu.matmul %14, %43, %cst_33 {dimension_numbers = #tpu.dot_dimension_numbers<[1], [0], [0], [1], [0, 0, 1, 1], [], []>} : vector<16x16xbf16>, vector<16x16xbf16>, vector<16x16xf32> -> vector<16x16xf32>
    %56 = arith.addf %54, %55 : vector<16x16xf32>
    %57 = arith.subf %51, %56 : vector<16x16xf32>
    %cst_34 = arith.constant dense<0.000000e+00> : vector<16x16xf32>
    %58 = tpu.matmul %8, %43, %cst_34 {dimension_numbers = #tpu.dot_dimension_numbers<[1], [0], [0], [1], [0, 0, 1, 1], [], []>} : vector<16x16xbf16>, vector<16x16xbf16>, vector<16x16xf32> -> vector<16x16xf32>
    %cst_35 = arith.constant dense<0.000000e+00> : vector<16x16xf32>
    %59 = tpu.matmul %8, %46, %cst_35 {dimension_numbers = #tpu.dot_dimension_numbers<[1], [0], [0], [1], [0, 0, 1, 1], [], []>} : vector<16x16xbf16>, vector<16x16xbf16>, vector<16x16xf32> -> vector<16x16xf32>
    %60 = arith.addf %58, %59 : vector<16x16xf32>
    %cst_36 = arith.constant dense<0.000000e+00> : vector<16x16xf32>
    %61 = tpu.matmul %10, %43, %cst_36 {dimension_numbers = #tpu.dot_dimension_numbers<[1], [0], [0], [1], [0, 0, 1, 1], [], []>} : vector<16x16xbf16>, vector<16x16xbf16>, vector<16x16xf32> -> vector<16x16xf32>
    %62 = arith.addf %60, %61 : vector<16x16xf32>
    %cst_37 = arith.constant dense<0.000000e+00> : vector<16x16xf32>
    %63 = tpu.matmul %12, %39, %cst_37 {dimension_numbers = #tpu.dot_dimension_numbers<[1], [0], [0], [1], [0, 0, 1, 1], [], []>} : vector<16x16xbf16>, vector<16x16xbf16>, vector<16x16xf32> -> vector<16x16xf32>
    %cst_38 = arith.constant dense<0.000000e+00> : vector<16x16xf32>
    %64 = tpu.matmul %12, %42, %cst_38 {dimension_numbers = #tpu.dot_dimension_numbers<[1], [0], [0], [1], [0, 0, 1, 1], [], []>} : vector<16x16xbf16>, vector<16x16xbf16>, vector<16x16xf32> -> vector<16x16xf32>
    %65 = arith.addf %63, %64 : vector<16x16xf32>
    %cst_39 = arith.constant dense<0.000000e+00> : vector<16x16xf32>
    %66 = tpu.matmul %14, %39, %cst_39 {dimension_numbers = #tpu.dot_dimension_numbers<[1], [0], [0], [1], [0, 0, 1, 1], [], []>} : vector<16x16xbf16>, vector<16x16xbf16>, vector<16x16xf32> -> vector<16x16xf32>
    %67 = arith.addf %65, %66 : vector<16x16xf32>
    %68 = arith.addf %62, %67 : vector<16x16xf32>
    %69 = arith.mulf %57, %16 : vector<16x16xf32>
    %70 = arith.mulf %68, %18 : vector<16x16xf32>
    %71 = arith.subf %69, %70 : vector<16x16xf32>
    %72 = arith.mulf %57, %18 : vector<16x16xf32>
    %73 = arith.mulf %68, %16 : vector<16x16xf32>
    %74 = arith.addf %72, %73 : vector<16x16xf32>
    %75 = arith.truncf %71 : vector<16x16xf32> to vector<16x16xbf16>
    %76 = arith.extf %75 : vector<16x16xbf16> to vector<16x16xf32>
    %77 = arith.subf %71, %76 : vector<16x16xf32>
    %78 = arith.truncf %77 : vector<16x16xf32> to vector<16x16xbf16>
    %79 = arith.truncf %74 : vector<16x16xf32> to vector<16x16xbf16>
    %80 = arith.extf %79 : vector<16x16xbf16> to vector<16x16xf32>
    %81 = arith.subf %74, %80 : vector<16x16xf32>
    %82 = arith.truncf %81 : vector<16x16xf32> to vector<16x16xbf16>
    %cst_40 = arith.constant dense<0.000000e+00> : vector<16x16xf32>
    %83 = tpu.matmul %8, %75, %cst_40 {dimension_numbers = #tpu.dot_dimension_numbers<[1], [0], [0], [1], [0, 0, 1, 1], [], []>} : vector<16x16xbf16>, vector<16x16xbf16>, vector<16x16xf32> -> vector<16x16xf32>
    %cst_41 = arith.constant dense<0.000000e+00> : vector<16x16xf32>
    %84 = tpu.matmul %8, %78, %cst_41 {dimension_numbers = #tpu.dot_dimension_numbers<[1], [0], [0], [1], [0, 0, 1, 1], [], []>} : vector<16x16xbf16>, vector<16x16xbf16>, vector<16x16xf32> -> vector<16x16xf32>
    %85 = arith.addf %83, %84 : vector<16x16xf32>
    %cst_42 = arith.constant dense<0.000000e+00> : vector<16x16xf32>
    %86 = tpu.matmul %10, %75, %cst_42 {dimension_numbers = #tpu.dot_dimension_numbers<[1], [0], [0], [1], [0, 0, 1, 1], [], []>} : vector<16x16xbf16>, vector<16x16xbf16>, vector<16x16xf32> -> vector<16x16xf32>
    %87 = arith.addf %85, %86 : vector<16x16xf32>
    %cst_43 = arith.constant dense<0.000000e+00> : vector<16x16xf32>
    %88 = tpu.matmul %12, %79, %cst_43 {dimension_numbers = #tpu.dot_dimension_numbers<[1], [0], [0], [1], [0, 0, 1, 1], [], []>} : vector<16x16xbf16>, vector<16x16xbf16>, vector<16x16xf32> -> vector<16x16xf32>
    %cst_44 = arith.constant dense<0.000000e+00> : vector<16x16xf32>
    %89 = tpu.matmul %12, %82, %cst_44 {dimension_numbers = #tpu.dot_dimension_numbers<[1], [0], [0], [1], [0, 0, 1, 1], [], []>} : vector<16x16xbf16>, vector<16x16xbf16>, vector<16x16xf32> -> vector<16x16xf32>
    %90 = arith.addf %88, %89 : vector<16x16xf32>
    %cst_45 = arith.constant dense<0.000000e+00> : vector<16x16xf32>
    %91 = tpu.matmul %14, %79, %cst_45 {dimension_numbers = #tpu.dot_dimension_numbers<[1], [0], [0], [1], [0, 0, 1, 1], [], []>} : vector<16x16xbf16>, vector<16x16xbf16>, vector<16x16xf32> -> vector<16x16xf32>
    %92 = arith.addf %90, %91 : vector<16x16xf32>
    %93 = arith.addf %87, %92 : vector<16x16xf32>
    %cst_46 = arith.constant dense<0.000000e+00> : vector<16x16xf32>
    %94 = tpu.matmul %8, %79, %cst_46 {dimension_numbers = #tpu.dot_dimension_numbers<[1], [0], [0], [1], [0, 0, 1, 1], [], []>} : vector<16x16xbf16>, vector<16x16xbf16>, vector<16x16xf32> -> vector<16x16xf32>
    %cst_47 = arith.constant dense<0.000000e+00> : vector<16x16xf32>
    %95 = tpu.matmul %8, %82, %cst_47 {dimension_numbers = #tpu.dot_dimension_numbers<[1], [0], [0], [1], [0, 0, 1, 1], [], []>} : vector<16x16xbf16>, vector<16x16xbf16>, vector<16x16xf32> -> vector<16x16xf32>
    %96 = arith.addf %94, %95 : vector<16x16xf32>
    %cst_48 = arith.constant dense<0.000000e+00> : vector<16x16xf32>
    %97 = tpu.matmul %10, %79, %cst_48 {dimension_numbers = #tpu.dot_dimension_numbers<[1], [0], [0], [1], [0, 0, 1, 1], [], []>} : vector<16x16xbf16>, vector<16x16xbf16>, vector<16x16xf32> -> vector<16x16xf32>
    %98 = arith.addf %96, %97 : vector<16x16xf32>
    %cst_49 = arith.constant dense<0.000000e+00> : vector<16x16xf32>
    %99 = tpu.matmul %12, %75, %cst_49 {dimension_numbers = #tpu.dot_dimension_numbers<[1], [0], [0], [1], [0, 0, 1, 1], [], []>} : vector<16x16xbf16>, vector<16x16xbf16>, vector<16x16xf32> -> vector<16x16xf32>
    %cst_50 = arith.constant dense<0.000000e+00> : vector<16x16xf32>
    %100 = tpu.matmul %12, %78, %cst_50 {dimension_numbers = #tpu.dot_dimension_numbers<[1], [0], [0], [1], [0, 0, 1, 1], [], []>} : vector<16x16xbf16>, vector<16x16xbf16>, vector<16x16xf32> -> vector<16x16xf32>
    %101 = arith.addf %99, %100 : vector<16x16xf32>
    %cst_51 = arith.constant dense<0.000000e+00> : vector<16x16xf32>
    %102 = tpu.matmul %14, %75, %cst_51 {dimension_numbers = #tpu.dot_dimension_numbers<[1], [0], [0], [1], [0, 0, 1, 1], [], []>} : vector<16x16xbf16>, vector<16x16xbf16>, vector<16x16xf32> -> vector<16x16xf32>
    %103 = arith.addf %101, %102 : vector<16x16xf32>
    %104 = arith.subf %98, %103 : vector<16x16xf32>
    %105 = arith.truncf %93 : vector<16x16xf32> to vector<16x16xbf16>
    %106 = arith.extf %105 : vector<16x16xbf16> to vector<16x16xf32>
    %107 = arith.subf %93, %106 : vector<16x16xf32>
    %108 = arith.truncf %107 : vector<16x16xf32> to vector<16x16xbf16>
    %109 = arith.truncf %104 : vector<16x16xf32> to vector<16x16xbf16>
    %110 = arith.extf %109 : vector<16x16xbf16> to vector<16x16xf32>
    %111 = arith.subf %104, %110 : vector<16x16xf32>
    %112 = arith.truncf %111 : vector<16x16xf32> to vector<16x16xbf16>
    %cst_52 = arith.constant dense<0.000000e+00> : vector<16x16xf32>
    %113 = tpu.matmul %105, %8, %cst_52 {dimension_numbers = #tpu.dot_dimension_numbers<[1], [0], [0], [1], [0, 0, 1, 1], [], []>} : vector<16x16xbf16>, vector<16x16xbf16>, vector<16x16xf32> -> vector<16x16xf32>
    %cst_53 = arith.constant dense<0.000000e+00> : vector<16x16xf32>
    %114 = tpu.matmul %105, %10, %cst_53 {dimension_numbers = #tpu.dot_dimension_numbers<[1], [0], [0], [1], [0, 0, 1, 1], [], []>} : vector<16x16xbf16>, vector<16x16xbf16>, vector<16x16xf32> -> vector<16x16xf32>
    %115 = arith.addf %113, %114 : vector<16x16xf32>
    %cst_54 = arith.constant dense<0.000000e+00> : vector<16x16xf32>
    %116 = tpu.matmul %108, %8, %cst_54 {dimension_numbers = #tpu.dot_dimension_numbers<[1], [0], [0], [1], [0, 0, 1, 1], [], []>} : vector<16x16xbf16>, vector<16x16xbf16>, vector<16x16xf32> -> vector<16x16xf32>
    %117 = arith.addf %115, %116 : vector<16x16xf32>
    %cst_55 = arith.constant dense<0.000000e+00> : vector<16x16xf32>
    %118 = tpu.matmul %109, %12, %cst_55 {dimension_numbers = #tpu.dot_dimension_numbers<[1], [0], [0], [1], [0, 0, 1, 1], [], []>} : vector<16x16xbf16>, vector<16x16xbf16>, vector<16x16xf32> -> vector<16x16xf32>
    %cst_56 = arith.constant dense<0.000000e+00> : vector<16x16xf32>
    %119 = tpu.matmul %109, %14, %cst_56 {dimension_numbers = #tpu.dot_dimension_numbers<[1], [0], [0], [1], [0, 0, 1, 1], [], []>} : vector<16x16xbf16>, vector<16x16xbf16>, vector<16x16xf32> -> vector<16x16xf32>
    %120 = arith.addf %118, %119 : vector<16x16xf32>
    %cst_57 = arith.constant dense<0.000000e+00> : vector<16x16xf32>
    %121 = tpu.matmul %112, %12, %cst_57 {dimension_numbers = #tpu.dot_dimension_numbers<[1], [0], [0], [1], [0, 0, 1, 1], [], []>} : vector<16x16xbf16>, vector<16x16xbf16>, vector<16x16xf32> -> vector<16x16xf32>
    %122 = arith.addf %120, %121 : vector<16x16xf32>
    %123 = arith.addf %117, %122 : vector<16x16xf32>
    %c0_58 = arith.constant 0 : index
    %c0_59 = arith.constant 0 : index
    %124 = vector.load %arg7[%c0_58, %c0_59] : memref<8x128xf32, #tpu.memory_space<vmem>>, vector<8x128xf32>
    %125 = arith.subf %123, %6 : vector<16x16xf32>
    %126 = math.absf %125 : vector<16x16xf32>
    %127 = vector.shape_cast %126 : vector<16x16xf32> to vector<1x16x16xf32>
    %cst_60 = arith.constant dense<0.000000e+00> : vector<1xf32>
    %128 = vector.multi_reduction <add>, %127, %cst_60 [1, 2] : vector<1x16x16xf32> to vector<1xf32>
    %129 = vector.shape_cast %128 : vector<1xf32> to vector<1x1x1xf32>
    %130 = vector.extract %129[0, 0, 0] : f32 from vector<1x1x1xf32>
    %131 = vector.broadcast %130 : f32 to vector<8x128xf32>
    %132 = arith.addf %124, %131 : vector<8x128xf32>
    %c0_61 = arith.constant 0 : index
    %c0_62 = arith.constant 0 : index
    %133 = vector.load %arg7[%c0_61, %c0_62] : memref<8x128xf32, #tpu.memory_space<vmem>>, vector<8x128xf32>
    tpu.vector_store %arg7[%c0_61, %c0_62], %132 {strides = array<i32>} : memref<8x128xf32, #tpu.memory_space<vmem>>, vector<8x128xf32>,
    %c1_i32 = arith.constant 1 : i32
    %134 = arith.cmpi eq, %arg1, %c1_i32 : i32
    %135 = arith.extui %134 : i1 to i32
    %c0_i32_63 = arith.constant 0 : i32
    %136 = arith.cmpi ne, %135, %c0_i32_63 : i32
    scf.if %136 {
      %c0_64 = arith.constant 0 : index
      %c0_65 = arith.constant 0 : index
      %137 = vector.load %arg7[%c0_64, %c0_65] : memref<8x128xf32, #tpu.memory_space<vmem>>, vector<8x128xf32>
      %c0_66 = arith.constant 0 : index
      %c0_67 = arith.constant 0 : index
      %138 = vector.load %arg6[%c0_66, %c0_67] : memref<8x128xf32, #tpu.memory_space<vmem>>, vector<8x128xf32>
      tpu.vector_store %arg6[%c0_66, %c0_67], %137 {strides = array<i32>} : memref<8x128xf32, #tpu.memory_space<vmem>>, vector<8x128xf32>,
    } else {
    }
    return
  }
  func.func @transform_0(%arg0: i32, %arg1: i32) -> (i32, i32, i32) {
    %c2_i32 = arith.constant 2 : i32
    %0 = arith.muli %arg0, %c2_i32 : i32
    %1 = arith.addi %0, %arg1 : i32
    %c0_i32 = arith.constant 0 : i32
    %c0_i32_0 = arith.constant 0 : i32
    %c0_i32_1 = arith.constant 0 : i32
    return %1, %c0_i32, %c0_i32_0 : i32, i32, i32
  }
  func.func @transform_1(%arg0: i32, %arg1: i32) -> (i32, i32, i32, i32, i32) {
    %c2_i32 = arith.constant 2 : i32
    %0 = arith.muli %arg0, %c2_i32 : i32
    %1 = arith.addi %0, %arg1 : i32
    %c0_i32 = arith.constant 0 : i32
    %c0_i32_0 = arith.constant 0 : i32
    %c0_i32_1 = arith.constant 0 : i32
    %c0_i32_2 = arith.constant 0 : i32
    %c0_i32_3 = arith.constant 0 : i32
    return %1, %c0_i32, %c0_i32_0, %c0_i32_1, %c0_i32_2 : i32, i32, i32, i32, i32
  }
  func.func @transform_2(%arg0: i32, %arg1: i32) -> (i32, i32, i32) {
    %c0_i32 = arith.constant 0 : i32
    %c0_i32_0 = arith.constant 0 : i32
    %c0_i32_1 = arith.constant 0 : i32
    %c0_i32_2 = arith.constant 0 : i32
    return %c0_i32, %c0_i32_0, %c0_i32_1 : i32, i32, i32
  }
  func.func @transform_3(%arg0: i32, %arg1: i32) -> (i32, i32, i32) {
    %c0_i32 = arith.constant 0 : i32
    %c0_i32_0 = arith.constant 0 : i32
    %c0_i32_1 = arith.constant 0 : i32
    %c0_i32_2 = arith.constant 0 : i32
    return %c0_i32, %c0_i32_0, %c0_i32_1 : i32, i32, i32
  }
  func.func @transform_4(%arg0: i32, %arg1: i32) -> (i32, i32) {
    %c0_i32 = arith.constant 0 : i32
    %c0_i32_0 = arith.constant 0 : i32
    return %arg0, %c0_i32 : i32, i32
  }
}

module attributes {stable_mosaic.version = 11 : i64} {
  func.func @propagation_loss_kernel(%arg0: i32, %arg1: i32, %arg2: memref<1x32x16xf32, #tpu.memory_space<vmem>>, %arg3: memref<1x1x1x16x16xf32, #tpu.memory_space<vmem>>, %arg4: memref<4x16x16xbf16, #tpu.memory_space<vmem>>, %arg5: memref<2x16x16xf32, #tpu.memory_space<vmem>>, %arg6: memref<8x128xf32, #tpu.memory_space<vmem>>, %arg7: memref<8x128xf32, #tpu.memory_space<vmem>>) attributes {dimension_semantics = [#tpu.dimension_semantics<parallel>, #tpu.dimension_semantics<arbitrary>], iteration_bounds = array<i64: 1, 2>, scalar_prefetch = 0 : i64, scratch_operands = 1 : i64, tpu.core_type = #tpu.core_type<tc>, window_params = [{transform_indices = @transform_0, window_bounds = array<i64: 1, 32, 16>}, {transform_indices = @transform_1, window_bounds = array<i64: 1, 1, 1, 16, 16>}, {pipeline_mode = #tpu.pipeline_mode<synchronous>, transform_indices = @transform_2, window_bounds = array<i64: 4, 16, 16>}, {pipeline_mode = #tpu.pipeline_mode<synchronous>, transform_indices = @transform_3, window_bounds = array<i64: 2, 16, 16>}, {transform_indices = @transform_4, window_bounds = array<i64: 8, 128>}]} {
    %c0_i32 = arith.constant 0 : i32
    %0 = arith.cmpi eq, %arg1, %c0_i32 : i32
    %1 = arith.extui %0 : i1 to i32
    %c0_i32_0 = arith.constant 0 : i32
    %2 = arith.cmpi ne, %1, %c0_i32_0 : i32
    scf.if %2 {
      %cst_64 = arith.constant 0.000000e+00 : f32
      %137 = vector.broadcast %cst_64 : f32 to vector<8x128xf32>
      %c0_65 = arith.constant 0 : index
      %c0_66 = arith.constant 0 : index
      %138 = vector.load %arg7[%c0_65, %c0_66] : memref<8x128xf32, #tpu.memory_space<vmem>>, vector<8x128xf32>
      tpu.vector_store %arg7[%c0_65, %c0_66], %137 {strides = array<i32>} : memref<8x128xf32, #tpu.memory_space<vmem>>, vector<8x128xf32>,
    } else {
    }
    %c0 = arith.constant 0 : index
    %c0_1 = arith.constant 0 : index
    %c0_2 = arith.constant 0 : index
    %3 = vector.load %arg2[%c0, %c0_1, %c0_2] : memref<1x32x16xf32, #tpu.memory_space<vmem>>, vector<1x32x16xf32>
    %4 = vector.shape_cast %3 : vector<1x32x16xf32> to vector<32x16xf32>
    %c0_3 = arith.constant 0 : index
    %c0_4 = arith.constant 0 : index
    %c0_5 = arith.constant 0 : index
    %c0_6 = arith.constant 0 : index
    %c0_7 = arith.constant 0 : index
    %5 = vector.load %arg3[%c0_3, %c0_4, %c0_5, %c0_6, %c0_7] : memref<1x1x1x16x16xf32, #tpu.memory_space<vmem>>, vector<1x1x1x16x16xf32>
    %6 = vector.shape_cast %5 : vector<1x1x1x16x16xf32> to vector<16x16xf32>
    %c0_8 = arith.constant 0 : index
    %c0_9 = arith.constant 0 : index
    %c0_10 = arith.constant 0 : index
    %7 = vector.load %arg4[%c0_8, %c0_9, %c0_10] : memref<4x16x16xbf16, #tpu.memory_space<vmem>>, vector<1x16x16xbf16>
    %8 = vector.shape_cast %7 : vector<1x16x16xbf16> to vector<16x16xbf16>
    %c1 = arith.constant 1 : index
    %c0_11 = arith.constant 0 : index
    %c0_12 = arith.constant 0 : index
    %9 = vector.load %arg4[%c1, %c0_11, %c0_12] : memref<4x16x16xbf16, #tpu.memory_space<vmem>>, vector<1x16x16xbf16>
    %10 = vector.shape_cast %9 : vector<1x16x16xbf16> to vector<16x16xbf16>
    %c2 = arith.constant 2 : index
    %c0_13 = arith.constant 0 : index
    %c0_14 = arith.constant 0 : index
    %11 = vector.load %arg4[%c2, %c0_13, %c0_14] : memref<4x16x16xbf16, #tpu.memory_space<vmem>>, vector<1x16x16xbf16>
    %12 = vector.shape_cast %11 : vector<1x16x16xbf16> to vector<16x16xbf16>
    %c3 = arith.constant 3 : index
    %c0_15 = arith.constant 0 : index
    %c0_16 = arith.constant 0 : index
    %13 = vector.load %arg4[%c3, %c0_15, %c0_16] : memref<4x16x16xbf16, #tpu.memory_space<vmem>>, vector<1x16x16xbf16>
    %14 = vector.shape_cast %13 : vector<1x16x16xbf16> to vector<16x16xbf16>
    %c0_17 = arith.constant 0 : index
    %c0_18 = arith.constant 0 : index
    %c0_19 = arith.constant 0 : index
    %15 = vector.load %arg5[%c0_17, %c0_18, %c0_19] : memref<2x16x16xf32, #tpu.memory_space<vmem>>, vector<1x16x16xf32>
    %16 = vector.shape_cast %15 : vector<1x16x16xf32> to vector<16x16xf32>
    %c1_20 = arith.constant 1 : index
    %c0_21 = arith.constant 0 : index
    %c0_22 = arith.constant 0 : index
    %17 = vector.load %arg5[%c1_20, %c0_21, %c0_22] : memref<2x16x16xf32, #tpu.memory_space<vmem>>, vector<1x16x16xf32>
    %18 = vector.shape_cast %17 : vector<1x16x16xf32> to vector<16x16xf32>
    %19 = arith.truncf %4 : vector<32x16xf32> to vector<32x16xbf16>
    %20 = arith.extf %19 : vector<32x16xbf16> to vector<32x16xf32>
    %21 = arith.subf %4, %20 : vector<32x16xf32>
    %22 = arith.truncf %21 : vector<32x16xf32> to vector<32x16xbf16>
    %cst = arith.constant dense<0.000000e+00> : vector<32x16xf32>
    %23 = tpu.matmul %19, %8, %cst {dimension_numbers = #tpu.dot_dimension_numbers<[1], [0], [0], [1], [0, 0, 1, 1], [], []>} : vector<32x16xbf16>, vector<16x16xbf16>, vector<32x16xf32> -> vector<32x16xf32>
    %cst_23 = arith.constant dense<0.000000e+00> : vector<32x16xf32>
    %24 = tpu.matmul %19, %10, %cst_23 {dimension_numbers = #tpu.dot_dimension_numbers<[1], [0], [0], [1], [0, 0, 1, 1], [], []>} : vector<32x16xbf16>, vector<16x16xbf16>, vector<32x16xf32> -> vector<32x16xf32>
    %25 = arith.addf %23, %24 : vector<32x16xf32>
    %cst_24 = arith.constant dense<0.000000e+00> : vector<32x16xf32>
    %26 = tpu.matmul %22, %8, %cst_24 {dimension_numbers = #tpu.dot_dimension_numbers<[1], [0], [0], [1], [0, 0, 1, 1], [], []>} : vector<32x16xbf16>, vector<16x16xbf16>, vector<32x16xf32> -> vector<32x16xf32>
    %27 = arith.addf %25, %26 : vector<32x16xf32>
    %cst_25 = arith.constant dense<0.000000e+00> : vector<32x16xf32>
    %28 = tpu.matmul %19, %12, %cst_25 {dimension_numbers = #tpu.dot_dimension_numbers<[1], [0], [0], [1], [0, 0, 1, 1], [], []>} : vector<32x16xbf16>, vector<16x16xbf16>, vector<32x16xf32> -> vector<32x16xf32>
    %cst_26 = arith.constant dense<0.000000e+00> : vector<32x16xf32>
    %29 = tpu.matmul %19, %14, %cst_26 {dimension_numbers = #tpu.dot_dimension_numbers<[1], [0], [0], [1], [0, 0, 1, 1], [], []>} : vector<32x16xbf16>, vector<16x16xbf16>, vector<32x16xf32> -> vector<32x16xf32>
    %30 = arith.addf %28, %29 : vector<32x16xf32>
    %cst_27 = arith.constant dense<0.000000e+00> : vector<32x16xf32>
    %31 = tpu.matmul %22, %12, %cst_27 {dimension_numbers = #tpu.dot_dimension_numbers<[1], [0], [0], [1], [0, 0, 1, 1], [], []>} : vector<32x16xbf16>, vector<16x16xbf16>, vector<32x16xf32> -> vector<32x16xf32>
    %32 = arith.addf %30, %31 : vector<32x16xf32>
    %33 = vector.extract_strided_slice %27 {offsets = [0, 0], sizes = [16, 16], strides = [1, 1]} : vector<32x16xf32> to vector<16x16xf32>
    %34 = vector.extract_strided_slice %32 {offsets = [16, 0], sizes = [16, 16], strides = [1, 1]} : vector<32x16xf32> to vector<16x16xf32>
    %35 = arith.subf %33, %34 : vector<16x16xf32>
    %36 = vector.extract_strided_slice %32 {offsets = [0, 0], sizes = [16, 16], strides = [1, 1]} : vector<32x16xf32> to vector<16x16xf32>
    %37 = vector.extract_strided_slice %27 {offsets = [16, 0], sizes = [16, 16], strides = [1, 1]} : vector<32x16xf32> to vector<16x16xf32>
    %38 = arith.addf %36, %37 : vector<16x16xf32>
    %39 = arith.truncf %35 : vector<16x16xf32> to vector<16x16xbf16>
    %40 = arith.extf %39 : vector<16x16xbf16> to vector<16x16xf32>
    %41 = arith.subf %35, %40 : vector<16x16xf32>
    %42 = arith.truncf %41 : vector<16x16xf32> to vector<16x16xbf16>
    %43 = arith.truncf %38 : vector<16x16xf32> to vector<16x16xbf16>
    %44 = arith.extf %43 : vector<16x16xbf16> to vector<16x16xf32>
    %45 = arith.subf %38, %44 : vector<16x16xf32>
    %46 = arith.truncf %45 : vector<16x16xf32> to vector<16x16xbf16>
    %cst_28 = arith.constant dense<0.000000e+00> : vector<16x16xf32>
    %47 = tpu.matmul %8, %39, %cst_28 {dimension_numbers = #tpu.dot_dimension_numbers<[1], [0], [0], [1], [0, 0, 1, 1], [], []>} : vector<16x16xbf16>, vector<16x16xbf16>, vector<16x16xf32> -> vector<16x16xf32>
    %cst_29 = arith.constant dense<0.000000e+00> : vector<16x16xf32>
    %48 = tpu.matmul %8, %42, %cst_29 {dimension_numbers = #tpu.dot_dimension_numbers<[1], [0], [0], [1], [0, 0, 1, 1], [], []>} : vector<16x16xbf16>, vector<16x16xbf16>, vector<16x16xf32> -> vector<16x16xf32>
    %49 = arith.addf %47, %48 : vector<16x16xf32>
    %cst_30 = arith.constant dense<0.000000e+00> : vector<16x16xf32>
    %50 = tpu.matmul %10, %39, %cst_30 {dimension_numbers = #tpu.dot_dimension_numbers<[1], [0], [0], [1], [0, 0, 1, 1], [], []>} : vector<16x16xbf16>, vector<16x16xbf16>, vector<16x16xf32> -> vector<16x16xf32>
    %51 = arith.addf %49, %50 : vector<16x16xf32>
    %cst_31 = arith.constant dense<0.000000e+00> : vector<16x16xf32>
    %52 = tpu.matmul %12, %43, %cst_31 {dimension_numbers = #tpu.dot_dimension_numbers<[1], [0], [0], [1], [0, 0, 1, 1], [], []>} : vector<16x16xbf16>, vector<16x16xbf16>, vector<16x16xf32> -> vector<16x16xf32>
    %cst_32 = arith.constant dense<0.000000e+00> : vector<16x16xf32>
    %53 = tpu.matmul %12, %46, %cst_32 {dimension_numbers = #tpu.dot_dimension_numbers<[1], [0], [0], [1], [0, 0, 1, 1], [], []>} : vector<16x16xbf16>, vector<16x16xbf16>, vector<16x16xf32> -> vector<16x16xf32>
    %54 = arith.addf %52, %53 : vector<16x16xf32>
    %cst_33 = arith.constant dense<0.000000e+00> : vector<16x16xf32>
    %55 = tpu.matmul %14, %43, %cst_33 {dimension_numbers = #tpu.dot_dimension_numbers<[1], [0], [0], [1], [0, 0, 1, 1], [], []>} : vector<16x16xbf16>, vector<16x16xbf16>, vector<16x16xf32> -> vector<16x16xf32>
    %56 = arith.addf %54, %55 : vector<16x16xf32>
    %57 = arith.subf %51, %56 : vector<16x16xf32>
    %cst_34 = arith.constant dense<0.000000e+00> : vector<16x16xf32>
    %58 = tpu.matmul %8, %43, %cst_34 {dimension_numbers = #tpu.dot_dimension_numbers<[1], [0], [0], [1], [0, 0, 1, 1], [], []>} : vector<16x16xbf16>, vector<16x16xbf16>, vector<16x16xf32> -> vector<16x16xf32>
    %cst_35 = arith.constant dense<0.000000e+00> : vector<16x16xf32>
    %59 = tpu.matmul %8, %46, %cst_35 {dimension_numbers = #tpu.dot_dimension_numbers<[1], [0], [0], [1], [0, 0, 1, 1], [], []>} : vector<16x16xbf16>, vector<16x16xbf16>, vector<16x16xf32> -> vector<16x16xf32>
    %60 = arith.addf %58, %59 : vector<16x16xf32>
    %cst_36 = arith.constant dense<0.000000e+00> : vector<16x16xf32>
    %61 = tpu.matmul %10, %43, %cst_36 {dimension_numbers = #tpu.dot_dimension_numbers<[1], [0], [0], [1], [0, 0, 1, 1], [], []>} : vector<16x16xbf16>, vector<16x16xbf16>, vector<16x16xf32> -> vector<16x16xf32>
    %62 = arith.addf %60, %61 : vector<16x16xf32>
    %cst_37 = arith.constant dense<0.000000e+00> : vector<16x16xf32>
    %63 = tpu.matmul %12, %39, %cst_37 {dimension_numbers = #tpu.dot_dimension_numbers<[1], [0], [0], [1], [0, 0, 1, 1], [], []>} : vector<16x16xbf16>, vector<16x16xbf16>, vector<16x16xf32> -> vector<16x16xf32>
    %cst_38 = arith.constant dense<0.000000e+00> : vector<16x16xf32>
    %64 = tpu.matmul %12, %42, %cst_38 {dimension_numbers = #tpu.dot_dimension_numbers<[1], [0], [0], [1], [0, 0, 1, 1], [], []>} : vector<16x16xbf16>, vector<16x16xbf16>, vector<16x16xf32> -> vector<16x16xf32>
    %65 = arith.addf %63, %64 : vector<16x16xf32>
    %cst_39 = arith.constant dense<0.000000e+00> : vector<16x16xf32>
    %66 = tpu.matmul %14, %39, %cst_39 {dimension_numbers = #tpu.dot_dimension_numbers<[1], [0], [0], [1], [0, 0, 1, 1], [], []>} : vector<16x16xbf16>, vector<16x16xbf16>, vector<16x16xf32> -> vector<16x16xf32>
    %67 = arith.addf %65, %66 : vector<16x16xf32>
    %68 = arith.addf %62, %67 : vector<16x16xf32>
    %69 = arith.mulf %57, %16 : vector<16x16xf32>
    %70 = arith.mulf %68, %18 : vector<16x16xf32>
    %71 = arith.subf %69, %70 : vector<16x16xf32>
    %72 = arith.mulf %57, %18 : vector<16x16xf32>
    %73 = arith.mulf %68, %16 : vector<16x16xf32>
    %74 = arith.addf %72, %73 : vector<16x16xf32>
    %75 = arith.truncf %71 : vector<16x16xf32> to vector<16x16xbf16>
    %76 = arith.extf %75 : vector<16x16xbf16> to vector<16x16xf32>
    %77 = arith.subf %71, %76 : vector<16x16xf32>
    %78 = arith.truncf %77 : vector<16x16xf32> to vector<16x16xbf16>
    %79 = arith.truncf %74 : vector<16x16xf32> to vector<16x16xbf16>
    %80 = arith.extf %79 : vector<16x16xbf16> to vector<16x16xf32>
    %81 = arith.subf %74, %80 : vector<16x16xf32>
    %82 = arith.truncf %81 : vector<16x16xf32> to vector<16x16xbf16>
    %cst_40 = arith.constant dense<0.000000e+00> : vector<16x16xf32>
    %83 = tpu.matmul %8, %75, %cst_40 {dimension_numbers = #tpu.dot_dimension_numbers<[1], [0], [0], [1], [0, 0, 1, 1], [], []>} : vector<16x16xbf16>, vector<16x16xbf16>, vector<16x16xf32> -> vector<16x16xf32>
    %cst_41 = arith.constant dense<0.000000e+00> : vector<16x16xf32>
    %84 = tpu.matmul %8, %78, %cst_41 {dimension_numbers = #tpu.dot_dimension_numbers<[1], [0], [0], [1], [0, 0, 1, 1], [], []>} : vector<16x16xbf16>, vector<16x16xbf16>, vector<16x16xf32> -> vector<16x16xf32>
    %85 = arith.addf %83, %84 : vector<16x16xf32>
    %cst_42 = arith.constant dense<0.000000e+00> : vector<16x16xf32>
    %86 = tpu.matmul %10, %75, %cst_42 {dimension_numbers = #tpu.dot_dimension_numbers<[1], [0], [0], [1], [0, 0, 1, 1], [], []>} : vector<16x16xbf16>, vector<16x16xbf16>, vector<16x16xf32> -> vector<16x16xf32>
    %87 = arith.addf %85, %86 : vector<16x16xf32>
    %cst_43 = arith.constant dense<0.000000e+00> : vector<16x16xf32>
    %88 = tpu.matmul %12, %79, %cst_43 {dimension_numbers = #tpu.dot_dimension_numbers<[1], [0], [0], [1], [0, 0, 1, 1], [], []>} : vector<16x16xbf16>, vector<16x16xbf16>, vector<16x16xf32> -> vector<16x16xf32>
    %cst_44 = arith.constant dense<0.000000e+00> : vector<16x16xf32>
    %89 = tpu.matmul %12, %82, %cst_44 {dimension_numbers = #tpu.dot_dimension_numbers<[1], [0], [0], [1], [0, 0, 1, 1], [], []>} : vector<16x16xbf16>, vector<16x16xbf16>, vector<16x16xf32> -> vector<16x16xf32>
    %90 = arith.addf %88, %89 : vector<16x16xf32>
    %cst_45 = arith.constant dense<0.000000e+00> : vector<16x16xf32>
    %91 = tpu.matmul %14, %79, %cst_45 {dimension_numbers = #tpu.dot_dimension_numbers<[1], [0], [0], [1], [0, 0, 1, 1], [], []>} : vector<16x16xbf16>, vector<16x16xbf16>, vector<16x16xf32> -> vector<16x16xf32>
    %92 = arith.addf %90, %91 : vector<16x16xf32>
    %93 = arith.addf %87, %92 : vector<16x16xf32>
    %cst_46 = arith.constant dense<0.000000e+00> : vector<16x16xf32>
    %94 = tpu.matmul %8, %79, %cst_46 {dimension_numbers = #tpu.dot_dimension_numbers<[1], [0], [0], [1], [0, 0, 1, 1], [], []>} : vector<16x16xbf16>, vector<16x16xbf16>, vector<16x16xf32> -> vector<16x16xf32>
    %cst_47 = arith.constant dense<0.000000e+00> : vector<16x16xf32>
    %95 = tpu.matmul %8, %82, %cst_47 {dimension_numbers = #tpu.dot_dimension_numbers<[1], [0], [0], [1], [0, 0, 1, 1], [], []>} : vector<16x16xbf16>, vector<16x16xbf16>, vector<16x16xf32> -> vector<16x16xf32>
    %96 = arith.addf %94, %95 : vector<16x16xf32>
    %cst_48 = arith.constant dense<0.000000e+00> : vector<16x16xf32>
    %97 = tpu.matmul %10, %79, %cst_48 {dimension_numbers = #tpu.dot_dimension_numbers<[1], [0], [0], [1], [0, 0, 1, 1], [], []>} : vector<16x16xbf16>, vector<16x16xbf16>, vector<16x16xf32> -> vector<16x16xf32>
    %98 = arith.addf %96, %97 : vector<16x16xf32>
    %cst_49 = arith.constant dense<0.000000e+00> : vector<16x16xf32>
    %99 = tpu.matmul %12, %75, %cst_49 {dimension_numbers = #tpu.dot_dimension_numbers<[1], [0], [0], [1], [0, 0, 1, 1], [], []>} : vector<16x16xbf16>, vector<16x16xbf16>, vector<16x16xf32> -> vector<16x16xf32>
    %cst_50 = arith.constant dense<0.000000e+00> : vector<16x16xf32>
    %100 = tpu.matmul %12, %78, %cst_50 {dimension_numbers = #tpu.dot_dimension_numbers<[1], [0], [0], [1], [0, 0, 1, 1], [], []>} : vector<16x16xbf16>, vector<16x16xbf16>, vector<16x16xf32> -> vector<16x16xf32>
    %101 = arith.addf %99, %100 : vector<16x16xf32>
    %cst_51 = arith.constant dense<0.000000e+00> : vector<16x16xf32>
    %102 = tpu.matmul %14, %75, %cst_51 {dimension_numbers = #tpu.dot_dimension_numbers<[1], [0], [0], [1], [0, 0, 1, 1], [], []>} : vector<16x16xbf16>, vector<16x16xbf16>, vector<16x16xf32> -> vector<16x16xf32>
    %103 = arith.addf %101, %102 : vector<16x16xf32>
    %104 = arith.subf %98, %103 : vector<16x16xf32>
    %105 = arith.truncf %93 : vector<16x16xf32> to vector<16x16xbf16>
    %106 = arith.extf %105 : vector<16x16xbf16> to vector<16x16xf32>
    %107 = arith.subf %93, %106 : vector<16x16xf32>
    %108 = arith.truncf %107 : vector<16x16xf32> to vector<16x16xbf16>
    %109 = arith.truncf %104 : vector<16x16xf32> to vector<16x16xbf16>
    %110 = arith.extf %109 : vector<16x16xbf16> to vector<16x16xf32>
    %111 = arith.subf %104, %110 : vector<16x16xf32>
    %112 = arith.truncf %111 : vector<16x16xf32> to vector<16x16xbf16>
    %cst_52 = arith.constant dense<0.000000e+00> : vector<16x16xf32>
    %113 = tpu.matmul %105, %8, %cst_52 {dimension_numbers = #tpu.dot_dimension_numbers<[1], [0], [0], [1], [0, 0, 1, 1], [], []>} : vector<16x16xbf16>, vector<16x16xbf16>, vector<16x16xf32> -> vector<16x16xf32>
    %cst_53 = arith.constant dense<0.000000e+00> : vector<16x16xf32>
    %114 = tpu.matmul %105, %10, %cst_53 {dimension_numbers = #tpu.dot_dimension_numbers<[1], [0], [0], [1], [0, 0, 1, 1], [], []>} : vector<16x16xbf16>, vector<16x16xbf16>, vector<16x16xf32> -> vector<16x16xf32>
    %115 = arith.addf %113, %114 : vector<16x16xf32>
    %cst_54 = arith.constant dense<0.000000e+00> : vector<16x16xf32>
    %116 = tpu.matmul %108, %8, %cst_54 {dimension_numbers = #tpu.dot_dimension_numbers<[1], [0], [0], [1], [0, 0, 1, 1], [], []>} : vector<16x16xbf16>, vector<16x16xbf16>, vector<16x16xf32> -> vector<16x16xf32>
    %117 = arith.addf %115, %116 : vector<16x16xf32>
    %cst_55 = arith.constant dense<0.000000e+00> : vector<16x16xf32>
    %118 = tpu.matmul %109, %12, %cst_55 {dimension_numbers = #tpu.dot_dimension_numbers<[1], [0], [0], [1], [0, 0, 1, 1], [], []>} : vector<16x16xbf16>, vector<16x16xbf16>, vector<16x16xf32> -> vector<16x16xf32>
    %cst_56 = arith.constant dense<0.000000e+00> : vector<16x16xf32>
    %119 = tpu.matmul %109, %14, %cst_56 {dimension_numbers = #tpu.dot_dimension_numbers<[1], [0], [0], [1], [0, 0, 1, 1], [], []>} : vector<16x16xbf16>, vector<16x16xbf16>, vector<16x16xf32> -> vector<16x16xf32>
    %120 = arith.addf %118, %119 : vector<16x16xf32>
    %cst_57 = arith.constant dense<0.000000e+00> : vector<16x16xf32>
    %121 = tpu.matmul %112, %12, %cst_57 {dimension_numbers = #tpu.dot_dimension_numbers<[1], [0], [0], [1], [0, 0, 1, 1], [], []>} : vector<16x16xbf16>, vector<16x16xbf16>, vector<16x16xf32> -> vector<16x16xf32>
    %122 = arith.addf %120, %121 : vector<16x16xf32>
    %123 = arith.addf %117, %122 : vector<16x16xf32>
    %c0_58 = arith.constant 0 : index
    %c0_59 = arith.constant 0 : index
    %124 = vector.load %arg7[%c0_58, %c0_59] : memref<8x128xf32, #tpu.memory_space<vmem>>, vector<8x128xf32>
    %125 = arith.subf %123, %6 : vector<16x16xf32>
    %126 = math.absf %125 : vector<16x16xf32>
    %127 = vector.shape_cast %126 : vector<16x16xf32> to vector<1x16x16xf32>
    %cst_60 = arith.constant dense<0.000000e+00> : vector<1xf32>
    %128 = vector.multi_reduction <add>, %127, %cst_60 [1, 2] : vector<1x16x16xf32> to vector<1xf32>
    %129 = vector.shape_cast %128 : vector<1xf32> to vector<1x1x1xf32>
    %130 = vector.extract %129[0, 0, 0] : f32 from vector<1x1x1xf32>
    %131 = vector.broadcast %130 : f32 to vector<8x128xf32>
    %132 = arith.addf %124, %131 : vector<8x128xf32>
    %c0_61 = arith.constant 0 : index
    %c0_62 = arith.constant 0 : index
    %133 = vector.load %arg7[%c0_61, %c0_62] : memref<8x128xf32, #tpu.memory_space<vmem>>, vector<8x128xf32>
    tpu.vector_store %arg7[%c0_61, %c0_62], %132 {strides = array<i32>} : memref<8x128xf32, #tpu.memory_space<vmem>>, vector<8x128xf32>,
    %c1_i32 = arith.constant 1 : i32
    %134 = arith.cmpi eq, %arg1, %c1_i32 : i32
    %135 = arith.extui %134 : i1 to i32
    %c0_i32_63 = arith.constant 0 : i32
    %136 = arith.cmpi ne, %135, %c0_i32_63 : i32
    scf.if %136 {
      %c0_64 = arith.constant 0 : index
      %c0_65 = arith.constant 0 : index
      %137 = vector.load %arg7[%c0_64, %c0_65] : memref<8x128xf32, #tpu.memory_space<vmem>>, vector<8x128xf32>
      %c0_66 = arith.constant 0 : index
      %c0_67 = arith.constant 0 : index
      %138 = vector.load %arg6[%c0_66, %c0_67] : memref<8x128xf32, #tpu.memory_space<vmem>>, vector<8x128xf32>
      tpu.vector_store %arg6[%c0_66, %c0_67], %137 {strides = array<i32>} : memref<8x128xf32, #tpu.memory_space<vmem>>, vector<8x128xf32>,
    } else {
    }
    return
  }
  func.func @transform_0(%arg0: i32, %arg1: i32) -> (i32, i32, i32) {
    %c2_i32 = arith.constant 2 : i32
    %0 = arith.muli %arg0, %c2_i32 : i32
    %1 = arith.addi %0, %arg1 : i32
    %c0_i32 = arith.constant 0 : i32
    %c0_i32_0 = arith.constant 0 : i32
    %c0_i32_1 = arith.constant 0 : i32
    return %1, %c0_i32, %c0_i32_0 : i32, i32, i32
  }
  func.func @transform_1(%arg0: i32, %arg1: i32) -> (i32, i32, i32, i32, i32) {
    %c2_i32 = arith.constant 2 : i32
    %0 = arith.muli %arg0, %c2_i32 : i32
    %1 = arith.addi %0, %arg1 : i32
    %c0_i32 = arith.constant 0 : i32
    %c0_i32_0 = arith.constant 0 : i32
    %c0_i32_1 = arith.constant 0 : i32
    %c0_i32_2 = arith.constant 0 : i32
    %c0_i32_3 = arith.constant 0 : i32
    return %1, %c0_i32, %c0_i32_0, %c0_i32_1, %c0_i32_2 : i32, i32, i32, i32, i32
  }
  func.func @transform_2(%arg0: i32, %arg1: i32) -> (i32, i32, i32) {
    %c0_i32 = arith.constant 0 : i32
    %c0_i32_0 = arith.constant 0 : i32
    %c0_i32_1 = arith.constant 0 : i32
    %c0_i32_2 = arith.constant 0 : i32
    return %c0_i32, %c0_i32_0, %c0_i32_1 : i32, i32, i32
  }
  func.func @transform_3(%arg0: i32, %arg1: i32) -> (i32, i32, i32) {
    %c0_i32 = arith.constant 0 : i32
    %c0_i32_0 = arith.constant 0 : i32
    %c0_i32_1 = arith.constant 0 : i32
    %c0_i32_2 = arith.constant 0 : i32
    return %c0_i32, %c0_i32_0, %c0_i32_1 : i32, i32, i32
  }
  func.func @transform_4(%arg0: i32, %arg1: i32) -> (i32, i32) {
    %c0_i32 = arith.constant 0 : i32
    %c0_i32_0 = arith.constant 0 : i32
    return %arg0, %c0_i32 : i32, i32
  }
}

</mosaic_0001>

<llo_original>
// kernel: tpu_custom_call.1
$region0: #{tpu_custom_call.1}
  #allocation0 [shape = 'u32[]', space=smem, size = 0x4, offset = 0x4, fixed_abs, tag = 'smem constant byte address 0x4 - core index']
  #allocation1 [shape = 'u32[144,128]{1,0:T(1,128)}', space=vmem, size = 0x12000, scoped, tag = 'internal scratch']
  #allocation2 [shape = 'f32[8,128]{1,0:T(8,128)}', space=vmem, size = 0x1000, scoped, tag = 'scratch operand']
  %s0 = inlined_call_operand.vmem [shape: f32[2,32,16], index: 0, kind: input, shape index: {}]
  %s1 = inlined_call_operand.vmem [shape: f32[2,2,1,16,16], index: 1, kind: input, shape index: {}]
  %s2 = inlined_call_operand.vmem [shape: bf16[4,16,16], index: 2, kind: input, shape index: {}]
  %s3 = inlined_call_operand.hbm [shape: f32[2,16,16], index: 3, kind: input, shape index: {}]
  %s4 = inlined_call_operand.hbm [shape: f32[8,128], index: 4, kind: output, shape index: {}]
  %s5 = sld [smem:[#allocation0]]
  $region61: #{tpu_custom_call.1} parent=0
    _
  %s7 = ssub.s32 1, %s5
  %s8 = scalar_select 0, %s7, %s5
  $region1: #{tpu_custom_call.1} parent=0
    #allocation3 [shape = 'u8[16384]{0}', space=vmem, size = 0x4000, scoped, tag = 'input window, operand 3, single buffered']
    #allocation4 [shape = 's32[2]{0}', space=sflag, size = 0x8, scoped, tag = 'scoped memory for tpu_custom_call.1']
    #allocation5 [shape = 's32[2]{0}', space=sflag, size = 0x8, scoped, tag = 'scoped memory for tpu_custom_call.1']
    #allocation6 [shape = 'u8[4096]{0}', space=vmem, size = 0x1000, scoped, tag = 'output window, operand 0, single buffered']
    %9 = vsyncpa [#allocation4], 0
    %10 = vsyncpa [#allocation5], 0
    loop: start=0, step=1, limit=4
    $region2: #{tpu_custom_call.1} parent=1 // loop_pre_header
      _
    $region3: #{tpu_custom_call.1} parent=1 // loop_header
      %s12 = sphi 0, %s16
      %p13 = scmp.ge.s32.totalorder %s12, 4
      %s19 = sphi 0, %s31
      %s20 = sphi 0, %s27
      %s21 = sphi 0, %s19
      %s22 = sphi 0, %s20
      %s23 = sphi 0, %s21
      %s24 = sphi 0, %s22
      %s38 = sphi 0, %s40
      %s41 = sphi 0, %s38
      %s42 = sphi 0, %s41
      %s58 = sphi 0, %s42
      %s68 = sphi 0, %s70
      %s71 = sphi 0, %s68
      %s72 = sphi 0, %s71
      %s88 = sphi 0, %s72
      %s92 = sphi 0, %s92
      %s94 = sphi 0, %s92
      %s95 = sphi 0, %s94
      %s109 = sphi 0, %s95
      %s113 = sphi 0, %s113
      %s115 = sphi 0, %s113
      %s116 = sphi 0, %s115
      %s130 = sphi 0, %s116
      %s136 = sphi 0, %s138
      %s139 = sphi 0, %s136
      %s140 = sphi 0, %s139
      %s156 = sphi 0, %s140
    $region4: #{tpu_custom_call.1} parent=1 // loop_header_branch
      %15 = sbr.rel (%p13) target = $region8
    $region5: #{tpu_custom_call.1} parent=1 // loop_body
      %s17 = ssub.s32 %s12, 1
      %s18 = ssub.s32 %s12, 2
      %s25 = sadd.s32 1, %s20
      %p26 = scmp.ge.s32.totalorder %s25, 2
      %s27 = scalar_select %p26, 0, %s25
      %s28 = sadd.s32 1, %s19
      %s29 = scalar_select %p26, %s28, %s19
      %p30 = scmp.ge.s32.totalorder %s29, 1
      %s31 = scalar_select %p30, 0, %s29
      %s32 = smul.u32 %s19, 2
      %s33 = sadd.s32 %s32, %s20
      %s34 = smul.u32 %s31, 2
      %s35 = sadd.s32 %s34, %s27
      %s36 = ssub.s32 %s33, %s35
      %p37 = scmp.eq.s32.totalorder %s36, 0
      %s39 = sadd.s32 %s38, 1
      %s40 = scalar_select %p37, %s38, %s39
      %p43 = pneg %p37
      %p44 = scmp.eq.s32.totalorder %s12, 1
      %p45 = por %p43, %p44
      %p46 = scmp.ne.s32.totalorder %s38, %s41
      %p47 = scmp.eq.s32.totalorder %s12, 0
      %p48 = por %p46, %p47
      %p49 = scmp.ne.s32.totalorder %s38, %s41
      %p50 = scmp.eq.s32.totalorder %s17, 1
      %p51 = por %p49, %p50
      %p52 = scmp.ne.s32.totalorder %s41, %s42
      %p53 = scmp.eq.s32.totalorder %s17, 0
      %p54 = por %p52, %p53
      %p55 = scmp.ne.s32.totalorder %s41, %s42
      %p56 = scmp.eq.s32.totalorder %s18, 1
      %p57 = por %p55, %p56
      %p59 = scmp.ne.s32.totalorder %s42, %s58
      %p60 = scmp.eq.s32.totalorder %s18, 0
      %p61 = por %p59, %p60
      %s62 = smul.u32 %s19, 2
      %s63 = sadd.s32 %s62, %s20
      %s64 = smul.u32 %s31, 2
      %s65 = sadd.s32 %s64, %s27
      %s66 = ssub.s32 %s63, %s65
      %p67 = scmp.eq.s32.totalorder %s66, 0
      %s69 = sadd.s32 %s68, 1
      %s70 = scalar_select %p67, %s68, %s69
      %p73 = pneg %p67
      %p74 = scmp.eq.s32.totalorder %s12, 1
      %p75 = por %p73, %p74
      %p76 = scmp.ne.s32.totalorder %s68, %s71
      %p77 = scmp.eq.s32.totalorder %s12, 0
      %p78 = por %p76, %p77
      %p79 = scmp.ne.s32.totalorder %s68, %s71
      %p80 = scmp.eq.s32.totalorder %s17, 1
      %p81 = por %p79, %p80
      %p82 = scmp.ne.s32.totalorder %s71, %s72
      %p83 = scmp.eq.s32.totalorder %s17, 0
      %p84 = por %p82, %p83
      %p85 = scmp.ne.s32.totalorder %s71, %s72
      %p86 = scmp.eq.s32.totalorder %s18, 1
      %p87 = por %p85, %p86
      %p89 = scmp.ne.s32.totalorder %s72, %s88
      %p90 = scmp.eq.s32.totalorder %s18, 0
      %p91 = por %p89, %p90
      %s93 = sadd.s32 %s92, 1
      %p96 = scmp.eq.s32.totalorder %s12, 1
      %p97 = scmp.ne.s32.totalorder %s92, %s94
      %p98 = scmp.eq.s32.totalorder %s12, 0
      %p99 = por %p97, %p98
      %p100 = scmp.ne.s32.totalorder %s92, %s94
      %p101 = scmp.eq.s32.totalorder %s17, 1
      %p102 = por %p100, %p101
      %p103 = scmp.ne.s32.totalorder %s94, %s95
      %p104 = scmp.eq.s32.totalorder %s17, 0
      %p105 = por %p103, %p104
      %p106 = scmp.ne.s32.totalorder %s94, %s95
      %p107 = scmp.eq.s32.totalorder %s18, 1
      %p108 = por %p106, %p107
      %p110 = scmp.ne.s32.totalorder %s95, %s109
      %p111 = scmp.eq.s32.totalorder %s18, 0
      %p112 = por %p110, %p111
      %s114 = sadd.s32 %s113, 1
      %p117 = scmp.eq.s32.totalorder %s12, 1
      %p118 = scmp.ne.s32.totalorder %s113, %s115
      %p119 = scmp.eq.s32.totalorder %s12, 0
      %p120 = por %p118, %p119
      %p121 = scmp.ne.s32.totalorder %s113, %s115
      %p122 = scmp.eq.s32.totalorder %s17, 1
      %p123 = por %p121, %p122
      %p124 = scmp.ne.s32.totalorder %s115, %s116
      %p125 = scmp.eq.s32.totalorder %s17, 0
      %p126 = por %p124, %p125
      %p127 = scmp.ne.s32.totalorder %s115, %s116
      %p128 = scmp.eq.s32.totalorder %s18, 1
      %p129 = por %p127, %p128
      %p131 = scmp.ne.s32.totalorder %s116, %s130
      %p132 = scmp.eq.s32.totalorder %s18, 0
      %p133 = por %p131, %p132
      %s134 = ssub.s32 %s19, %s31
      %p135 = scmp.eq.s32.totalorder %s134, 0
      %s137 = sadd.s32 %s136, 1
      %s138 = scalar_select %p135, %s136, %s137
      %p141 = pneg %p135
      %p142 = scmp.eq.s32.totalorder %s12, 1
      %p143 = por %p141, %p142
      %p144 = scmp.ne.s32.totalorder %s136, %s139
      %p145 = scmp.eq.s32.totalorder %s12, 0
      %p146 = por %p144, %p145
      %p147 = scmp.ne.s32.totalorder %s136, %s139
      %p148 = scmp.eq.s32.totalorder %s17, 1
      %p149 = por %p147, %p148
      %p150 = scmp.ne.s32.totalorder %s139, %s140
      %p151 = scmp.eq.s32.totalorder %s17, 0
      %p152 = por %p150, %p151
      %p153 = scmp.ne.s32.totalorder %s139, %s140
      %p154 = scmp.eq.s32.totalorder %s18, 1
      %p155 = por %p153, %p154
      %p157 = scmp.ne.s32.totalorder %s140, %s156
      %p158 = scmp.eq.s32.totalorder %s18, 0
      %p159 = por %p157, %p158
      %p160 = scmp.le.s32.totalorder 1, %s12
      %p161 = scmp.lt.s32.totalorder %s12, 3
      %p162 = pnand %p160, %p161
      %p163 = pneg %p162
      // Predicated region
      $region9: #{tpu_custom_call.1} parent=5 // pred_check
        _
      $region10: #{tpu_custom_call.1} parent=5 // pred_check_branch
        %165 = sbr.rel (%p162) target = $region12
      $region11: #{tpu_custom_call.1} parent=5 // pred_region
        %s166 = ssub.s32 %s12, 1
        // Predicated region
        $region13: #{tpu_custom_call.1} parent=11 // pred_check
          %p167 = pneg %p105
        $region14: #{tpu_custom_call.1} parent=11 // pred_check_branch
          %169 = sbr.rel (%p167) target = $region16
        $region15: #{tpu_custom_call.1} parent=11 // pred_region
          _
        $region16: #{tpu_custom_call.1} parent=11 // pred_fallthru
          _
        // Predicated region
        $region17: #{tpu_custom_call.1} parent=11 // pred_check
          %p170 = pneg %p126
        $region18: #{tpu_custom_call.1} parent=11 // pred_check_branch
          %172 = sbr.rel (%p170) target = $region20
        $region19: #{tpu_custom_call.1} parent=11 // pred_region
          %s174 = ssub.s32 512, 512
          %175 = vsyncadd [#allocation4], %s174
          %s176 = sshll.u32 [#allocation3], 4
          %s177 = int_to_ptr.vmem [resolvable:$true] %s176
          %182 = dma.hbm_to_vmem [thread:$0]  %s3, 512, %s177, [#allocation4], 128, 128, 8
        $region20: #{tpu_custom_call.1} parent=11 // pred_fallthru
          _
      $region12: #{tpu_custom_call.1} parent=5 // pred_fallthru
        _
      %p183 = scmp.lt.s32.totalorder %s12, 2
      // Predicated region
      $region21: #{tpu_custom_call.1} parent=5 // pred_check
        %p184 = pneg %p183
      $region22: #{tpu_custom_call.1} parent=5 // pred_check_branch
        %186 = sbr.rel (%p184) target = $region24
      $region23: #{tpu_custom_call.1} parent=5 // pred_region
        // Predicated region
        $region25: #{tpu_custom_call.1} parent=23 // pred_check
          %p187 = pneg %p48
        $region26: #{tpu_custom_call.1} parent=23 // pred_check_branch
          %189 = sbr.rel (%p187) target = $region28
        $region27: #{tpu_custom_call.1} parent=23 // pred_region
          %s190 = smul.u32 %s19, 2
          %s191 = sadd.s32 %s190, %s20
          %p192 = scmp.lt.s32.totalorder %s191, 1
          %s193 = scalar_select %p192, %s191, 1
          %s194 = smul.addr %s193, 4
          %s195 = smul.addr %s194, 8
          %s196 = scalar_lea.vmem %s0, %s195
          %s197 = smul.u32 %s19, 2
          %s198 = sadd.s32 %s197, %s20
        $region28: #{tpu_custom_call.1} parent=23 // pred_fallthru
          _
        // Predicated region
        $region29: #{tpu_custom_call.1} parent=23 // pred_check
          %p199 = pneg %p78
        $region30: #{tpu_custom_call.1} parent=23 // pred_check_branch
          %201 = sbr.rel (%p199) target = $region32
        $region31: #{tpu_custom_call.1} parent=23 // pred_region
          %s202 = smul.u32 %s19, 2
          %s203 = sadd.s32 %s202, %s20
          %p204 = scmp.lt.s32.totalorder %s203, 1
          %s205 = scalar_select %p204, %s203, 1
          %s206 = smul.addr %s205, 4
          %s207 = smul.addr %s206, 8
          %s208 = scalar_lea.vmem %s1, %s207
          %s209 = smul.u32 %s19, 2
          %s210 = sadd.s32 %s209, %s20
        $region32: #{tpu_custom_call.1} parent=23 // pred_fallthru
          _
      $region24: #{tpu_custom_call.1} parent=5 // pred_fallthru
        _
      %p211 = scmp.le.s32.totalorder 1, %s12
      %p212 = scmp.lt.s32.totalorder %s12, 3
      %p213 = pnand %p211, %p212
      %p214 = pneg %p213
      // Predicated region
      $region33: #{tpu_custom_call.1} parent=5 // pred_check
        _
      $region34: #{tpu_custom_call.1} parent=5 // pred_check_branch
        %216 = sbr.rel (%p213) target = $region36
      $region35: #{tpu_custom_call.1} parent=5 // pred_region
        %s217 = ssub.s32 %s12, 1
        // Predicated region
        $region37: #{tpu_custom_call.1} parent=35 // pred_check
          %p218 = pneg %p126
        $region38: #{tpu_custom_call.1} parent=35 // pred_check_branch
          %220 = sbr.rel (%p218) target = $region40
        $region39: #{tpu_custom_call.1} parent=35 // pred_region
          %221 = dma.done [#allocation4], 512
        $region40: #{tpu_custom_call.1} parent=35 // pred_fallthru
          _
        %s222 = smul.u32 %s21, 2
        %s223 = sadd.s32 %s222, %s22
        %p224 = scmp.lt.s32.totalorder %s223, 1
        %s225 = scalar_select %p224, %s223, 1
        %s226 = smul.addr %s225, 4
        %s227 = smul.addr %s226, 8
        %s228 = scalar_lea.vmem %s0, %s227
        %p229 = pneg %p54
        %p230 = pneg %p51
        %s231 = smul.u32 %s21, 2
        %s232 = sadd.s32 %s231, %s22
        %p233 = scmp.lt.s32.totalorder %s232, 1
        %s234 = scalar_select %p233, %s232, 1
        %s235 = smul.addr %s234, 4
        %s236 = smul.addr %s235, 8
        %s237 = scalar_lea.vmem %s1, %s236
        %p238 = pneg %p84
        %p239 = pneg %p81
        %p240 = pneg %p105
        %p241 = pneg %p102
        %p242 = pneg %p126
        %p243 = pneg %p123
        %p244 = pneg %p152
        %p245 = pneg %p149
        %s246 = smul.u32 %s21, 2
        %s247 = sadd.s32 %s246, %s22
        %p248 = scmp.lt.s32.totalorder %s247, 1
        %s249 = scalar_select %p248, %s247, 1
        %s250 = smul.addr %s249, 4
        %s251 = smul.addr %s250, 8
        %s252 = scalar_lea.vmem %s0, %s251
        %s253 = smul.u32 %s21, 2
        %s254 = sadd.s32 %s253, %s22
        %s255 = smul.u32 %s21, 2
        %s256 = sadd.s32 %s255, %s22
        %p257 = scmp.lt.s32.totalorder %s256, 1
        %s258 = scalar_select %p257, %s256, 1
        %s259 = smul.addr %s258, 4
        %s260 = smul.addr %s259, 8
        %s261 = scalar_lea.vmem %s1, %s260
        %s262 = smul.u32 %s21, 2
        %s263 = sadd.s32 %s262, %s22
        %p265 = scmp.eq.s32.totalorder %s22, 0
        // Predicated region
        $region41: #{tpu_custom_call.1} parent=35 // pred_check
          %p266 = pneg %p265
        $region42: #{tpu_custom_call.1} parent=35 // pred_check_branch
          %268 = sbr.rel (%p266) target = $region44
        $region43: #{tpu_custom_call.1} parent=35 // pred_region
          %269 = vst [vmem:[#allocation2] sm:$0xff] 0.0
        $region44: #{tpu_custom_call.1} parent=35 // pred_fallthru
          _
        %v270 = vld [vmem:[%s252] sm:$0xff]
        %v271 = vld [vmem:[%s252 + $0x8] sm:$0xff]
        %v272 = vld [vmem:[%s252 + $0x10] sm:$0xff]
        %v273 = vld [vmem:[%s252 + $0x18] sm:$0xff]
        %v274 = vld [vmem:[%s261] sm:$0xff]
        %v275 = vld [vmem:[%s261 + $0x8] sm:$0xff]
        %v276 = vld [vmem:[%s2] sm:$0xf]
        %v277 = vld [vmem:[%s2 + $0x4] sm:$0xf]
        %s278 = scalar_lea.vmem %s2, 8
        %v279 = vld [vmem:[%s278] sm:$0xf]
        %v280 = vld [vmem:[%s278 + $0x4] sm:$0xf]
        %s281 = scalar_lea.vmem %s2, 16
        %v282 = vld [vmem:[%s281] sm:$0xf]
        %v283 = vld [vmem:[%s281 + $0x4] sm:$0xf]
        %s284 = scalar_lea.vmem %s2, 24
        %v285 = vld [vmem:[%s284] sm:$0xf]
        %v286 = vld [vmem:[%s284 + $0x4] sm:$0xf]
        %v287 = vld [vmem:[#allocation3] sm:$0xff]
        %v288 = vld [vmem:[#allocation3 + $0x8] sm:$0xff]
        %s289 = scalar_lea.vmem [#allocation3], 16
        %v290 = vld [vmem:[%s289] sm:$0xff]
        %v291 = vld [vmem:[%s289 + $0x8] sm:$0xff]
        %v292 = vpack.c.bf16 %v271, %v270
        %v293 = vpack.c.bf16 %v273, %v272
        %v294 = vunpack.c.l.bf16 %v292
        %v295 = vunpack.c.h.bf16 %v292
        %v296 = vunpack.c.l.bf16 %v293
        %v297 = vunpack.c.h.bf16 %v293
        %v298 = vsub.f32 %v270, %v294
        %v299 = vsub.f32 %v271, %v295
        %v300 = vsub.f32 %v272, %v296
        %v301 = vsub.f32 %v273, %v297
        %v302 = vpack.c.bf16 %v299, %v298
        %v303 = vpack.c.bf16 %v301, %v300
        %v306 = vunpack.c.l.b16 %v279
        %v307 = vunpack.c.l.b16 %v280
        %v308 = vpack.c.b16 %v307, %v306
        %vm310 = vcmask 130048
        %v312 = vsel %vm310, %v292, 0
        %v315 = vsel %vm310, %v293, 0
        %317 = vmatprep.subr.bf16.mxu0 0
        %318 = vmatpush1.bf16.msra.mxu0 %v308
        %319 = vmatprep.subr.bf16.mxu0 0
        %320 = vmatpush1.bf16.msra.mxu0 0
        %321 = vmatprep.subr.bf16.mxu0 0
        %322 = vmatpush1.bf16.msra.mxu0 0
        %323 = vmatprep.subr.bf16.mxu0 0
        %324 = vmatpush1.bf16.msra.mxu0 0
        %325 = vmatprep.subr.bf16.mxu0 0
        %326 = vmatpush1.bf16.msra.mxu0 0
        %327 = vmatprep.subr.bf16.mxu0 0
        %328 = vmatpush1.bf16.msra.mxu0 0
        %329 = vmatprep.subr.bf16.mxu0 0
        %330 = vmatpush1.bf16.msra.mxu0 0
        %331 = vmatprep.subr.bf16.mxu0 0
        %332 = vmatpush1.bf16.msra.mxu0 0
        %333 = vmatprep.subr.bf16.mxu0 0
        %334 = vmatpush1.bf16.msra.mxu0 0
        %335 = vmatprep.subr.bf16.mxu0 0
        %336 = vmatpush1.bf16.msra.mxu0 0
        %337 = vmatprep.subr.bf16.mxu0 0
        %338 = vmatpush1.bf16.msra.mxu0 0
        %339 = vmatprep.subr.bf16.mxu0 0
        %340 = vmatpush1.bf16.msra.mxu0 0
        %341 = vmatprep.subr.bf16.mxu0 0
        %342 = vmatpush1.bf16.msra.mxu0 0
        %343 = vmatprep.subr.bf16.mxu0 0
        %344 = vmatpush1.bf16.msra.mxu0 0
        %345 = vmatprep.subr.bf16.mxu0 0
        %346 = vmatpush1.bf16.msra.mxu0 0
        %347 = vmatprep.subr.bf16.mxu0 0
        %348 = vmatpush1.bf16.msra.mxu0 0
        %349 = vmatprep.mubr.bf16.mxu0 0
        %350 = vmatmul.mubr.bf16.gmra.mrb[0].mxu0 %v312
        %v351 = vpop.f32.mrb[0].mxu0
        %v352 = vadd.f32 0.0, %v351
        %v353 = vpop.f32.mrb[0].mxu0
        %v354 = vpop.f32.mrb[0].mxu0
        %v355 = vadd.f32 0.0, %v354
        %v356 = vpop.f32.mrb[0].mxu0
        %357 = vmatprep.mubr.bf16.mxu0 0
        %358 = vmatmul.mubr.bf16.gmra.mrb[0].mxu0 %v315
        %v359 = vpop.f32.mrb[0].mxu0
        %v360 = vadd.f32 0.0, %v359
        %v361 = vpop.f32.mrb[0].mxu0
        %v362 = vpop.f32.mrb[0].mxu0
        %v363 = vadd.f32 0.0, %v362
        %v364 = vpop.f32.mrb[0].mxu0
        %365 = vdwg.mxu0
        %v368 = vunpack.c.l.b16 %v276
        %v369 = vunpack.c.l.b16 %v277
        %v370 = vpack.c.b16 %v369, %v368
        %372 = vmatprep.subr.bf16.mxu0 0
        %373 = vmatpush1.bf16.msra.mxu0 %v370
        %374 = vmatprep.subr.bf16.mxu0 0
        %375 = vmatpush1.bf16.msra.mxu0 0
        %376 = vmatprep.subr.bf16.mxu0 0
        %377 = vmatpush1.bf16.msra.mxu0 0
        %378 = vmatprep.subr.bf16.mxu0 0
        %379 = vmatpush1.bf16.msra.mxu0 0
        %380 = vmatprep.subr.bf16.mxu0 0
        %381 = vmatpush1.bf16.msra.mxu0 0
        %382 = vmatprep.subr.bf16.mxu0 0
        %383 = vmatpush1.bf16.msra.mxu0 0
        %384 = vmatprep.subr.bf16.mxu0 0
        %385 = vmatpush1.bf16.msra.mxu0 0
        %386 = vmatprep.subr.bf16.mxu0 0
        %387 = vmatpush1.bf16.msra.mxu0 0
        %388 = vmatprep.subr.bf16.mxu0 0
        %389 = vmatpush1.bf16.msra.mxu0 0
        %390 = vmatprep.subr.bf16.mxu0 0
        %391 = vmatpush1.bf16.msra.mxu0 0
        %392 = vmatprep.subr.bf16.mxu0 0
        %393 = vmatpush1.bf16.msra.mxu0 0
        %394 = vmatprep.subr.bf16.mxu0 0
        %395 = vmatpush1.bf16.msra.mxu0 0
        %396 = vmatprep.subr.bf16.mxu0 0
        %397 = vmatpush1.bf16.msra.mxu0 0
        %398 = vmatprep.subr.bf16.mxu0 0
        %399 = vmatpush1.bf16.msra.mxu0 0
        %400 = vmatprep.subr.bf16.mxu0 0
        %401 = vmatpush1.bf16.msra.mxu0 0
        %402 = vmatprep.subr.bf16.mxu0 0
        %403 = vmatpush1.bf16.msra.mxu0 0
        %404 = vmatprep.mubr.bf16.mxu0 0
        %405 = vmatmul.mubr.bf16.gmra.mrb[0].mxu0 %v312
        %v406 = vpop.f32.mrb[0].mxu0
        %v407 = vadd.f32 %v352, %v406
        %v408 = vpop.f32.mrb[0].mxu0
        %v409 = vpop.f32.mrb[0].mxu0
        %v410 = vadd.f32 %v355, %v409
        %v411 = vpop.f32.mrb[0].mxu0
        %412 = vmatprep.mubr.bf16.mxu0 0
        %413 = vmatmul.mubr.bf16.gmra.mrb[0].mxu0 %v315
        %v414 = vpop.f32.mrb[0].mxu0
        %v415 = vadd.f32 %v360, %v414
        %v416 = vpop.f32.mrb[0].mxu0
        %v417 = vpop.f32.mrb[0].mxu0
        %v418 = vadd.f32 %v363, %v417
        %v419 = vpop.f32.mrb[0].mxu0
        %420 = vdwg.mxu0
        %v422 = vsel %vm310, %v302, 0
        %v425 = vsel %vm310, %v303, 0
        %427 = vmatprep.subr.bf16.mxu0 0
        %428 = vmatpush1.bf16.msra.mxu0 %v370
        %429 = vmatprep.subr.bf16.mxu0 0
        %430 = vmatpush1.bf16.msra.mxu0 0
        %431 = vmatprep.subr.bf16.mxu0 0
        %432 = vmatpush1.bf16.msra.mxu0 0
        %433 = vmatprep.subr.bf16.mxu0 0
        %434 = vmatpush1.bf16.msra.mxu0 0
        %435 = vmatprep.subr.bf16.mxu0 0
        %436 = vmatpush1.bf16.msra.mxu0 0
        %437 = vmatprep.subr.bf16.mxu0 0
        %438 = vmatpush1.bf16.msra.mxu0 0
        %439 = vmatprep.subr.bf16.mxu0 0
        %440 = vmatpush1.bf16.msra.mxu0 0
        %441 = vmatprep.subr.bf16.mxu0 0
        %442 = vmatpush1.bf16.msra.mxu0 0
        %443 = vmatprep.subr.bf16.mxu0 0
        %444 = vmatpush1.bf16.msra.mxu0 0
        %445 = vmatprep.subr.bf16.mxu0 0
        %446 = vmatpush1.bf16.msra.mxu0 0
        %447 = vmatprep.subr.bf16.mxu0 0
        %448 = vmatpush1.bf16.msra.mxu0 0
        %449 = vmatprep.subr.bf16.mxu0 0
        %450 = vmatpush1.bf16.msra.mxu0 0
        %451 = vmatprep.subr.bf16.mxu0 0
        %452 = vmatpush1.bf16.msra.mxu0 0
        %453 = vmatprep.subr.bf16.mxu0 0
        %454 = vmatpush1.bf16.msra.mxu0 0
        %455 = vmatprep.subr.bf16.mxu0 0
        %456 = vmatpush1.bf16.msra.mxu0 0
        %457 = vmatprep.subr.bf16.mxu0 0
        %458 = vmatpush1.bf16.msra.mxu0 0
        %459 = vmatprep.mubr.bf16.mxu0 0
        %460 = vmatmul.mubr.bf16.gmra.mrb[0].mxu0 %v422
        %v461 = vpop.f32.mrb[0].mxu0
        %v462 = vadd.f32 0.0, %v461
        %v463 = vpop.f32.mrb[0].mxu0
        %v464 = vpop.f32.mrb[0].mxu0
        %v465 = vadd.f32 0.0, %v464
        %v466 = vpop.f32.mrb[0].mxu0
        %467 = vmatprep.mubr.bf16.mxu0 0
        %468 = vmatmul.mubr.bf16.gmra.mrb[0].mxu0 %v425
        %v469 = vpop.f32.mrb[0].mxu0
        %v470 = vadd.f32 0.0, %v469
        %v471 = vpop.f32.mrb[0].mxu0
        %v472 = vpop.f32.mrb[0].mxu0
        %v473 = vadd.f32 0.0, %v472
        %v474 = vpop.f32.mrb[0].mxu0
        %475 = vdwg.mxu0
        %v476 = vadd.f32 %v407, %v462
        %v477 = vadd.f32 %v410, %v465
        %v478 = vadd.f32 %v415, %v470
        %v479 = vadd.f32 %v418, %v473
        %v482 = vunpack.c.l.b16 %v285
        %v483 = vunpack.c.l.b16 %v286
        %v484 = vpack.c.b16 %v483, %v482
        %486 = vmatprep.subr.bf16.mxu0 0
        %487 = vmatpush1.bf16.msra.mxu0 %v484
        %488 = vmatprep.subr.bf16.mxu0 0
        %489 = vmatpush1.bf16.msra.mxu0 0
        %490 = vmatprep.subr.bf16.mxu0 0
        %491 = vmatpush1.bf16.msra.mxu0 0
        %492 = vmatprep.subr.bf16.mxu0 0
        %493 = vmatpush1.bf16.msra.mxu0 0
        %494 = vmatprep.subr.bf16.mxu0 0
        %495 = vmatpush1.bf16.msra.mxu0 0
        %496 = vmatprep.subr.bf16.mxu0 0
        %497 = vmatpush1.bf16.msra.mxu0 0
        %498 = vmatprep.subr.bf16.mxu0 0
        %499 = vmatpush1.bf16.msra.mxu0 0
        %500 = vmatprep.subr.bf16.mxu0 0
        %501 = vmatpush1.bf16.msra.mxu0 0
        %502 = vmatprep.subr.bf16.mxu0 0
        %503 = vmatpush1.bf16.msra.mxu0 0
        %504 = vmatprep.subr.bf16.mxu0 0
        %505 = vmatpush1.bf16.msra.mxu0 0
        %506 = vmatprep.subr.bf16.mxu0 0
        %507 = vmatpush1.bf16.msra.mxu0 0
        %508 = vmatprep.subr.bf16.mxu0 0
        %509 = vmatpush1.bf16.msra.mxu0 0
        %510 = vmatprep.subr.bf16.mxu0 0
        %511 = vmatpush1.bf16.msra.mxu0 0
        %512 = vmatprep.subr.bf16.mxu0 0
        %513 = vmatpush1.bf16.msra.mxu0 0
        %514 = vmatprep.subr.bf16.mxu0 0
        %515 = vmatpush1.bf16.msra.mxu0 0
        %516 = vmatprep.subr.bf16.mxu0 0
        %517 = vmatpush1.bf16.msra.mxu0 0
        %518 = vmatprep.mubr.bf16.mxu0 0
        %519 = vmatmul.mubr.bf16.gmra.mrb[0].mxu0 %v312
        %v520 = vpop.f32.mrb[0].mxu0
        %v521 = vadd.f32 0.0, %v520
        %v522 = vpop.f32.mrb[0].mxu0
        %v523 = vpop.f32.mrb[0].mxu0
        %v524 = vadd.f32 0.0, %v523
        %v525 = vpop.f32.mrb[0].mxu0
        %526 = vmatprep.mubr.bf16.mxu0 0
        %527 = vmatmul.mubr.bf16.gmra.mrb[0].mxu0 %v315
        %v528 = vpop.f32.mrb[0].mxu0
        %v529 = vadd.f32 0.0, %v528
        %v530 = vpop.f32.mrb[0].mxu0
        %v531 = vpop.f32.mrb[0].mxu0
        %v532 = vadd.f32 0.0, %v531
        %v533 = vpop.f32.mrb[0].mxu0
        %534 = vdwg.mxu0
        %v537 = vunpack.c.l.b16 %v282
        %v538 = vunpack.c.l.b16 %v283
        %v539 = vpack.c.b16 %v538, %v537
        %541 = vmatprep.subr.bf16.mxu0 0
        %542 = vmatpush1.bf16.msra.mxu0 %v539
        %543 = vmatprep.subr.bf16.mxu0 0
        %544 = vmatpush1.bf16.msra.mxu0 0
        %545 = vmatprep.subr.bf16.mxu0 0
        %546 = vmatpush1.bf16.msra.mxu0 0
        %547 = vmatprep.subr.bf16.mxu0 0
        %548 = vmatpush1.bf16.msra.mxu0 0
        %549 = vmatprep.subr.bf16.mxu0 0
        %550 = vmatpush1.bf16.msra.mxu0 0
        %551 = vmatprep.subr.bf16.mxu0 0
        %552 = vmatpush1.bf16.msra.mxu0 0
        %553 = vmatprep.subr.bf16.mxu0 0
        %554 = vmatpush1.bf16.msra.mxu0 0
        %555 = vmatprep.subr.bf16.mxu0 0
        %556 = vmatpush1.bf16.msra.mxu0 0
        %557 = vmatprep.subr.bf16.mxu0 0
        %558 = vmatpush1.bf16.msra.mxu0 0
        %559 = vmatprep.subr.bf16.mxu0 0
        %560 = vmatpush1.bf16.msra.mxu0 0
        %561 = vmatprep.subr.bf16.mxu0 0
        %562 = vmatpush1.bf16.msra.mxu0 0
        %563 = vmatprep.subr.bf16.mxu0 0
        %564 = vmatpush1.bf16.msra.mxu0 0
        %565 = vmatprep.subr.bf16.mxu0 0
        %566 = vmatpush1.bf16.msra.mxu0 0
        %567 = vmatprep.subr.bf16.mxu0 0
        %568 = vmatpush1.bf16.msra.mxu0 0
        %569 = vmatprep.subr.bf16.mxu0 0
        %570 = vmatpush1.bf16.msra.mxu0 0
        %571 = vmatprep.subr.bf16.mxu0 0
        %572 = vmatpush1.bf16.msra.mxu0 0
        %573 = vmatprep.mubr.bf16.mxu0 0
        %574 = vmatmul.mubr.bf16.gmra.mrb[0].mxu0 %v312
        %v575 = vpop.f32.mrb[0].mxu0
        %v576 = vadd.f32 %v521, %v575
        %v577 = vpop.f32.mrb[0].mxu0
        %v578 = vpop.f32.mrb[0].mxu0
        %v579 = vadd.f32 %v524, %v578
        %v580 = vpop.f32.mrb[0].mxu0
        %581 = vmatprep.mubr.bf16.mxu0 0
        %582 = vmatmul.mubr.bf16.gmra.mrb[0].mxu0 %v315
        %v583 = vpop.f32.mrb[0].mxu0
        %v584 = vadd.f32 %v529, %v583
        %v585 = vpop.f32.mrb[0].mxu0
        %v586 = vpop.f32.mrb[0].mxu0
        %v587 = vadd.f32 %v532, %v586
        %v588 = vpop.f32.mrb[0].mxu0
        %589 = vdwg.mxu0
        %590 = vmatprep.subr.bf16.mxu0 0
        %591 = vmatpush1.bf16.msra.mxu0 %v539
        %592 = vmatprep.subr.bf16.mxu0 0
        %593 = vmatpush1.bf16.msra.mxu0 0
        %594 = vmatprep.subr.bf16.mxu0 0
        %595 = vmatpush1.bf16.msra.mxu0 0
        %596 = vmatprep.subr.bf16.mxu0 0
        %597 = vmatpush1.bf16.msra.mxu0 0
        %598 = vmatprep.subr.bf16.mxu0 0
        %599 = vmatpush1.bf16.msra.mxu0 0
        %600 = vmatprep.subr.bf16.mxu0 0
        %601 = vmatpush1.bf16.msra.mxu0 0
        %602 = vmatprep.subr.bf16.mxu0 0
        %603 = vmatpush1.bf16.msra.mxu0 0
        %604 = vmatprep.subr.bf16.mxu0 0
        %605 = vmatpush1.bf16.msra.mxu0 0
        %606 = vmatprep.subr.bf16.mxu0 0
        %607 = vmatpush1.bf16.msra.mxu0 0
        %608 = vmatprep.subr.bf16.mxu0 0
        %609 = vmatpush1.bf16.msra.mxu0 0
        %610 = vmatprep.subr.bf16.mxu0 0
        %611 = vmatpush1.bf16.msra.mxu0 0
        %612 = vmatprep.subr.bf16.mxu0 0
        %613 = vmatpush1.bf16.msra.mxu0 0
        %614 = vmatprep.subr.bf16.mxu0 0
        %615 = vmatpush1.bf16.msra.mxu0 0
        %616 = vmatprep.subr.bf16.mxu0 0
        %617 = vmatpush1.bf16.msra.mxu0 0
        %618 = vmatprep.subr.bf16.mxu0 0
        %619 = vmatpush1.bf16.msra.mxu0 0
        %620 = vmatprep.subr.bf16.mxu0 0
        %621 = vmatpush1.bf16.msra.mxu0 0
        %622 = vmatprep.mubr.bf16.mxu0 0
        %623 = vmatmul.mubr.bf16.gmra.mrb[0].mxu0 %v422
        %v624 = vpop.f32.mrb[0].mxu0
        %v625 = vadd.f32 0.0, %v624
        %v626 = vpop.f32.mrb[0].mxu0
        %v627 = vpop.f32.mrb[0].mxu0
        %v628 = vadd.f32 0.0, %v627
        %v629 = vpop.f32.mrb[0].mxu0
        %630 = vmatprep.mubr.bf16.mxu0 0
        %631 = vmatmul.mubr.bf16.gmra.mrb[0].mxu0 %v425
        %v632 = vpop.f32.mrb[0].mxu0
        %v633 = vadd.f32 0.0, %v632
        %v634 = vpop.f32.mrb[0].mxu0
        %v635 = vpop.f32.mrb[0].mxu0
        %v636 = vadd.f32 0.0, %v635
        %v637 = vpop.f32.mrb[0].mxu0
        %638 = vdwg.mxu0
        %v639 = vadd.f32 %v576, %v625
        %v640 = vadd.f32 %v579, %v628
        %v641 = vadd.f32 %v584, %v633
        %v642 = vadd.f32 %v587, %v636
        %v643 = vsub.f32 %v476, %v641
        %v644 = vsub.f32 %v477, %v642
        %v645 = vadd.f32 %v639, %v478
        %v646 = vadd.f32 %v640, %v479
        %v647 = vpack.c.bf16 %v644, %v643
        %v648 = vunpack.c.l.bf16 %v647
        %v649 = vunpack.c.h.bf16 %v647
        %v650 = vsub.f32 %v643, %v648
        %v651 = vsub.f32 %v644, %v649
        %v652 = vpack.c.bf16 %v651, %v650
        %v653 = vpack.c.bf16 %v646, %v645
        %v654 = vunpack.c.l.bf16 %v653
        %v655 = vunpack.c.h.bf16 %v653
        %v656 = vsub.f32 %v645, %v654
        %v657 = vsub.f32 %v646, %v655
        %v658 = vpack.c.bf16 %v657, %v656
        %v660 = vsel %vm310, %v370, 0
        %662 = vmatprep.subr.bf16.mxu0 0
        %663 = vmatpush1.bf16.msra.mxu0 %v652
        %664 = vmatprep.subr.bf16.mxu0 0
        %665 = vmatpush1.bf16.msra.mxu0 0
        %666 = vmatprep.subr.bf16.mxu0 0
        %667 = vmatpush1.bf16.msra.mxu0 0
        %668 = vmatprep.subr.bf16.mxu0 0
        %669 = vmatpush1.bf16.msra.mxu0 0
        %670 = vmatprep.subr.bf16.mxu0 0
        %671 = vmatpush1.bf16.msra.mxu0 0
        %672 = vmatprep.subr.bf16.mxu0 0
        %673 = vmatpush1.bf16.msra.mxu0 0
        %674 = vmatprep.subr.bf16.mxu0 0
        %675 = vmatpush1.bf16.msra.mxu0 0
        %676 = vmatprep.subr.bf16.mxu0 0
        %677 = vmatpush1.bf16.msra.mxu0 0
        %678 = vmatprep.subr.bf16.mxu0 0
        %679 = vmatpush1.bf16.msra.mxu0 0
        %680 = vmatprep.subr.bf16.mxu0 0
        %681 = vmatpush1.bf16.msra.mxu0 0
        %682 = vmatprep.subr.bf16.mxu0 0
        %683 = vmatpush1.bf16.msra.mxu0 0
        %684 = vmatprep.subr.bf16.mxu0 0
        %685 = vmatpush1.bf16.msra.mxu0 0
        %686 = vmatprep.subr.bf16.mxu0 0
        %687 = vmatpush1.bf16.msra.mxu0 0
        %688 = vmatprep.subr.bf16.mxu0 0
        %689 = vmatpush1.bf16.msra.mxu0 0
        %690 = vmatprep.subr.bf16.mxu0 0
        %691 = vmatpush1.bf16.msra.mxu0 0
        %692 = vmatprep.subr.bf16.mxu0 0
        %693 = vmatpush1.bf16.msra.mxu0 0
        %694 = vmatprep.mubr.bf16.mxu0 0
        %695 = vmatmul.mubr.bf16.gmra.mrb[0].mxu0 %v660
        %v696 = vpop.f32.mrb[0].mxu0
        %v697 = vadd.f32 0.0, %v696
        %v698 = vpop.f32.mrb[0].mxu0
        %v699 = vpop.f32.mrb[0].mxu0
        %v700 = vadd.f32 0.0, %v699
        %v701 = vpop.f32.mrb[0].mxu0
        %702 = vdwg.mxu0
        %703 = vmatprep.subr.bf16.mxu0 0
        %704 = vmatpush1.bf16.msra.mxu0 %v647
        %705 = vmatprep.subr.bf16.mxu0 0
        %706 = vmatpush1.bf16.msra.mxu0 0
        %707 = vmatprep.subr.bf16.mxu0 0
        %708 = vmatpush1.bf16.msra.mxu0 0
        %709 = vmatprep.subr.bf16.mxu0 0
        %710 = vmatpush1.bf16.msra.mxu0 0
        %711 = vmatprep.subr.bf16.mxu0 0
        %712 = vmatpush1.bf16.msra.mxu0 0
        %713 = vmatprep.subr.bf16.mxu0 0
        %714 = vmatpush1.bf16.msra.mxu0 0
        %715 = vmatprep.subr.bf16.mxu0 0
        %716 = vmatpush1.bf16.msra.mxu0 0
        %717 = vmatprep.subr.bf16.mxu0 0
        %718 = vmatpush1.bf16.msra.mxu0 0
        %719 = vmatprep.subr.bf16.mxu0 0
        %720 = vmatpush1.bf16.msra.mxu0 0
        %721 = vmatprep.subr.bf16.mxu0 0
        %722 = vmatpush1.bf16.msra.mxu0 0
        %723 = vmatprep.subr.bf16.mxu0 0
        %724 = vmatpush1.bf16.msra.mxu0 0
        %725 = vmatprep.subr.bf16.mxu0 0
        %726 = vmatpush1.bf16.msra.mxu0 0
        %727 = vmatprep.subr.bf16.mxu0 0
        %728 = vmatpush1.bf16.msra.mxu0 0
        %729 = vmatprep.subr.bf16.mxu0 0
        %730 = vmatpush1.bf16.msra.mxu0 0
        %731 = vmatprep.subr.bf16.mxu0 0
        %732 = vmatpush1.bf16.msra.mxu0 0
        %733 = vmatprep.subr.bf16.mxu0 0
        %734 = vmatpush1.bf16.msra.mxu0 0
        %735 = vmatprep.mubr.bf16.mxu0 0
        %736 = vmatmul.mubr.bf16.gmra.mrb[0].mxu0 %v660
        %v737 = vpop.f32.mrb[0].mxu0
        %v738 = vadd.f32 %v697, %v737
        %v739 = vpop.f32.mrb[0].mxu0
        %v740 = vpop.f32.mrb[0].mxu0
        %v741 = vadd.f32 %v700, %v740
        %v742 = vpop.f32.mrb[0].mxu0
        %743 = vdwg.mxu0
        %v745 = vsel %vm310, %v308, 0
        %747 = vmatprep.subr.bf16.mxu0 0
        %748 = vmatpush1.bf16.msra.mxu0 %v647
        %749 = vmatprep.subr.bf16.mxu0 0
        %750 = vmatpush1.bf16.msra.mxu0 0
        %751 = vmatprep.subr.bf16.mxu0 0
        %752 = vmatpush1.bf16.msra.mxu0 0
        %753 = vmatprep.subr.bf16.mxu0 0
        %754 = vmatpush1.bf16.msra.mxu0 0
        %755 = vmatprep.subr.bf16.mxu0 0
        %756 = vmatpush1.bf16.msra.mxu0 0
        %757 = vmatprep.subr.bf16.mxu0 0
        %758 = vmatpush1.bf16.msra.mxu0 0
        %759 = vmatprep.subr.bf16.mxu0 0
        %760 = vmatpush1.bf16.msra.mxu0 0
        %761 = vmatprep.subr.bf16.mxu0 0
        %762 = vmatpush1.bf16.msra.mxu0 0
        %763 = vmatprep.subr.bf16.mxu0 0
        %764 = vmatpush1.bf16.msra.mxu0 0
        %765 = vmatprep.subr.bf16.mxu0 0
        %766 = vmatpush1.bf16.msra.mxu0 0
        %767 = vmatprep.subr.bf16.mxu0 0
        %768 = vmatpush1.bf16.msra.mxu0 0
        %769 = vmatprep.subr.bf16.mxu0 0
        %770 = vmatpush1.bf16.msra.mxu0 0
        %771 = vmatprep.subr.bf16.mxu0 0
        %772 = vmatpush1.bf16.msra.mxu0 0
        %773 = vmatprep.subr.bf16.mxu0 0
        %774 = vmatpush1.bf16.msra.mxu0 0
        %775 = vmatprep.subr.bf16.mxu0 0
        %776 = vmatpush1.bf16.msra.mxu0 0
        %777 = vmatprep.subr.bf16.mxu0 0
        %778 = vmatpush1.bf16.msra.mxu0 0
        %779 = vmatprep.mubr.bf16.mxu0 0
        %780 = vmatmul.mubr.bf16.gmra.mrb[0].mxu0 %v745
        %v781 = vpop.f32.mrb[0].mxu0
        %v782 = vadd.f32 0.0, %v781
        %v783 = vpop.f32.mrb[0].mxu0
        %v784 = vpop.f32.mrb[0].mxu0
        %v785 = vadd.f32 0.0, %v784
        %v786 = vpop.f32.mrb[0].mxu0
        %787 = vdwg.mxu0
        %v788 = vadd.f32 %v738, %v782
        %v789 = vadd.f32 %v741, %v785
        %v791 = vsel %vm310, %v539, 0
        %793 = vmatprep.subr.bf16.mxu0 0
        %794 = vmatpush1.bf16.msra.mxu0 %v658
        %795 = vmatprep.subr.bf16.mxu0 0
        %796 = vmatpush1.bf16.msra.mxu0 0
        %797 = vmatprep.subr.bf16.mxu0 0
        %798 = vmatpush1.bf16.msra.mxu0 0
        %799 = vmatprep.subr.bf16.mxu0 0
        %800 = vmatpush1.bf16.msra.mxu0 0
        %801 = vmatprep.subr.bf16.mxu0 0
        %802 = vmatpush1.bf16.msra.mxu0 0
        %803 = vmatprep.subr.bf16.mxu0 0
        %804 = vmatpush1.bf16.msra.mxu0 0
        %805 = vmatprep.subr.bf16.mxu0 0
        %806 = vmatpush1.bf16.msra.mxu0 0
        %807 = vmatprep.subr.bf16.mxu0 0
        %808 = vmatpush1.bf16.msra.mxu0 0
        %809 = vmatprep.subr.bf16.mxu0 0
        %810 = vmatpush1.bf16.msra.mxu0 0
        %811 = vmatprep.subr.bf16.mxu0 0
        %812 = vmatpush1.bf16.msra.mxu0 0
        %813 = vmatprep.subr.bf16.mxu0 0
        %814 = vmatpush1.bf16.msra.mxu0 0
        %815 = vmatprep.subr.bf16.mxu0 0
        %816 = vmatpush1.bf16.msra.mxu0 0
        %817 = vmatprep.subr.bf16.mxu0 0
        %818 = vmatpush1.bf16.msra.mxu0 0
        %819 = vmatprep.subr.bf16.mxu0 0
        %820 = vmatpush1.bf16.msra.mxu0 0
        %821 = vmatprep.subr.bf16.mxu0 0
        %822 = vmatpush1.bf16.msra.mxu0 0
        %823 = vmatprep.subr.bf16.mxu0 0
        %824 = vmatpush1.bf16.msra.mxu0 0
        %825 = vmatprep.mubr.bf16.mxu0 0
        %826 = vmatmul.mubr.bf16.gmra.mrb[0].mxu0 %v791
        %v827 = vpop.f32.mrb[0].mxu0
        %v828 = vadd.f32 0.0, %v827
        %v829 = vpop.f32.mrb[0].mxu0
        %v830 = vpop.f32.mrb[0].mxu0
        %v831 = vadd.f32 0.0, %v830
        %v832 = vpop.f32.mrb[0].mxu0
        %833 = vdwg.mxu0
        %834 = vmatprep.subr.bf16.mxu0 0
        %835 = vmatpush1.bf16.msra.mxu0 %v653
        %836 = vmatprep.subr.bf16.mxu0 0
        %837 = vmatpush1.bf16.msra.mxu0 0
        %838 = vmatprep.subr.bf16.mxu0 0
        %839 = vmatpush1.bf16.msra.mxu0 0
        %840 = vmatprep.subr.bf16.mxu0 0
        %841 = vmatpush1.bf16.msra.mxu0 0
        %842 = vmatprep.subr.bf16.mxu0 0
        %843 = vmatpush1.bf16.msra.mxu0 0
        %844 = vmatprep.subr.bf16.mxu0 0
        %845 = vmatpush1.bf16.msra.mxu0 0
        %846 = vmatprep.subr.bf16.mxu0 0
        %847 = vmatpush1.bf16.msra.mxu0 0
        %848 = vmatprep.subr.bf16.mxu0 0
        %849 = vmatpush1.bf16.msra.mxu0 0
        %850 = vmatprep.subr.bf16.mxu0 0
        %851 = vmatpush1.bf16.msra.mxu0 0
        %852 = vmatprep.subr.bf16.mxu0 0
        %853 = vmatpush1.bf16.msra.mxu0 0
        %854 = vmatprep.subr.bf16.mxu0 0
        %855 = vmatpush1.bf16.msra.mxu0 0
        %856 = vmatprep.subr.bf16.mxu0 0
        %857 = vmatpush1.bf16.msra.mxu0 0
        %858 = vmatprep.subr.bf16.mxu0 0
        %859 = vmatpush1.bf16.msra.mxu0 0
        %860 = vmatprep.subr.bf16.mxu0 0
        %861 = vmatpush1.bf16.msra.mxu0 0
        %862 = vmatprep.subr.bf16.mxu0 0
        %863 = vmatpush1.bf16.msra.mxu0 0
        %864 = vmatprep.subr.bf16.mxu0 0
        %865 = vmatpush1.bf16.msra.mxu0 0
        %866 = vmatprep.mubr.bf16.mxu0 0
        %867 = vmatmul.mubr.bf16.gmra.mrb[0].mxu0 %v791
        %v868 = vpop.f32.mrb[0].mxu0
        %v869 = vadd.f32 %v828, %v868
        %v870 = vpop.f32.mrb[0].mxu0
        %v871 = vpop.f32.mrb[0].mxu0
        %v872 = vadd.f32 %v831, %v871
        %v873 = vpop.f32.mrb[0].mxu0
        %874 = vdwg.mxu0
        %v876 = vsel %vm310, %v484, 0
        %878 = vmatprep.subr.bf16.mxu0 0
        %879 = vmatpush1.bf16.msra.mxu0 %v653
        %880 = vmatprep.subr.bf16.mxu0 0
        %881 = vmatpush1.bf16.msra.mxu0 0
        %882 = vmatprep.subr.bf16.mxu0 0
        %883 = vmatpush1.bf16.msra.mxu0 0
        %884 = vmatprep.subr.bf16.mxu0 0
        %885 = vmatpush1.bf16.msra.mxu0 0
        %886 = vmatprep.subr.bf16.mxu0 0
        %887 = vmatpush1.bf16.msra.mxu0 0
        %888 = vmatprep.subr.bf16.mxu0 0
        %889 = vmatpush1.bf16.msra.mxu0 0
        %890 = vmatprep.subr.bf16.mxu0 0
        %891 = vmatpush1.bf16.msra.mxu0 0
        %892 = vmatprep.subr.bf16.mxu0 0
        %893 = vmatpush1.bf16.msra.mxu0 0
        %894 = vmatprep.subr.bf16.mxu0 0
        %895 = vmatpush1.bf16.msra.mxu0 0
        %896 = vmatprep.subr.bf16.mxu0 0
        %897 = vmatpush1.bf16.msra.mxu0 0
        %898 = vmatprep.subr.bf16.mxu0 0
        %899 = vmatpush1.bf16.msra.mxu0 0
        %900 = vmatprep.subr.bf16.mxu0 0
        %901 = vmatpush1.bf16.msra.mxu0 0
        %902 = vmatprep.subr.bf16.mxu0 0
        %903 = vmatpush1.bf16.msra.mxu0 0
        %904 = vmatprep.subr.bf16.mxu0 0
        %905 = vmatpush1.bf16.msra.mxu0 0
        %906 = vmatprep.subr.bf16.mxu0 0
        %907 = vmatpush1.bf16.msra.mxu0 0
        %908 = vmatprep.subr.bf16.mxu0 0
        %909 = vmatpush1.bf16.msra.mxu0 0
        %910 = vmatprep.mubr.bf16.mxu0 0
        %911 = vmatmul.mubr.bf16.gmra.mrb[0].mxu0 %v876
        %v912 = vpop.f32.mrb[0].mxu0
        %v913 = vadd.f32 0.0, %v912
        %v914 = vpop.f32.mrb[0].mxu0
        %v915 = vpop.f32.mrb[0].mxu0
        %v916 = vadd.f32 0.0, %v915
        %v917 = vpop.f32.mrb[0].mxu0
        %918 = vdwg.mxu0
        %v919 = vadd.f32 %v869, %v913
        %v920 = vadd.f32 %v872, %v916
        %v921 = vsub.f32 %v788, %v919
        %v922 = vsub.f32 %v789, %v920
        %923 = vmatprep.subr.bf16.mxu0 0
        %924 = vmatpush1.bf16.msra.mxu0 %v658
        %925 = vmatprep.subr.bf16.mxu0 0
        %926 = vmatpush1.bf16.msra.mxu0 0
        %927 = vmatprep.subr.bf16.mxu0 0
        %928 = vmatpush1.bf16.msra.mxu0 0
        %929 = vmatprep.subr.bf16.mxu0 0
        %930 = vmatpush1.bf16.msra.mxu0 0
        %931 = vmatprep.subr.bf16.mxu0 0
        %932 = vmatpush1.bf16.msra.mxu0 0
        %933 = vmatprep.subr.bf16.mxu0 0
        %934 = vmatpush1.bf16.msra.mxu0 0
        %935 = vmatprep.subr.bf16.mxu0 0
        %936 = vmatpush1.bf16.msra.mxu0 0
        %937 = vmatprep.subr.bf16.mxu0 0
        %938 = vmatpush1.bf16.msra.mxu0 0
        %939 = vmatprep.subr.bf16.mxu0 0
        %940 = vmatpush1.bf16.msra.mxu0 0
        %941 = vmatprep.subr.bf16.mxu0 0
        %942 = vmatpush1.bf16.msra.mxu0 0
        %943 = vmatprep.subr.bf16.mxu0 0
        %944 = vmatpush1.bf16.msra.mxu0 0
        %945 = vmatprep.subr.bf16.mxu0 0
        %946 = vmatpush1.bf16.msra.mxu0 0
        %947 = vmatprep.subr.bf16.mxu0 0
        %948 = vmatpush1.bf16.msra.mxu0 0
        %949 = vmatprep.subr.bf16.mxu0 0
        %950 = vmatpush1.bf16.msra.mxu0 0
        %951 = vmatprep.subr.bf16.mxu0 0
        %952 = vmatpush1.bf16.msra.mxu0 0
        %953 = vmatprep.subr.bf16.mxu0 0
        %954 = vmatpush1.bf16.msra.mxu0 0
        %955 = vmatprep.mubr.bf16.mxu0 0
        %956 = vmatmul.mubr.bf16.gmra.mrb[0].mxu0 %v660
        %v957 = vpop.f32.mrb[0].mxu0
        %v958 = vadd.f32 0.0, %v957
        %v959 = vpop.f32.mrb[0].mxu0
        %v960 = vpop.f32.mrb[0].mxu0
        %v961 = vadd.f32 0.0, %v960
        %v962 = vpop.f32.mrb[0].mxu0
        %963 = vdwg.mxu0
        %964 = vmatprep.subr.bf16.mxu0 0
        %965 = vmatpush1.bf16.msra.mxu0 %v653
        %966 = vmatprep.subr.bf16.mxu0 0
        %967 = vmatpush1.bf16.msra.mxu0 0
        %968 = vmatprep.subr.bf16.mxu0 0
        %969 = vmatpush1.bf16.msra.mxu0 0
        %970 = vmatprep.subr.bf16.mxu0 0
        %971 = vmatpush1.bf16.msra.mxu0 0
        %972 = vmatprep.subr.bf16.mxu0 0
        %973 = vmatpush1.bf16.msra.mxu0 0
        %974 = vmatprep.subr.bf16.mxu0 0
        %975 = vmatpush1.bf16.msra.mxu0 0
        %976 = vmatprep.subr.bf16.mxu0 0
        %977 = vmatpush1.bf16.msra.mxu0 0
        %978 = vmatprep.subr.bf16.mxu0 0
        %979 = vmatpush1.bf16.msra.mxu0 0
        %980 = vmatprep.subr.bf16.mxu0 0
        %981 = vmatpush1.bf16.msra.mxu0 0
        %982 = vmatprep.subr.bf16.mxu0 0
        %983 = vmatpush1.bf16.msra.mxu0 0
        %984 = vmatprep.subr.bf16.mxu0 0
        %985 = vmatpush1.bf16.msra.mxu0 0
        %986 = vmatprep.subr.bf16.mxu0 0
        %987 = vmatpush1.bf16.msra.mxu0 0
        %988 = vmatprep.subr.bf16.mxu0 0
        %989 = vmatpush1.bf16.msra.mxu0 0
        %990 = vmatprep.subr.bf16.mxu0 0
        %991 = vmatpush1.bf16.msra.mxu0 0
        %992 = vmatprep.subr.bf16.mxu0 0
        %993 = vmatpush1.bf16.msra.mxu0 0
        %994 = vmatprep.subr.bf16.mxu0 0
        %995 = vmatpush1.bf16.msra.mxu0 0
        %996 = vmatprep.mubr.bf16.mxu0 0
        %997 = vmatmul.mubr.bf16.gmra.mrb[0].mxu0 %v660
        %v998 = vpop.f32.mrb[0].mxu0
        %v999 = vadd.f32 %v958, %v998
        %v1000 = vpop.f32.mrb[0].mxu0
        %v1001 = vpop.f32.mrb[0].mxu0
        %v1002 = vadd.f32 %v961, %v1001
        %v1003 = vpop.f32.mrb[0].mxu0
        %1004 = vdwg.mxu0
        %1005 = vmatprep.subr.bf16.mxu0 0
        %1006 = vmatpush1.bf16.msra.mxu0 %v653
        %1007 = vmatprep.subr.bf16.mxu0 0
        %1008 = vmatpush1.bf16.msra.mxu0 0
        %1009 = vmatprep.subr.bf16.mxu0 0
        %1010 = vmatpush1.bf16.msra.mxu0 0
        %1011 = vmatprep.subr.bf16.mxu0 0
        %1012 = vmatpush1.bf16.msra.mxu0 0
        %1013 = vmatprep.subr.bf16.mxu0 0
        %1014 = vmatpush1.bf16.msra.mxu0 0
        %1015 = vmatprep.subr.bf16.mxu0 0
        %1016 = vmatpush1.bf16.msra.mxu0 0
        %1017 = vmatprep.subr.bf16.mxu0 0
        %1018 = vmatpush1.bf16.msra.mxu0 0
        %1019 = vmatprep.subr.bf16.mxu0 0
        %1020 = vmatpush1.bf16.msra.mxu0 0
        %1021 = vmatprep.subr.bf16.mxu0 0
        %1022 = vmatpush1.bf16.msra.mxu0 0
        %1023 = vmatprep.subr.bf16.mxu0 0
        %1024 = vmatpush1.bf16.msra.mxu0 0
        %1025 = vmatprep.subr.bf16.mxu0 0
        %1026 = vmatpush1.bf16.msra.mxu0 0
        %1027 = vmatprep.subr.bf16.mxu0 0
        %1028 = vmatpush1.bf16.msra.mxu0 0
        %1029 = vmatprep.subr.bf16.mxu0 0
        %1030 = vmatpush1.bf16.msra.mxu0 0
        %1031 = vmatprep.subr.bf16.mxu0 0
        %1032 = vmatpush1.bf16.msra.mxu0 0
        %1033 = vmatprep.subr.bf16.mxu0 0
        %1034 = vmatpush1.bf16.msra.mxu0 0
        %1035 = vmatprep.subr.bf16.mxu0 0
        %1036 = vmatpush1.bf16.msra.mxu0 0
        %1037 = vmatprep.mubr.bf16.mxu0 0
        %1038 = vmatmul.mubr.bf16.gmra.mrb[0].mxu0 %v745
        %v1039 = vpop.f32.mrb[0].mxu0
        %v1040 = vadd.f32 0.0, %v1039
        %v1041 = vpop.f32.mrb[0].mxu0
        %v1042 = vpop.f32.mrb[0].mxu0
        %v1043 = vadd.f32 0.0, %v1042
        %v1044 = vpop.f32.mrb[0].mxu0
        %1045 = vdwg.mxu0
        %v1046 = vadd.f32 %v999, %v1040
        %v1047 = vadd.f32 %v1002, %v1043
        %1048 = vmatprep.subr.bf16.mxu0 0
        %1049 = vmatpush1.bf16.msra.mxu0 %v652
        %1050 = vmatprep.subr.bf16.mxu0 0
        %1051 = vmatpush1.bf16.msra.mxu0 0
        %1052 = vmatprep.subr.bf16.mxu0 0
        %1053 = vmatpush1.bf16.msra.mxu0 0
        %1054 = vmatprep.subr.bf16.mxu0 0
        %1055 = vmatpush1.bf16.msra.mxu0 0
        %1056 = vmatprep.subr.bf16.mxu0 0
        %1057 = vmatpush1.bf16.msra.mxu0 0
        %1058 = vmatprep.subr.bf16.mxu0 0
        %1059 = vmatpush1.bf16.msra.mxu0 0
        %1060 = vmatprep.subr.bf16.mxu0 0
        %1061 = vmatpush1.bf16.msra.mxu0 0
        %1062 = vmatprep.subr.bf16.mxu0 0
        %1063 = vmatpush1.bf16.msra.mxu0 0
        %1064 = vmatprep.subr.bf16.mxu0 0
        %1065 = vmatpush1.bf16.msra.mxu0 0
        %1066 = vmatprep.subr.bf16.mxu0 0
        %1067 = vmatpush1.bf16.msra.mxu0 0
        %1068 = vmatprep.subr.bf16.mxu0 0
        %1069 = vmatpush1.bf16.msra.mxu0 0
        %1070 = vmatprep.subr.bf16.mxu0 0
        %1071 = vmatpush1.bf16.msra.mxu0 0
        %1072 = vmatprep.subr.bf16.mxu0 0
        %1073 = vmatpush1.bf16.msra.mxu0 0
        %1074 = vmatprep.subr.bf16.mxu0 0
        %1075 = vmatpush1.bf16.msra.mxu0 0
        %1076 = vmatprep.subr.bf16.mxu0 0
        %1077 = vmatpush1.bf16.msra.mxu0 0
        %1078 = vmatprep.subr.bf16.mxu0 0
        %1079 = vmatpush1.bf16.msra.mxu0 0
        %1080 = vmatprep.mubr.bf16.mxu0 0
        %1081 = vmatmul.mubr.bf16.gmra.mrb[0].mxu0 %v791
        %v1082 = vpop.f32.mrb[0].mxu0
        %v1083 = vadd.f32 0.0, %v1082
        %v1084 = vpop.f32.mrb[0].mxu0
        %v1085 = vpop.f32.mrb[0].mxu0
        %v1086 = vadd.f32 0.0, %v1085
        %v1087 = vpop.f32.mrb[0].mxu0
        %1088 = vdwg.mxu0
        %1089 = vmatprep.subr.bf16.mxu0 0
        %1090 = vmatpush1.bf16.msra.mxu0 %v647
        %1091 = vmatprep.subr.bf16.mxu0 0
        %1092 = vmatpush1.bf16.msra.mxu0 0
        %1093 = vmatprep.subr.bf16.mxu0 0
        %1094 = vmatpush1.bf16.msra.mxu0 0
        %1095 = vmatprep.subr.bf16.mxu0 0
        %1096 = vmatpush1.bf16.msra.mxu0 0
        %1097 = vmatprep.subr.bf16.mxu0 0
        %1098 = vmatpush1.bf16.msra.mxu0 0
        %1099 = vmatprep.subr.bf16.mxu0 0
        %1100 = vmatpush1.bf16.msra.mxu0 0
        %1101 = vmatprep.subr.bf16.mxu0 0
        %1102 = vmatpush1.bf16.msra.mxu0 0
        %1103 = vmatprep.subr.bf16.mxu0 0
        %1104 = vmatpush1.bf16.msra.mxu0 0
        %1105 = vmatprep.subr.bf16.mxu0 0
        %1106 = vmatpush1.bf16.msra.mxu0 0
        %1107 = vmatprep.subr.bf16.mxu0 0
        %1108 = vmatpush1.bf16.msra.mxu0 0
        %1109 = vmatprep.subr.bf16.mxu0 0
        %1110 = vmatpush1.bf16.msra.mxu0 0
        %1111 = vmatprep.subr.bf16.mxu0 0
        %1112 = vmatpush1.bf16.msra.mxu0 0
        %1113 = vmatprep.subr.bf16.mxu0 0
        %1114 = vmatpush1.bf16.msra.mxu0 0
        %1115 = vmatprep.subr.bf16.mxu0 0
        %1116 = vmatpush1.bf16.msra.mxu0 0
        %1117 = vmatprep.subr.bf16.mxu0 0
        %1118 = vmatpush1.bf16.msra.mxu0 0
        %1119 = vmatprep.subr.bf16.mxu0 0
        %1120 = vmatpush1.bf16.msra.mxu0 0
        %1121 = vmatprep.mubr.bf16.mxu0 0
        %1122 = vmatmul.mubr.bf16.gmra.mrb[0].mxu0 %v791
        %v1123 = vpop.f32.mrb[0].mxu0
        %v1124 = vadd.f32 %v1083, %v1123
        %v1125 = vpop.f32.mrb[0].mxu0
        %v1126 = vpop.f32.mrb[0].mxu0
        %v1127 = vadd.f32 %v1086, %v1126
        %v1128 = vpop.f32.mrb[0].mxu0
        %1129 = vdwg.mxu0
        %1130 = vmatprep.subr.bf16.mxu0 0
        %1131 = vmatpush1.bf16.msra.mxu0 %v647
        %1132 = vmatprep.subr.bf16.mxu0 0
        %1133 = vmatpush1.bf16.msra.mxu0 0
        %1134 = vmatprep.subr.bf16.mxu0 0
        %1135 = vmatpush1.bf16.msra.mxu0 0
        %1136 = vmatprep.subr.bf16.mxu0 0
        %1137 = vmatpush1.bf16.msra.mxu0 0
        %1138 = vmatprep.subr.bf16.mxu0 0
        %1139 = vmatpush1.bf16.msra.mxu0 0
        %1140 = vmatprep.subr.bf16.mxu0 0
        %1141 = vmatpush1.bf16.msra.mxu0 0
        %1142 = vmatprep.subr.bf16.mxu0 0
        %1143 = vmatpush1.bf16.msra.mxu0 0
        %1144 = vmatprep.subr.bf16.mxu0 0
        %1145 = vmatpush1.bf16.msra.mxu0 0
        %1146 = vmatprep.subr.bf16.mxu0 0
        %1147 = vmatpush1.bf16.msra.mxu0 0
        %1148 = vmatprep.subr.bf16.mxu0 0
        %1149 = vmatpush1.bf16.msra.mxu0 0
        %1150 = vmatprep.subr.bf16.mxu0 0
        %1151 = vmatpush1.bf16.msra.mxu0 0
        %1152 = vmatprep.subr.bf16.mxu0 0
        %1153 = vmatpush1.bf16.msra.mxu0 0
        %1154 = vmatprep.subr.bf16.mxu0 0
        %1155 = vmatpush1.bf16.msra.mxu0 0
        %1156 = vmatprep.subr.bf16.mxu0 0
        %1157 = vmatpush1.bf16.msra.mxu0 0
        %1158 = vmatprep.subr.bf16.mxu0 0
        %1159 = vmatpush1.bf16.msra.mxu0 0
        %1160 = vmatprep.subr.bf16.mxu0 0
        %1161 = vmatpush1.bf16.msra.mxu0 0
        %1162 = vmatprep.mubr.bf16.mxu0 0
        %1163 = vmatmul.mubr.bf16.gmra.mrb[0].mxu0 %v876
        %v1164 = vpop.f32.mrb[0].mxu0
        %v1165 = vadd.f32 0.0, %v1164
        %v1166 = vpop.f32.mrb[0].mxu0
        %v1167 = vpop.f32.mrb[0].mxu0
        %v1168 = vadd.f32 0.0, %v1167
        %v1169 = vpop.f32.mrb[0].mxu0
        %1170 = vdwg.mxu0
        %v1171 = vadd.f32 %v1124, %v1165
        %v1172 = vadd.f32 %v1127, %v1168
        %v1173 = vadd.f32 %v1046, %v1171
        %v1174 = vadd.f32 %v1047, %v1172
        %v1175 = vmul.f32 %v921, %v287
        %v1176 = vmul.f32 %v922, %v288
        %v1177 = vmul.f32 %v1173, %v290
        %v1178 = vmul.f32 %v1174, %v291
        %v1179 = vsub.f32 %v1175, %v1177
        %v1180 = vsub.f32 %v1176, %v1178
        %v1181 = vmul.f32 %v921, %v290
        %v1182 = vmul.f32 %v922, %v291
        %v1183 = vmul.f32 %v1173, %v287
        %v1184 = vmul.f32 %v1174, %v288
        %v1185 = vadd.f32 %v1181, %v1183
        %v1186 = vadd.f32 %v1182, %v1184
        %v1187 = vpack.c.bf16 %v1180, %v1179
        %v1188 = vunpack.c.l.bf16 %v1187
        %v1189 = vunpack.c.h.bf16 %v1187
        %v1190 = vsub.f32 %v1179, %v1188
        %v1191 = vsub.f32 %v1180, %v1189
        %v1192 = vpack.c.bf16 %v1191, %v1190
        %v1193 = vpack.c.bf16 %v1186, %v1185
        %v1194 = vunpack.c.l.bf16 %v1193
        %v1195 = vunpack.c.h.bf16 %v1193
        %v1196 = vsub.f32 %v1185, %v1194
        %v1197 = vsub.f32 %v1186, %v1195
        %v1198 = vpack.c.bf16 %v1197, %v1196
        %1199 = vmatprep.subr.bf16.mxu0 0
        %1200 = vmatpush1.bf16.msra.mxu0 %v1192
        %1201 = vmatprep.subr.bf16.mxu0 0
        %1202 = vmatpush1.bf16.msra.mxu0 0
        %1203 = vmatprep.subr.bf16.mxu0 0
        %1204 = vmatpush1.bf16.msra.mxu0 0
        %1205 = vmatprep.subr.bf16.mxu0 0
        %1206 = vmatpush1.bf16.msra.mxu0 0
        %1207 = vmatprep.subr.bf16.mxu0 0
        %1208 = vmatpush1.bf16.msra.mxu0 0
        %1209 = vmatprep.subr.bf16.mxu0 0
        %1210 = vmatpush1.bf16.msra.mxu0 0
        %1211 = vmatprep.subr.bf16.mxu0 0
        %1212 = vmatpush1.bf16.msra.mxu0 0
        %1213 = vmatprep.subr.bf16.mxu0 0
        %1214 = vmatpush1.bf16.msra.mxu0 0
        %1215 = vmatprep.subr.bf16.mxu0 0
        %1216 = vmatpush1.bf16.msra.mxu0 0
        %1217 = vmatprep.subr.bf16.mxu0 0
        %1218 = vmatpush1.bf16.msra.mxu0 0
        %1219 = vmatprep.subr.bf16.mxu0 0
        %1220 = vmatpush1.bf16.msra.mxu0 0
        %1221 = vmatprep.subr.bf16.mxu0 0
        %1222 = vmatpush1.bf16.msra.mxu0 0
        %1223 = vmatprep.subr.bf16.mxu0 0
        %1224 = vmatpush1.bf16.msra.mxu0 0
        %1225 = vmatprep.subr.bf16.mxu0 0
        %1226 = vmatpush1.bf16.msra.mxu0 0
        %1227 = vmatprep.subr.bf16.mxu0 0
        %1228 = vmatpush1.bf16.msra.mxu0 0
        %1229 = vmatprep.subr.bf16.mxu0 0
        %1230 = vmatpush1.bf16.msra.mxu0 0
        %1231 = vmatprep.mubr.bf16.mxu0 0
        %1232 = vmatmul.mubr.bf16.gmra.mrb[0].mxu0 %v660
        %v1233 = vpop.f32.mrb[0].mxu0
        %v1234 = vadd.f32 0.0, %v1233
        %v1235 = vpop.f32.mrb[0].mxu0
        %v1236 = vpop.f32.mrb[0].mxu0
        %v1237 = vadd.f32 0.0, %v1236
        %v1238 = vpop.f32.mrb[0].mxu0
        %1239 = vdwg.mxu0
        %1240 = vmatprep.subr.bf16.mxu0 0
        %1241 = vmatpush1.bf16.msra.mxu0 %v1187
        %1242 = vmatprep.subr.bf16.mxu0 0
        %1243 = vmatpush1.bf16.msra.mxu0 0
        %1244 = vmatprep.subr.bf16.mxu0 0
        %1245 = vmatpush1.bf16.msra.mxu0 0
        %1246 = vmatprep.subr.bf16.mxu0 0
        %1247 = vmatpush1.bf16.msra.mxu0 0
        %1248 = vmatprep.subr.bf16.mxu0 0
        %1249 = vmatpush1.bf16.msra.mxu0 0
        %1250 = vmatprep.subr.bf16.mxu0 0
        %1251 = vmatpush1.bf16.msra.mxu0 0
        %1252 = vmatprep.subr.bf16.mxu0 0
        %1253 = vmatpush1.bf16.msra.mxu0 0
        %1254 = vmatprep.subr.bf16.mxu0 0
        %1255 = vmatpush1.bf16.msra.mxu0 0
        %1256 = vmatprep.subr.bf16.mxu0 0
        %1257 = vmatpush1.bf16.msra.mxu0 0
        %1258 = vmatprep.subr.bf16.mxu0 0
        %1259 = vmatpush1.bf16.msra.mxu0 0
        %1260 = vmatprep.subr.bf16.mxu0 0
        %1261 = vmatpush1.bf16.msra.mxu0 0
        %1262 = vmatprep.subr.bf16.mxu0 0
        %1263 = vmatpush1.bf16.msra.mxu0 0
        %1264 = vmatprep.subr.bf16.mxu0 0
        %1265 = vmatpush1.bf16.msra.mxu0 0
        %1266 = vmatprep.subr.bf16.mxu0 0
        %1267 = vmatpush1.bf16.msra.mxu0 0
        %1268 = vmatprep.subr.bf16.mxu0 0
        %1269 = vmatpush1.bf16.msra.mxu0 0
        %1270 = vmatprep.subr.bf16.mxu0 0
        %1271 = vmatpush1.bf16.msra.mxu0 0
        %1272 = vmatprep.mubr.bf16.mxu0 0
        %1273 = vmatmul.mubr.bf16.gmra.mrb[0].mxu0 %v660
        %v1274 = vpop.f32.mrb[0].mxu0
        %v1275 = vadd.f32 %v1234, %v1274
        %v1276 = vpop.f32.mrb[0].mxu0
        %v1277 = vpop.f32.mrb[0].mxu0
        %v1278 = vadd.f32 %v1237, %v1277
        %v1279 = vpop.f32.mrb[0].mxu0
        %1280 = vdwg.mxu0
        %1281 = vmatprep.subr.bf16.mxu0 0
        %1282 = vmatpush1.bf16.msra.mxu0 %v1187
        %1283 = vmatprep.subr.bf16.mxu0 0
        %1284 = vmatpush1.bf16.msra.mxu0 0
        %1285 = vmatprep.subr.bf16.mxu0 0
        %1286 = vmatpush1.bf16.msra.mxu0 0
        %1287 = vmatprep.subr.bf16.mxu0 0
        %1288 = vmatpush1.bf16.msra.mxu0 0
        %1289 = vmatprep.subr.bf16.mxu0 0
        %1290 = vmatpush1.bf16.msra.mxu0 0
        %1291 = vmatprep.subr.bf16.mxu0 0
        %1292 = vmatpush1.bf16.msra.mxu0 0
        %1293 = vmatprep.subr.bf16.mxu0 0
        %1294 = vmatpush1.bf16.msra.mxu0 0
        %1295 = vmatprep.subr.bf16.mxu0 0
        %1296 = vmatpush1.bf16.msra.mxu0 0
        %1297 = vmatprep.subr.bf16.mxu0 0
        %1298 = vmatpush1.bf16.msra.mxu0 0
        %1299 = vmatprep.subr.bf16.mxu0 0
        %1300 = vmatpush1.bf16.msra.mxu0 0
        %1301 = vmatprep.subr.bf16.mxu0 0
        %1302 = vmatpush1.bf16.msra.mxu0 0
        %1303 = vmatprep.subr.bf16.mxu0 0
        %1304 = vmatpush1.bf16.msra.mxu0 0
        %1305 = vmatprep.subr.bf16.mxu0 0
        %1306 = vmatpush1.bf16.msra.mxu0 0
        %1307 = vmatprep.subr.bf16.mxu0 0
        %1308 = vmatpush1.bf16.msra.mxu0 0
        %1309 = vmatprep.subr.bf16.mxu0 0
        %1310 = vmatpush1.bf16.msra.mxu0 0
        %1311 = vmatprep.subr.bf16.mxu0 0
        %1312 = vmatpush1.bf16.msra.mxu0 0
        %1313 = vmatprep.mubr.bf16.mxu0 0
        %1314 = vmatmul.mubr.bf16.gmra.mrb[0].mxu0 %v745
        %v1315 = vpop.f32.mrb[0].mxu0
        %v1316 = vadd.f32 0.0, %v1315
        %v1317 = vpop.f32.mrb[0].mxu0
        %v1318 = vpop.f32.mrb[0].mxu0
        %v1319 = vadd.f32 0.0, %v1318
        %v1320 = vpop.f32.mrb[0].mxu0
        %1321 = vdwg.mxu0
        %v1322 = vadd.f32 %v1275, %v1316
        %v1323 = vadd.f32 %v1278, %v1319
        %1324 = vmatprep.subr.bf16.mxu0 0
        %1325 = vmatpush1.bf16.msra.mxu0 %v1198
        %1326 = vmatprep.subr.bf16.mxu0 0
        %1327 = vmatpush1.bf16.msra.mxu0 0
        %1328 = vmatprep.subr.bf16.mxu0 0
        %1329 = vmatpush1.bf16.msra.mxu0 0
        %1330 = vmatprep.subr.bf16.mxu0 0
        %1331 = vmatpush1.bf16.msra.mxu0 0
        %1332 = vmatprep.subr.bf16.mxu0 0
        %1333 = vmatpush1.bf16.msra.mxu0 0
        %1334 = vmatprep.subr.bf16.mxu0 0
        %1335 = vmatpush1.bf16.msra.mxu0 0
        %1336 = vmatprep.subr.bf16.mxu0 0
        %1337 = vmatpush1.bf16.msra.mxu0 0
        %1338 = vmatprep.subr.bf16.mxu0 0
        %1339 = vmatpush1.bf16.msra.mxu0 0
        %1340 = vmatprep.subr.bf16.mxu0 0
        %1341 = vmatpush1.bf16.msra.mxu0 0
        %1342 = vmatprep.subr.bf16.mxu0 0
        %1343 = vmatpush1.bf16.msra.mxu0 0
        %1344 = vmatprep.subr.bf16.mxu0 0
        %1345 = vmatpush1.bf16.msra.mxu0 0
        %1346 = vmatprep.subr.bf16.mxu0 0
        %1347 = vmatpush1.bf16.msra.mxu0 0
        %1348 = vmatprep.subr.bf16.mxu0 0
        %1349 = vmatpush1.bf16.msra.mxu0 0
        %1350 = vmatprep.subr.bf16.mxu0 0
        %1351 = vmatpush1.bf16.msra.mxu0 0
        %1352 = vmatprep.subr.bf16.mxu0 0
        %1353 = vmatpush1.bf16.msra.mxu0 0
        %1354 = vmatprep.subr.bf16.mxu0 0
        %1355 = vmatpush1.bf16.msra.mxu0 0
        %1356 = vmatprep.mubr.bf16.mxu0 0
        %1357 = vmatmul.mubr.bf16.gmra.mrb[0].mxu0 %v791
        %v1358 = vpop.f32.mrb[0].mxu0
        %v1359 = vadd.f32 0.0, %v1358
        %v1360 = vpop.f32.mrb[0].mxu0
        %v1361 = vpop.f32.mrb[0].mxu0
        %v1362 = vadd.f32 0.0, %v1361
        %v1363 = vpop.f32.mrb[0].mxu0
        %1364 = vdwg.mxu0
        %1365 = vmatprep.subr.bf16.mxu0 0
        %1366 = vmatpush1.bf16.msra.mxu0 %v1193
        %1367 = vmatprep.subr.bf16.mxu0 0
        %1368 = vmatpush1.bf16.msra.mxu0 0
        %1369 = vmatprep.subr.bf16.mxu0 0
        %1370 = vmatpush1.bf16.msra.mxu0 0
        %1371 = vmatprep.subr.bf16.mxu0 0
        %1372 = vmatpush1.bf16.msra.mxu0 0
        %1373 = vmatprep.subr.bf16.mxu0 0
        %1374 = vmatpush1.bf16.msra.mxu0 0
        %1375 = vmatprep.subr.bf16.mxu0 0
        %1376 = vmatpush1.bf16.msra.mxu0 0
        %1377 = vmatprep.subr.bf16.mxu0 0
        %1378 = vmatpush1.bf16.msra.mxu0 0
        %1379 = vmatprep.subr.bf16.mxu0 0
        %1380 = vmatpush1.bf16.msra.mxu0 0
        %1381 = vmatprep.subr.bf16.mxu0 0
        %1382 = vmatpush1.bf16.msra.mxu0 0
        %1383 = vmatprep.subr.bf16.mxu0 0
        %1384 = vmatpush1.bf16.msra.mxu0 0
        %1385 = vmatprep.subr.bf16.mxu0 0
        %1386 = vmatpush1.bf16.msra.mxu0 0
        %1387 = vmatprep.subr.bf16.mxu0 0
        %1388 = vmatpush1.bf16.msra.mxu0 0
        %1389 = vmatprep.subr.bf16.mxu0 0
        %1390 = vmatpush1.bf16.msra.mxu0 0
        %1391 = vmatprep.subr.bf16.mxu0 0
        %1392 = vmatpush1.bf16.msra.mxu0 0
        %1393 = vmatprep.subr.bf16.mxu0 0
        %1394 = vmatpush1.bf16.msra.mxu0 0
        %1395 = vmatprep.subr.bf16.mxu0 0
        %1396 = vmatpush1.bf16.msra.mxu0 0
        %1397 = vmatprep.mubr.bf16.mxu0 0
        %1398 = vmatmul.mubr.bf16.gmra.mrb[0].mxu0 %v791
        %v1399 = vpop.f32.mrb[0].mxu0
        %v1400 = vadd.f32 %v1359, %v1399
        %v1401 = vpop.f32.mrb[0].mxu0
        %v1402 = vpop.f32.mrb[0].mxu0
        %v1403 = vadd.f32 %v1362, %v1402
        %v1404 = vpop.f32.mrb[0].mxu0
        %1405 = vdwg.mxu0
        %1406 = vmatprep.subr.bf16.mxu0 0
        %1407 = vmatpush1.bf16.msra.mxu0 %v1193
        %1408 = vmatprep.subr.bf16.mxu0 0
        %1409 = vmatpush1.bf16.msra.mxu0 0
        %1410 = vmatprep.subr.bf16.mxu0 0
        %1411 = vmatpush1.bf16.msra.mxu0 0
        %1412 = vmatprep.subr.bf16.mxu0 0
        %1413 = vmatpush1.bf16.msra.mxu0 0
        %1414 = vmatprep.subr.bf16.mxu0 0
        %1415 = vmatpush1.bf16.msra.mxu0 0
        %1416 = vmatprep.subr.bf16.mxu0 0
        %1417 = vmatpush1.bf16.msra.mxu0 0
        %1418 = vmatprep.subr.bf16.mxu0 0
        %1419 = vmatpush1.bf16.msra.mxu0 0
        %1420 = vmatprep.subr.bf16.mxu0 0
        %1421 = vmatpush1.bf16.msra.mxu0 0
        %1422 = vmatprep.subr.bf16.mxu0 0
        %1423 = vmatpush1.bf16.msra.mxu0 0
        %1424 = vmatprep.subr.bf16.mxu0 0
        %1425 = vmatpush1.bf16.msra.mxu0 0
        %1426 = vmatprep.subr.bf16.mxu0 0
        %1427 = vmatpush1.bf16.msra.mxu0 0
        %1428 = vmatprep.subr.bf16.mxu0 0
        %1429 = vmatpush1.bf16.msra.mxu0 0
        %1430 = vmatprep.subr.bf16.mxu0 0
        %1431 = vmatpush1.bf16.msra.mxu0 0
        %1432 = vmatprep.subr.bf16.mxu0 0
        %1433 = vmatpush1.bf16.msra.mxu0 0
        %1434 = vmatprep.subr.bf16.mxu0 0
        %1435 = vmatpush1.bf16.msra.mxu0 0
        %1436 = vmatprep.subr.bf16.mxu0 0
        %1437 = vmatpush1.bf16.msra.mxu0 0
        %1438 = vmatprep.mubr.bf16.mxu0 0
        %1439 = vmatmul.mubr.bf16.gmra.mrb[0].mxu0 %v876
        %v1440 = vpop.f32.mrb[0].mxu0
        %v1441 = vadd.f32 0.0, %v1440
        %v1442 = vpop.f32.mrb[0].mxu0
        %v1443 = vpop.f32.mrb[0].mxu0
        %v1444 = vadd.f32 0.0, %v1443
        %v1445 = vpop.f32.mrb[0].mxu0
        %1446 = vdwg.mxu0
        %v1447 = vadd.f32 %v1400, %v1441
        %v1448 = vadd.f32 %v1403, %v1444
        %v1449 = vadd.f32 %v1322, %v1447
        %v1450 = vadd.f32 %v1323, %v1448
        %1451 = vmatprep.subr.bf16.mxu0 0
        %1452 = vmatpush1.bf16.msra.mxu0 %v1198
        %1453 = vmatprep.subr.bf16.mxu0 0
        %1454 = vmatpush1.bf16.msra.mxu0 0
        %1455 = vmatprep.subr.bf16.mxu0 0
        %1456 = vmatpush1.bf16.msra.mxu0 0
        %1457 = vmatprep.subr.bf16.mxu0 0
        %1458 = vmatpush1.bf16.msra.mxu0 0
        %1459 = vmatprep.subr.bf16.mxu0 0
        %1460 = vmatpush1.bf16.msra.mxu0 0
        %1461 = vmatprep.subr.bf16.mxu0 0
        %1462 = vmatpush1.bf16.msra.mxu0 0
        %1463 = vmatprep.subr.bf16.mxu0 0
        %1464 = vmatpush1.bf16.msra.mxu0 0
        %1465 = vmatprep.subr.bf16.mxu0 0
        %1466 = vmatpush1.bf16.msra.mxu0 0
        %1467 = vmatprep.subr.bf16.mxu0 0
        %1468 = vmatpush1.bf16.msra.mxu0 0
        %1469 = vmatprep.subr.bf16.mxu0 0
        %1470 = vmatpush1.bf16.msra.mxu0 0
        %1471 = vmatprep.subr.bf16.mxu0 0
        %1472 = vmatpush1.bf16.msra.mxu0 0
        %1473 = vmatprep.subr.bf16.mxu0 0
        %1474 = vmatpush1.bf16.msra.mxu0 0
        %1475 = vmatprep.subr.bf16.mxu0 0
        %1476 = vmatpush1.bf16.msra.mxu0 0
        %1477 = vmatprep.subr.bf16.mxu0 0
        %1478 = vmatpush1.bf16.msra.mxu0 0
        %1479 = vmatprep.subr.bf16.mxu0 0
        %1480 = vmatpush1.bf16.msra.mxu0 0
        %1481 = vmatprep.subr.bf16.mxu0 0
        %1482 = vmatpush1.bf16.msra.mxu0 0
        %1483 = vmatprep.mubr.bf16.mxu0 0
        %1484 = vmatmul.mubr.bf16.gmra.mrb[0].mxu0 %v660
        %v1485 = vpop.f32.mrb[0].mxu0
        %v1486 = vadd.f32 0.0, %v1485
        %v1487 = vpop.f32.mrb[0].mxu0
        %v1488 = vpop.f32.mrb[0].mxu0
        %v1489 = vadd.f32 0.0, %v1488
        %v1490 = vpop.f32.mrb[0].mxu0
        %1491 = vdwg.mxu0
        %1492 = vmatprep.subr.bf16.mxu0 0
        %1493 = vmatpush1.bf16.msra.mxu0 %v1193
        %1494 = vmatprep.subr.bf16.mxu0 0
        %1495 = vmatpush1.bf16.msra.mxu0 0
        %1496 = vmatprep.subr.bf16.mxu0 0
        %1497 = vmatpush1.bf16.msra.mxu0 0
        %1498 = vmatprep.subr.bf16.mxu0 0
        %1499 = vmatpush1.bf16.msra.mxu0 0
        %1500 = vmatprep.subr.bf16.mxu0 0
        %1501 = vmatpush1.bf16.msra.mxu0 0
        %1502 = vmatprep.subr.bf16.mxu0 0
        %1503 = vmatpush1.bf16.msra.mxu0 0
        %1504 = vmatprep.subr.bf16.mxu0 0
        %1505 = vmatpush1.bf16.msra.mxu0 0
        %1506 = vmatprep.subr.bf16.mxu0 0
        %1507 = vmatpush1.bf16.msra.mxu0 0
        %1508 = vmatprep.subr.bf16.mxu0 0
        %1509 = vmatpush1.bf16.msra.mxu0 0
        %1510 = vmatprep.subr.bf16.mxu0 0
        %1511 = vmatpush1.bf16.msra.mxu0 0
        %1512 = vmatprep.subr.bf16.mxu0 0
        %1513 = vmatpush1.bf16.msra.mxu0 0
        %1514 = vmatprep.subr.bf16.mxu0 0
        %1515 = vmatpush1.bf16.msra.mxu0 0
        %1516 = vmatprep.subr.bf16.mxu0 0
        %1517 = vmatpush1.bf16.msra.mxu0 0
        %1518 = vmatprep.subr.bf16.mxu0 0
        %1519 = vmatpush1.bf16.msra.mxu0 0
        %1520 = vmatprep.subr.bf16.mxu0 0
        %1521 = vmatpush1.bf16.msra.mxu0 0
        %1522 = vmatprep.subr.bf16.mxu0 0
        %1523 = vmatpush1.bf16.msra.mxu0 0
        %1524 = vmatprep.mubr.bf16.mxu0 0
        %1525 = vmatmul.mubr.bf16.gmra.mrb[0].mxu0 %v660
        %v1526 = vpop.f32.mrb[0].mxu0
        %v1527 = vadd.f32 %v1486, %v1526
        %v1528 = vpop.f32.mrb[0].mxu0
        %v1529 = vpop.f32.mrb[0].mxu0
        %v1530 = vadd.f32 %v1489, %v1529
        %v1531 = vpop.f32.mrb[0].mxu0
        %1532 = vdwg.mxu0
        %1533 = vmatprep.subr.bf16.mxu0 0
        %1534 = vmatpush1.bf16.msra.mxu0 %v1193
        %1535 = vmatprep.subr.bf16.mxu0 0
        %1536 = vmatpush1.bf16.msra.mxu0 0
        %1537 = vmatprep.subr.bf16.mxu0 0
        %1538 = vmatpush1.bf16.msra.mxu0 0
        %1539 = vmatprep.subr.bf16.mxu0 0
        %1540 = vmatpush1.bf16.msra.mxu0 0
        %1541 = vmatprep.subr.bf16.mxu0 0
        %1542 = vmatpush1.bf16.msra.mxu0 0
        %1543 = vmatprep.subr.bf16.mxu0 0
        %1544 = vmatpush1.bf16.msra.mxu0 0
        %1545 = vmatprep.subr.bf16.mxu0 0
        %1546 = vmatpush1.bf16.msra.mxu0 0
        %1547 = vmatprep.subr.bf16.mxu0 0
        %1548 = vmatpush1.bf16.msra.mxu0 0
        %1549 = vmatprep.subr.bf16.mxu0 0
        %1550 = vmatpush1.bf16.msra.mxu0 0
        %1551 = vmatprep.subr.bf16.mxu0 0
        %1552 = vmatpush1.bf16.msra.mxu0 0
        %1553 = vmatprep.subr.bf16.mxu0 0
        %1554 = vmatpush1.bf16.msra.mxu0 0
        %1555 = vmatprep.subr.bf16.mxu0 0
        %1556 = vmatpush1.bf16.msra.mxu0 0
        %1557 = vmatprep.subr.bf16.mxu0 0
        %1558 = vmatpush1.bf16.msra.mxu0 0
        %1559 = vmatprep.subr.bf16.mxu0 0
        %1560 = vmatpush1.bf16.msra.mxu0 0
        %1561 = vmatprep.subr.bf16.mxu0 0
        %1562 = vmatpush1.bf16.msra.mxu0 0
        %1563 = vmatprep.subr.bf16.mxu0 0
        %1564 = vmatpush1.bf16.msra.mxu0 0
        %1565 = vmatprep.mubr.bf16.mxu0 0
        %1566 = vmatmul.mubr.bf16.gmra.mrb[0].mxu0 %v745
        %v1567 = vpop.f32.mrb[0].mxu0
        %v1568 = vadd.f32 0.0, %v1567
        %v1569 = vpop.f32.mrb[0].mxu0
        %v1570 = vpop.f32.mrb[0].mxu0
        %v1571 = vadd.f32 0.0, %v1570
        %v1572 = vpop.f32.mrb[0].mxu0
        %1573 = vdwg.mxu0
        %v1574 = vadd.f32 %v1527, %v1568
        %v1575 = vadd.f32 %v1530, %v1571
        %1576 = vmatprep.subr.bf16.mxu0 0
        %1577 = vmatpush1.bf16.msra.mxu0 %v1192
        %1578 = vmatprep.subr.bf16.mxu0 0
        %1579 = vmatpush1.bf16.msra.mxu0 0
        %1580 = vmatprep.subr.bf16.mxu0 0
        %1581 = vmatpush1.bf16.msra.mxu0 0
        %1582 = vmatprep.subr.bf16.mxu0 0
        %1583 = vmatpush1.bf16.msra.mxu0 0
        %1584 = vmatprep.subr.bf16.mxu0 0
        %1585 = vmatpush1.bf16.msra.mxu0 0
        %1586 = vmatprep.subr.bf16.mxu0 0
        %1587 = vmatpush1.bf16.msra.mxu0 0
        %1588 = vmatprep.subr.bf16.mxu0 0
        %1589 = vmatpush1.bf16.msra.mxu0 0
        %1590 = vmatprep.subr.bf16.mxu0 0
        %1591 = vmatpush1.bf16.msra.mxu0 0
        %1592 = vmatprep.subr.bf16.mxu0 0
        %1593 = vmatpush1.bf16.msra.mxu0 0
        %1594 = vmatprep.subr.bf16.mxu0 0
        %1595 = vmatpush1.bf16.msra.mxu0 0
        %1596 = vmatprep.subr.bf16.mxu0 0
        %1597 = vmatpush1.bf16.msra.mxu0 0
        %1598 = vmatprep.subr.bf16.mxu0 0
        %1599 = vmatpush1.bf16.msra.mxu0 0
        %1600 = vmatprep.subr.bf16.mxu0 0
        %1601 = vmatpush1.bf16.msra.mxu0 0
        %1602 = vmatprep.subr.bf16.mxu0 0
        %1603 = vmatpush1.bf16.msra.mxu0 0
        %1604 = vmatprep.subr.bf16.mxu0 0
        %1605 = vmatpush1.bf16.msra.mxu0 0
        %1606 = vmatprep.subr.bf16.mxu0 0
        %1607 = vmatpush1.bf16.msra.mxu0 0
        %1608 = vmatprep.mubr.bf16.mxu0 0
        %1609 = vmatmul.mubr.bf16.gmra.mrb[0].mxu0 %v791
        %v1610 = vpop.f32.mrb[0].mxu0
        %v1611 = vadd.f32 0.0, %v1610
        %v1612 = vpop.f32.mrb[0].mxu0
        %v1613 = vpop.f32.mrb[0].mxu0
        %v1614 = vadd.f32 0.0, %v1613
        %v1615 = vpop.f32.mrb[0].mxu0
        %1616 = vdwg.mxu0
        %1617 = vmatprep.subr.bf16.mxu0 0
        %1618 = vmatpush1.bf16.msra.mxu0 %v1187
        %1619 = vmatprep.subr.bf16.mxu0 0
        %1620 = vmatpush1.bf16.msra.mxu0 0
        %1621 = vmatprep.subr.bf16.mxu0 0
        %1622 = vmatpush1.bf16.msra.mxu0 0
        %1623 = vmatprep.subr.bf16.mxu0 0
        %1624 = vmatpush1.bf16.msra.mxu0 0
        %1625 = vmatprep.subr.bf16.mxu0 0
        %1626 = vmatpush1.bf16.msra.mxu0 0
        %1627 = vmatprep.subr.bf16.mxu0 0
        %1628 = vmatpush1.bf16.msra.mxu0 0
        %1629 = vmatprep.subr.bf16.mxu0 0
        %1630 = vmatpush1.bf16.msra.mxu0 0
        %1631 = vmatprep.subr.bf16.mxu0 0
        %1632 = vmatpush1.bf16.msra.mxu0 0
        %1633 = vmatprep.subr.bf16.mxu0 0
        %1634 = vmatpush1.bf16.msra.mxu0 0
        %1635 = vmatprep.subr.bf16.mxu0 0
        %1636 = vmatpush1.bf16.msra.mxu0 0
        %1637 = vmatprep.subr.bf16.mxu0 0
        %1638 = vmatpush1.bf16.msra.mxu0 0
        %1639 = vmatprep.subr.bf16.mxu0 0
        %1640 = vmatpush1.bf16.msra.mxu0 0
        %1641 = vmatprep.subr.bf16.mxu0 0
        %1642 = vmatpush1.bf16.msra.mxu0 0
        %1643 = vmatprep.subr.bf16.mxu0 0
        %1644 = vmatpush1.bf16.msra.mxu0 0
        %1645 = vmatprep.subr.bf16.mxu0 0
        %1646 = vmatpush1.bf16.msra.mxu0 0
        %1647 = vmatprep.subr.bf16.mxu0 0
        %1648 = vmatpush1.bf16.msra.mxu0 0
        %1649 = vmatprep.mubr.bf16.mxu0 0
        %1650 = vmatmul.mubr.bf16.gmra.mrb[0].mxu0 %v791
        %v1651 = vpop.f32.mrb[0].mxu0
        %v1652 = vadd.f32 %v1611, %v1651
        %v1653 = vpop.f32.mrb[0].mxu0
        %v1654 = vpop.f32.mrb[0].mxu0
        %v1655 = vadd.f32 %v1614, %v1654
        %v1656 = vpop.f32.mrb[0].mxu0
        %1657 = vdwg.mxu0
        %1658 = vmatprep.subr.bf16.mxu0 0
        %1659 = vmatpush1.bf16.msra.mxu0 %v1187
        %1660 = vmatprep.subr.bf16.mxu0 0
        %1661 = vmatpush1.bf16.msra.mxu0 0
        %1662 = vmatprep.subr.bf16.mxu0 0
        %1663 = vmatpush1.bf16.msra.mxu0 0
        %1664 = vmatprep.subr.bf16.mxu0 0
        %1665 = vmatpush1.bf16.msra.mxu0 0
        %1666 = vmatprep.subr.bf16.mxu0 0
        %1667 = vmatpush1.bf16.msra.mxu0 0
        %1668 = vmatprep.subr.bf16.mxu0 0
        %1669 = vmatpush1.bf16.msra.mxu0 0
        %1670 = vmatprep.subr.bf16.mxu0 0
        %1671 = vmatpush1.bf16.msra.mxu0 0
        %1672 = vmatprep.subr.bf16.mxu0 0
        %1673 = vmatpush1.bf16.msra.mxu0 0
        %1674 = vmatprep.subr.bf16.mxu0 0
        %1675 = vmatpush1.bf16.msra.mxu0 0
        %1676 = vmatprep.subr.bf16.mxu0 0
        %1677 = vmatpush1.bf16.msra.mxu0 0
        %1678 = vmatprep.subr.bf16.mxu0 0
        %1679 = vmatpush1.bf16.msra.mxu0 0
        %1680 = vmatprep.subr.bf16.mxu0 0
        %1681 = vmatpush1.bf16.msra.mxu0 0
        %1682 = vmatprep.subr.bf16.mxu0 0
        %1683 = vmatpush1.bf16.msra.mxu0 0
        %1684 = vmatprep.subr.bf16.mxu0 0
        %1685 = vmatpush1.bf16.msra.mxu0 0
        %1686 = vmatprep.subr.bf16.mxu0 0
        %1687 = vmatpush1.bf16.msra.mxu0 0
        %1688 = vmatprep.subr.bf16.mxu0 0
        %1689 = vmatpush1.bf16.msra.mxu0 0
        %1690 = vmatprep.mubr.bf16.mxu0 0
        %1691 = vmatmul.mubr.bf16.gmra.mrb[0].mxu0 %v876
        %v1692 = vpop.f32.mrb[0].mxu0
        %v1693 = vadd.f32 0.0, %v1692
        %v1694 = vpop.f32.mrb[0].mxu0
        %v1695 = vpop.f32.mrb[0].mxu0
        %v1696 = vadd.f32 0.0, %v1695
        %v1697 = vpop.f32.mrb[0].mxu0
        %1698 = vdwg.mxu0
        %v1699 = vadd.f32 %v1652, %v1693
        %v1700 = vadd.f32 %v1655, %v1696
        %v1701 = vsub.f32 %v1574, %v1699
        %v1702 = vsub.f32 %v1575, %v1700
        %v1703 = vpack.c.bf16 %v1450, %v1449
        %v1704 = vunpack.c.l.bf16 %v1703
        %v1705 = vunpack.c.h.bf16 %v1703
        %v1706 = vsub.f32 %v1449, %v1704
        %v1707 = vsub.f32 %v1450, %v1705
        %v1708 = vpack.c.bf16 %v1707, %v1706
        %v1709 = vpack.c.bf16 %v1702, %v1701
        %v1710 = vunpack.c.l.bf16 %v1709
        %v1711 = vunpack.c.h.bf16 %v1709
        %v1712 = vsub.f32 %v1701, %v1710
        %v1713 = vsub.f32 %v1702, %v1711
        %v1714 = vpack.c.bf16 %v1713, %v1712
        %v1716 = vsel %vm310, %v1703, 0
        %1718 = vmatprep.subr.bf16.mxu0 0
        %1719 = vmatpush1.bf16.msra.mxu0 %v308
        %1720 = vmatprep.subr.bf16.mxu0 0
        %1721 = vmatpush1.bf16.msra.mxu0 0
        %1722 = vmatprep.subr.bf16.mxu0 0
        %1723 = vmatpush1.bf16.msra.mxu0 0
        %1724 = vmatprep.subr.bf16.mxu0 0
        %1725 = vmatpush1.bf16.msra.mxu0 0
        %1726 = vmatprep.subr.bf16.mxu0 0
        %1727 = vmatpush1.bf16.msra.mxu0 0
        %1728 = vmatprep.subr.bf16.mxu0 0
        %1729 = vmatpush1.bf16.msra.mxu0 0
        %1730 = vmatprep.subr.bf16.mxu0 0
        %1731 = vmatpush1.bf16.msra.mxu0 0
        %1732 = vmatprep.subr.bf16.mxu0 0
        %1733 = vmatpush1.bf16.msra.mxu0 0
        %1734 = vmatprep.subr.bf16.mxu0 0
        %1735 = vmatpush1.bf16.msra.mxu0 0
        %1736 = vmatprep.subr.bf16.mxu0 0
        %1737 = vmatpush1.bf16.msra.mxu0 0
        %1738 = vmatprep.subr.bf16.mxu0 0
        %1739 = vmatpush1.bf16.msra.mxu0 0
        %1740 = vmatprep.subr.bf16.mxu0 0
        %1741 = vmatpush1.bf16.msra.mxu0 0
        %1742 = vmatprep.subr.bf16.mxu0 0
        %1743 = vmatpush1.bf16.msra.mxu0 0
        %1744 = vmatprep.subr.bf16.mxu0 0
        %1745 = vmatpush1.bf16.msra.mxu0 0
        %1746 = vmatprep.subr.bf16.mxu0 0
        %1747 = vmatpush1.bf16.msra.mxu0 0
        %1748 = vmatprep.subr.bf16.mxu0 0
        %1749 = vmatpush1.bf16.msra.mxu0 0
        %1750 = vmatprep.mubr.bf16.mxu0 0
        %1751 = vmatmul.mubr.bf16.gmra.mrb[0].mxu0 %v1716
        %v1752 = vpop.f32.mrb[0].mxu0
        %v1753 = vadd.f32 0.0, %v1752
        %v1754 = vpop.f32.mrb[0].mxu0
        %v1755 = vpop.f32.mrb[0].mxu0
        %v1756 = vadd.f32 0.0, %v1755
        %v1757 = vpop.f32.mrb[0].mxu0
        %1758 = vdwg.mxu0
        %1759 = vmatprep.subr.bf16.mxu0 0
        %1760 = vmatpush1.bf16.msra.mxu0 %v370
        %1761 = vmatprep.subr.bf16.mxu0 0
        %1762 = vmatpush1.bf16.msra.mxu0 0
        %1763 = vmatprep.subr.bf16.mxu0 0
        %1764 = vmatpush1.bf16.msra.mxu0 0
        %1765 = vmatprep.subr.bf16.mxu0 0
        %1766 = vmatpush1.bf16.msra.mxu0 0
        %1767 = vmatprep.subr.bf16.mxu0 0
        %1768 = vmatpush1.bf16.msra.mxu0 0
        %1769 = vmatprep.subr.bf16.mxu0 0
        %1770 = vmatpush1.bf16.msra.mxu0 0
        %1771 = vmatprep.subr.bf16.mxu0 0
        %1772 = vmatpush1.bf16.msra.mxu0 0
        %1773 = vmatprep.subr.bf16.mxu0 0
        %1774 = vmatpush1.bf16.msra.mxu0 0
        %1775 = vmatprep.subr.bf16.mxu0 0
        %1776 = vmatpush1.bf16.msra.mxu0 0
        %1777 = vmatprep.subr.bf16.mxu0 0
        %1778 = vmatpush1.bf16.msra.mxu0 0
        %1779 = vmatprep.subr.bf16.mxu0 0
        %1780 = vmatpush1.bf16.msra.mxu0 0
        %1781 = vmatprep.subr.bf16.mxu0 0
        %1782 = vmatpush1.bf16.msra.mxu0 0
        %1783 = vmatprep.subr.bf16.mxu0 0
        %1784 = vmatpush1.bf16.msra.mxu0 0
        %1785 = vmatprep.subr.bf16.mxu0 0
        %1786 = vmatpush1.bf16.msra.mxu0 0
        %1787 = vmatprep.subr.bf16.mxu0 0
        %1788 = vmatpush1.bf16.msra.mxu0 0
        %1789 = vmatprep.subr.bf16.mxu0 0
        %1790 = vmatpush1.bf16.msra.mxu0 0
        %1791 = vmatprep.mubr.bf16.mxu0 0
        %1792 = vmatmul.mubr.bf16.gmra.mrb[0].mxu0 %v1716
        %v1793 = vpop.f32.mrb[0].mxu0
        %v1794 = vadd.f32 %v1753, %v1793
        %v1795 = vpop.f32.mrb[0].mxu0
        %v1796 = vpop.f32.mrb[0].mxu0
        %v1797 = vadd.f32 %v1756, %v1796
        %v1798 = vpop.f32.mrb[0].mxu0
        %1799 = vdwg.mxu0
        %v1801 = vsel %vm310, %v1708, 0
        %1803 = vmatprep.subr.bf16.mxu0 0
        %1804 = vmatpush1.bf16.msra.mxu0 %v370
        %1805 = vmatprep.subr.bf16.mxu0 0
        %1806 = vmatpush1.bf16.msra.mxu0 0
        %1807 = vmatprep.subr.bf16.mxu0 0
        %1808 = vmatpush1.bf16.msra.mxu0 0
        %1809 = vmatprep.subr.bf16.mxu0 0
        %1810 = vmatpush1.bf16.msra.mxu0 0
        %1811 = vmatprep.subr.bf16.mxu0 0
        %1812 = vmatpush1.bf16.msra.mxu0 0
        %1813 = vmatprep.subr.bf16.mxu0 0
        %1814 = vmatpush1.bf16.msra.mxu0 0
        %1815 = vmatprep.subr.bf16.mxu0 0
        %1816 = vmatpush1.bf16.msra.mxu0 0
        %1817 = vmatprep.subr.bf16.mxu0 0
        %1818 = vmatpush1.bf16.msra.mxu0 0
        %1819 = vmatprep.subr.bf16.mxu0 0
        %1820 = vmatpush1.bf16.msra.mxu0 0
        %1821 = vmatprep.subr.bf16.mxu0 0
        %1822 = vmatpush1.bf16.msra.mxu0 0
        %1823 = vmatprep.subr.bf16.mxu0 0
        %1824 = vmatpush1.bf16.msra.mxu0 0
        %1825 = vmatprep.subr.bf16.mxu0 0
        %1826 = vmatpush1.bf16.msra.mxu0 0
        %1827 = vmatprep.subr.bf16.mxu0 0
        %1828 = vmatpush1.bf16.msra.mxu0 0
        %1829 = vmatprep.subr.bf16.mxu0 0
        %1830 = vmatpush1.bf16.msra.mxu0 0
        %1831 = vmatprep.subr.bf16.mxu0 0
        %1832 = vmatpush1.bf16.msra.mxu0 0
        %1833 = vmatprep.subr.bf16.mxu0 0
        %1834 = vmatpush1.bf16.msra.mxu0 0
        %1835 = vmatprep.mubr.bf16.mxu0 0
        %1836 = vmatmul.mubr.bf16.gmra.mrb[0].mxu0 %v1801
        %v1837 = vpop.f32.mrb[0].mxu0
        %v1838 = vadd.f32 0.0, %v1837
        %v1839 = vpop.f32.mrb[0].mxu0
        %v1840 = vpop.f32.mrb[0].mxu0
        %v1841 = vadd.f32 0.0, %v1840
        %v1842 = vpop.f32.mrb[0].mxu0
        %1843 = vdwg.mxu0
        %v1844 = vadd.f32 %v1794, %v1838
        %v1845 = vadd.f32 %v1797, %v1841
        %v1847 = vsel %vm310, %v1709, 0
        %1849 = vmatprep.subr.bf16.mxu0 0
        %1850 = vmatpush1.bf16.msra.mxu0 %v484
        %1851 = vmatprep.subr.bf16.mxu0 0
        %1852 = vmatpush1.bf16.msra.mxu0 0
        %1853 = vmatprep.subr.bf16.mxu0 0
        %1854 = vmatpush1.bf16.msra.mxu0 0
        %1855 = vmatprep.subr.bf16.mxu0 0
        %1856 = vmatpush1.bf16.msra.mxu0 0
        %1857 = vmatprep.subr.bf16.mxu0 0
        %1858 = vmatpush1.bf16.msra.mxu0 0
        %1859 = vmatprep.subr.bf16.mxu0 0
        %1860 = vmatpush1.bf16.msra.mxu0 0
        %1861 = vmatprep.subr.bf16.mxu0 0
        %1862 = vmatpush1.bf16.msra.mxu0 0
        %1863 = vmatprep.subr.bf16.mxu0 0
        %1864 = vmatpush1.bf16.msra.mxu0 0
        %1865 = vmatprep.subr.bf16.mxu0 0
        %1866 = vmatpush1.bf16.msra.mxu0 0
        %1867 = vmatprep.subr.bf16.mxu0 0
        %1868 = vmatpush1.bf16.msra.mxu0 0
        %1869 = vmatprep.subr.bf16.mxu0 0
        %1870 = vmatpush1.bf16.msra.mxu0 0
        %1871 = vmatprep.subr.bf16.mxu0 0
        %1872 = vmatpush1.bf16.msra.mxu0 0
        %1873 = vmatprep.subr.bf16.mxu0 0
        %1874 = vmatpush1.bf16.msra.mxu0 0
        %1875 = vmatprep.subr.bf16.mxu0 0
        %1876 = vmatpush1.bf16.msra.mxu0 0
        %1877 = vmatprep.subr.bf16.mxu0 0
        %1878 = vmatpush1.bf16.msra.mxu0 0
        %1879 = vmatprep.subr.bf16.mxu0 0
        %1880 = vmatpush1.bf16.msra.mxu0 0
        %1881 = vmatprep.mubr.bf16.mxu0 0
        %1882 = vmatmul.mubr.bf16.gmra.mrb[0].mxu0 %v1847
        %v1883 = vpop.f32.mrb[0].mxu0
        %v1884 = vadd.f32 0.0, %v1883
        %v1885 = vpop.f32.mrb[0].mxu0
        %v1886 = vpop.f32.mrb[0].mxu0
        %v1887 = vadd.f32 0.0, %v1886
        %v1888 = vpop.f32.mrb[0].mxu0
        %1889 = vdwg.mxu0
        %1890 = vmatprep.subr.bf16.mxu0 0
        %1891 = vmatpush1.bf16.msra.mxu0 %v539
        %1892 = vmatprep.subr.bf16.mxu0 0
        %1893 = vmatpush1.bf16.msra.mxu0 0
        %1894 = vmatprep.subr.bf16.mxu0 0
        %1895 = vmatpush1.bf16.msra.mxu0 0
        %1896 = vmatprep.subr.bf16.mxu0 0
        %1897 = vmatpush1.bf16.msra.mxu0 0
        %1898 = vmatprep.subr.bf16.mxu0 0
        %1899 = vmatpush1.bf16.msra.mxu0 0
        %1900 = vmatprep.subr.bf16.mxu0 0
        %1901 = vmatpush1.bf16.msra.mxu0 0
        %1902 = vmatprep.subr.bf16.mxu0 0
        %1903 = vmatpush1.bf16.msra.mxu0 0
        %1904 = vmatprep.subr.bf16.mxu0 0
        %1905 = vmatpush1.bf16.msra.mxu0 0
        %1906 = vmatprep.subr.bf16.mxu0 0
        %1907 = vmatpush1.bf16.msra.mxu0 0
        %1908 = vmatprep.subr.bf16.mxu0 0
        %1909 = vmatpush1.bf16.msra.mxu0 0
        %1910 = vmatprep.subr.bf16.mxu0 0
        %1911 = vmatpush1.bf16.msra.mxu0 0
        %1912 = vmatprep.subr.bf16.mxu0 0
        %1913 = vmatpush1.bf16.msra.mxu0 0
        %1914 = vmatprep.subr.bf16.mxu0 0
        %1915 = vmatpush1.bf16.msra.mxu0 0
        %1916 = vmatprep.subr.bf16.mxu0 0
        %1917 = vmatpush1.bf16.msra.mxu0 0
        %1918 = vmatprep.subr.bf16.mxu0 0
        %1919 = vmatpush1.bf16.msra.mxu0 0
        %1920 = vmatprep.subr.bf16.mxu0 0
        %1921 = vmatpush1.bf16.msra.mxu0 0
        %1922 = vmatprep.mubr.bf16.mxu0 0
        %1923 = vmatmul.mubr.bf16.gmra.mrb[0].mxu0 %v1847
        %v1924 = vpop.f32.mrb[0].mxu0
        %v1925 = vadd.f32 %v1884, %v1924
        %v1926 = vpop.f32.mrb[0].mxu0
        %v1927 = vpop.f32.mrb[0].mxu0
        %v1928 = vadd.f32 %v1887, %v1927
        %v1929 = vpop.f32.mrb[0].mxu0
        %1930 = vdwg.mxu0
        %v1932 = vsel %vm310, %v1714, 0
        %1934 = vmatprep.subr.bf16.mxu0 0
        %1935 = vmatpush1.bf16.msra.mxu0 %v539
        %1936 = vmatprep.subr.bf16.mxu0 0
        %1937 = vmatpush1.bf16.msra.mxu0 0
        %1938 = vmatprep.subr.bf16.mxu0 0
        %1939 = vmatpush1.bf16.msra.mxu0 0
        %1940 = vmatprep.subr.bf16.mxu0 0
        %1941 = vmatpush1.bf16.msra.mxu0 0
        %1942 = vmatprep.subr.bf16.mxu0 0
        %1943 = vmatpush1.bf16.msra.mxu0 0
        %1944 = vmatprep.subr.bf16.mxu0 0
        %1945 = vmatpush1.bf16.msra.mxu0 0
        %1946 = vmatprep.subr.bf16.mxu0 0
        %1947 = vmatpush1.bf16.msra.mxu0 0
        %1948 = vmatprep.subr.bf16.mxu0 0
        %1949 = vmatpush1.bf16.msra.mxu0 0
        %1950 = vmatprep.subr.bf16.mxu0 0
        %1951 = vmatpush1.bf16.msra.mxu0 0
        %1952 = vmatprep.subr.bf16.mxu0 0
        %1953 = vmatpush1.bf16.msra.mxu0 0
        %1954 = vmatprep.subr.bf16.mxu0 0
        %1955 = vmatpush1.bf16.msra.mxu0 0
        %1956 = vmatprep.subr.bf16.mxu0 0
        %1957 = vmatpush1.bf16.msra.mxu0 0
        %1958 = vmatprep.subr.bf16.mxu0 0
        %1959 = vmatpush1.bf16.msra.mxu0 0
        %1960 = vmatprep.subr.bf16.mxu0 0
        %1961 = vmatpush1.bf16.msra.mxu0 0
        %1962 = vmatprep.subr.bf16.mxu0 0
        %1963 = vmatpush1.bf16.msra.mxu0 0
        %1964 = vmatprep.subr.bf16.mxu0 0
        %1965 = vmatpush1.bf16.msra.mxu0 0
        %1966 = vmatprep.mubr.bf16.mxu0 0
        %1967 = vmatmul.mubr.bf16.gmra.mrb[0].mxu0 %v1932
        %v1968 = vpop.f32.mrb[0].mxu0
        %v1969 = vadd.f32 0.0, %v1968
        %v1970 = vpop.f32.mrb[0].mxu0
        %v1971 = vpop.f32.mrb[0].mxu0
        %v1972 = vadd.f32 0.0, %v1971
        %v1973 = vpop.f32.mrb[0].mxu0
        %1974 = vdwg.mxu0
        %v1975 = vadd.f32 %v1925, %v1969
        %v1976 = vadd.f32 %v1928, %v1972
        %v1977 = vadd.f32 %v1844, %v1975
        %v1978 = vadd.f32 %v1845, %v1976
        %v1979 = vld [vmem:[#allocation2] sm:$0xff]
        %v1980 = vsub.f32 %v1977, %v274
        %v1981 = vsub.f32 %v1978, %v275
        %v1982 = vand.u32 2147483647, %v1980
        %v1983 = vand.u32 2147483647, %v1981
        %v1984 = vsel %vm310, %v1982, 0.0
        %v1985 = vsel %vm310, %v1983, 0.0
        %v1986 = vadd.f32 %v1984, %v1985
        %1987 = vadd.xlane.f32.xlu0 %v1986
        %v1988 = vpop.xlane.xlu0 %1987
        %v1989 = vrot.slane %v1988, 4
        %v1990 = vadd.f32 %v1988, %v1989
        %v1991 = vrot.slane %v1990, 2
        %v1992 = vadd.f32 %v1990, %v1991
        %v1993 = vrot.slane %v1992, 1
        %v1994 = vadd.f32 %v1992, %v1993
        %s1995 = vtos %v1994
        %v1996 = vstv %s1995
        %v1997 = vadd.f32 %v1979, %v1996
        %1998 = vst [vmem:[#allocation2] sm:$0xff] %v1997
        %p1999 = scmp.eq.s32.totalorder %s22, 1
        // Predicated region
        $region45: #{tpu_custom_call.1} parent=35 // pred_check
          %p2000 = pneg %p1999
        $region46: #{tpu_custom_call.1} parent=35 // pred_check_branch
          %2002 = sbr.rel (%p2000) target = $region48
        $region47: #{tpu_custom_call.1} parent=35 // pred_region
          %v2003 = vld [vmem:[#allocation2] sm:$0xff]
          %2004 = vst [vmem:[#allocation6] sm:$0xff] %v2003
        $region48: #{tpu_custom_call.1} parent=35 // pred_fallthru
          _
        // Predicated region
        $region49: #{tpu_custom_call.1} parent=35 // pred_check
          %p2005 = pneg %p149
        $region50: #{tpu_custom_call.1} parent=35 // pred_check_branch
          %2007 = sbr.rel (%p2005) target = $region52
        $region51: #{tpu_custom_call.1} parent=35 // pred_region
          %s2009 = ssub.s32 128, 128
          %2010 = vsyncadd [#allocation5], %s2009
          %s2011 = smul.addr %s21, 128
          %s2012 = scalar_lea.hbm %s4, %s2011
          %s2014 = sshll.u32 [#allocation6], 4
          %s2015 = int_to_ptr.vmem [resolvable:$true] %s2014
          %2017 = dma.vmem_to_hbm [thread:$0]  %s2015, 128, %s2012, [#allocation5]
        $region52: #{tpu_custom_call.1} parent=35 // pred_fallthru
          _
        // Predicated region
        $region53: #{tpu_custom_call.1} parent=35 // pred_check
          %p2018 = pneg %p149
        $region54: #{tpu_custom_call.1} parent=35 // pred_check_branch
          %2020 = sbr.rel (%p2018) target = $region56
        $region55: #{tpu_custom_call.1} parent=35 // pred_region
          %2021 = dma.done [#allocation5], 128
        $region56: #{tpu_custom_call.1} parent=35 // pred_fallthru
          _
      $region36: #{tpu_custom_call.1} parent=5 // pred_fallthru
        _
      %p2022 = scmp.le.s32.totalorder 2, %s12
      // Predicated region
      $region57: #{tpu_custom_call.1} parent=5 // pred_check
        %p2023 = pneg %p2022
      $region58: #{tpu_custom_call.1} parent=5 // pred_check_branch
        %2025 = sbr.rel (%p2023) target = $region60
      $region59: #{tpu_custom_call.1} parent=5 // pred_region
        %s2026 = ssub.s32 %s12, 2
      $region60: #{tpu_custom_call.1} parent=5 // pred_fallthru
        _
    $region6: #{tpu_custom_call.1} parent=1 // loop_footer
      %s16 = sadd.s32 1, %s12
    $region7: #{tpu_custom_call.1} parent=1 // loop_footer_branch
      %11 = sbr.rel target = $region3
    $region8: #{tpu_custom_call.1} parent=1 // loop_exit
      _
    %2027 = vsyncpa [#allocation4], 1
    %s2028 = scalar_lea.sflag [#allocation4], 1
    %2029 = vsyncpa %s2028, 1
    %2030 = vsyncpa [#allocation5], 1
    %s2031 = scalar_lea.sflag [#allocation5], 1
    %2032 = vsyncpa %s2031, 1

// kernel: tpu_custom_call.1
$region0: #{tpu_custom_call.1}
  #allocation0 [shape = 'u32[]', space=smem, size = 0x4, offset = 0x4, fixed_abs, tag = 'smem constant byte address 0x4 - core index']
  #allocation1 [shape = 'u32[144,128]{1,0:T(1,128)}', space=vmem, size = 0x12000, scoped, tag = 'internal scratch']
  #allocation2 [shape = 'f32[8,128]{1,0:T(8,128)}', space=vmem, size = 0x1000, scoped, tag = 'scratch operand']
  %s0 = inlined_call_operand.vmem [shape: f32[2,32,16], index: 0, kind: input, shape index: {}]
  %s1 = inlined_call_operand.vmem [shape: f32[2,2,1,16,16], index: 1, kind: input, shape index: {}]
  %s2 = inlined_call_operand.vmem [shape: bf16[4,16,16], index: 2, kind: input, shape index: {}]
  %s3 = inlined_call_operand.hbm [shape: f32[2,16,16], index: 3, kind: input, shape index: {}]
  %s4 = inlined_call_operand.hbm [shape: f32[8,128], index: 4, kind: output, shape index: {}]
  %s5 = sld [smem:[#allocation0]]
  $region61: #{tpu_custom_call.1} parent=0
    _
  %s7 = ssub.s32 1, %s5
  %s8 = scalar_select 0, %s7, %s5
  $region1: #{tpu_custom_call.1} parent=0
    #allocation3 [shape = 'u8[16384]{0}', space=vmem, size = 0x4000, scoped, tag = 'input window, operand 3, single buffered']
    #allocation4 [shape = 's32[2]{0}', space=sflag, size = 0x8, scoped, tag = 'scoped memory for tpu_custom_call.1']
    #allocation5 [shape = 's32[2]{0}', space=sflag, size = 0x8, scoped, tag = 'scoped memory for tpu_custom_call.1']
    #allocation6 [shape = 'u8[4096]{0}', space=vmem, size = 0x1000, scoped, tag = 'output window, operand 0, single buffered']
    %9 = vsyncpa [#allocation4], 0
    %10 = vsyncpa [#allocation5], 0
    loop: start=0, step=1, limit=4
    $region2: #{tpu_custom_call.1} parent=1 // loop_pre_header
      _
    $region3: #{tpu_custom_call.1} parent=1 // loop_header
      %s12 = sphi 0, %s16
      %p13 = scmp.ge.s32.totalorder %s12, 4
      %s19 = sphi 0, %s31
      %s20 = sphi 0, %s27
      %s21 = sphi 0, %s19
      %s22 = sphi 0, %s20
      %s23 = sphi 0, %s21
      %s24 = sphi 0, %s22
      %s38 = sphi 0, %s40
      %s41 = sphi 0, %s38
      %s42 = sphi 0, %s41
      %s58 = sphi 0, %s42
      %s68 = sphi 0, %s70
      %s71 = sphi 0, %s68
      %s72 = sphi 0, %s71
      %s88 = sphi 0, %s72
      %s92 = sphi 0, %s92
      %s94 = sphi 0, %s92
      %s95 = sphi 0, %s94
      %s109 = sphi 0, %s95
      %s113 = sphi 0, %s113
      %s115 = sphi 0, %s113
      %s116 = sphi 0, %s115
      %s130 = sphi 0, %s116
      %s136 = sphi 0, %s138
      %s139 = sphi 0, %s136
      %s140 = sphi 0, %s139
      %s156 = sphi 0, %s140
    $region4: #{tpu_custom_call.1} parent=1 // loop_header_branch
      %15 = sbr.rel (%p13) target = $region8
    $region5: #{tpu_custom_call.1} parent=1 // loop_body
      %s17 = ssub.s32 %s12, 1
      %s18 = ssub.s32 %s12, 2
      %s25 = sadd.s32 1, %s20
      %p26 = scmp.ge.s32.totalorder %s25, 2
      %s27 = scalar_select %p26, 0, %s25
      %s28 = sadd.s32 1, %s19
      %s29 = scalar_select %p26, %s28, %s19
      %p30 = scmp.ge.s32.totalorder %s29, 1
      %s31 = scalar_select %p30, 0, %s29
      %s32 = smul.u32 %s19, 2
      %s33 = sadd.s32 %s32, %s20
      %s34 = smul.u32 %s31, 2
      %s35 = sadd.s32 %s34, %s27
      %s36 = ssub.s32 %s33, %s35
      %p37 = scmp.eq.s32.totalorder %s36, 0
      %s39 = sadd.s32 %s38, 1
      %s40 = scalar_select %p37, %s38, %s39
      %p43 = pneg %p37
      %p44 = scmp.eq.s32.totalorder %s12, 1
      %p45 = por %p43, %p44
      %p46 = scmp.ne.s32.totalorder %s38, %s41
      %p47 = scmp.eq.s32.totalorder %s12, 0
      %p48 = por %p46, %p47
      %p49 = scmp.ne.s32.totalorder %s38, %s41
      %p50 = scmp.eq.s32.totalorder %s17, 1
      %p51 = por %p49, %p50
      %p52 = scmp.ne.s32.totalorder %s41, %s42
      %p53 = scmp.eq.s32.totalorder %s17, 0
      %p54 = por %p52, %p53
      %p55 = scmp.ne.s32.totalorder %s41, %s42
      %p56 = scmp.eq.s32.totalorder %s18, 1
      %p57 = por %p55, %p56
      %p59 = scmp.ne.s32.totalorder %s42, %s58
      %p60 = scmp.eq.s32.totalorder %s18, 0
      %p61 = por %p59, %p60
      %s62 = smul.u32 %s19, 2
      %s63 = sadd.s32 %s62, %s20
      %s64 = smul.u32 %s31, 2
      %s65 = sadd.s32 %s64, %s27
      %s66 = ssub.s32 %s63, %s65
      %p67 = scmp.eq.s32.totalorder %s66, 0
      %s69 = sadd.s32 %s68, 1
      %s70 = scalar_select %p67, %s68, %s69
      %p73 = pneg %p67
      %p74 = scmp.eq.s32.totalorder %s12, 1
      %p75 = por %p73, %p74
      %p76 = scmp.ne.s32.totalorder %s68, %s71
      %p77 = scmp.eq.s32.totalorder %s12, 0
      %p78 = por %p76, %p77
      %p79 = scmp.ne.s32.totalorder %s68, %s71
      %p80 = scmp.eq.s32.totalorder %s17, 1
      %p81 = por %p79, %p80
      %p82 = scmp.ne.s32.totalorder %s71, %s72
      %p83 = scmp.eq.s32.totalorder %s17, 0
      %p84 = por %p82, %p83
      %p85 = scmp.ne.s32.totalorder %s71, %s72
      %p86 = scmp.eq.s32.totalorder %s18, 1
      %p87 = por %p85, %p86
      %p89 = scmp.ne.s32.totalorder %s72, %s88
      %p90 = scmp.eq.s32.totalorder %s18, 0
      %p91 = por %p89, %p90
      %s93 = sadd.s32 %s92, 1
      %p96 = scmp.eq.s32.totalorder %s12, 1
      %p97 = scmp.ne.s32.totalorder %s92, %s94
      %p98 = scmp.eq.s32.totalorder %s12, 0
      %p99 = por %p97, %p98
      %p100 = scmp.ne.s32.totalorder %s92, %s94
      %p101 = scmp.eq.s32.totalorder %s17, 1
      %p102 = por %p100, %p101
      %p103 = scmp.ne.s32.totalorder %s94, %s95
      %p104 = scmp.eq.s32.totalorder %s17, 0
      %p105 = por %p103, %p104
      %p106 = scmp.ne.s32.totalorder %s94, %s95
      %p107 = scmp.eq.s32.totalorder %s18, 1
      %p108 = por %p106, %p107
      %p110 = scmp.ne.s32.totalorder %s95, %s109
      %p111 = scmp.eq.s32.totalorder %s18, 0
      %p112 = por %p110, %p111
      %s114 = sadd.s32 %s113, 1
      %p117 = scmp.eq.s32.totalorder %s12, 1
      %p118 = scmp.ne.s32.totalorder %s113, %s115
      %p119 = scmp.eq.s32.totalorder %s12, 0
      %p120 = por %p118, %p119
      %p121 = scmp.ne.s32.totalorder %s113, %s115
      %p122 = scmp.eq.s32.totalorder %s17, 1
      %p123 = por %p121, %p122
      %p124 = scmp.ne.s32.totalorder %s115, %s116
      %p125 = scmp.eq.s32.totalorder %s17, 0
      %p126 = por %p124, %p125
      %p127 = scmp.ne.s32.totalorder %s115, %s116
      %p128 = scmp.eq.s32.totalorder %s18, 1
      %p129 = por %p127, %p128
      %p131 = scmp.ne.s32.totalorder %s116, %s130
      %p132 = scmp.eq.s32.totalorder %s18, 0
      %p133 = por %p131, %p132
      %s134 = ssub.s32 %s19, %s31
      %p135 = scmp.eq.s32.totalorder %s134, 0
      %s137 = sadd.s32 %s136, 1
      %s138 = scalar_select %p135, %s136, %s137
      %p141 = pneg %p135
      %p142 = scmp.eq.s32.totalorder %s12, 1
      %p143 = por %p141, %p142
      %p144 = scmp.ne.s32.totalorder %s136, %s139
      %p145 = scmp.eq.s32.totalorder %s12, 0
      %p146 = por %p144, %p145
      %p147 = scmp.ne.s32.totalorder %s136, %s139
      %p148 = scmp.eq.s32.totalorder %s17, 1
      %p149 = por %p147, %p148
      %p150 = scmp.ne.s32.totalorder %s139, %s140
      %p151 = scmp.eq.s32.totalorder %s17, 0
      %p152 = por %p150, %p151
      %p153 = scmp.ne.s32.totalorder %s139, %s140
      %p154 = scmp.eq.s32.totalorder %s18, 1
      %p155 = por %p153, %p154
      %p157 = scmp.ne.s32.totalorder %s140, %s156
      %p158 = scmp.eq.s32.totalorder %s18, 0
      %p159 = por %p157, %p158
      %p160 = scmp.le.s32.totalorder 1, %s12
      %p161 = scmp.lt.s32.totalorder %s12, 3
      %p162 = pnand %p160, %p161
      %p163 = pneg %p162
      // Predicated region
      $region9: #{tpu_custom_call.1} parent=5 // pred_check
        _
      $region10: #{tpu_custom_call.1} parent=5 // pred_check_branch
        %165 = sbr.rel (%p162) target = $region12
      $region11: #{tpu_custom_call.1} parent=5 // pred_region
        %s166 = ssub.s32 %s12, 1
        // Predicated region
        $region13: #{tpu_custom_call.1} parent=11 // pred_check
          %p167 = pneg %p105
        $region14: #{tpu_custom_call.1} parent=11 // pred_check_branch
          %169 = sbr.rel (%p167) target = $region16
        $region15: #{tpu_custom_call.1} parent=11 // pred_region
          _
        $region16: #{tpu_custom_call.1} parent=11 // pred_fallthru
          _
        // Predicated region
        $region17: #{tpu_custom_call.1} parent=11 // pred_check
          %p170 = pneg %p126
        $region18: #{tpu_custom_call.1} parent=11 // pred_check_branch
          %172 = sbr.rel (%p170) target = $region20
        $region19: #{tpu_custom_call.1} parent=11 // pred_region
          %s174 = ssub.s32 512, 512
          %175 = vsyncadd [#allocation4], %s174
          %s176 = sshll.u32 [#allocation3], 4
          %s177 = int_to_ptr.vmem [resolvable:$true] %s176
          %182 = dma.hbm_to_vmem [thread:$0]  %s3, 512, %s177, [#allocation4], 128, 128, 8
        $region20: #{tpu_custom_call.1} parent=11 // pred_fallthru
          _
      $region12: #{tpu_custom_call.1} parent=5 // pred_fallthru
        _
      %p183 = scmp.lt.s32.totalorder %s12, 2
      // Predicated region
      $region21: #{tpu_custom_call.1} parent=5 // pred_check
        %p184 = pneg %p183
      $region22: #{tpu_custom_call.1} parent=5 // pred_check_branch
        %186 = sbr.rel (%p184) target = $region24
      $region23: #{tpu_custom_call.1} parent=5 // pred_region
        // Predicated region
        $region25: #{tpu_custom_call.1} parent=23 // pred_check
          %p187 = pneg %p48
        $region26: #{tpu_custom_call.1} parent=23 // pred_check_branch
          %189 = sbr.rel (%p187) target = $region28
        $region27: #{tpu_custom_call.1} parent=23 // pred_region
          %s190 = smul.u32 %s19, 2
          %s191 = sadd.s32 %s190, %s20
          %p192 = scmp.lt.s32.totalorder %s191, 1
          %s193 = scalar_select %p192, %s191, 1
          %s194 = smul.addr %s193, 4
          %s195 = smul.addr %s194, 8
          %s196 = scalar_lea.vmem %s0, %s195
          %s197 = smul.u32 %s19, 2
          %s198 = sadd.s32 %s197, %s20
        $region28: #{tpu_custom_call.1} parent=23 // pred_fallthru
          _
        // Predicated region
        $region29: #{tpu_custom_call.1} parent=23 // pred_check
          %p199 = pneg %p78
        $region30: #{tpu_custom_call.1} parent=23 // pred_check_branch
          %201 = sbr.rel (%p199) target = $region32
        $region31: #{tpu_custom_call.1} parent=23 // pred_region
          %s202 = smul.u32 %s19, 2
          %s203 = sadd.s32 %s202, %s20
          %p204 = scmp.lt.s32.totalorder %s203, 1
          %s205 = scalar_select %p204, %s203, 1
          %s206 = smul.addr %s205, 4
          %s207 = smul.addr %s206, 8
          %s208 = scalar_lea.vmem %s1, %s207
          %s209 = smul.u32 %s19, 2
          %s210 = sadd.s32 %s209, %s20
        $region32: #{tpu_custom_call.1} parent=23 // pred_fallthru
          _
      $region24: #{tpu_custom_call.1} parent=5 // pred_fallthru
        _
      %p211 = scmp.le.s32.totalorder 1, %s12
      %p212 = scmp.lt.s32.totalorder %s12, 3
      %p213 = pnand %p211, %p212
      %p214 = pneg %p213
      // Predicated region
      $region33: #{tpu_custom_call.1} parent=5 // pred_check
        _
      $region34: #{tpu_custom_call.1} parent=5 // pred_check_branch
        %216 = sbr.rel (%p213) target = $region36
      $region35: #{tpu_custom_call.1} parent=5 // pred_region
        %s217 = ssub.s32 %s12, 1
        // Predicated region
        $region37: #{tpu_custom_call.1} parent=35 // pred_check
          %p218 = pneg %p126
        $region38: #{tpu_custom_call.1} parent=35 // pred_check_branch
          %220 = sbr.rel (%p218) target = $region40
        $region39: #{tpu_custom_call.1} parent=35 // pred_region
          %221 = dma.done [#allocation4], 512
        $region40: #{tpu_custom_call.1} parent=35 // pred_fallthru
          _
        %s222 = smul.u32 %s21, 2
        %s223 = sadd.s32 %s222, %s22
        %p224 = scmp.lt.s32.totalorder %s223, 1
        %s225 = scalar_select %p224, %s223, 1
        %s226 = smul.addr %s225, 4
        %s227 = smul.addr %s226, 8
        %s228 = scalar_lea.vmem %s0, %s227
        %p229 = pneg %p54
        %p230 = pneg %p51
        %s231 = smul.u32 %s21, 2
        %s232 = sadd.s32 %s231, %s22
        %p233 = scmp.lt.s32.totalorder %s232, 1
        %s234 = scalar_select %p233, %s232, 1
        %s235 = smul.addr %s234, 4
        %s236 = smul.addr %s235, 8
        %s237 = scalar_lea.vmem %s1, %s236
        %p238 = pneg %p84
        %p239 = pneg %p81
        %p240 = pneg %p105
        %p241 = pneg %p102
        %p242 = pneg %p126
        %p243 = pneg %p123
        %p244 = pneg %p152
        %p245 = pneg %p149
        %s246 = smul.u32 %s21, 2
        %s247 = sadd.s32 %s246, %s22
        %p248 = scmp.lt.s32.totalorder %s247, 1
        %s249 = scalar_select %p248, %s247, 1
        %s250 = smul.addr %s249, 4
        %s251 = smul.addr %s250, 8
        %s252 = scalar_lea.vmem %s0, %s251
        %s253 = smul.u32 %s21, 2
        %s254 = sadd.s32 %s253, %s22
        %s255 = smul.u32 %s21, 2
        %s256 = sadd.s32 %s255, %s22
        %p257 = scmp.lt.s32.totalorder %s256, 1
        %s258 = scalar_select %p257, %s256, 1
        %s259 = smul.addr %s258, 4
        %s260 = smul.addr %s259, 8
        %s261 = scalar_lea.vmem %s1, %s260
        %s262 = smul.u32 %s21, 2
        %s263 = sadd.s32 %s262, %s22
        %p265 = scmp.eq.s32.totalorder %s22, 0
        // Predicated region
        $region41: #{tpu_custom_call.1} parent=35 // pred_check
          %p266 = pneg %p265
        $region42: #{tpu_custom_call.1} parent=35 // pred_check_branch
          %268 = sbr.rel (%p266) target = $region44
        $region43: #{tpu_custom_call.1} parent=35 // pred_region
          %269 = vst [vmem:[#allocation2] sm:$0xff] 0.0
        $region44: #{tpu_custom_call.1} parent=35 // pred_fallthru
          _
        %v270 = vld [vmem:[%s252] sm:$0xff]
        %v271 = vld [vmem:[%s252 + $0x8] sm:$0xff]
        %v272 = vld [vmem:[%s252 + $0x10] sm:$0xff]
        %v273 = vld [vmem:[%s252 + $0x18] sm:$0xff]
        %v274 = vld [vmem:[%s261] sm:$0xff]
        %v275 = vld [vmem:[%s261 + $0x8] sm:$0xff]
        %v276 = vld [vmem:[%s2] sm:$0xf]
        %v277 = vld [vmem:[%s2 + $0x4] sm:$0xf]
        %s278 = scalar_lea.vmem %s2, 8
        %v279 = vld [vmem:[%s278] sm:$0xf]
        %v280 = vld [vmem:[%s278 + $0x4] sm:$0xf]
        %s281 = scalar_lea.vmem %s2, 16
        %v282 = vld [vmem:[%s281] sm:$0xf]
        %v283 = vld [vmem:[%s281 + $0x4] sm:$0xf]
        %s284 = scalar_lea.vmem %s2, 24
        %v285 = vld [vmem:[%s284] sm:$0xf]
        %v286 = vld [vmem:[%s284 + $0x4] sm:$0xf]
        %v287 = vld [vmem:[#allocation3] sm:$0xff]
        %v288 = vld [vmem:[#allocation3 + $0x8] sm:$0xff]
        %s289 = scalar_lea.vmem [#allocation3], 16
        %v290 = vld [vmem:[%s289] sm:$0xff]
        %v291 = vld [vmem:[%s289 + $0x8] sm:$0xff]
        %v292 = vpack.c.bf16 %v271, %v270
        %v293 = vpack.c.bf16 %v273, %v272
        %v294 = vunpack.c.l.bf16 %v292
        %v295 = vunpack.c.h.bf16 %v292
        %v296 = vunpack.c.l.bf16 %v293
        %v297 = vunpack.c.h.bf16 %v293
        %v298 = vsub.f32 %v270, %v294
        %v299 = vsub.f32 %v271, %v295
        %v300 = vsub.f32 %v272, %v296
        %v301 = vsub.f32 %v273, %v297
        %v302 = vpack.c.bf16 %v299, %v298
        %v303 = vpack.c.bf16 %v301, %v300
        %v306 = vunpack.c.l.b16 %v279
        %v307 = vunpack.c.l.b16 %v280
        %v308 = vpack.c.b16 %v307, %v306
        %vm310 = vcmask 130048
        %v312 = vsel %vm310, %v292, 0
        %v315 = vsel %vm310, %v293, 0
        %317 = vmatprep.subr.bf16.mxu0 0
        %318 = vmatpush1.bf16.msra.mxu0 %v308
        %319 = vmatprep.subr.bf16.mxu0 0
        %320 = vmatpush1.bf16.msra.mxu0 0
        %321 = vmatprep.subr.bf16.mxu0 0
        %322 = vmatpush1.bf16.msra.mxu0 0
        %323 = vmatprep.subr.bf16.mxu0 0
        %324 = vmatpush1.bf16.msra.mxu0 0
        %325 = vmatprep.subr.bf16.mxu0 0
        %326 = vmatpush1.bf16.msra.mxu0 0
        %327 = vmatprep.subr.bf16.mxu0 0
        %328 = vmatpush1.bf16.msra.mxu0 0
        %329 = vmatprep.subr.bf16.mxu0 0
        %330 = vmatpush1.bf16.msra.mxu0 0
        %331 = vmatprep.subr.bf16.mxu0 0
        %332 = vmatpush1.bf16.msra.mxu0 0
        %333 = vmatprep.subr.bf16.mxu0 0
        %334 = vmatpush1.bf16.msra.mxu0 0
        %335 = vmatprep.subr.bf16.mxu0 0
        %336 = vmatpush1.bf16.msra.mxu0 0
        %337 = vmatprep.subr.bf16.mxu0 0
        %338 = vmatpush1.bf16.msra.mxu0 0
        %339 = vmatprep.subr.bf16.mxu0 0
        %340 = vmatpush1.bf16.msra.mxu0 0
        %341 = vmatprep.subr.bf16.mxu0 0
        %342 = vmatpush1.bf16.msra.mxu0 0
        %343 = vmatprep.subr.bf16.mxu0 0
        %344 = vmatpush1.bf16.msra.mxu0 0
        %345 = vmatprep.subr.bf16.mxu0 0
        %346 = vmatpush1.bf16.msra.mxu0 0
        %347 = vmatprep.subr.bf16.mxu0 0
        %348 = vmatpush1.bf16.msra.mxu0 0
        %349 = vmatprep.mubr.bf16.mxu0 0
        %350 = vmatmul.mubr.bf16.gmra.mrb[0].mxu0 %v312
        %v351 = vpop.f32.mrb[0].mxu0
        %v352 = vadd.f32 0.0, %v351
        %v353 = vpop.f32.mrb[0].mxu0
        %v354 = vpop.f32.mrb[0].mxu0
        %v355 = vadd.f32 0.0, %v354
        %v356 = vpop.f32.mrb[0].mxu0
        %357 = vmatprep.mubr.bf16.mxu0 0
        %358 = vmatmul.mubr.bf16.gmra.mrb[0].mxu0 %v315
        %v359 = vpop.f32.mrb[0].mxu0
        %v360 = vadd.f32 0.0, %v359
        %v361 = vpop.f32.mrb[0].mxu0
        %v362 = vpop.f32.mrb[0].mxu0
        %v363 = vadd.f32 0.0, %v362
        %v364 = vpop.f32.mrb[0].mxu0
        %365 = vdwg.mxu0
        %v368 = vunpack.c.l.b16 %v276
        %v369 = vunpack.c.l.b16 %v277
        %v370 = vpack.c.b16 %v369, %v368
        %372 = vmatprep.subr.bf16.mxu0 0
        %373 = vmatpush1.bf16.msra.mxu0 %v370
        %374 = vmatprep.subr.bf16.mxu0 0
        %375 = vmatpush1.bf16.msra.mxu0 0
        %376 = vmatprep.subr.bf16.mxu0 0
        %377 = vmatpush1.bf16.msra.mxu0 0
        %378 = vmatprep.subr.bf16.mxu0 0
        %379 = vmatpush1.bf16.msra.mxu0 0
        %380 = vmatprep.subr.bf16.mxu0 0
        %381 = vmatpush1.bf16.msra.mxu0 0
        %382 = vmatprep.subr.bf16.mxu0 0
        %383 = vmatpush1.bf16.msra.mxu0 0
        %384 = vmatprep.subr.bf16.mxu0 0
        %385 = vmatpush1.bf16.msra.mxu0 0
        %386 = vmatprep.subr.bf16.mxu0 0
        %387 = vmatpush1.bf16.msra.mxu0 0
        %388 = vmatprep.subr.bf16.mxu0 0
        %389 = vmatpush1.bf16.msra.mxu0 0
        %390 = vmatprep.subr.bf16.mxu0 0
        %391 = vmatpush1.bf16.msra.mxu0 0
        %392 = vmatprep.subr.bf16.mxu0 0
        %393 = vmatpush1.bf16.msra.mxu0 0
        %394 = vmatprep.subr.bf16.mxu0 0
        %395 = vmatpush1.bf16.msra.mxu0 0
        %396 = vmatprep.subr.bf16.mxu0 0
        %397 = vmatpush1.bf16.msra.mxu0 0
        %398 = vmatprep.subr.bf16.mxu0 0
        %399 = vmatpush1.bf16.msra.mxu0 0
        %400 = vmatprep.subr.bf16.mxu0 0
        %401 = vmatpush1.bf16.msra.mxu0 0
        %402 = vmatprep.subr.bf16.mxu0 0
        %403 = vmatpush1.bf16.msra.mxu0 0
        %404 = vmatprep.mubr.bf16.mxu0 0
        %405 = vmatmul.mubr.bf16.gmra.mrb[0].mxu0 %v312
        %v406 = vpop.f32.mrb[0].mxu0
        %v407 = vadd.f32 %v352, %v406
        %v408 = vpop.f32.mrb[0].mxu0
        %v409 = vpop.f32.mrb[0].mxu0
        %v410 = vadd.f32 %v355, %v409
        %v411 = vpop.f32.mrb[0].mxu0
        %412 = vmatprep.mubr.bf16.mxu0 0
        %413 = vmatmul.mubr.bf16.gmra.mrb[0].mxu0 %v315
        %v414 = vpop.f32.mrb[0].mxu0
        %v415 = vadd.f32 %v360, %v414
        %v416 = vpop.f32.mrb[0].mxu0
        %v417 = vpop.f32.mrb[0].mxu0
        %v418 = vadd.f32 %v363, %v417
        %v419 = vpop.f32.mrb[0].mxu0
        %420 = vdwg.mxu0
        %v422 = vsel %vm310, %v302, 0
        %v425 = vsel %vm310, %v303, 0
        %427 = vmatprep.subr.bf16.mxu0 0
        %428 = vmatpush1.bf16.msra.mxu0 %v370
        %429 = vmatprep.subr.bf16.mxu0 0
        %430 = vmatpush1.bf16.msra.mxu0 0
        %431 = vmatprep.subr.bf16.mxu0 0
        %432 = vmatpush1.bf16.msra.mxu0 0
        %433 = vmatprep.subr.bf16.mxu0 0
        %434 = vmatpush1.bf16.msra.mxu0 0
        %435 = vmatprep.subr.bf16.mxu0 0
        %436 = vmatpush1.bf16.msra.mxu0 0
        %437 = vmatprep.subr.bf16.mxu0 0
        %438 = vmatpush1.bf16.msra.mxu0 0
        %439 = vmatprep.subr.bf16.mxu0 0
        %440 = vmatpush1.bf16.msra.mxu0 0
        %441 = vmatprep.subr.bf16.mxu0 0
        %442 = vmatpush1.bf16.msra.mxu0 0
        %443 = vmatprep.subr.bf16.mxu0 0
        %444 = vmatpush1.bf16.msra.mxu0 0
        %445 = vmatprep.subr.bf16.mxu0 0
        %446 = vmatpush1.bf16.msra.mxu0 0
        %447 = vmatprep.subr.bf16.mxu0 0
        %448 = vmatpush1.bf16.msra.mxu0 0
        %449 = vmatprep.subr.bf16.mxu0 0
        %450 = vmatpush1.bf16.msra.mxu0 0
        %451 = vmatprep.subr.bf16.mxu0 0
        %452 = vmatpush1.bf16.msra.mxu0 0
        %453 = vmatprep.subr.bf16.mxu0 0
        %454 = vmatpush1.bf16.msra.mxu0 0
        %455 = vmatprep.subr.bf16.mxu0 0
        %456 = vmatpush1.bf16.msra.mxu0 0
        %457 = vmatprep.subr.bf16.mxu0 0
        %458 = vmatpush1.bf16.msra.mxu0 0
        %459 = vmatprep.mubr.bf16.mxu0 0
        %460 = vmatmul.mubr.bf16.gmra.mrb[0].mxu0 %v422
        %v461 = vpop.f32.mrb[0].mxu0
        %v462 = vadd.f32 0.0, %v461
        %v463 = vpop.f32.mrb[0].mxu0
        %v464 = vpop.f32.mrb[0].mxu0
        %v465 = vadd.f32 0.0, %v464
        %v466 = vpop.f32.mrb[0].mxu0
        %467 = vmatprep.mubr.bf16.mxu0 0
        %468 = vmatmul.mubr.bf16.gmra.mrb[0].mxu0 %v425
        %v469 = vpop.f32.mrb[0].mxu0
        %v470 = vadd.f32 0.0, %v469
        %v471 = vpop.f32.mrb[0].mxu0
        %v472 = vpop.f32.mrb[0].mxu0
        %v473 = vadd.f32 0.0, %v472
        %v474 = vpop.f32.mrb[0].mxu0
        %475 = vdwg.mxu0
        %v476 = vadd.f32 %v407, %v462
        %v477 = vadd.f32 %v410, %v465
        %v478 = vadd.f32 %v415, %v470
        %v479 = vadd.f32 %v418, %v473
        %v482 = vunpack.c.l.b16 %v285
        %v483 = vunpack.c.l.b16 %v286
        %v484 = vpack.c.b16 %v483, %v482
        %486 = vmatprep.subr.bf16.mxu0 0
        %487 = vmatpush1.bf16.msra.mxu0 %v484
        %488 = vmatprep.subr.bf16.mxu0 0
        %489 = vmatpush1.bf16.msra.mxu0 0
        %490 = vmatprep.subr.bf16.mxu0 0
        %491 = vmatpush1.bf16.msra.mxu0 0
        %492 = vmatprep.subr.bf16.mxu0 0
        %493 = vmatpush1.bf16.msra.mxu0 0
        %494 = vmatprep.subr.bf16.mxu0 0
        %495 = vmatpush1.bf16.msra.mxu0 0
        %496 = vmatprep.subr.bf16.mxu0 0
        %497 = vmatpush1.bf16.msra.mxu0 0
        %498 = vmatprep.subr.bf16.mxu0 0
        %499 = vmatpush1.bf16.msra.mxu0 0
        %500 = vmatprep.subr.bf16.mxu0 0
        %501 = vmatpush1.bf16.msra.mxu0 0
        %502 = vmatprep.subr.bf16.mxu0 0
        %503 = vmatpush1.bf16.msra.mxu0 0
        %504 = vmatprep.subr.bf16.mxu0 0
        %505 = vmatpush1.bf16.msra.mxu0 0
        %506 = vmatprep.subr.bf16.mxu0 0
        %507 = vmatpush1.bf16.msra.mxu0 0
        %508 = vmatprep.subr.bf16.mxu0 0
        %509 = vmatpush1.bf16.msra.mxu0 0
        %510 = vmatprep.subr.bf16.mxu0 0
        %511 = vmatpush1.bf16.msra.mxu0 0
        %512 = vmatprep.subr.bf16.mxu0 0
        %513 = vmatpush1.bf16.msra.mxu0 0
        %514 = vmatprep.subr.bf16.mxu0 0
        %515 = vmatpush1.bf16.msra.mxu0 0
        %516 = vmatprep.subr.bf16.mxu0 0
        %517 = vmatpush1.bf16.msra.mxu0 0
        %518 = vmatprep.mubr.bf16.mxu0 0
        %519 = vmatmul.mubr.bf16.gmra.mrb[0].mxu0 %v312
        %v520 = vpop.f32.mrb[0].mxu0
        %v521 = vadd.f32 0.0, %v520
        %v522 = vpop.f32.mrb[0].mxu0
        %v523 = vpop.f32.mrb[0].mxu0
        %v524 = vadd.f32 0.0, %v523
        %v525 = vpop.f32.mrb[0].mxu0
        %526 = vmatprep.mubr.bf16.mxu0 0
        %527 = vmatmul.mubr.bf16.gmra.mrb[0].mxu0 %v315
        %v528 = vpop.f32.mrb[0].mxu0
        %v529 = vadd.f32 0.0, %v528
        %v530 = vpop.f32.mrb[0].mxu0
        %v531 = vpop.f32.mrb[0].mxu0
        %v532 = vadd.f32 0.0, %v531
        %v533 = vpop.f32.mrb[0].mxu0
        %534 = vdwg.mxu0
        %v537 = vunpack.c.l.b16 %v282
        %v538 = vunpack.c.l.b16 %v283
        %v539 = vpack.c.b16 %v538, %v537
        %541 = vmatprep.subr.bf16.mxu0 0
        %542 = vmatpush1.bf16.msra.mxu0 %v539
        %543 = vmatprep.subr.bf16.mxu0 0
        %544 = vmatpush1.bf16.msra.mxu0 0
        %545 = vmatprep.subr.bf16.mxu0 0
        %546 = vmatpush1.bf16.msra.mxu0 0
        %547 = vmatprep.subr.bf16.mxu0 0
        %548 = vmatpush1.bf16.msra.mxu0 0
        %549 = vmatprep.subr.bf16.mxu0 0
        %550 = vmatpush1.bf16.msra.mxu0 0
        %551 = vmatprep.subr.bf16.mxu0 0
        %552 = vmatpush1.bf16.msra.mxu0 0
        %553 = vmatprep.subr.bf16.mxu0 0
        %554 = vmatpush1.bf16.msra.mxu0 0
        %555 = vmatprep.subr.bf16.mxu0 0
        %556 = vmatpush1.bf16.msra.mxu0 0
        %557 = vmatprep.subr.bf16.mxu0 0
        %558 = vmatpush1.bf16.msra.mxu0 0
        %559 = vmatprep.subr.bf16.mxu0 0
        %560 = vmatpush1.bf16.msra.mxu0 0
        %561 = vmatprep.subr.bf16.mxu0 0
        %562 = vmatpush1.bf16.msra.mxu0 0
        %563 = vmatprep.subr.bf16.mxu0 0
        %564 = vmatpush1.bf16.msra.mxu0 0
        %565 = vmatprep.subr.bf16.mxu0 0
        %566 = vmatpush1.bf16.msra.mxu0 0
        %567 = vmatprep.subr.bf16.mxu0 0
        %568 = vmatpush1.bf16.msra.mxu0 0
        %569 = vmatprep.subr.bf16.mxu0 0
        %570 = vmatpush1.bf16.msra.mxu0 0
        %571 = vmatprep.subr.bf16.mxu0 0
        %572 = vmatpush1.bf16.msra.mxu0 0
        %573 = vmatprep.mubr.bf16.mxu0 0
        %574 = vmatmul.mubr.bf16.gmra.mrb[0].mxu0 %v312
        %v575 = vpop.f32.mrb[0].mxu0
        %v576 = vadd.f32 %v521, %v575
        %v577 = vpop.f32.mrb[0].mxu0
        %v578 = vpop.f32.mrb[0].mxu0
        %v579 = vadd.f32 %v524, %v578
        %v580 = vpop.f32.mrb[0].mxu0
        %581 = vmatprep.mubr.bf16.mxu0 0
        %582 = vmatmul.mubr.bf16.gmra.mrb[0].mxu0 %v315
        %v583 = vpop.f32.mrb[0].mxu0
        %v584 = vadd.f32 %v529, %v583
        %v585 = vpop.f32.mrb[0].mxu0
        %v586 = vpop.f32.mrb[0].mxu0
        %v587 = vadd.f32 %v532, %v586
        %v588 = vpop.f32.mrb[0].mxu0
        %589 = vdwg.mxu0
        %590 = vmatprep.subr.bf16.mxu0 0
        %591 = vmatpush1.bf16.msra.mxu0 %v539
        %592 = vmatprep.subr.bf16.mxu0 0
        %593 = vmatpush1.bf16.msra.mxu0 0
        %594 = vmatprep.subr.bf16.mxu0 0
        %595 = vmatpush1.bf16.msra.mxu0 0
        %596 = vmatprep.subr.bf16.mxu0 0
        %597 = vmatpush1.bf16.msra.mxu0 0
        %598 = vmatprep.subr.bf16.mxu0 0
        %599 = vmatpush1.bf16.msra.mxu0 0
        %600 = vmatprep.subr.bf16.mxu0 0
        %601 = vmatpush1.bf16.msra.mxu0 0
        %602 = vmatprep.subr.bf16.mxu0 0
        %603 = vmatpush1.bf16.msra.mxu0 0
        %604 = vmatprep.subr.bf16.mxu0 0
        %605 = vmatpush1.bf16.msra.mxu0 0
        %606 = vmatprep.subr.bf16.mxu0 0
        %607 = vmatpush1.bf16.msra.mxu0 0
        %608 = vmatprep.subr.bf16.mxu0 0
        %609 = vmatpush1.bf16.msra.mxu0 0
        %610 = vmatprep.subr.bf16.mxu0 0
        %611 = vmatpush1.bf16.msra.mxu0 0
        %612 = vmatprep.subr.bf16.mxu0 0
        %613 = vmatpush1.bf16.msra.mxu0 0
        %614 = vmatprep.subr.bf16.mxu0 0
        %615 = vmatpush1.bf16.msra.mxu0 0
        %616 = vmatprep.subr.bf16.mxu0 0
        %617 = vmatpush1.bf16.msra.mxu0 0
        %618 = vmatprep.subr.bf16.mxu0 0
        %619 = vmatpush1.bf16.msra.mxu0 0
        %620 = vmatprep.subr.bf16.mxu0 0
        %621 = vmatpush1.bf16.msra.mxu0 0
        %622 = vmatprep.mubr.bf16.mxu0 0
        %623 = vmatmul.mubr.bf16.gmra.mrb[0].mxu0 %v422
        %v624 = vpop.f32.mrb[0].mxu0
        %v625 = vadd.f32 0.0, %v624
        %v626 = vpop.f32.mrb[0].mxu0
        %v627 = vpop.f32.mrb[0].mxu0
        %v628 = vadd.f32 0.0, %v627
        %v629 = vpop.f32.mrb[0].mxu0
        %630 = vmatprep.mubr.bf16.mxu0 0
        %631 = vmatmul.mubr.bf16.gmra.mrb[0].mxu0 %v425
        %v632 = vpop.f32.mrb[0].mxu0
        %v633 = vadd.f32 0.0, %v632
        %v634 = vpop.f32.mrb[0].mxu0
        %v635 = vpop.f32.mrb[0].mxu0
        %v636 = vadd.f32 0.0, %v635
        %v637 = vpop.f32.mrb[0].mxu0
        %638 = vdwg.mxu0
        %v639 = vadd.f32 %v576, %v625
        %v640 = vadd.f32 %v579, %v628
        %v641 = vadd.f32 %v584, %v633
        %v642 = vadd.f32 %v587, %v636
        %v643 = vsub.f32 %v476, %v641
        %v644 = vsub.f32 %v477, %v642
        %v645 = vadd.f32 %v639, %v478
        %v646 = vadd.f32 %v640, %v479
        %v647 = vpack.c.bf16 %v644, %v643
        %v648 = vunpack.c.l.bf16 %v647
        %v649 = vunpack.c.h.bf16 %v647
        %v650 = vsub.f32 %v643, %v648
        %v651 = vsub.f32 %v644, %v649
        %v652 = vpack.c.bf16 %v651, %v650
        %v653 = vpack.c.bf16 %v646, %v645
        %v654 = vunpack.c.l.bf16 %v653
        %v655 = vunpack.c.h.bf16 %v653
        %v656 = vsub.f32 %v645, %v654
        %v657 = vsub.f32 %v646, %v655
        %v658 = vpack.c.bf16 %v657, %v656
        %v660 = vsel %vm310, %v370, 0
        %662 = vmatprep.subr.bf16.mxu0 0
        %663 = vmatpush1.bf16.msra.mxu0 %v652
        %664 = vmatprep.subr.bf16.mxu0 0
        %665 = vmatpush1.bf16.msra.mxu0 0
        %666 = vmatprep.subr.bf16.mxu0 0
        %667 = vmatpush1.bf16.msra.mxu0 0
        %668 = vmatprep.subr.bf16.mxu0 0
        %669 = vmatpush1.bf16.msra.mxu0 0
        %670 = vmatprep.subr.bf16.mxu0 0
        %671 = vmatpush1.bf16.msra.mxu0 0
        %672 = vmatprep.subr.bf16.mxu0 0
        %673 = vmatpush1.bf16.msra.mxu0 0
        %674 = vmatprep.subr.bf16.mxu0 0
        %675 = vmatpush1.bf16.msra.mxu0 0
        %676 = vmatprep.subr.bf16.mxu0 0
        %677 = vmatpush1.bf16.msra.mxu0 0
        %678 = vmatprep.subr.bf16.mxu0 0
        %679 = vmatpush1.bf16.msra.mxu0 0
        %680 = vmatprep.subr.bf16.mxu0 0
        %681 = vmatpush1.bf16.msra.mxu0 0
        %682 = vmatprep.subr.bf16.mxu0 0
        %683 = vmatpush1.bf16.msra.mxu0 0
        %684 = vmatprep.subr.bf16.mxu0 0
        %685 = vmatpush1.bf16.msra.mxu0 0
        %686 = vmatprep.subr.bf16.mxu0 0
        %687 = vmatpush1.bf16.msra.mxu0 0
        %688 = vmatprep.subr.bf16.mxu0 0
        %689 = vmatpush1.bf16.msra.mxu0 0
        %690 = vmatprep.subr.bf16.mxu0 0
        %691 = vmatpush1.bf16.msra.mxu0 0
        %692 = vmatprep.subr.bf16.mxu0 0
        %693 = vmatpush1.bf16.msra.mxu0 0
        %694 = vmatprep.mubr.bf16.mxu0 0
        %695 = vmatmul.mubr.bf16.gmra.mrb[0].mxu0 %v660
        %v696 = vpop.f32.mrb[0].mxu0
        %v697 = vadd.f32 0.0, %v696
        %v698 = vpop.f32.mrb[0].mxu0
        %v699 = vpop.f32.mrb[0].mxu0
        %v700 = vadd.f32 0.0, %v699
        %v701 = vpop.f32.mrb[0].mxu0
        %702 = vdwg.mxu0
        %703 = vmatprep.subr.bf16.mxu0 0
        %704 = vmatpush1.bf16.msra.mxu0 %v647
        %705 = vmatprep.subr.bf16.mxu0 0
        %706 = vmatpush1.bf16.msra.mxu0 0
        %707 = vmatprep.subr.bf16.mxu0 0
        %708 = vmatpush1.bf16.msra.mxu0 0
        %709 = vmatprep.subr.bf16.mxu0 0
        %710 = vmatpush1.bf16.msra.mxu0 0
        %711 = vmatprep.subr.bf16.mxu0 0
        %712 = vmatpush1.bf16.msra.mxu0 0
        %713 = vmatprep.subr.bf16.mxu0 0
        %714 = vmatpush1.bf16.msra.mxu0 0
        %715 = vmatprep.subr.bf16.mxu0 0
        %716 = vmatpush1.bf16.msra.mxu0 0
        %717 = vmatprep.subr.bf16.mxu0 0
        %718 = vmatpush1.bf16.msra.mxu0 0
        %719 = vmatprep.subr.bf16.mxu0 0
        %720 = vmatpush1.bf16.msra.mxu0 0
        %721 = vmatprep.subr.bf16.mxu0 0
        %722 = vmatpush1.bf16.msra.mxu0 0
        %723 = vmatprep.subr.bf16.mxu0 0
        %724 = vmatpush1.bf16.msra.mxu0 0
        %725 = vmatprep.subr.bf16.mxu0 0
        %726 = vmatpush1.bf16.msra.mxu0 0
        %727 = vmatprep.subr.bf16.mxu0 0
        %728 = vmatpush1.bf16.msra.mxu0 0
        %729 = vmatprep.subr.bf16.mxu0 0
        %730 = vmatpush1.bf16.msra.mxu0 0
        %731 = vmatprep.subr.bf16.mxu0 0
        %732 = vmatpush1.bf16.msra.mxu0 0
        %733 = vmatprep.subr.bf16.mxu0 0
        %734 = vmatpush1.bf16.msra.mxu0 0
        %735 = vmatprep.mubr.bf16.mxu0 0
        %736 = vmatmul.mubr.bf16.gmra.mrb[0].mxu0 %v660
        %v737 = vpop.f32.mrb[0].mxu0
        %v738 = vadd.f32 %v697, %v737
        %v739 = vpop.f32.mrb[0].mxu0
        %v740 = vpop.f32.mrb[0].mxu0
        %v741 = vadd.f32 %v700, %v740
        %v742 = vpop.f32.mrb[0].mxu0
        %743 = vdwg.mxu0
        %v745 = vsel %vm310, %v308, 0
        %747 = vmatprep.subr.bf16.mxu0 0
        %748 = vmatpush1.bf16.msra.mxu0 %v647
        %749 = vmatprep.subr.bf16.mxu0 0
        %750 = vmatpush1.bf16.msra.mxu0 0
        %751 = vmatprep.subr.bf16.mxu0 0
        %752 = vmatpush1.bf16.msra.mxu0 0
        %753 = vmatprep.subr.bf16.mxu0 0
        %754 = vmatpush1.bf16.msra.mxu0 0
        %755 = vmatprep.subr.bf16.mxu0 0
        %756 = vmatpush1.bf16.msra.mxu0 0
        %757 = vmatprep.subr.bf16.mxu0 0
        %758 = vmatpush1.bf16.msra.mxu0 0
        %759 = vmatprep.subr.bf16.mxu0 0
        %760 = vmatpush1.bf16.msra.mxu0 0
        %761 = vmatprep.subr.bf16.mxu0 0
        %762 = vmatpush1.bf16.msra.mxu0 0
        %763 = vmatprep.subr.bf16.mxu0 0
        %764 = vmatpush1.bf16.msra.mxu0 0
        %765 = vmatprep.subr.bf16.mxu0 0
        %766 = vmatpush1.bf16.msra.mxu0 0
        %767 = vmatprep.subr.bf16.mxu0 0
        %768 = vmatpush1.bf16.msra.mxu0 0
        %769 = vmatprep.subr.bf16.mxu0 0
        %770 = vmatpush1.bf16.msra.mxu0 0
        %771 = vmatprep.subr.bf16.mxu0 0
        %772 = vmatpush1.bf16.msra.mxu0 0
        %773 = vmatprep.subr.bf16.mxu0 0
        %774 = vmatpush1.bf16.msra.mxu0 0
        %775 = vmatprep.subr.bf16.mxu0 0
        %776 = vmatpush1.bf16.msra.mxu0 0
        %777 = vmatprep.subr.bf16.mxu0 0
        %778 = vmatpush1.bf16.msra.mxu0 0
        %779 = vmatprep.mubr.bf16.mxu0 0
        %780 = vmatmul.mubr.bf16.gmra.mrb[0].mxu0 %v745
        %v781 = vpop.f32.mrb[0].mxu0
        %v782 = vadd.f32 0.0, %v781
        %v783 = vpop.f32.mrb[0].mxu0
        %v784 = vpop.f32.mrb[0].mxu0
        %v785 = vadd.f32 0.0, %v784
        %v786 = vpop.f32.mrb[0].mxu0
        %787 = vdwg.mxu0
        %v788 = vadd.f32 %v738, %v782
        %v789 = vadd.f32 %v741, %v785
        %v791 = vsel %vm310, %v539, 0
        %793 = vmatprep.subr.bf16.mxu0 0
        %794 = vmatpush1.bf16.msra.mxu0 %v658
        %795 = vmatprep.subr.bf16.mxu0 0
        %796 = vmatpush1.bf16.msra.mxu0 0
        %797 = vmatprep.subr.bf16.mxu0 0
        %798 = vmatpush1.bf16.msra.mxu0 0
        %799 = vmatprep.subr.bf16.mxu0 0
        %800 = vmatpush1.bf16.msra.mxu0 0
        %801 = vmatprep.subr.bf16.mxu0 0
        %802 = vmatpush1.bf16.msra.mxu0 0
        %803 = vmatprep.subr.bf16.mxu0 0
        %804 = vmatpush1.bf16.msra.mxu0 0
        %805 = vmatprep.subr.bf16.mxu0 0
        %806 = vmatpush1.bf16.msra.mxu0 0
        %807 = vmatprep.subr.bf16.mxu0 0
        %808 = vmatpush1.bf16.msra.mxu0 0
        %809 = vmatprep.subr.bf16.mxu0 0
        %810 = vmatpush1.bf16.msra.mxu0 0
        %811 = vmatprep.subr.bf16.mxu0 0
        %812 = vmatpush1.bf16.msra.mxu0 0
        %813 = vmatprep.subr.bf16.mxu0 0
        %814 = vmatpush1.bf16.msra.mxu0 0
        %815 = vmatprep.subr.bf16.mxu0 0
        %816 = vmatpush1.bf16.msra.mxu0 0
        %817 = vmatprep.subr.bf16.mxu0 0
        %818 = vmatpush1.bf16.msra.mxu0 0
        %819 = vmatprep.subr.bf16.mxu0 0
        %820 = vmatpush1.bf16.msra.mxu0 0
        %821 = vmatprep.subr.bf16.mxu0 0
        %822 = vmatpush1.bf16.msra.mxu0 0
        %823 = vmatprep.subr.bf16.mxu0 0
        %824 = vmatpush1.bf16.msra.mxu0 0
        %825 = vmatprep.mubr.bf16.mxu0 0
        %826 = vmatmul.mubr.bf16.gmra.mrb[0].mxu0 %v791
        %v827 = vpop.f32.mrb[0].mxu0
        %v828 = vadd.f32 0.0, %v827
        %v829 = vpop.f32.mrb[0].mxu0
        %v830 = vpop.f32.mrb[0].mxu0
        %v831 = vadd.f32 0.0, %v830
        %v832 = vpop.f32.mrb[0].mxu0
        %833 = vdwg.mxu0
        %834 = vmatprep.subr.bf16.mxu0 0
        %835 = vmatpush1.bf16.msra.mxu0 %v653
        %836 = vmatprep.subr.bf16.mxu0 0
        %837 = vmatpush1.bf16.msra.mxu0 0
        %838 = vmatprep.subr.bf16.mxu0 0
        %839 = vmatpush1.bf16.msra.mxu0 0
        %840 = vmatprep.subr.bf16.mxu0 0
        %841 = vmatpush1.bf16.msra.mxu0 0
        %842 = vmatprep.subr.bf16.mxu0 0
        %843 = vmatpush1.bf16.msra.mxu0 0
        %844 = vmatprep.subr.bf16.mxu0 0
        %845 = vmatpush1.bf16.msra.mxu0 0
        %846 = vmatprep.subr.bf16.mxu0 0
        %847 = vmatpush1.bf16.msra.mxu0 0
        %848 = vmatprep.subr.bf16.mxu0 0
        %849 = vmatpush1.bf16.msra.mxu0 0
        %850 = vmatprep.subr.bf16.mxu0 0
        %851 = vmatpush1.bf16.msra.mxu0 0
        %852 = vmatprep.subr.bf16.mxu0 0
        %853 = vmatpush1.bf16.msra.mxu0 0
        %854 = vmatprep.subr.bf16.mxu0 0
        %855 = vmatpush1.bf16.msra.mxu0 0
        %856 = vmatprep.subr.bf16.mxu0 0
        %857 = vmatpush1.bf16.msra.mxu0 0
        %858 = vmatprep.subr.bf16.mxu0 0
        %859 = vmatpush1.bf16.msra.mxu0 0
        %860 = vmatprep.subr.bf16.mxu0 0
        %861 = vmatpush1.bf16.msra.mxu0 0
        %862 = vmatprep.subr.bf16.mxu0 0
        %863 = vmatpush1.bf16.msra.mxu0 0
        %864 = vmatprep.subr.bf16.mxu0 0
        %865 = vmatpush1.bf16.msra.mxu0 0
        %866 = vmatprep.mubr.bf16.mxu0 0
        %867 = vmatmul.mubr.bf16.gmra.mrb[0].mxu0 %v791
        %v868 = vpop.f32.mrb[0].mxu0
        %v869 = vadd.f32 %v828, %v868
        %v870 = vpop.f32.mrb[0].mxu0
        %v871 = vpop.f32.mrb[0].mxu0
        %v872 = vadd.f32 %v831, %v871
        %v873 = vpop.f32.mrb[0].mxu0
        %874 = vdwg.mxu0
        %v876 = vsel %vm310, %v484, 0
        %878 = vmatprep.subr.bf16.mxu0 0
        %879 = vmatpush1.bf16.msra.mxu0 %v653
        %880 = vmatprep.subr.bf16.mxu0 0
        %881 = vmatpush1.bf16.msra.mxu0 0
        %882 = vmatprep.subr.bf16.mxu0 0
        %883 = vmatpush1.bf16.msra.mxu0 0
        %884 = vmatprep.subr.bf16.mxu0 0
        %885 = vmatpush1.bf16.msra.mxu0 0
        %886 = vmatprep.subr.bf16.mxu0 0
        %887 = vmatpush1.bf16.msra.mxu0 0
        %888 = vmatprep.subr.bf16.mxu0 0
        %889 = vmatpush1.bf16.msra.mxu0 0
        %890 = vmatprep.subr.bf16.mxu0 0
        %891 = vmatpush1.bf16.msra.mxu0 0
        %892 = vmatprep.subr.bf16.mxu0 0
        %893 = vmatpush1.bf16.msra.mxu0 0
        %894 = vmatprep.subr.bf16.mxu0 0
        %895 = vmatpush1.bf16.msra.mxu0 0
        %896 = vmatprep.subr.bf16.mxu0 0
        %897 = vmatpush1.bf16.msra.mxu0 0
        %898 = vmatprep.subr.bf16.mxu0 0
        %899 = vmatpush1.bf16.msra.mxu0 0
        %900 = vmatprep.subr.bf16.mxu0 0
        %901 = vmatpush1.bf16.msra.mxu0 0
        %902 = vmatprep.subr.bf16.mxu0 0
        %903 = vmatpush1.bf16.msra.mxu0 0
        %904 = vmatprep.subr.bf16.mxu0 0
        %905 = vmatpush1.bf16.msra.mxu0 0
        %906 = vmatprep.subr.bf16.mxu0 0
        %907 = vmatpush1.bf16.msra.mxu0 0
        %908 = vmatprep.subr.bf16.mxu0 0
        %909 = vmatpush1.bf16.msra.mxu0 0
        %910 = vmatprep.mubr.bf16.mxu0 0
        %911 = vmatmul.mubr.bf16.gmra.mrb[0].mxu0 %v876
        %v912 = vpop.f32.mrb[0].mxu0
        %v913 = vadd.f32 0.0, %v912
        %v914 = vpop.f32.mrb[0].mxu0
        %v915 = vpop.f32.mrb[0].mxu0
        %v916 = vadd.f32 0.0, %v915
        %v917 = vpop.f32.mrb[0].mxu0
        %918 = vdwg.mxu0
        %v919 = vadd.f32 %v869, %v913
        %v920 = vadd.f32 %v872, %v916
        %v921 = vsub.f32 %v788, %v919
        %v922 = vsub.f32 %v789, %v920
        %923 = vmatprep.subr.bf16.mxu0 0
        %924 = vmatpush1.bf16.msra.mxu0 %v658
        %925 = vmatprep.subr.bf16.mxu0 0
        %926 = vmatpush1.bf16.msra.mxu0 0
        %927 = vmatprep.subr.bf16.mxu0 0
        %928 = vmatpush1.bf16.msra.mxu0 0
        %929 = vmatprep.subr.bf16.mxu0 0
        %930 = vmatpush1.bf16.msra.mxu0 0
        %931 = vmatprep.subr.bf16.mxu0 0
        %932 = vmatpush1.bf16.msra.mxu0 0
        %933 = vmatprep.subr.bf16.mxu0 0
        %934 = vmatpush1.bf16.msra.mxu0 0
        %935 = vmatprep.subr.bf16.mxu0 0
        %936 = vmatpush1.bf16.msra.mxu0 0
        %937 = vmatprep.subr.bf16.mxu0 0
        %938 = vmatpush1.bf16.msra.mxu0 0
        %939 = vmatprep.subr.bf16.mxu0 0
        %940 = vmatpush1.bf16.msra.mxu0 0
        %941 = vmatprep.subr.bf16.mxu0 0
        %942 = vmatpush1.bf16.msra.mxu0 0
        %943 = vmatprep.subr.bf16.mxu0 0
        %944 = vmatpush1.bf16.msra.mxu0 0
        %945 = vmatprep.subr.bf16.mxu0 0
        %946 = vmatpush1.bf16.msra.mxu0 0
        %947 = vmatprep.subr.bf16.mxu0 0
        %948 = vmatpush1.bf16.msra.mxu0 0
        %949 = vmatprep.subr.bf16.mxu0 0
        %950 = vmatpush1.bf16.msra.mxu0 0
        %951 = vmatprep.subr.bf16.mxu0 0
        %952 = vmatpush1.bf16.msra.mxu0 0
        %953 = vmatprep.subr.bf16.mxu0 0
        %954 = vmatpush1.bf16.msra.mxu0 0
        %955 = vmatprep.mubr.bf16.mxu0 0
        %956 = vmatmul.mubr.bf16.gmra.mrb[0].mxu0 %v660
        %v957 = vpop.f32.mrb[0].mxu0
        %v958 = vadd.f32 0.0, %v957
        %v959 = vpop.f32.mrb[0].mxu0
        %v960 = vpop.f32.mrb[0].mxu0
        %v961 = vadd.f32 0.0, %v960
        %v962 = vpop.f32.mrb[0].mxu0
        %963 = vdwg.mxu0
        %964 = vmatprep.subr.bf16.mxu0 0
        %965 = vmatpush1.bf16.msra.mxu0 %v653
        %966 = vmatprep.subr.bf16.mxu0 0
        %967 = vmatpush1.bf16.msra.mxu0 0
        %968 = vmatprep.subr.bf16.mxu0 0
        %969 = vmatpush1.bf16.msra.mxu0 0
        %970 = vmatprep.subr.bf16.mxu0 0
        %971 = vmatpush1.bf16.msra.mxu0 0
        %972 = vmatprep.subr.bf16.mxu0 0
        %973 = vmatpush1.bf16.msra.mxu0 0
        %974 = vmatprep.subr.bf16.mxu0 0
        %975 = vmatpush1.bf16.msra.mxu0 0
        %976 = vmatprep.subr.bf16.mxu0 0
        %977 = vmatpush1.bf16.msra.mxu0 0
        %978 = vmatprep.subr.bf16.mxu0 0
        %979 = vmatpush1.bf16.msra.mxu0 0
        %980 = vmatprep.subr.bf16.mxu0 0
        %981 = vmatpush1.bf16.msra.mxu0 0
        %982 = vmatprep.subr.bf16.mxu0 0
        %983 = vmatpush1.bf16.msra.mxu0 0
        %984 = vmatprep.subr.bf16.mxu0 0
        %985 = vmatpush1.bf16.msra.mxu0 0
        %986 = vmatprep.subr.bf16.mxu0 0
        %987 = vmatpush1.bf16.msra.mxu0 0
        %988 = vmatprep.subr.bf16.mxu0 0
        %989 = vmatpush1.bf16.msra.mxu0 0
        %990 = vmatprep.subr.bf16.mxu0 0
        %991 = vmatpush1.bf16.msra.mxu0 0
        %992 = vmatprep.subr.bf16.mxu0 0
        %993 = vmatpush1.bf16.msra.mxu0 0
        %994 = vmatprep.subr.bf16.mxu0 0
        %995 = vmatpush1.bf16.msra.mxu0 0
        %996 = vmatprep.mubr.bf16.mxu0 0
        %997 = vmatmul.mubr.bf16.gmra.mrb[0].mxu0 %v660
        %v998 = vpop.f32.mrb[0].mxu0
        %v999 = vadd.f32 %v958, %v998
        %v1000 = vpop.f32.mrb[0].mxu0
        %v1001 = vpop.f32.mrb[0].mxu0
        %v1002 = vadd.f32 %v961, %v1001
        %v1003 = vpop.f32.mrb[0].mxu0
        %1004 = vdwg.mxu0
        %1005 = vmatprep.subr.bf16.mxu0 0
        %1006 = vmatpush1.bf16.msra.mxu0 %v653
        %1007 = vmatprep.subr.bf16.mxu0 0
        %1008 = vmatpush1.bf16.msra.mxu0 0
        %1009 = vmatprep.subr.bf16.mxu0 0
        %1010 = vmatpush1.bf16.msra.mxu0 0
        %1011 = vmatprep.subr.bf16.mxu0 0
        %1012 = vmatpush1.bf16.msra.mxu0 0
        %1013 = vmatprep.subr.bf16.mxu0 0
        %1014 = vmatpush1.bf16.msra.mxu0 0
        %1015 = vmatprep.subr.bf16.mxu0 0
        %1016 = vmatpush1.bf16.msra.mxu0 0
        %1017 = vmatprep.subr.bf16.mxu0 0
        %1018 = vmatpush1.bf16.msra.mxu0 0
        %1019 = vmatprep.subr.bf16.mxu0 0
        %1020 = vmatpush1.bf16.msra.mxu0 0
        %1021 = vmatprep.subr.bf16.mxu0 0
        %1022 = vmatpush1.bf16.msra.mxu0 0
        %1023 = vmatprep.subr.bf16.mxu0 0
        %1024 = vmatpush1.bf16.msra.mxu0 0
        %1025 = vmatprep.subr.bf16.mxu0 0
        %1026 = vmatpush1.bf16.msra.mxu0 0
        %1027 = vmatprep.subr.bf16.mxu0 0
        %1028 = vmatpush1.bf16.msra.mxu0 0
        %1029 = vmatprep.subr.bf16.mxu0 0
        %1030 = vmatpush1.bf16.msra.mxu0 0
        %1031 = vmatprep.subr.bf16.mxu0 0
        %1032 = vmatpush1.bf16.msra.mxu0 0
        %1033 = vmatprep.subr.bf16.mxu0 0
        %1034 = vmatpush1.bf16.msra.mxu0 0
        %1035 = vmatprep.subr.bf16.mxu0 0
        %1036 = vmatpush1.bf16.msra.mxu0 0
        %1037 = vmatprep.mubr.bf16.mxu0 0
        %1038 = vmatmul.mubr.bf16.gmra.mrb[0].mxu0 %v745
        %v1039 = vpop.f32.mrb[0].mxu0
        %v1040 = vadd.f32 0.0, %v1039
        %v1041 = vpop.f32.mrb[0].mxu0
        %v1042 = vpop.f32.mrb[0].mxu0
        %v1043 = vadd.f32 0.0, %v1042
        %v1044 = vpop.f32.mrb[0].mxu0
        %1045 = vdwg.mxu0
        %v1046 = vadd.f32 %v999, %v1040
        %v1047 = vadd.f32 %v1002, %v1043
        %1048 = vmatprep.subr.bf16.mxu0 0
        %1049 = vmatpush1.bf16.msra.mxu0 %v652
        %1050 = vmatprep.subr.bf16.mxu0 0
        %1051 = vmatpush1.bf16.msra.mxu0 0
        %1052 = vmatprep.subr.bf16.mxu0 0
        %1053 = vmatpush1.bf16.msra.mxu0 0
        %1054 = vmatprep.subr.bf16.mxu0 0
        %1055 = vmatpush1.bf16.msra.mxu0 0
        %1056 = vmatprep.subr.bf16.mxu0 0
        %1057 = vmatpush1.bf16.msra.mxu0 0
        %1058 = vmatprep.subr.bf16.mxu0 0
        %1059 = vmatpush1.bf16.msra.mxu0 0
        %1060 = vmatprep.subr.bf16.mxu0 0
        %1061 = vmatpush1.bf16.msra.mxu0 0
        %1062 = vmatprep.subr.bf16.mxu0 0
        %1063 = vmatpush1.bf16.msra.mxu0 0
        %1064 = vmatprep.subr.bf16.mxu0 0
        %1065 = vmatpush1.bf16.msra.mxu0 0
        %1066 = vmatprep.subr.bf16.mxu0 0
        %1067 = vmatpush1.bf16.msra.mxu0 0
        %1068 = vmatprep.subr.bf16.mxu0 0
        %1069 = vmatpush1.bf16.msra.mxu0 0
        %1070 = vmatprep.subr.bf16.mxu0 0
        %1071 = vmatpush1.bf16.msra.mxu0 0
        %1072 = vmatprep.subr.bf16.mxu0 0
        %1073 = vmatpush1.bf16.msra.mxu0 0
        %1074 = vmatprep.subr.bf16.mxu0 0
        %1075 = vmatpush1.bf16.msra.mxu0 0
        %1076 = vmatprep.subr.bf16.mxu0 0
        %1077 = vmatpush1.bf16.msra.mxu0 0
        %1078 = vmatprep.subr.bf16.mxu0 0
        %1079 = vmatpush1.bf16.msra.mxu0 0
        %1080 = vmatprep.mubr.bf16.mxu0 0
        %1081 = vmatmul.mubr.bf16.gmra.mrb[0].mxu0 %v791
        %v1082 = vpop.f32.mrb[0].mxu0
        %v1083 = vadd.f32 0.0, %v1082
        %v1084 = vpop.f32.mrb[0].mxu0
        %v1085 = vpop.f32.mrb[0].mxu0
        %v1086 = vadd.f32 0.0, %v1085
        %v1087 = vpop.f32.mrb[0].mxu0
        %1088 = vdwg.mxu0
        %1089 = vmatprep.subr.bf16.mxu0 0
        %1090 = vmatpush1.bf16.msra.mxu0 %v647
        %1091 = vmatprep.subr.bf16.mxu0 0
        %1092 = vmatpush1.bf16.msra.mxu0 0
        %1093 = vmatprep.subr.bf16.mxu0 0
        %1094 = vmatpush1.bf16.msra.mxu0 0
        %1095 = vmatprep.subr.bf16.mxu0 0
        %1096 = vmatpush1.bf16.msra.mxu0 0
        %1097 = vmatprep.subr.bf16.mxu0 0
        %1098 = vmatpush1.bf16.msra.mxu0 0
        %1099 = vmatprep.subr.bf16.mxu0 0
        %1100 = vmatpush1.bf16.msra.mxu0 0
        %1101 = vmatprep.subr.bf16.mxu0 0
        %1102 = vmatpush1.bf16.msra.mxu0 0
        %1103 = vmatprep.subr.bf16.mxu0 0
        %1104 = vmatpush1.bf16.msra.mxu0 0
        %1105 = vmatprep.subr.bf16.mxu0 0
        %1106 = vmatpush1.bf16.msra.mxu0 0
        %1107 = vmatprep.subr.bf16.mxu0 0
        %1108 = vmatpush1.bf16.msra.mxu0 0
        %1109 = vmatprep.subr.bf16.mxu0 0
        %1110 = vmatpush1.bf16.msra.mxu0 0
        %1111 = vmatprep.subr.bf16.mxu0 0
        %1112 = vmatpush1.bf16.msra.mxu0 0
        %1113 = vmatprep.subr.bf16.mxu0 0
        %1114 = vmatpush1.bf16.msra.mxu0 0
        %1115 = vmatprep.subr.bf16.mxu0 0
        %1116 = vmatpush1.bf16.msra.mxu0 0
        %1117 = vmatprep.subr.bf16.mxu0 0
        %1118 = vmatpush1.bf16.msra.mxu0 0
        %1119 = vmatprep.subr.bf16.mxu0 0
        %1120 = vmatpush1.bf16.msra.mxu0 0
        %1121 = vmatprep.mubr.bf16.mxu0 0
        %1122 = vmatmul.mubr.bf16.gmra.mrb[0].mxu0 %v791
        %v1123 = vpop.f32.mrb[0].mxu0
        %v1124 = vadd.f32 %v1083, %v1123
        %v1125 = vpop.f32.mrb[0].mxu0
        %v1126 = vpop.f32.mrb[0].mxu0
        %v1127 = vadd.f32 %v1086, %v1126
        %v1128 = vpop.f32.mrb[0].mxu0
        %1129 = vdwg.mxu0
        %1130 = vmatprep.subr.bf16.mxu0 0
        %1131 = vmatpush1.bf16.msra.mxu0 %v647
        %1132 = vmatprep.subr.bf16.mxu0 0
        %1133 = vmatpush1.bf16.msra.mxu0 0
        %1134 = vmatprep.subr.bf16.mxu0 0
        %1135 = vmatpush1.bf16.msra.mxu0 0
        %1136 = vmatprep.subr.bf16.mxu0 0
        %1137 = vmatpush1.bf16.msra.mxu0 0
        %1138 = vmatprep.subr.bf16.mxu0 0
        %1139 = vmatpush1.bf16.msra.mxu0 0
        %1140 = vmatprep.subr.bf16.mxu0 0
        %1141 = vmatpush1.bf16.msra.mxu0 0
        %1142 = vmatprep.subr.bf16.mxu0 0
        %1143 = vmatpush1.bf16.msra.mxu0 0
        %1144 = vmatprep.subr.bf16.mxu0 0
        %1145 = vmatpush1.bf16.msra.mxu0 0
        %1146 = vmatprep.subr.bf16.mxu0 0
        %1147 = vmatpush1.bf16.msra.mxu0 0
        %1148 = vmatprep.subr.bf16.mxu0 0
        %1149 = vmatpush1.bf16.msra.mxu0 0
        %1150 = vmatprep.subr.bf16.mxu0 0
        %1151 = vmatpush1.bf16.msra.mxu0 0
        %1152 = vmatprep.subr.bf16.mxu0 0
        %1153 = vmatpush1.bf16.msra.mxu0 0
        %1154 = vmatprep.subr.bf16.mxu0 0
        %1155 = vmatpush1.bf16.msra.mxu0 0
        %1156 = vmatprep.subr.bf16.mxu0 0
        %1157 = vmatpush1.bf16.msra.mxu0 0
        %1158 = vmatprep.subr.bf16.mxu0 0
        %1159 = vmatpush1.bf16.msra.mxu0 0
        %1160 = vmatprep.subr.bf16.mxu0 0
        %1161 = vmatpush1.bf16.msra.mxu0 0
        %1162 = vmatprep.mubr.bf16.mxu0 0
        %1163 = vmatmul.mubr.bf16.gmra.mrb[0].mxu0 %v876
        %v1164 = vpop.f32.mrb[0].mxu0
        %v1165 = vadd.f32 0.0, %v1164
        %v1166 = vpop.f32.mrb[0].mxu0
        %v1167 = vpop.f32.mrb[0].mxu0
        %v1168 = vadd.f32 0.0, %v1167
        %v1169 = vpop.f32.mrb[0].mxu0
        %1170 = vdwg.mxu0
        %v1171 = vadd.f32 %v1124, %v1165
        %v1172 = vadd.f32 %v1127, %v1168
        %v1173 = vadd.f32 %v1046, %v1171
        %v1174 = vadd.f32 %v1047, %v1172
        %v1175 = vmul.f32 %v921, %v287
        %v1176 = vmul.f32 %v922, %v288
        %v1177 = vmul.f32 %v1173, %v290
        %v1178 = vmul.f32 %v1174, %v291
        %v1179 = vsub.f32 %v1175, %v1177
        %v1180 = vsub.f32 %v1176, %v1178
        %v1181 = vmul.f32 %v921, %v290
        %v1182 = vmul.f32 %v922, %v291
        %v1183 = vmul.f32 %v1173, %v287
        %v1184 = vmul.f32 %v1174, %v288
        %v1185 = vadd.f32 %v1181, %v1183
        %v1186 = vadd.f32 %v1182, %v1184
        %v1187 = vpack.c.bf16 %v1180, %v1179
        %v1188 = vunpack.c.l.bf16 %v1187
        %v1189 = vunpack.c.h.bf16 %v1187
        %v1190 = vsub.f32 %v1179, %v1188
        %v1191 = vsub.f32 %v1180, %v1189
        %v1192 = vpack.c.bf16 %v1191, %v1190
        %v1193 = vpack.c.bf16 %v1186, %v1185
        %v1194 = vunpack.c.l.bf16 %v1193
        %v1195 = vunpack.c.h.bf16 %v1193
        %v1196 = vsub.f32 %v1185, %v1194
        %v1197 = vsub.f32 %v1186, %v1195
        %v1198 = vpack.c.bf16 %v1197, %v1196
        %1199 = vmatprep.subr.bf16.mxu0 0
        %1200 = vmatpush1.bf16.msra.mxu0 %v1192
        %1201 = vmatprep.subr.bf16.mxu0 0
        %1202 = vmatpush1.bf16.msra.mxu0 0
        %1203 = vmatprep.subr.bf16.mxu0 0
        %1204 = vmatpush1.bf16.msra.mxu0 0
        %1205 = vmatprep.subr.bf16.mxu0 0
        %1206 = vmatpush1.bf16.msra.mxu0 0
        %1207 = vmatprep.subr.bf16.mxu0 0
        %1208 = vmatpush1.bf16.msra.mxu0 0
        %1209 = vmatprep.subr.bf16.mxu0 0
        %1210 = vmatpush1.bf16.msra.mxu0 0
        %1211 = vmatprep.subr.bf16.mxu0 0
        %1212 = vmatpush1.bf16.msra.mxu0 0
        %1213 = vmatprep.subr.bf16.mxu0 0
        %1214 = vmatpush1.bf16.msra.mxu0 0
        %1215 = vmatprep.subr.bf16.mxu0 0
        %1216 = vmatpush1.bf16.msra.mxu0 0
        %1217 = vmatprep.subr.bf16.mxu0 0
        %1218 = vmatpush1.bf16.msra.mxu0 0
        %1219 = vmatprep.subr.bf16.mxu0 0
        %1220 = vmatpush1.bf16.msra.mxu0 0
        %1221 = vmatprep.subr.bf16.mxu0 0
        %1222 = vmatpush1.bf16.msra.mxu0 0
        %1223 = vmatprep.subr.bf16.mxu0 0
        %1224 = vmatpush1.bf16.msra.mxu0 0
        %1225 = vmatprep.subr.bf16.mxu0 0
        %1226 = vmatpush1.bf16.msra.mxu0 0
        %1227 = vmatprep.subr.bf16.mxu0 0
        %1228 = vmatpush1.bf16.msra.mxu0 0
        %1229 = vmatprep.subr.bf16.mxu0 0
        %1230 = vmatpush1.bf16.msra.mxu0 0
        %1231 = vmatprep.mubr.bf16.mxu0 0
        %1232 = vmatmul.mubr.bf16.gmra.mrb[0].mxu0 %v660
        %v1233 = vpop.f32.mrb[0].mxu0
        %v1234 = vadd.f32 0.0, %v1233
        %v1235 = vpop.f32.mrb[0].mxu0
        %v1236 = vpop.f32.mrb[0].mxu0
        %v1237 = vadd.f32 0.0, %v1236
        %v1238 = vpop.f32.mrb[0].mxu0
        %1239 = vdwg.mxu0
        %1240 = vmatprep.subr.bf16.mxu0 0
        %1241 = vmatpush1.bf16.msra.mxu0 %v1187
        %1242 = vmatprep.subr.bf16.mxu0 0
        %1243 = vmatpush1.bf16.msra.mxu0 0
        %1244 = vmatprep.subr.bf16.mxu0 0
        %1245 = vmatpush1.bf16.msra.mxu0 0
        %1246 = vmatprep.subr.bf16.mxu0 0
        %1247 = vmatpush1.bf16.msra.mxu0 0
        %1248 = vmatprep.subr.bf16.mxu0 0
        %1249 = vmatpush1.bf16.msra.mxu0 0
        %1250 = vmatprep.subr.bf16.mxu0 0
        %1251 = vmatpush1.bf16.msra.mxu0 0
        %1252 = vmatprep.subr.bf16.mxu0 0
        %1253 = vmatpush1.bf16.msra.mxu0 0
        %1254 = vmatprep.subr.bf16.mxu0 0
        %1255 = vmatpush1.bf16.msra.mxu0 0
        %1256 = vmatprep.subr.bf16.mxu0 0
        %1257 = vmatpush1.bf16.msra.mxu0 0
        %1258 = vmatprep.subr.bf16.mxu0 0
        %1259 = vmatpush1.bf16.msra.mxu0 0
        %1260 = vmatprep.subr.bf16.mxu0 0
        %1261 = vmatpush1.bf16.msra.mxu0 0
        %1262 = vmatprep.subr.bf16.mxu0 0
        %1263 = vmatpush1.bf16.msra.mxu0 0
        %1264 = vmatprep.subr.bf16.mxu0 0
        %1265 = vmatpush1.bf16.msra.mxu0 0
        %1266 = vmatprep.subr.bf16.mxu0 0
        %1267 = vmatpush1.bf16.msra.mxu0 0
        %1268 = vmatprep.subr.bf16.mxu0 0
        %1269 = vmatpush1.bf16.msra.mxu0 0
        %1270 = vmatprep.subr.bf16.mxu0 0
        %1271 = vmatpush1.bf16.msra.mxu0 0
        %1272 = vmatprep.mubr.bf16.mxu0 0
        %1273 = vmatmul.mubr.bf16.gmra.mrb[0].mxu0 %v660
        %v1274 = vpop.f32.mrb[0].mxu0
        %v1275 = vadd.f32 %v1234, %v1274
        %v1276 = vpop.f32.mrb[0].mxu0
        %v1277 = vpop.f32.mrb[0].mxu0
        %v1278 = vadd.f32 %v1237, %v1277
        %v1279 = vpop.f32.mrb[0].mxu0
        %1280 = vdwg.mxu0
        %1281 = vmatprep.subr.bf16.mxu0 0
        %1282 = vmatpush1.bf16.msra.mxu0 %v1187
        %1283 = vmatprep.subr.bf16.mxu0 0
        %1284 = vmatpush1.bf16.msra.mxu0 0
        %1285 = vmatprep.subr.bf16.mxu0 0
        %1286 = vmatpush1.bf16.msra.mxu0 0
        %1287 = vmatprep.subr.bf16.mxu0 0
        %1288 = vmatpush1.bf16.msra.mxu0 0
        %1289 = vmatprep.subr.bf16.mxu0 0
        %1290 = vmatpush1.bf16.msra.mxu0 0
        %1291 = vmatprep.subr.bf16.mxu0 0
        %1292 = vmatpush1.bf16.msra.mxu0 0
        %1293 = vmatprep.subr.bf16.mxu0 0
        %1294 = vmatpush1.bf16.msra.mxu0 0
        %1295 = vmatprep.subr.bf16.mxu0 0
        %1296 = vmatpush1.bf16.msra.mxu0 0
        %1297 = vmatprep.subr.bf16.mxu0 0
        %1298 = vmatpush1.bf16.msra.mxu0 0
        %1299 = vmatprep.subr.bf16.mxu0 0
        %1300 = vmatpush1.bf16.msra.mxu0 0
        %1301 = vmatprep.subr.bf16.mxu0 0
        %1302 = vmatpush1.bf16.msra.mxu0 0
        %1303 = vmatprep.subr.bf16.mxu0 0
        %1304 = vmatpush1.bf16.msra.mxu0 0
        %1305 = vmatprep.subr.bf16.mxu0 0
        %1306 = vmatpush1.bf16.msra.mxu0 0
        %1307 = vmatprep.subr.bf16.mxu0 0
        %1308 = vmatpush1.bf16.msra.mxu0 0
        %1309 = vmatprep.subr.bf16.mxu0 0
        %1310 = vmatpush1.bf16.msra.mxu0 0
        %1311 = vmatprep.subr.bf16.mxu0 0
        %1312 = vmatpush1.bf16.msra.mxu0 0
        %1313 = vmatprep.mubr.bf16.mxu0 0
        %1314 = vmatmul.mubr.bf16.gmra.mrb[0].mxu0 %v745
        %v1315 = vpop.f32.mrb[0].mxu0
        %v1316 = vadd.f32 0.0, %v1315
        %v1317 = vpop.f32.mrb[0].mxu0
        %v1318 = vpop.f32.mrb[0].mxu0
        %v1319 = vadd.f32 0.0, %v1318
        %v1320 = vpop.f32.mrb[0].mxu0
        %1321 = vdwg.mxu0
        %v1322 = vadd.f32 %v1275, %v1316
        %v1323 = vadd.f32 %v1278, %v1319
        %1324 = vmatprep.subr.bf16.mxu0 0
        %1325 = vmatpush1.bf16.msra.mxu0 %v1198
        %1326 = vmatprep.subr.bf16.mxu0 0
        %1327 = vmatpush1.bf16.msra.mxu0 0
        %1328 = vmatprep.subr.bf16.mxu0 0
        %1329 = vmatpush1.bf16.msra.mxu0 0
        %1330 = vmatprep.subr.bf16.mxu0 0
        %1331 = vmatpush1.bf16.msra.mxu0 0
        %1332 = vmatprep.subr.bf16.mxu0 0
        %1333 = vmatpush1.bf16.msra.mxu0 0
        %1334 = vmatprep.subr.bf16.mxu0 0
        %1335 = vmatpush1.bf16.msra.mxu0 0
        %1336 = vmatprep.subr.bf16.mxu0 0
        %1337 = vmatpush1.bf16.msra.mxu0 0
        %1338 = vmatprep.subr.bf16.mxu0 0
        %1339 = vmatpush1.bf16.msra.mxu0 0
        %1340 = vmatprep.subr.bf16.mxu0 0
        %1341 = vmatpush1.bf16.msra.mxu0 0
        %1342 = vmatprep.subr.bf16.mxu0 0
        %1343 = vmatpush1.bf16.msra.mxu0 0
        %1344 = vmatprep.subr.bf16.mxu0 0
        %1345 = vmatpush1.bf16.msra.mxu0 0
        %1346 = vmatprep.subr.bf16.mxu0 0
        %1347 = vmatpush1.bf16.msra.mxu0 0
        %1348 = vmatprep.subr.bf16.mxu0 0
        %1349 = vmatpush1.bf16.msra.mxu0 0
        %1350 = vmatprep.subr.bf16.mxu0 0
        %1351 = vmatpush1.bf16.msra.mxu0 0
        %1352 = vmatprep.subr.bf16.mxu0 0
        %1353 = vmatpush1.bf16.msra.mxu0 0
        %1354 = vmatprep.subr.bf16.mxu0 0
        %1355 = vmatpush1.bf16.msra.mxu0 0
        %1356 = vmatprep.mubr.bf16.mxu0 0
        %1357 = vmatmul.mubr.bf16.gmra.mrb[0].mxu0 %v791
        %v1358 = vpop.f32.mrb[0].mxu0
        %v1359 = vadd.f32 0.0, %v1358
        %v1360 = vpop.f32.mrb[0].mxu0
        %v1361 = vpop.f32.mrb[0].mxu0
        %v1362 = vadd.f32 0.0, %v1361
        %v1363 = vpop.f32.mrb[0].mxu0
        %1364 = vdwg.mxu0
        %1365 = vmatprep.subr.bf16.mxu0 0
        %1366 = vmatpush1.bf16.msra.mxu0 %v1193
        %1367 = vmatprep.subr.bf16.mxu0 0
        %1368 = vmatpush1.bf16.msra.mxu0 0
        %1369 = vmatprep.subr.bf16.mxu0 0
        %1370 = vmatpush1.bf16.msra.mxu0 0
        %1371 = vmatprep.subr.bf16.mxu0 0
        %1372 = vmatpush1.bf16.msra.mxu0 0
        %1373 = vmatprep.subr.bf16.mxu0 0
        %1374 = vmatpush1.bf16.msra.mxu0 0
        %1375 = vmatprep.subr.bf16.mxu0 0
        %1376 = vmatpush1.bf16.msra.mxu0 0
        %1377 = vmatprep.subr.bf16.mxu0 0
        %1378 = vmatpush1.bf16.msra.mxu0 0
        %1379 = vmatprep.subr.bf16.mxu0 0
        %1380 = vmatpush1.bf16.msra.mxu0 0
        %1381 = vmatprep.subr.bf16.mxu0 0
        %1382 = vmatpush1.bf16.msra.mxu0 0
        %1383 = vmatprep.subr.bf16.mxu0 0
        %1384 = vmatpush1.bf16.msra.mxu0 0
        %1385 = vmatprep.subr.bf16.mxu0 0
        %1386 = vmatpush1.bf16.msra.mxu0 0
        %1387 = vmatprep.subr.bf16.mxu0 0
        %1388 = vmatpush1.bf16.msra.mxu0 0
        %1389 = vmatprep.subr.bf16.mxu0 0
        %1390 = vmatpush1.bf16.msra.mxu0 0
        %1391 = vmatprep.subr.bf16.mxu0 0
        %1392 = vmatpush1.bf16.msra.mxu0 0
        %1393 = vmatprep.subr.bf16.mxu0 0
        %1394 = vmatpush1.bf16.msra.mxu0 0
        %1395 = vmatprep.subr.bf16.mxu0 0
        %1396 = vmatpush1.bf16.msra.mxu0 0
        %1397 = vmatprep.mubr.bf16.mxu0 0
        %1398 = vmatmul.mubr.bf16.gmra.mrb[0].mxu0 %v791
        %v1399 = vpop.f32.mrb[0].mxu0
        %v1400 = vadd.f32 %v1359, %v1399
        %v1401 = vpop.f32.mrb[0].mxu0
        %v1402 = vpop.f32.mrb[0].mxu0
        %v1403 = vadd.f32 %v1362, %v1402
        %v1404 = vpop.f32.mrb[0].mxu0
        %1405 = vdwg.mxu0
        %1406 = vmatprep.subr.bf16.mxu0 0
        %1407 = vmatpush1.bf16.msra.mxu0 %v1193
        %1408 = vmatprep.subr.bf16.mxu0 0
        %1409 = vmatpush1.bf16.msra.mxu0 0
        %1410 = vmatprep.subr.bf16.mxu0 0
        %1411 = vmatpush1.bf16.msra.mxu0 0
        %1412 = vmatprep.subr.bf16.mxu0 0
        %1413 = vmatpush1.bf16.msra.mxu0 0
        %1414 = vmatprep.subr.bf16.mxu0 0
        %1415 = vmatpush1.bf16.msra.mxu0 0
        %1416 = vmatprep.subr.bf16.mxu0 0
        %1417 = vmatpush1.bf16.msra.mxu0 0
        %1418 = vmatprep.subr.bf16.mxu0 0
        %1419 = vmatpush1.bf16.msra.mxu0 0
        %1420 = vmatprep.subr.bf16.mxu0 0
        %1421 = vmatpush1.bf16.msra.mxu0 0
        %1422 = vmatprep.subr.bf16.mxu0 0
        %1423 = vmatpush1.bf16.msra.mxu0 0
        %1424 = vmatprep.subr.bf16.mxu0 0
        %1425 = vmatpush1.bf16.msra.mxu0 0
        %1426 = vmatprep.subr.bf16.mxu0 0
        %1427 = vmatpush1.bf16.msra.mxu0 0
        %1428 = vmatprep.subr.bf16.mxu0 0
        %1429 = vmatpush1.bf16.msra.mxu0 0
        %1430 = vmatprep.subr.bf16.mxu0 0
        %1431 = vmatpush1.bf16.msra.mxu0 0
        %1432 = vmatprep.subr.bf16.mxu0 0
        %1433 = vmatpush1.bf16.msra.mxu0 0
        %1434 = vmatprep.subr.bf16.mxu0 0
        %1435 = vmatpush1.bf16.msra.mxu0 0
        %1436 = vmatprep.subr.bf16.mxu0 0
        %1437 = vmatpush1.bf16.msra.mxu0 0
        %1438 = vmatprep.mubr.bf16.mxu0 0
        %1439 = vmatmul.mubr.bf16.gmra.mrb[0].mxu0 %v876
        %v1440 = vpop.f32.mrb[0].mxu0
        %v1441 = vadd.f32 0.0, %v1440
        %v1442 = vpop.f32.mrb[0].mxu0
        %v1443 = vpop.f32.mrb[0].mxu0
        %v1444 = vadd.f32 0.0, %v1443
        %v1445 = vpop.f32.mrb[0].mxu0
        %1446 = vdwg.mxu0
        %v1447 = vadd.f32 %v1400, %v1441
        %v1448 = vadd.f32 %v1403, %v1444
        %v1449 = vadd.f32 %v1322, %v1447
        %v1450 = vadd.f32 %v1323, %v1448
        %1451 = vmatprep.subr.bf16.mxu0 0
        %1452 = vmatpush1.bf16.msra.mxu0 %v1198
        %1453 = vmatprep.subr.bf16.mxu0 0
        %1454 = vmatpush1.bf16.msra.mxu0 0
        %1455 = vmatprep.subr.bf16.mxu0 0
        %1456 = vmatpush1.bf16.msra.mxu0 0
        %1457 = vmatprep.subr.bf16.mxu0 0
        %1458 = vmatpush1.bf16.msra.mxu0 0
        %1459 = vmatprep.subr.bf16.mxu0 0
        %1460 = vmatpush1.bf16.msra.mxu0 0
        %1461 = vmatprep.subr.bf16.mxu0 0
        %1462 = vmatpush1.bf16.msra.mxu0 0
        %1463 = vmatprep.subr.bf16.mxu0 0
        %1464 = vmatpush1.bf16.msra.mxu0 0
        %1465 = vmatprep.subr.bf16.mxu0 0
        %1466 = vmatpush1.bf16.msra.mxu0 0
        %1467 = vmatprep.subr.bf16.mxu0 0
        %1468 = vmatpush1.bf16.msra.mxu0 0
        %1469 = vmatprep.subr.bf16.mxu0 0
        %1470 = vmatpush1.bf16.msra.mxu0 0
        %1471 = vmatprep.subr.bf16.mxu0 0
        %1472 = vmatpush1.bf16.msra.mxu0 0
        %1473 = vmatprep.subr.bf16.mxu0 0
        %1474 = vmatpush1.bf16.msra.mxu0 0
        %1475 = vmatprep.subr.bf16.mxu0 0
        %1476 = vmatpush1.bf16.msra.mxu0 0
        %1477 = vmatprep.subr.bf16.mxu0 0
        %1478 = vmatpush1.bf16.msra.mxu0 0
        %1479 = vmatprep.subr.bf16.mxu0 0
        %1480 = vmatpush1.bf16.msra.mxu0 0
        %1481 = vmatprep.subr.bf16.mxu0 0
        %1482 = vmatpush1.bf16.msra.mxu0 0
        %1483 = vmatprep.mubr.bf16.mxu0 0
        %1484 = vmatmul.mubr.bf16.gmra.mrb[0].mxu0 %v660
        %v1485 = vpop.f32.mrb[0].mxu0
        %v1486 = vadd.f32 0.0, %v1485
        %v1487 = vpop.f32.mrb[0].mxu0
        %v1488 = vpop.f32.mrb[0].mxu0
        %v1489 = vadd.f32 0.0, %v1488
        %v1490 = vpop.f32.mrb[0].mxu0
        %1491 = vdwg.mxu0
        %1492 = vmatprep.subr.bf16.mxu0 0
        %1493 = vmatpush1.bf16.msra.mxu0 %v1193
        %1494 = vmatprep.subr.bf16.mxu0 0
        %1495 = vmatpush1.bf16.msra.mxu0 0
        %1496 = vmatprep.subr.bf16.mxu0 0
        %1497 = vmatpush1.bf16.msra.mxu0 0
        %1498 = vmatprep.subr.bf16.mxu0 0
        %1499 = vmatpush1.bf16.msra.mxu0 0
        %1500 = vmatprep.subr.bf16.mxu0 0
        %1501 = vmatpush1.bf16.msra.mxu0 0
        %1502 = vmatprep.subr.bf16.mxu0 0
        %1503 = vmatpush1.bf16.msra.mxu0 0
        %1504 = vmatprep.subr.bf16.mxu0 0
        %1505 = vmatpush1.bf16.msra.mxu0 0
        %1506 = vmatprep.subr.bf16.mxu0 0
        %1507 = vmatpush1.bf16.msra.mxu0 0
        %1508 = vmatprep.subr.bf16.mxu0 0
        %1509 = vmatpush1.bf16.msra.mxu0 0
        %1510 = vmatprep.subr.bf16.mxu0 0
        %1511 = vmatpush1.bf16.msra.mxu0 0
        %1512 = vmatprep.subr.bf16.mxu0 0
        %1513 = vmatpush1.bf16.msra.mxu0 0
        %1514 = vmatprep.subr.bf16.mxu0 0
        %1515 = vmatpush1.bf16.msra.mxu0 0
        %1516 = vmatprep.subr.bf16.mxu0 0
        %1517 = vmatpush1.bf16.msra.mxu0 0
        %1518 = vmatprep.subr.bf16.mxu0 0
        %1519 = vmatpush1.bf16.msra.mxu0 0
        %1520 = vmatprep.subr.bf16.mxu0 0
        %1521 = vmatpush1.bf16.msra.mxu0 0
        %1522 = vmatprep.subr.bf16.mxu0 0
        %1523 = vmatpush1.bf16.msra.mxu0 0
        %1524 = vmatprep.mubr.bf16.mxu0 0
        %1525 = vmatmul.mubr.bf16.gmra.mrb[0].mxu0 %v660
        %v1526 = vpop.f32.mrb[0].mxu0
        %v1527 = vadd.f32 %v1486, %v1526
        %v1528 = vpop.f32.mrb[0].mxu0
        %v1529 = vpop.f32.mrb[0].mxu0
        %v1530 = vadd.f32 %v1489, %v1529
        %v1531 = vpop.f32.mrb[0].mxu0
        %1532 = vdwg.mxu0
        %1533 = vmatprep.subr.bf16.mxu0 0
        %1534 = vmatpush1.bf16.msra.mxu0 %v1193
        %1535 = vmatprep.subr.bf16.mxu0 0
        %1536 = vmatpush1.bf16.msra.mxu0 0
        %1537 = vmatprep.subr.bf16.mxu0 0
        %1538 = vmatpush1.bf16.msra.mxu0 0
        %1539 = vmatprep.subr.bf16.mxu0 0
        %1540 = vmatpush1.bf16.msra.mxu0 0
        %1541 = vmatprep.subr.bf16.mxu0 0
        %1542 = vmatpush1.bf16.msra.mxu0 0
        %1543 = vmatprep.subr.bf16.mxu0 0
        %1544 = vmatpush1.bf16.msra.mxu0 0
        %1545 = vmatprep.subr.bf16.mxu0 0
        %1546 = vmatpush1.bf16.msra.mxu0 0
        %1547 = vmatprep.subr.bf16.mxu0 0
        %1548 = vmatpush1.bf16.msra.mxu0 0
        %1549 = vmatprep.subr.bf16.mxu0 0
        %1550 = vmatpush1.bf16.msra.mxu0 0
        %1551 = vmatprep.subr.bf16.mxu0 0
        %1552 = vmatpush1.bf16.msra.mxu0 0
        %1553 = vmatprep.subr.bf16.mxu0 0
        %1554 = vmatpush1.bf16.msra.mxu0 0
        %1555 = vmatprep.subr.bf16.mxu0 0
        %1556 = vmatpush1.bf16.msra.mxu0 0
        %1557 = vmatprep.subr.bf16.mxu0 0
        %1558 = vmatpush1.bf16.msra.mxu0 0
        %1559 = vmatprep.subr.bf16.mxu0 0
        %1560 = vmatpush1.bf16.msra.mxu0 0
        %1561 = vmatprep.subr.bf16.mxu0 0
        %1562 = vmatpush1.bf16.msra.mxu0 0
        %1563 = vmatprep.subr.bf16.mxu0 0
        %1564 = vmatpush1.bf16.msra.mxu0 0
        %1565 = vmatprep.mubr.bf16.mxu0 0
        %1566 = vmatmul.mubr.bf16.gmra.mrb[0].mxu0 %v745
        %v1567 = vpop.f32.mrb[0].mxu0
        %v1568 = vadd.f32 0.0, %v1567
        %v1569 = vpop.f32.mrb[0].mxu0
        %v1570 = vpop.f32.mrb[0].mxu0
        %v1571 = vadd.f32 0.0, %v1570
        %v1572 = vpop.f32.mrb[0].mxu0
        %1573 = vdwg.mxu0
        %v1574 = vadd.f32 %v1527, %v1568
        %v1575 = vadd.f32 %v1530, %v1571
        %1576 = vmatprep.subr.bf16.mxu0 0
        %1577 = vmatpush1.bf16.msra.mxu0 %v1192
        %1578 = vmatprep.subr.bf16.mxu0 0
        %1579 = vmatpush1.bf16.msra.mxu0 0
        %1580 = vmatprep.subr.bf16.mxu0 0
        %1581 = vmatpush1.bf16.msra.mxu0 0
        %1582 = vmatprep.subr.bf16.mxu0 0
        %1583 = vmatpush1.bf16.msra.mxu0 0
        %1584 = vmatprep.subr.bf16.mxu0 0
        %1585 = vmatpush1.bf16.msra.mxu0 0
        %1586 = vmatprep.subr.bf16.mxu0 0
        %1587 = vmatpush1.bf16.msra.mxu0 0
        %1588 = vmatprep.subr.bf16.mxu0 0
        %1589 = vmatpush1.bf16.msra.mxu0 0
        %1590 = vmatprep.subr.bf16.mxu0 0
        %1591 = vmatpush1.bf16.msra.mxu0 0
        %1592 = vmatprep.subr.bf16.mxu0 0
        %1593 = vmatpush1.bf16.msra.mxu0 0
        %1594 = vmatprep.subr.bf16.mxu0 0
        %1595 = vmatpush1.bf16.msra.mxu0 0
        %1596 = vmatprep.subr.bf16.mxu0 0
        %1597 = vmatpush1.bf16.msra.mxu0 0
        %1598 = vmatprep.subr.bf16.mxu0 0
        %1599 = vmatpush1.bf16.msra.mxu0 0
        %1600 = vmatprep.subr.bf16.mxu0 0
        %1601 = vmatpush1.bf16.msra.mxu0 0
        %1602 = vmatprep.subr.bf16.mxu0 0
        %1603 = vmatpush1.bf16.msra.mxu0 0
        %1604 = vmatprep.subr.bf16.mxu0 0
        %1605 = vmatpush1.bf16.msra.mxu0 0
        %1606 = vmatprep.subr.bf16.mxu0 0
        %1607 = vmatpush1.bf16.msra.mxu0 0
        %1608 = vmatprep.mubr.bf16.mxu0 0
        %1609 = vmatmul.mubr.bf16.gmra.mrb[0].mxu0 %v791
        %v1610 = vpop.f32.mrb[0].mxu0
        %v1611 = vadd.f32 0.0, %v1610
        %v1612 = vpop.f32.mrb[0].mxu0
        %v1613 = vpop.f32.mrb[0].mxu0
        %v1614 = vadd.f32 0.0, %v1613
        %v1615 = vpop.f32.mrb[0].mxu0
        %1616 = vdwg.mxu0
        %1617 = vmatprep.subr.bf16.mxu0 0
        %1618 = vmatpush1.bf16.msra.mxu0 %v1187
        %1619 = vmatprep.subr.bf16.mxu0 0
        %1620 = vmatpush1.bf16.msra.mxu0 0
        %1621 = vmatprep.subr.bf16.mxu0 0
        %1622 = vmatpush1.bf16.msra.mxu0 0
        %1623 = vmatprep.subr.bf16.mxu0 0
        %1624 = vmatpush1.bf16.msra.mxu0 0
        %1625 = vmatprep.subr.bf16.mxu0 0
        %1626 = vmatpush1.bf16.msra.mxu0 0
        %1627 = vmatprep.subr.bf16.mxu0 0
        %1628 = vmatpush1.bf16.msra.mxu0 0
        %1629 = vmatprep.subr.bf16.mxu0 0
        %1630 = vmatpush1.bf16.msra.mxu0 0
        %1631 = vmatprep.subr.bf16.mxu0 0
        %1632 = vmatpush1.bf16.msra.mxu0 0
        %1633 = vmatprep.subr.bf16.mxu0 0
        %1634 = vmatpush1.bf16.msra.mxu0 0
        %1635 = vmatprep.subr.bf16.mxu0 0
        %1636 = vmatpush1.bf16.msra.mxu0 0
        %1637 = vmatprep.subr.bf16.mxu0 0
        %1638 = vmatpush1.bf16.msra.mxu0 0
        %1639 = vmatprep.subr.bf16.mxu0 0
        %1640 = vmatpush1.bf16.msra.mxu0 0
        %1641 = vmatprep.subr.bf16.mxu0 0
        %1642 = vmatpush1.bf16.msra.mxu0 0
        %1643 = vmatprep.subr.bf16.mxu0 0
        %1644 = vmatpush1.bf16.msra.mxu0 0
        %1645 = vmatprep.subr.bf16.mxu0 0
        %1646 = vmatpush1.bf16.msra.mxu0 0
        %1647 = vmatprep.subr.bf16.mxu0 0
        %1648 = vmatpush1.bf16.msra.mxu0 0
        %1649 = vmatprep.mubr.bf16.mxu0 0
        %1650 = vmatmul.mubr.bf16.gmra.mrb[0].mxu0 %v791
        %v1651 = vpop.f32.mrb[0].mxu0
        %v1652 = vadd.f32 %v1611, %v1651
        %v1653 = vpop.f32.mrb[0].mxu0
        %v1654 = vpop.f32.mrb[0].mxu0
        %v1655 = vadd.f32 %v1614, %v1654
        %v1656 = vpop.f32.mrb[0].mxu0
        %1657 = vdwg.mxu0
        %1658 = vmatprep.subr.bf16.mxu0 0
        %1659 = vmatpush1.bf16.msra.mxu0 %v1187
        %1660 = vmatprep.subr.bf16.mxu0 0
        %1661 = vmatpush1.bf16.msra.mxu0 0
        %1662 = vmatprep.subr.bf16.mxu0 0
        %1663 = vmatpush1.bf16.msra.mxu0 0
        %1664 = vmatprep.subr.bf16.mxu0 0
        %1665 = vmatpush1.bf16.msra.mxu0 0
        %1666 = vmatprep.subr.bf16.mxu0 0
        %1667 = vmatpush1.bf16.msra.mxu0 0
        %1668 = vmatprep.subr.bf16.mxu0 0
        %1669 = vmatpush1.bf16.msra.mxu0 0
        %1670 = vmatprep.subr.bf16.mxu0 0
        %1671 = vmatpush1.bf16.msra.mxu0 0
        %1672 = vmatprep.subr.bf16.mxu0 0
        %1673 = vmatpush1.bf16.msra.mxu0 0
        %1674 = vmatprep.subr.bf16.mxu0 0
        %1675 = vmatpush1.bf16.msra.mxu0 0
        %1676 = vmatprep.subr.bf16.mxu0 0
        %1677 = vmatpush1.bf16.msra.mxu0 0
        %1678 = vmatprep.subr.bf16.mxu0 0
        %1679 = vmatpush1.bf16.msra.mxu0 0
        %1680 = vmatprep.subr.bf16.mxu0 0
        %1681 = vmatpush1.bf16.msra.mxu0 0
        %1682 = vmatprep.subr.bf16.mxu0 0
        %1683 = vmatpush1.bf16.msra.mxu0 0
        %1684 = vmatprep.subr.bf16.mxu0 0
        %1685 = vmatpush1.bf16.msra.mxu0 0
        %1686 = vmatprep.subr.bf16.mxu0 0
        %1687 = vmatpush1.bf16.msra.mxu0 0
        %1688 = vmatprep.subr.bf16.mxu0 0
        %1689 = vmatpush1.bf16.msra.mxu0 0
        %1690 = vmatprep.mubr.bf16.mxu0 0
        %1691 = vmatmul.mubr.bf16.gmra.mrb[0].mxu0 %v876
        %v1692 = vpop.f32.mrb[0].mxu0
        %v1693 = vadd.f32 0.0, %v1692
        %v1694 = vpop.f32.mrb[0].mxu0
        %v1695 = vpop.f32.mrb[0].mxu0
        %v1696 = vadd.f32 0.0, %v1695
        %v1697 = vpop.f32.mrb[0].mxu0
        %1698 = vdwg.mxu0
        %v1699 = vadd.f32 %v1652, %v1693
        %v1700 = vadd.f32 %v1655, %v1696
        %v1701 = vsub.f32 %v1574, %v1699
        %v1702 = vsub.f32 %v1575, %v1700
        %v1703 = vpack.c.bf16 %v1450, %v1449
        %v1704 = vunpack.c.l.bf16 %v1703
        %v1705 = vunpack.c.h.bf16 %v1703
        %v1706 = vsub.f32 %v1449, %v1704
        %v1707 = vsub.f32 %v1450, %v1705
        %v1708 = vpack.c.bf16 %v1707, %v1706
        %v1709 = vpack.c.bf16 %v1702, %v1701
        %v1710 = vunpack.c.l.bf16 %v1709
        %v1711 = vunpack.c.h.bf16 %v1709
        %v1712 = vsub.f32 %v1701, %v1710
        %v1713 = vsub.f32 %v1702, %v1711
        %v1714 = vpack.c.bf16 %v1713, %v1712
        %v1716 = vsel %vm310, %v1703, 0
        %1718 = vmatprep.subr.bf16.mxu0 0
        %1719 = vmatpush1.bf16.msra.mxu0 %v308
        %1720 = vmatprep.subr.bf16.mxu0 0
        %1721 = vmatpush1.bf16.msra.mxu0 0
        %1722 = vmatprep.subr.bf16.mxu0 0
        %1723 = vmatpush1.bf16.msra.mxu0 0
        %1724 = vmatprep.subr.bf16.mxu0 0
        %1725 = vmatpush1.bf16.msra.mxu0 0
        %1726 = vmatprep.subr.bf16.mxu0 0
        %1727 = vmatpush1.bf16.msra.mxu0 0
        %1728 = vmatprep.subr.bf16.mxu0 0
        %1729 = vmatpush1.bf16.msra.mxu0 0
        %1730 = vmatprep.subr.bf16.mxu0 0
        %1731 = vmatpush1.bf16.msra.mxu0 0
        %1732 = vmatprep.subr.bf16.mxu0 0
        %1733 = vmatpush1.bf16.msra.mxu0 0
        %1734 = vmatprep.subr.bf16.mxu0 0
        %1735 = vmatpush1.bf16.msra.mxu0 0
        %1736 = vmatprep.subr.bf16.mxu0 0
        %1737 = vmatpush1.bf16.msra.mxu0 0
        %1738 = vmatprep.subr.bf16.mxu0 0
        %1739 = vmatpush1.bf16.msra.mxu0 0
        %1740 = vmatprep.subr.bf16.mxu0 0
        %1741 = vmatpush1.bf16.msra.mxu0 0
        %1742 = vmatprep.subr.bf16.mxu0 0
        %1743 = vmatpush1.bf16.msra.mxu0 0
        %1744 = vmatprep.subr.bf16.mxu0 0
        %1745 = vmatpush1.bf16.msra.mxu0 0
        %1746 = vmatprep.subr.bf16.mxu0 0
        %1747 = vmatpush1.bf16.msra.mxu0 0
        %1748 = vmatprep.subr.bf16.mxu0 0
        %1749 = vmatpush1.bf16.msra.mxu0 0
        %1750 = vmatprep.mubr.bf16.mxu0 0
        %1751 = vmatmul.mubr.bf16.gmra.mrb[0].mxu0 %v1716
        %v1752 = vpop.f32.mrb[0].mxu0
        %v1753 = vadd.f32 0.0, %v1752
        %v1754 = vpop.f32.mrb[0].mxu0
        %v1755 = vpop.f32.mrb[0].mxu0
        %v1756 = vadd.f32 0.0, %v1755
        %v1757 = vpop.f32.mrb[0].mxu0
        %1758 = vdwg.mxu0
        %1759 = vmatprep.subr.bf16.mxu0 0
        %1760 = vmatpush1.bf16.msra.mxu0 %v370
        %1761 = vmatprep.subr.bf16.mxu0 0
        %1762 = vmatpush1.bf16.msra.mxu0 0
        %1763 = vmatprep.subr.bf16.mxu0 0
        %1764 = vmatpush1.bf16.msra.mxu0 0
        %1765 = vmatprep.subr.bf16.mxu0 0
        %1766 = vmatpush1.bf16.msra.mxu0 0
        %1767 = vmatprep.subr.bf16.mxu0 0
        %1768 = vmatpush1.bf16.msra.mxu0 0
        %1769 = vmatprep.subr.bf16.mxu0 0
        %1770 = vmatpush1.bf16.msra.mxu0 0
        %1771 = vmatprep.subr.bf16.mxu0 0
        %1772 = vmatpush1.bf16.msra.mxu0 0
        %1773 = vmatprep.subr.bf16.mxu0 0
        %1774 = vmatpush1.bf16.msra.mxu0 0
        %1775 = vmatprep.subr.bf16.mxu0 0
        %1776 = vmatpush1.bf16.msra.mxu0 0
        %1777 = vmatprep.subr.bf16.mxu0 0
        %1778 = vmatpush1.bf16.msra.mxu0 0
        %1779 = vmatprep.subr.bf16.mxu0 0
        %1780 = vmatpush1.bf16.msra.mxu0 0
        %1781 = vmatprep.subr.bf16.mxu0 0
        %1782 = vmatpush1.bf16.msra.mxu0 0
        %1783 = vmatprep.subr.bf16.mxu0 0
        %1784 = vmatpush1.bf16.msra.mxu0 0
        %1785 = vmatprep.subr.bf16.mxu0 0
        %1786 = vmatpush1.bf16.msra.mxu0 0
        %1787 = vmatprep.subr.bf16.mxu0 0
        %1788 = vmatpush1.bf16.msra.mxu0 0
        %1789 = vmatprep.subr.bf16.mxu0 0
        %1790 = vmatpush1.bf16.msra.mxu0 0
        %1791 = vmatprep.mubr.bf16.mxu0 0
        %1792 = vmatmul.mubr.bf16.gmra.mrb[0].mxu0 %v1716
        %v1793 = vpop.f32.mrb[0].mxu0
        %v1794 = vadd.f32 %v1753, %v1793
        %v1795 = vpop.f32.mrb[0].mxu0
        %v1796 = vpop.f32.mrb[0].mxu0
        %v1797 = vadd.f32 %v1756, %v1796
        %v1798 = vpop.f32.mrb[0].mxu0
        %1799 = vdwg.mxu0
        %v1801 = vsel %vm310, %v1708, 0
        %1803 = vmatprep.subr.bf16.mxu0 0
        %1804 = vmatpush1.bf16.msra.mxu0 %v370
        %1805 = vmatprep.subr.bf16.mxu0 0
        %1806 = vmatpush1.bf16.msra.mxu0 0
        %1807 = vmatprep.subr.bf16.mxu0 0
        %1808 = vmatpush1.bf16.msra.mxu0 0
        %1809 = vmatprep.subr.bf16.mxu0 0
        %1810 = vmatpush1.bf16.msra.mxu0 0
        %1811 = vmatprep.subr.bf16.mxu0 0
        %1812 = vmatpush1.bf16.msra.mxu0 0
        %1813 = vmatprep.subr.bf16.mxu0 0
        %1814 = vmatpush1.bf16.msra.mxu0 0
        %1815 = vmatprep.subr.bf16.mxu0 0
        %1816 = vmatpush1.bf16.msra.mxu0 0
        %1817 = vmatprep.subr.bf16.mxu0 0
        %1818 = vmatpush1.bf16.msra.mxu0 0
        %1819 = vmatprep.subr.bf16.mxu0 0
        %1820 = vmatpush1.bf16.msra.mxu0 0
        %1821 = vmatprep.subr.bf16.mxu0 0
        %1822 = vmatpush1.bf16.msra.mxu0 0
        %1823 = vmatprep.subr.bf16.mxu0 0
        %1824 = vmatpush1.bf16.msra.mxu0 0
        %1825 = vmatprep.subr.bf16.mxu0 0
        %1826 = vmatpush1.bf16.msra.mxu0 0
        %1827 = vmatprep.subr.bf16.mxu0 0
        %1828 = vmatpush1.bf16.msra.mxu0 0
        %1829 = vmatprep.subr.bf16.mxu0 0
        %1830 = vmatpush1.bf16.msra.mxu0 0
        %1831 = vmatprep.subr.bf16.mxu0 0
        %1832 = vmatpush1.bf16.msra.mxu0 0
        %1833 = vmatprep.subr.bf16.mxu0 0
        %1834 = vmatpush1.bf16.msra.mxu0 0
        %1835 = vmatprep.mubr.bf16.mxu0 0
        %1836 = vmatmul.mubr.bf16.gmra.mrb[0].mxu0 %v1801
        %v1837 = vpop.f32.mrb[0].mxu0
        %v1838 = vadd.f32 0.0, %v1837
        %v1839 = vpop.f32.mrb[0].mxu0
        %v1840 = vpop.f32.mrb[0].mxu0
        %v1841 = vadd.f32 0.0, %v1840
        %v1842 = vpop.f32.mrb[0].mxu0
        %1843 = vdwg.mxu0
        %v1844 = vadd.f32 %v1794, %v1838
        %v1845 = vadd.f32 %v1797, %v1841
        %v1847 = vsel %vm310, %v1709, 0
        %1849 = vmatprep.subr.bf16.mxu0 0
        %1850 = vmatpush1.bf16.msra.mxu0 %v484
        %1851 = vmatprep.subr.bf16.mxu0 0
        %1852 = vmatpush1.bf16.msra.mxu0 0
        %1853 = vmatprep.subr.bf16.mxu0 0
        %1854 = vmatpush1.bf16.msra.mxu0 0
        %1855 = vmatprep.subr.bf16.mxu0 0
        %1856 = vmatpush1.bf16.msra.mxu0 0
        %1857 = vmatprep.subr.bf16.mxu0 0
        %1858 = vmatpush1.bf16.msra.mxu0 0
        %1859 = vmatprep.subr.bf16.mxu0 0
        %1860 = vmatpush1.bf16.msra.mxu0 0
        %1861 = vmatprep.subr.bf16.mxu0 0
        %1862 = vmatpush1.bf16.msra.mxu0 0
        %1863 = vmatprep.subr.bf16.mxu0 0
        %1864 = vmatpush1.bf16.msra.mxu0 0
        %1865 = vmatprep.subr.bf16.mxu0 0
        %1866 = vmatpush1.bf16.msra.mxu0 0
        %1867 = vmatprep.subr.bf16.mxu0 0
        %1868 = vmatpush1.bf16.msra.mxu0 0
        %1869 = vmatprep.subr.bf16.mxu0 0
        %1870 = vmatpush1.bf16.msra.mxu0 0
        %1871 = vmatprep.subr.bf16.mxu0 0
        %1872 = vmatpush1.bf16.msra.mxu0 0
        %1873 = vmatprep.subr.bf16.mxu0 0
        %1874 = vmatpush1.bf16.msra.mxu0 0
        %1875 = vmatprep.subr.bf16.mxu0 0
        %1876 = vmatpush1.bf16.msra.mxu0 0
        %1877 = vmatprep.subr.bf16.mxu0 0
        %1878 = vmatpush1.bf16.msra.mxu0 0
        %1879 = vmatprep.subr.bf16.mxu0 0
        %1880 = vmatpush1.bf16.msra.mxu0 0
        %1881 = vmatprep.mubr.bf16.mxu0 0
        %1882 = vmatmul.mubr.bf16.gmra.mrb[0].mxu0 %v1847
        %v1883 = vpop.f32.mrb[0].mxu0
        %v1884 = vadd.f32 0.0, %v1883
        %v1885 = vpop.f32.mrb[0].mxu0
        %v1886 = vpop.f32.mrb[0].mxu0
        %v1887 = vadd.f32 0.0, %v1886
        %v1888 = vpop.f32.mrb[0].mxu0
        %1889 = vdwg.mxu0
        %1890 = vmatprep.subr.bf16.mxu0 0
        %1891 = vmatpush1.bf16.msra.mxu0 %v539
        %1892 = vmatprep.subr.bf16.mxu0 0
        %1893 = vmatpush1.bf16.msra.mxu0 0
        %1894 = vmatprep.subr.bf16.mxu0 0
        %1895 = vmatpush1.bf16.msra.mxu0 0
        %1896 = vmatprep.subr.bf16.mxu0 0
        %1897 = vmatpush1.bf16.msra.mxu0 0
        %1898 = vmatprep.subr.bf16.mxu0 0
        %1899 = vmatpush1.bf16.msra.mxu0 0
        %1900 = vmatprep.subr.bf16.mxu0 0
        %1901 = vmatpush1.bf16.msra.mxu0 0
        %1902 = vmatprep.subr.bf16.mxu0 0
        %1903 = vmatpush1.bf16.msra.mxu0 0
        %1904 = vmatprep.subr.bf16.mxu0 0
        %1905 = vmatpush1.bf16.msra.mxu0 0
        %1906 = vmatprep.subr.bf16.mxu0 0
        %1907 = vmatpush1.bf16.msra.mxu0 0
        %1908 = vmatprep.subr.bf16.mxu0 0
        %1909 = vmatpush1.bf16.msra.mxu0 0
        %1910 = vmatprep.subr.bf16.mxu0 0
        %1911 = vmatpush1.bf16.msra.mxu0 0
        %1912 = vmatprep.subr.bf16.mxu0 0
        %1913 = vmatpush1.bf16.msra.mxu0 0
        %1914 = vmatprep.subr.bf16.mxu0 0
        %1915 = vmatpush1.bf16.msra.mxu0 0
        %1916 = vmatprep.subr.bf16.mxu0 0
        %1917 = vmatpush1.bf16.msra.mxu0 0
        %1918 = vmatprep.subr.bf16.mxu0 0
        %1919 = vmatpush1.bf16.msra.mxu0 0
        %1920 = vmatprep.subr.bf16.mxu0 0
        %1921 = vmatpush1.bf16.msra.mxu0 0
        %1922 = vmatprep.mubr.bf16.mxu0 0
        %1923 = vmatmul.mubr.bf16.gmra.mrb[0].mxu0 %v1847
        %v1924 = vpop.f32.mrb[0].mxu0
        %v1925 = vadd.f32 %v1884, %v1924
        %v1926 = vpop.f32.mrb[0].mxu0
        %v1927 = vpop.f32.mrb[0].mxu0
        %v1928 = vadd.f32 %v1887, %v1927
        %v1929 = vpop.f32.mrb[0].mxu0
        %1930 = vdwg.mxu0
        %v1932 = vsel %vm310, %v1714, 0
        %1934 = vmatprep.subr.bf16.mxu0 0
        %1935 = vmatpush1.bf16.msra.mxu0 %v539
        %1936 = vmatprep.subr.bf16.mxu0 0
        %1937 = vmatpush1.bf16.msra.mxu0 0
        %1938 = vmatprep.subr.bf16.mxu0 0
        %1939 = vmatpush1.bf16.msra.mxu0 0
        %1940 = vmatprep.subr.bf16.mxu0 0
        %1941 = vmatpush1.bf16.msra.mxu0 0
        %1942 = vmatprep.subr.bf16.mxu0 0
        %1943 = vmatpush1.bf16.msra.mxu0 0
        %1944 = vmatprep.subr.bf16.mxu0 0
        %1945 = vmatpush1.bf16.msra.mxu0 0
        %1946 = vmatprep.subr.bf16.mxu0 0
        %1947 = vmatpush1.bf16.msra.mxu0 0
        %1948 = vmatprep.subr.bf16.mxu0 0
        %1949 = vmatpush1.bf16.msra.mxu0 0
        %1950 = vmatprep.subr.bf16.mxu0 0
        %1951 = vmatpush1.bf16.msra.mxu0 0
        %1952 = vmatprep.subr.bf16.mxu0 0
        %1953 = vmatpush1.bf16.msra.mxu0 0
        %1954 = vmatprep.subr.bf16.mxu0 0
        %1955 = vmatpush1.bf16.msra.mxu0 0
        %1956 = vmatprep.subr.bf16.mxu0 0
        %1957 = vmatpush1.bf16.msra.mxu0 0
        %1958 = vmatprep.subr.bf16.mxu0 0
        %1959 = vmatpush1.bf16.msra.mxu0 0
        %1960 = vmatprep.subr.bf16.mxu0 0
        %1961 = vmatpush1.bf16.msra.mxu0 0
        %1962 = vmatprep.subr.bf16.mxu0 0
        %1963 = vmatpush1.bf16.msra.mxu0 0
        %1964 = vmatprep.subr.bf16.mxu0 0
        %1965 = vmatpush1.bf16.msra.mxu0 0
        %1966 = vmatprep.mubr.bf16.mxu0 0
        %1967 = vmatmul.mubr.bf16.gmra.mrb[0].mxu0 %v1932
        %v1968 = vpop.f32.mrb[0].mxu0
        %v1969 = vadd.f32 0.0, %v1968
        %v1970 = vpop.f32.mrb[0].mxu0
        %v1971 = vpop.f32.mrb[0].mxu0
        %v1972 = vadd.f32 0.0, %v1971
        %v1973 = vpop.f32.mrb[0].mxu0
        %1974 = vdwg.mxu0
        %v1975 = vadd.f32 %v1925, %v1969
        %v1976 = vadd.f32 %v1928, %v1972
        %v1977 = vadd.f32 %v1844, %v1975
        %v1978 = vadd.f32 %v1845, %v1976
        %v1979 = vld [vmem:[#allocation2] sm:$0xff]
        %v1980 = vsub.f32 %v1977, %v274
        %v1981 = vsub.f32 %v1978, %v275
        %v1982 = vand.u32 2147483647, %v1980
        %v1983 = vand.u32 2147483647, %v1981
        %v1984 = vsel %vm310, %v1982, 0.0
        %v1985 = vsel %vm310, %v1983, 0.0
        %v1986 = vadd.f32 %v1984, %v1985
        %1987 = vadd.xlane.f32.xlu0 %v1986
        %v1988 = vpop.xlane.xlu0 %1987
        %v1989 = vrot.slane %v1988, 4
        %v1990 = vadd.f32 %v1988, %v1989
        %v1991 = vrot.slane %v1990, 2
        %v1992 = vadd.f32 %v1990, %v1991
        %v1993 = vrot.slane %v1992, 1
        %v1994 = vadd.f32 %v1992, %v1993
        %s1995 = vtos %v1994
        %v1996 = vstv %s1995
        %v1997 = vadd.f32 %v1979, %v1996
        %1998 = vst [vmem:[#allocation2] sm:$0xff] %v1997
        %p1999 = scmp.eq.s32.totalorder %s22, 1
        // Predicated region
        $region45: #{tpu_custom_call.1} parent=35 // pred_check
          %p2000 = pneg %p1999
        $region46: #{tpu_custom_call.1} parent=35 // pred_check_branch
          %2002 = sbr.rel (%p2000) target = $region48
        $region47: #{tpu_custom_call.1} parent=35 // pred_region
          %v2003 = vld [vmem:[#allocation2] sm:$0xff]
          %2004 = vst [vmem:[#allocation6] sm:$0xff] %v2003
        $region48: #{tpu_custom_call.1} parent=35 // pred_fallthru
          _
        // Predicated region
        $region49: #{tpu_custom_call.1} parent=35 // pred_check
          %p2005 = pneg %p149
        $region50: #{tpu_custom_call.1} parent=35 // pred_check_branch
          %2007 = sbr.rel (%p2005) target = $region52
        $region51: #{tpu_custom_call.1} parent=35 // pred_region
          %s2009 = ssub.s32 128, 128
          %2010 = vsyncadd [#allocation5], %s2009
          %s2011 = smul.addr %s21, 128
          %s2012 = scalar_lea.hbm %s4, %s2011
          %s2014 = sshll.u32 [#allocation6], 4
          %s2015 = int_to_ptr.vmem [resolvable:$true] %s2014
          %2017 = dma.vmem_to_hbm [thread:$0]  %s2015, 128, %s2012, [#allocation5]
        $region52: #{tpu_custom_call.1} parent=35 // pred_fallthru
          _
        // Predicated region
        $region53: #{tpu_custom_call.1} parent=35 // pred_check
          %p2018 = pneg %p149
        $region54: #{tpu_custom_call.1} parent=35 // pred_check_branch
          %2020 = sbr.rel (%p2018) target = $region56
        $region55: #{tpu_custom_call.1} parent=35 // pred_region
          %2021 = dma.done [#allocation5], 128
        $region56: #{tpu_custom_call.1} parent=35 // pred_fallthru
          _
      $region36: #{tpu_custom_call.1} parent=5 // pred_fallthru
        _
      %p2022 = scmp.le.s32.totalorder 2, %s12
      // Predicated region
      $region57: #{tpu_custom_call.1} parent=5 // pred_check
        %p2023 = pneg %p2022
      $region58: #{tpu_custom_call.1} parent=5 // pred_check_branch
        %2025 = sbr.rel (%p2023) target = $region60
      $region59: #{tpu_custom_call.1} parent=5 // pred_region
        %s2026 = ssub.s32 %s12, 2
      $region60: #{tpu_custom_call.1} parent=5 // pred_fallthru
        _
    $region6: #{tpu_custom_call.1} parent=1 // loop_footer
      %s16 = sadd.s32 1, %s12
    $region7: #{tpu_custom_call.1} parent=1 // loop_footer_branch
      %11 = sbr.rel target = $region3
    $region8: #{tpu_custom_call.1} parent=1 // loop_exit
      _
    %2027 = vsyncpa [#allocation4], 1
    %s2028 = scalar_lea.sflag [#allocation4], 1
    %2029 = vsyncpa %s2028, 1
    %2030 = vsyncpa [#allocation5], 1
    %s2031 = scalar_lea.sflag [#allocation5], 1
    %2032 = vsyncpa %s2031, 1

// kernel: tpu_custom_call.1
$region0: #{tpu_custom_call.1}
  #allocation0 [shape = 'u32[]', space=smem, size = 0x4, offset = 0x4, fixed_abs, tag = 'smem constant byte address 0x4 - core index']
  #allocation1 [shape = 'u32[144,128]{1,0:T(1,128)}', space=vmem, size = 0x12000, scoped, tag = 'internal scratch']
  #allocation2 [shape = 'f32[8,128]{1,0:T(8,128)}', space=vmem, size = 0x1000, scoped, tag = 'scratch operand']
  %s0 = inlined_call_operand.vmem [shape: f32[2,32,16], index: 0, kind: input, shape index: {}]
  %s1 = inlined_call_operand.vmem [shape: f32[2,2,1,16,16], index: 1, kind: input, shape index: {}]
  %s2 = inlined_call_operand.vmem [shape: bf16[4,16,16], index: 2, kind: input, shape index: {}]
  %s3 = inlined_call_operand.hbm [shape: f32[2,16,16], index: 3, kind: input, shape index: {}]
  %s4 = inlined_call_operand.hbm [shape: f32[8,128], index: 4, kind: output, shape index: {}]
  %s5 = sld [smem:[#allocation0]]
  $region61: #{tpu_custom_call.1} parent=0
    _
  %s7 = ssub.s32 1, %s5
  %s8 = scalar_select 0, %s7, %s5
  $region1: #{tpu_custom_call.1} parent=0
    #allocation3 [shape = 'u8[16384]{0}', space=vmem, size = 0x4000, scoped, tag = 'input window, operand 3, single buffered']
    #allocation4 [shape = 's32[2]{0}', space=sflag, size = 0x8, scoped, tag = 'scoped memory for tpu_custom_call.1']
    #allocation5 [shape = 's32[2]{0}', space=sflag, size = 0x8, scoped, tag = 'scoped memory for tpu_custom_call.1']
    #allocation6 [shape = 'u8[4096]{0}', space=vmem, size = 0x1000, scoped, tag = 'output window, operand 0, single buffered']
    %9 = vsyncpa [#allocation4], 0
    %10 = vsyncpa [#allocation5], 0
    loop: start=0, step=1, limit=4
    $region2: #{tpu_custom_call.1} parent=1 // loop_pre_header
      _
    $region3: #{tpu_custom_call.1} parent=1 // loop_header
      %s12 = sphi 0, %s16
      %p13 = scmp.ge.s32.totalorder %s12, 4
      %s19 = sphi 0, %s31
      %s20 = sphi 0, %s27
      %s21 = sphi 0, %s19
      %s22 = sphi 0, %s20
      %s23 = sphi 0, %s21
      %s24 = sphi 0, %s22
      %s38 = sphi 0, %s40
      %s41 = sphi 0, %s38
      %s42 = sphi 0, %s41
      %s58 = sphi 0, %s42
      %s68 = sphi 0, %s70
      %s71 = sphi 0, %s68
      %s72 = sphi 0, %s71
      %s88 = sphi 0, %s72
      %s92 = sphi 0, %s92
      %s94 = sphi 0, %s92
      %s95 = sphi 0, %s94
      %s109 = sphi 0, %s95
      %s113 = sphi 0, %s113
      %s115 = sphi 0, %s113
      %s116 = sphi 0, %s115
      %s130 = sphi 0, %s116
      %s136 = sphi 0, %s138
      %s139 = sphi 0, %s136
      %s140 = sphi 0, %s139
      %s156 = sphi 0, %s140
    $region4: #{tpu_custom_call.1} parent=1 // loop_header_branch
      %15 = sbr.rel (%p13) target = $region8
    $region5: #{tpu_custom_call.1} parent=1 // loop_body
      %s17 = ssub.s32 %s12, 1
      %s18 = ssub.s32 %s12, 2
      %s25 = sadd.s32 1, %s20
      %p26 = scmp.ge.s32.totalorder %s25, 2
      %s27 = scalar_select %p26, 0, %s25
      %s28 = sadd.s32 1, %s19
      %s29 = scalar_select %p26, %s28, %s19
      %p30 = scmp.ge.s32.totalorder %s29, 1
      %s31 = scalar_select %p30, 0, %s29
      %s32 = smul.u32 %s19, 2
      %s33 = sadd.s32 %s32, %s20
      %s34 = smul.u32 %s31, 2
      %s35 = sadd.s32 %s34, %s27
      %s36 = ssub.s32 %s33, %s35
      %p37 = scmp.eq.s32.totalorder %s36, 0
      %s39 = sadd.s32 %s38, 1
      %s40 = scalar_select %p37, %s38, %s39
      %p43 = pneg %p37
      %p44 = scmp.eq.s32.totalorder %s12, 1
      %p45 = por %p43, %p44
      %p46 = scmp.ne.s32.totalorder %s38, %s41
      %p47 = scmp.eq.s32.totalorder %s12, 0
      %p48 = por %p46, %p47
      %p49 = scmp.ne.s32.totalorder %s38, %s41
      %p50 = scmp.eq.s32.totalorder %s17, 1
      %p51 = por %p49, %p50
      %p52 = scmp.ne.s32.totalorder %s41, %s42
      %p53 = scmp.eq.s32.totalorder %s17, 0
      %p54 = por %p52, %p53
      %p55 = scmp.ne.s32.totalorder %s41, %s42
      %p56 = scmp.eq.s32.totalorder %s18, 1
      %p57 = por %p55, %p56
      %p59 = scmp.ne.s32.totalorder %s42, %s58
      %p60 = scmp.eq.s32.totalorder %s18, 0
      %p61 = por %p59, %p60
      %s62 = smul.u32 %s19, 2
      %s63 = sadd.s32 %s62, %s20
      %s64 = smul.u32 %s31, 2
      %s65 = sadd.s32 %s64, %s27
      %s66 = ssub.s32 %s63, %s65
      %p67 = scmp.eq.s32.totalorder %s66, 0
      %s69 = sadd.s32 %s68, 1
      %s70 = scalar_select %p67, %s68, %s69
      %p73 = pneg %p67
      %p74 = scmp.eq.s32.totalorder %s12, 1
      %p75 = por %p73, %p74
      %p76 = scmp.ne.s32.totalorder %s68, %s71
      %p77 = scmp.eq.s32.totalorder %s12, 0
      %p78 = por %p76, %p77
      %p79 = scmp.ne.s32.totalorder %s68, %s71
      %p80 = scmp.eq.s32.totalorder %s17, 1
      %p81 = por %p79, %p80
      %p82 = scmp.ne.s32.totalorder %s71, %s72
      %p83 = scmp.eq.s32.totalorder %s17, 0
      %p84 = por %p82, %p83
      %p85 = scmp.ne.s32.totalorder %s71, %s72
      %p86 = scmp.eq.s32.totalorder %s18, 1
      %p87 = por %p85, %p86
      %p89 = scmp.ne.s32.totalorder %s72, %s88
      %p90 = scmp.eq.s32.totalorder %s18, 0
      %p91 = por %p89, %p90
      %s93 = sadd.s32 %s92, 1
      %p96 = scmp.eq.s32.totalorder %s12, 1
      %p97 = scmp.ne.s32.totalorder %s92, %s94
      %p98 = scmp.eq.s32.totalorder %s12, 0
      %p99 = por %p97, %p98
      %p100 = scmp.ne.s32.totalorder %s92, %s94
      %p101 = scmp.eq.s32.totalorder %s17, 1
      %p102 = por %p100, %p101
      %p103 = scmp.ne.s32.totalorder %s94, %s95
      %p104 = scmp.eq.s32.totalorder %s17, 0
      %p105 = por %p103, %p104
      %p106 = scmp.ne.s32.totalorder %s94, %s95
      %p107 = scmp.eq.s32.totalorder %s18, 1
      %p108 = por %p106, %p107
      %p110 = scmp.ne.s32.totalorder %s95, %s109
      %p111 = scmp.eq.s32.totalorder %s18, 0
      %p112 = por %p110, %p111
      %s114 = sadd.s32 %s113, 1
      %p117 = scmp.eq.s32.totalorder %s12, 1
      %p118 = scmp.ne.s32.totalorder %s113, %s115
      %p119 = scmp.eq.s32.totalorder %s12, 0
      %p120 = por %p118, %p119
      %p121 = scmp.ne.s32.totalorder %s113, %s115
      %p122 = scmp.eq.s32.totalorder %s17, 1
      %p123 = por %p121, %p122
      %p124 = scmp.ne.s32.totalorder %s115, %s116
      %p125 = scmp.eq.s32.totalorder %s17, 0
      %p126 = por %p124, %p125
      %p127 = scmp.ne.s32.totalorder %s115, %s116
      %p128 = scmp.eq.s32.totalorder %s18, 1
      %p129 = por %p127, %p128
      %p131 = scmp.ne.s32.totalorder %s116, %s130
      %p132 = scmp.eq.s32.totalorder %s18, 0
      %p133 = por %p131, %p132
      %s134 = ssub.s32 %s19, %s31
      %p135 = scmp.eq.s32.totalorder %s134, 0
      %s137 = sadd.s32 %s136, 1
      %s138 = scalar_select %p135, %s136, %s137
      %p141 = pneg %p135
      %p142 = scmp.eq.s32.totalorder %s12, 1
      %p143 = por %p141, %p142
      %p144 = scmp.ne.s32.totalorder %s136, %s139
      %p145 = scmp.eq.s32.totalorder %s12, 0
      %p146 = por %p144, %p145
      %p147 = scmp.ne.s32.totalorder %s136, %s139
      %p148 = scmp.eq.s32.totalorder %s17, 1
      %p149 = por %p147, %p148
      %p150 = scmp.ne.s32.totalorder %s139, %s140
      %p151 = scmp.eq.s32.totalorder %s17, 0
      %p152 = por %p150, %p151
      %p153 = scmp.ne.s32.totalorder %s139, %s140
      %p154 = scmp.eq.s32.totalorder %s18, 1
      %p155 = por %p153, %p154
      %p157 = scmp.ne.s32.totalorder %s140, %s156
      %p158 = scmp.eq.s32.totalorder %s18, 0
      %p159 = por %p157, %p158
      %p160 = scmp.le.s32.totalorder 1, %s12
      %p161 = scmp.lt.s32.totalorder %s12, 3
      %p162 = pnand %p160, %p161
      %p163 = pneg %p162
      // Predicated region
      $region9: #{tpu_custom_call.1} parent=5 // pred_check
        _
      $region10: #{tpu_custom_call.1} parent=5 // pred_check_branch
        %165 = sbr.rel (%p162) target = $region12
      $region11: #{tpu_custom_call.1} parent=5 // pred_region
        %s166 = ssub.s32 %s12, 1
        // Predicated region
        $region13: #{tpu_custom_call.1} parent=11 // pred_check
          %p167 = pneg %p105
        $region14: #{tpu_custom_call.1} parent=11 // pred_check_branch
          %169 = sbr.rel (%p167) target = $region16
        $region15: #{tpu_custom_call.1} parent=11 // pred_region
          _
        $region16: #{tpu_custom_call.1} parent=11 // pred_fallthru
          _
        // Predicated region
        $region17: #{tpu_custom_call.1} parent=11 // pred_check
          %p170 = pneg %p126
        $region18: #{tpu_custom_call.1} parent=11 // pred_check_branch
          %172 = sbr.rel (%p170) target = $region20
        $region19: #{tpu_custom_call.1} parent=11 // pred_region
          %s174 = ssub.s32 512, 512
          %175 = vsyncadd [#allocation4], %s174
          %s176 = sshll.u32 [#allocation3], 4
          %s177 = int_to_ptr.vmem [resolvable:$true] %s176
          %182 = dma.hbm_to_vmem [thread:$0]  %s3, 512, %s177, [#allocation4], 128, 128, 8
        $region20: #{tpu_custom_call.1} parent=11 // pred_fallthru
          _
      $region12: #{tpu_custom_call.1} parent=5 // pred_fallthru
        _
      %p183 = scmp.lt.s32.totalorder %s12, 2
      // Predicated region
      $region21: #{tpu_custom_call.1} parent=5 // pred_check
        %p184 = pneg %p183
      $region22: #{tpu_custom_call.1} parent=5 // pred_check_branch
        %186 = sbr.rel (%p184) target = $region24
      $region23: #{tpu_custom_call.1} parent=5 // pred_region
        // Predicated region
        $region25: #{tpu_custom_call.1} parent=23 // pred_check
          %p187 = pneg %p48
        $region26: #{tpu_custom_call.1} parent=23 // pred_check_branch
          %189 = sbr.rel (%p187) target = $region28
        $region27: #{tpu_custom_call.1} parent=23 // pred_region
          %s190 = smul.u32 %s19, 2
          %s191 = sadd.s32 %s190, %s20
          %p192 = scmp.lt.s32.totalorder %s191, 1
          %s193 = scalar_select %p192, %s191, 1
          %s194 = smul.addr %s193, 4
          %s195 = smul.addr %s194, 8
          %s196 = scalar_lea.vmem %s0, %s195
          %s197 = smul.u32 %s19, 2
          %s198 = sadd.s32 %s197, %s20
        $region28: #{tpu_custom_call.1} parent=23 // pred_fallthru
          _
        // Predicated region
        $region29: #{tpu_custom_call.1} parent=23 // pred_check
          %p199 = pneg %p78
        $region30: #{tpu_custom_call.1} parent=23 // pred_check_branch
          %201 = sbr.rel (%p199) target = $region32
        $region31: #{tpu_custom_call.1} parent=23 // pred_region
          %s202 = smul.u32 %s19, 2
          %s203 = sadd.s32 %s202, %s20
          %p204 = scmp.lt.s32.totalorder %s203, 1
          %s205 = scalar_select %p204, %s203, 1
          %s206 = smul.addr %s205, 4
          %s207 = smul.addr %s206, 8
          %s208 = scalar_lea.vmem %s1, %s207
          %s209 = smul.u32 %s19, 2
          %s210 = sadd.s32 %s209, %s20
        $region32: #{tpu_custom_call.1} parent=23 // pred_fallthru
          _
      $region24: #{tpu_custom_call.1} parent=5 // pred_fallthru
        _
      %p211 = scmp.le.s32.totalorder 1, %s12
      %p212 = scmp.lt.s32.totalorder %s12, 3
      %p213 = pnand %p211, %p212
      %p214 = pneg %p213
      // Predicated region
      $region33: #{tpu_custom_call.1} parent=5 // pred_check
        _
      $region34: #{tpu_custom_call.1} parent=5 // pred_check_branch
        %216 = sbr.rel (%p213) target = $region36
      $region35: #{tpu_custom_call.1} parent=5 // pred_region
        %s217 = ssub.s32 %s12, 1
        // Predicated region
        $region37: #{tpu_custom_call.1} parent=35 // pred_check
          %p218 = pneg %p126
        $region38: #{tpu_custom_call.1} parent=35 // pred_check_branch
          %220 = sbr.rel (%p218) target = $region40
        $region39: #{tpu_custom_call.1} parent=35 // pred_region
          %221 = dma.done [#allocation4], 512
        $region40: #{tpu_custom_call.1} parent=35 // pred_fallthru
          _
        %s222 = smul.u32 %s21, 2
        %s223 = sadd.s32 %s222, %s22
        %p224 = scmp.lt.s32.totalorder %s223, 1
        %s225 = scalar_select %p224, %s223, 1
        %s226 = smul.addr %s225, 4
        %s227 = smul.addr %s226, 8
        %s228 = scalar_lea.vmem %s0, %s227
        %p229 = pneg %p54
        %p230 = pneg %p51
        %s231 = smul.u32 %s21, 2
        %s232 = sadd.s32 %s231, %s22
        %p233 = scmp.lt.s32.totalorder %s232, 1
        %s234 = scalar_select %p233, %s232, 1
        %s235 = smul.addr %s234, 4
        %s236 = smul.addr %s235, 8
        %s237 = scalar_lea.vmem %s1, %s236
        %p238 = pneg %p84
        %p239 = pneg %p81
        %p240 = pneg %p105
        %p241 = pneg %p102
        %p242 = pneg %p126
        %p243 = pneg %p123
        %p244 = pneg %p152
        %p245 = pneg %p149
        %s246 = smul.u32 %s21, 2
        %s247 = sadd.s32 %s246, %s22
        %p248 = scmp.lt.s32.totalorder %s247, 1
        %s249 = scalar_select %p248, %s247, 1
        %s250 = smul.addr %s249, 4
        %s251 = smul.addr %s250, 8
        %s252 = scalar_lea.vmem %s0, %s251
        %s253 = smul.u32 %s21, 2
        %s254 = sadd.s32 %s253, %s22
        %s255 = smul.u32 %s21, 2
        %s256 = sadd.s32 %s255, %s22
        %p257 = scmp.lt.s32.totalorder %s256, 1
        %s258 = scalar_select %p257, %s256, 1
        %s259 = smul.addr %s258, 4
        %s260 = smul.addr %s259, 8
        %s261 = scalar_lea.vmem %s1, %s260
        %s262 = smul.u32 %s21, 2
        %s263 = sadd.s32 %s262, %s22
        %p265 = scmp.eq.s32.totalorder %s22, 0
        // Predicated region
        $region41: #{tpu_custom_call.1} parent=35 // pred_check
          %p266 = pneg %p265
        $region42: #{tpu_custom_call.1} parent=35 // pred_check_branch
          %268 = sbr.rel (%p266) target = $region44
        $region43: #{tpu_custom_call.1} parent=35 // pred_region
          %269 = vst [vmem:[#allocation2] sm:$0xff] 0.0
        $region44: #{tpu_custom_call.1} parent=35 // pred_fallthru
          _
        %v270 = vld [vmem:[%s252] sm:$0xff]
        %v271 = vld [vmem:[%s252 + $0x8] sm:$0xff]
        %v272 = vld [vmem:[%s252 + $0x10] sm:$0xff]
        %v273 = vld [vmem:[%s252 + $0x18] sm:$0xff]
        %v274 = vld [vmem:[%s261] sm:$0xff]
        %v275 = vld [vmem:[%s261 + $0x8] sm:$0xff]
        %v276 = vld [vmem:[%s2] sm:$0xf]
        %v277 = vld [vmem:[%s2 + $0x4] sm:$0xf]
        %s278 = scalar_lea.vmem %s2, 8
        %v279 = vld [vmem:[%s278] sm:$0xf]
        %v280 = vld [vmem:[%s278 + $0x4] sm:$0xf]
        %s281 = scalar_lea.vmem %s2, 16
        %v282 = vld [vmem:[%s281] sm:$0xf]
        %v283 = vld [vmem:[%s281 + $0x4] sm:$0xf]
        %s284 = scalar_lea.vmem %s2, 24
        %v285 = vld [vmem:[%s284] sm:$0xf]
        %v286 = vld [vmem:[%s284 + $0x4] sm:$0xf]
        %v287 = vld [vmem:[#allocation3] sm:$0xff]
        %v288 = vld [vmem:[#allocation3 + $0x8] sm:$0xff]
        %s289 = scalar_lea.vmem [#allocation3], 16
        %v290 = vld [vmem:[%s289] sm:$0xff]
        %v291 = vld [vmem:[%s289 + $0x8] sm:$0xff]
        %v292 = vpack.c.bf16 %v271, %v270
        %v293 = vpack.c.bf16 %v273, %v272
        %v294 = vunpack.c.l.bf16 %v292
        %v295 = vunpack.c.h.bf16 %v292
        %v296 = vunpack.c.l.bf16 %v293
        %v297 = vunpack.c.h.bf16 %v293
        %v298 = vsub.f32 %v270, %v294
        %v299 = vsub.f32 %v271, %v295
        %v300 = vsub.f32 %v272, %v296
        %v301 = vsub.f32 %v273, %v297
        %v302 = vpack.c.bf16 %v299, %v298
        %v303 = vpack.c.bf16 %v301, %v300
        %v306 = vunpack.c.l.b16 %v279
        %v307 = vunpack.c.l.b16 %v280
        %v308 = vpack.c.b16 %v307, %v306
        %vm310 = vcmask 130048
        %v312 = vsel %vm310, %v292, 0
        %v315 = vsel %vm310, %v293, 0
        %317 = vmatprep.subr.bf16.mxu0 0
        %318 = vmatpush1.bf16.msra.mxu0 %v308
        %319 = vmatprep.subr.bf16.mxu0 0
        %320 = vmatpush1.bf16.msra.mxu0 0
        %321 = vmatprep.subr.bf16.mxu0 0
        %322 = vmatpush1.bf16.msra.mxu0 0
        %323 = vmatprep.subr.bf16.mxu0 0
        %324 = vmatpush1.bf16.msra.mxu0 0
        %325 = vmatprep.subr.bf16.mxu0 0
        %326 = vmatpush1.bf16.msra.mxu0 0
        %327 = vmatprep.subr.bf16.mxu0 0
        %328 = vmatpush1.bf16.msra.mxu0 0
        %329 = vmatprep.subr.bf16.mxu0 0
        %330 = vmatpush1.bf16.msra.mxu0 0
        %331 = vmatprep.subr.bf16.mxu0 0
        %332 = vmatpush1.bf16.msra.mxu0 0
        %333 = vmatprep.subr.bf16.mxu0 0
        %334 = vmatpush1.bf16.msra.mxu0 0
        %335 = vmatprep.subr.bf16.mxu0 0
        %336 = vmatpush1.bf16.msra.mxu0 0
        %337 = vmatprep.subr.bf16.mxu0 0
        %338 = vmatpush1.bf16.msra.mxu0 0
        %339 = vmatprep.subr.bf16.mxu0 0
        %340 = vmatpush1.bf16.msra.mxu0 0
        %341 = vmatprep.subr.bf16.mxu0 0
        %342 = vmatpush1.bf16.msra.mxu0 0
        %343 = vmatprep.subr.bf16.mxu0 0
        %344 = vmatpush1.bf16.msra.mxu0 0
        %345 = vmatprep.subr.bf16.mxu0 0
        %346 = vmatpush1.bf16.msra.mxu0 0
        %347 = vmatprep.subr.bf16.mxu0 0
        %348 = vmatpush1.bf16.msra.mxu0 0
        %349 = vmatprep.mubr.bf16.mxu0 0
        %350 = vmatmul.mubr.bf16.gmra.mrb[0].mxu0 %v312
        %v351 = vpop.f32.mrb[0].mxu0
        %v352 = vadd.f32 0.0, %v351
        %v353 = vpop.f32.mrb[0].mxu0
        %v354 = vpop.f32.mrb[0].mxu0
        %v355 = vadd.f32 0.0, %v354
        %v356 = vpop.f32.mrb[0].mxu0
        %357 = vmatprep.mubr.bf16.mxu0 0
        %358 = vmatmul.mubr.bf16.gmra.mrb[0].mxu0 %v315
        %v359 = vpop.f32.mrb[0].mxu0
        %v360 = vadd.f32 0.0, %v359
        %v361 = vpop.f32.mrb[0].mxu0
        %v362 = vpop.f32.mrb[0].mxu0
        %v363 = vadd.f32 0.0, %v362
        %v364 = vpop.f32.mrb[0].mxu0
        %365 = vdwg.mxu0
        %v368 = vunpack.c.l.b16 %v276
        %v369 = vunpack.c.l.b16 %v277
        %v370 = vpack.c.b16 %v369, %v368
        %372 = vmatprep.subr.bf16.mxu0 0
        %373 = vmatpush1.bf16.msra.mxu0 %v370
        %374 = vmatprep.subr.bf16.mxu0 0
        %375 = vmatpush1.bf16.msra.mxu0 0
        %376 = vmatprep.subr.bf16.mxu0 0
        %377 = vmatpush1.bf16.msra.mxu0 0
        %378 = vmatprep.subr.bf16.mxu0 0
        %379 = vmatpush1.bf16.msra.mxu0 0
        %380 = vmatprep.subr.bf16.mxu0 0
        %381 = vmatpush1.bf16.msra.mxu0 0
        %382 = vmatprep.subr.bf16.mxu0 0
        %383 = vmatpush1.bf16.msra.mxu0 0
        %384 = vmatprep.subr.bf16.mxu0 0
        %385 = vmatpush1.bf16.msra.mxu0 0
        %386 = vmatprep.subr.bf16.mxu0 0
        %387 = vmatpush1.bf16.msra.mxu0 0
        %388 = vmatprep.subr.bf16.mxu0 0
        %389 = vmatpush1.bf16.msra.mxu0 0
        %390 = vmatprep.subr.bf16.mxu0 0
        %391 = vmatpush1.bf16.msra.mxu0 0
        %392 = vmatprep.subr.bf16.mxu0 0
        %393 = vmatpush1.bf16.msra.mxu0 0
        %394 = vmatprep.subr.bf16.mxu0 0
        %395 = vmatpush1.bf16.msra.mxu0 0
        %396 = vmatprep.subr.bf16.mxu0 0
        %397 = vmatpush1.bf16.msra.mxu0 0
        %398 = vmatprep.subr.bf16.mxu0 0
        %399 = vmatpush1.bf16.msra.mxu0 0
        %400 = vmatprep.subr.bf16.mxu0 0
        %401 = vmatpush1.bf16.msra.mxu0 0
        %402 = vmatprep.subr.bf16.mxu0 0
        %403 = vmatpush1.bf16.msra.mxu0 0
        %404 = vmatprep.mubr.bf16.mxu0 0
        %405 = vmatmul.mubr.bf16.gmra.mrb[0].mxu0 %v312
        %v406 = vpop.f32.mrb[0].mxu0
        %v407 = vadd.f32 %v352, %v406
        %v408 = vpop.f32.mrb[0].mxu0
        %v409 = vpop.f32.mrb[0].mxu0
        %v410 = vadd.f32 %v355, %v409
        %v411 = vpop.f32.mrb[0].mxu0
        %412 = vmatprep.mubr.bf16.mxu0 0
        %413 = vmatmul.mubr.bf16.gmra.mrb[0].mxu0 %v315
        %v414 = vpop.f32.mrb[0].mxu0
        %v415 = vadd.f32 %v360, %v414
        %v416 = vpop.f32.mrb[0].mxu0
        %v417 = vpop.f32.mrb[0].mxu0
        %v418 = vadd.f32 %v363, %v417
        %v419 = vpop.f32.mrb[0].mxu0
        %420 = vdwg.mxu0
        %v422 = vsel %vm310, %v302, 0
        %v425 = vsel %vm310, %v303, 0
        %427 = vmatprep.subr.bf16.mxu0 0
        %428 = vmatpush1.bf16.msra.mxu0 %v370
        %429 = vmatprep.subr.bf16.mxu0 0
        %430 = vmatpush1.bf16.msra.mxu0 0
        %431 = vmatprep.subr.bf16.mxu0 0
        %432 = vmatpush1.bf16.msra.mxu0 0
        %433 = vmatprep.subr.bf16.mxu0 0
        %434 = vmatpush1.bf16.msra.mxu0 0
        %435 = vmatprep.subr.bf16.mxu0 0
        %436 = vmatpush1.bf16.msra.mxu0 0
        %437 = vmatprep.subr.bf16.mxu0 0
        %438 = vmatpush1.bf16.msra.mxu0 0
        %439 = vmatprep.subr.bf16.mxu0 0
        %440 = vmatpush1.bf16.msra.mxu0 0
        %441 = vmatprep.subr.bf16.mxu0 0
        %442 = vmatpush1.bf16.msra.mxu0 0
        %443 = vmatprep.subr.bf16.mxu0 0
        %444 = vmatpush1.bf16.msra.mxu0 0
        %445 = vmatprep.subr.bf16.mxu0 0
        %446 = vmatpush1.bf16.msra.mxu0 0
        %447 = vmatprep.subr.bf16.mxu0 0
        %448 = vmatpush1.bf16.msra.mxu0 0
        %449 = vmatprep.subr.bf16.mxu0 0
        %450 = vmatpush1.bf16.msra.mxu0 0
        %451 = vmatprep.subr.bf16.mxu0 0
        %452 = vmatpush1.bf16.msra.mxu0 0
        %453 = vmatprep.subr.bf16.mxu0 0
        %454 = vmatpush1.bf16.msra.mxu0 0
        %455 = vmatprep.subr.bf16.mxu0 0
        %456 = vmatpush1.bf16.msra.mxu0 0
        %457 = vmatprep.subr.bf16.mxu0 0
        %458 = vmatpush1.bf16.msra.mxu0 0
        %459 = vmatprep.mubr.bf16.mxu0 0
        %460 = vmatmul.mubr.bf16.gmra.mrb[0].mxu0 %v422
        %v461 = vpop.f32.mrb[0].mxu0
        %v462 = vadd.f32 0.0, %v461
        %v463 = vpop.f32.mrb[0].mxu0
        %v464 = vpop.f32.mrb[0].mxu0
        %v465 = vadd.f32 0.0, %v464
        %v466 = vpop.f32.mrb[0].mxu0
        %467 = vmatprep.mubr.bf16.mxu0 0
        %468 = vmatmul.mubr.bf16.gmra.mrb[0].mxu0 %v425
        %v469 = vpop.f32.mrb[0].mxu0
        %v470 = vadd.f32 0.0, %v469
        %v471 = vpop.f32.mrb[0].mxu0
        %v472 = vpop.f32.mrb[0].mxu0
        %v473 = vadd.f32 0.0, %v472
        %v474 = vpop.f32.mrb[0].mxu0
        %475 = vdwg.mxu0
        %v476 = vadd.f32 %v407, %v462
        %v477 = vadd.f32 %v410, %v465
        %v478 = vadd.f32 %v415, %v470
        %v479 = vadd.f32 %v418, %v473
        %v482 = vunpack.c.l.b16 %v285
        %v483 = vunpack.c.l.b16 %v286
        %v484 = vpack.c.b16 %v483, %v482
        %486 = vmatprep.subr.bf16.mxu0 0
        %487 = vmatpush1.bf16.msra.mxu0 %v484
        %488 = vmatprep.subr.bf16.mxu0 0
        %489 = vmatpush1.bf16.msra.mxu0 0
        %490 = vmatprep.subr.bf16.mxu0 0
        %491 = vmatpush1.bf16.msra.mxu0 0
        %492 = vmatprep.subr.bf16.mxu0 0
        %493 = vmatpush1.bf16.msra.mxu0 0
        %494 = vmatprep.subr.bf16.mxu0 0
        %495 = vmatpush1.bf16.msra.mxu0 0
        %496 = vmatprep.subr.bf16.mxu0 0
        %497 = vmatpush1.bf16.msra.mxu0 0
        %498 = vmatprep.subr.bf16.mxu0 0
        %499 = vmatpush1.bf16.msra.mxu0 0
        %500 = vmatprep.subr.bf16.mxu0 0
        %501 = vmatpush1.bf16.msra.mxu0 0
        %502 = vmatprep.subr.bf16.mxu0 0
        %503 = vmatpush1.bf16.msra.mxu0 0
        %504 = vmatprep.subr.bf16.mxu0 0
        %505 = vmatpush1.bf16.msra.mxu0 0
        %506 = vmatprep.subr.bf16.mxu0 0
        %507 = vmatpush1.bf16.msra.mxu0 0
        %508 = vmatprep.subr.bf16.mxu0 0
        %509 = vmatpush1.bf16.msra.mxu0 0
        %510 = vmatprep.subr.bf16.mxu0 0
        %511 = vmatpush1.bf16.msra.mxu0 0
        %512 = vmatprep.subr.bf16.mxu0 0
        %513 = vmatpush1.bf16.msra.mxu0 0
        %514 = vmatprep.subr.bf16.mxu0 0
        %515 = vmatpush1.bf16.msra.mxu0 0
        %516 = vmatprep.subr.bf16.mxu0 0
        %517 = vmatpush1.bf16.msra.mxu0 0
        %518 = vmatprep.mubr.bf16.mxu0 0
        %519 = vmatmul.mubr.bf16.gmra.mrb[0].mxu0 %v312
        %v520 = vpop.f32.mrb[0].mxu0
        %v521 = vadd.f32 0.0, %v520
        %v522 = vpop.f32.mrb[0].mxu0
        %v523 = vpop.f32.mrb[0].mxu0
        %v524 = vadd.f32 0.0, %v523
        %v525 = vpop.f32.mrb[0].mxu0
        %526 = vmatprep.mubr.bf16.mxu0 0
        %527 = vmatmul.mubr.bf16.gmra.mrb[0].mxu0 %v315
        %v528 = vpop.f32.mrb[0].mxu0
        %v529 = vadd.f32 0.0, %v528
        %v530 = vpop.f32.mrb[0].mxu0
        %v531 = vpop.f32.mrb[0].mxu0
        %v532 = vadd.f32 0.0, %v531
        %v533 = vpop.f32.mrb[0].mxu0
        %534 = vdwg.mxu0
        %v537 = vunpack.c.l.b16 %v282
        %v538 = vunpack.c.l.b16 %v283
        %v539 = vpack.c.b16 %v538, %v537
        %541 = vmatprep.subr.bf16.mxu0 0
        %542 = vmatpush1.bf16.msra.mxu0 %v539
        %543 = vmatprep.subr.bf16.mxu0 0
        %544 = vmatpush1.bf16.msra.mxu0 0
        %545 = vmatprep.subr.bf16.mxu0 0
        %546 = vmatpush1.bf16.msra.mxu0 0
        %547 = vmatprep.subr.bf16.mxu0 0
        %548 = vmatpush1.bf16.msra.mxu0 0
        %549 = vmatprep.subr.bf16.mxu0 0
        %550 = vmatpush1.bf16.msra.mxu0 0
        %551 = vmatprep.subr.bf16.mxu0 0
        %552 = vmatpush1.bf16.msra.mxu0 0
        %553 = vmatprep.subr.bf16.mxu0 0
        %554 = vmatpush1.bf16.msra.mxu0 0
        %555 = vmatprep.subr.bf16.mxu0 0
        %556 = vmatpush1.bf16.msra.mxu0 0
        %557 = vmatprep.subr.bf16.mxu0 0
        %558 = vmatpush1.bf16.msra.mxu0 0
        %559 = vmatprep.subr.bf16.mxu0 0
        %560 = vmatpush1.bf16.msra.mxu0 0
        %561 = vmatprep.subr.bf16.mxu0 0
        %562 = vmatpush1.bf16.msra.mxu0 0
        %563 = vmatprep.subr.bf16.mxu0 0
        %564 = vmatpush1.bf16.msra.mxu0 0
        %565 = vmatprep.subr.bf16.mxu0 0
        %566 = vmatpush1.bf16.msra.mxu0 0
        %567 = vmatprep.subr.bf16.mxu0 0
        %568 = vmatpush1.bf16.msra.mxu0 0
        %569 = vmatprep.subr.bf16.mxu0 0
        %570 = vmatpush1.bf16.msra.mxu0 0
        %571 = vmatprep.subr.bf16.mxu0 0
        %572 = vmatpush1.bf16.msra.mxu0 0
        %573 = vmatprep.mubr.bf16.mxu0 0
        %574 = vmatmul.mubr.bf16.gmra.mrb[0].mxu0 %v312
        %v575 = vpop.f32.mrb[0].mxu0
        %v576 = vadd.f32 %v521, %v575
        %v577 = vpop.f32.mrb[0].mxu0
        %v578 = vpop.f32.mrb[0].mxu0
        %v579 = vadd.f32 %v524, %v578
        %v580 = vpop.f32.mrb[0].mxu0
        %581 = vmatprep.mubr.bf16.mxu0 0
        %582 = vmatmul.mubr.bf16.gmra.mrb[0].mxu0 %v315
        %v583 = vpop.f32.mrb[0].mxu0
        %v584 = vadd.f32 %v529, %v583
        %v585 = vpop.f32.mrb[0].mxu0
        %v586 = vpop.f32.mrb[0].mxu0
        %v587 = vadd.f32 %v532, %v586
        %v588 = vpop.f32.mrb[0].mxu0
        %589 = vdwg.mxu0
        %590 = vmatprep.subr.bf16.mxu0 0
        %591 = vmatpush1.bf16.msra.mxu0 %v539
        %592 = vmatprep.subr.bf16.mxu0 0
        %593 = vmatpush1.bf16.msra.mxu0 0
        %594 = vmatprep.subr.bf16.mxu0 0
        %595 = vmatpush1.bf16.msra.mxu0 0
        %596 = vmatprep.subr.bf16.mxu0 0
        %597 = vmatpush1.bf16.msra.mxu0 0
        %598 = vmatprep.subr.bf16.mxu0 0
        %599 = vmatpush1.bf16.msra.mxu0 0
        %600 = vmatprep.subr.bf16.mxu0 0
        %601 = vmatpush1.bf16.msra.mxu0 0
        %602 = vmatprep.subr.bf16.mxu0 0
        %603 = vmatpush1.bf16.msra.mxu0 0
        %604 = vmatprep.subr.bf16.mxu0 0
        %605 = vmatpush1.bf16.msra.mxu0 0
        %606 = vmatprep.subr.bf16.mxu0 0
        %607 = vmatpush1.bf16.msra.mxu0 0
        %608 = vmatprep.subr.bf16.mxu0 0
        %609 = vmatpush1.bf16.msra.mxu0 0
        %610 = vmatprep.subr.bf16.mxu0 0
        %611 = vmatpush1.bf16.msra.mxu0 0
        %612 = vmatprep.subr.bf16.mxu0 0
        %613 = vmatpush1.bf16.msra.mxu0 0
        %614 = vmatprep.subr.bf16.mxu0 0
        %615 = vmatpush1.bf16.msra.mxu0 0
        %616 = vmatprep.subr.bf16.mxu0 0
        %617 = vmatpush1.bf16.msra.mxu0 0
        %618 = vmatprep.subr.bf16.mxu0 0
        %619 = vmatpush1.bf16.msra.mxu0 0
        %620 = vmatprep.subr.bf16.mxu0 0
        %621 = vmatpush1.bf16.msra.mxu0 0
        %622 = vmatprep.mubr.bf16.mxu0 0
        %623 = vmatmul.mubr.bf16.gmra.mrb[0].mxu0 %v422
        %v624 = vpop.f32.mrb[0].mxu0
        %v625 = vadd.f32 0.0, %v624
        %v626 = vpop.f32.mrb[0].mxu0
        %v627 = vpop.f32.mrb[0].mxu0
        %v628 = vadd.f32 0.0, %v627
        %v629 = vpop.f32.mrb[0].mxu0
        %630 = vmatprep.mubr.bf16.mxu0 0
        %631 = vmatmul.mubr.bf16.gmra.mrb[0].mxu0 %v425
        %v632 = vpop.f32.mrb[0].mxu0
        %v633 = vadd.f32 0.0, %v632
        %v634 = vpop.f32.mrb[0].mxu0
        %v635 = vpop.f32.mrb[0].mxu0
        %v636 = vadd.f32 0.0, %v635
        %v637 = vpop.f32.mrb[0].mxu0
        %638 = vdwg.mxu0
        %v639 = vadd.f32 %v576, %v625
        %v640 = vadd.f32 %v579, %v628
        %v641 = vadd.f32 %v584, %v633
        %v642 = vadd.f32 %v587, %v636
        %v643 = vsub.f32 %v476, %v641
        %v644 = vsub.f32 %v477, %v642
        %v645 = vadd.f32 %v639, %v478
        %v646 = vadd.f32 %v640, %v479
        %v647 = vpack.c.bf16 %v644, %v643
        %v648 = vunpack.c.l.bf16 %v647
        %v649 = vunpack.c.h.bf16 %v647
        %v650 = vsub.f32 %v643, %v648
        %v651 = vsub.f32 %v644, %v649
        %v652 = vpack.c.bf16 %v651, %v650
        %v653 = vpack.c.bf16 %v646, %v645
        %v654 = vunpack.c.l.bf16 %v653
        %v655 = vunpack.c.h.bf16 %v653
        %v656 = vsub.f32 %v645, %v654
        %v657 = vsub.f32 %v646, %v655
        %v658 = vpack.c.bf16 %v657, %v656
        %v660 = vsel %vm310, %v370, 0
        %662 = vmatprep.subr.bf16.mxu0 0
        %663 = vmatpush1.bf16.msra.mxu0 %v652
        %664 = vmatprep.subr.bf16.mxu0 0
        %665 = vmatpush1.bf16.msra.mxu0 0
        %666 = vmatprep.subr.bf16.mxu0 0
        %667 = vmatpush1.bf16.msra.mxu0 0
        %668 = vmatprep.subr.bf16.mxu0 0
        %669 = vmatpush1.bf16.msra.mxu0 0
        %670 = vmatprep.subr.bf16.mxu0 0
        %671 = vmatpush1.bf16.msra.mxu0 0
        %672 = vmatprep.subr.bf16.mxu0 0
        %673 = vmatpush1.bf16.msra.mxu0 0
        %674 = vmatprep.subr.bf16.mxu0 0
        %675 = vmatpush1.bf16.msra.mxu0 0
        %676 = vmatprep.subr.bf16.mxu0 0
        %677 = vmatpush1.bf16.msra.mxu0 0
        %678 = vmatprep.subr.bf16.mxu0 0
        %679 = vmatpush1.bf16.msra.mxu0 0
        %680 = vmatprep.subr.bf16.mxu0 0
        %681 = vmatpush1.bf16.msra.mxu0 0
        %682 = vmatprep.subr.bf16.mxu0 0
        %683 = vmatpush1.bf16.msra.mxu0 0
        %684 = vmatprep.subr.bf16.mxu0 0
        %685 = vmatpush1.bf16.msra.mxu0 0
        %686 = vmatprep.subr.bf16.mxu0 0
        %687 = vmatpush1.bf16.msra.mxu0 0
        %688 = vmatprep.subr.bf16.mxu0 0
        %689 = vmatpush1.bf16.msra.mxu0 0
        %690 = vmatprep.subr.bf16.mxu0 0
        %691 = vmatpush1.bf16.msra.mxu0 0
        %692 = vmatprep.subr.bf16.mxu0 0
        %693 = vmatpush1.bf16.msra.mxu0 0
        %694 = vmatprep.mubr.bf16.mxu0 0
        %695 = vmatmul.mubr.bf16.gmra.mrb[0].mxu0 %v660
        %v696 = vpop.f32.mrb[0].mxu0
        %v697 = vadd.f32 0.0, %v696
        %v698 = vpop.f32.mrb[0].mxu0
        %v699 = vpop.f32.mrb[0].mxu0
        %v700 = vadd.f32 0.0, %v699
        %v701 = vpop.f32.mrb[0].mxu0
        %702 = vdwg.mxu0
        %703 = vmatprep.subr.bf16.mxu0 0
        %704 = vmatpush1.bf16.msra.mxu0 %v647
        %705 = vmatprep.subr.bf16.mxu0 0
        %706 = vmatpush1.bf16.msra.mxu0 0
        %707 = vmatprep.subr.bf16.mxu0 0
        %708 = vmatpush1.bf16.msra.mxu0 0
        %709 = vmatprep.subr.bf16.mxu0 0
        %710 = vmatpush1.bf16.msra.mxu0 0
        %711 = vmatprep.subr.bf16.mxu0 0
        %712 = vmatpush1.bf16.msra.mxu0 0
        %713 = vmatprep.subr.bf16.mxu0 0
        %714 = vmatpush1.bf16.msra.mxu0 0
        %715 = vmatprep.subr.bf16.mxu0 0
        %716 = vmatpush1.bf16.msra.mxu0 0
        %717 = vmatprep.subr.bf16.mxu0 0
        %718 = vmatpush1.bf16.msra.mxu0 0
        %719 = vmatprep.subr.bf16.mxu0 0
        %720 = vmatpush1.bf16.msra.mxu0 0
        %721 = vmatprep.subr.bf16.mxu0 0
        %722 = vmatpush1.bf16.msra.mxu0 0
        %723 = vmatprep.subr.bf16.mxu0 0
        %724 = vmatpush1.bf16.msra.mxu0 0
        %725 = vmatprep.subr.bf16.mxu0 0
        %726 = vmatpush1.bf16.msra.mxu0 0
        %727 = vmatprep.subr.bf16.mxu0 0
        %728 = vmatpush1.bf16.msra.mxu0 0
        %729 = vmatprep.subr.bf16.mxu0 0
        %730 = vmatpush1.bf16.msra.mxu0 0
        %731 = vmatprep.subr.bf16.mxu0 0
        %732 = vmatpush1.bf16.msra.mxu0 0
        %733 = vmatprep.subr.bf16.mxu0 0
        %734 = vmatpush1.bf16.msra.mxu0 0
        %735 = vmatprep.mubr.bf16.mxu0 0
        %736 = vmatmul.mubr.bf16.gmra.mrb[0].mxu0 %v660
        %v737 = vpop.f32.mrb[0].mxu0
        %v738 = vadd.f32 %v697, %v737
        %v739 = vpop.f32.mrb[0].mxu0
        %v740 = vpop.f32.mrb[0].mxu0
        %v741 = vadd.f32 %v700, %v740
        %v742 = vpop.f32.mrb[0].mxu0
        %743 = vdwg.mxu0
        %v745 = vsel %vm310, %v308, 0
        %747 = vmatprep.subr.bf16.mxu0 0
        %748 = vmatpush1.bf16.msra.mxu0 %v647
        %749 = vmatprep.subr.bf16.mxu0 0
        %750 = vmatpush1.bf16.msra.mxu0 0
        %751 = vmatprep.subr.bf16.mxu0 0
        %752 = vmatpush1.bf16.msra.mxu0 0
        %753 = vmatprep.subr.bf16.mxu0 0
        %754 = vmatpush1.bf16.msra.mxu0 0
        %755 = vmatprep.subr.bf16.mxu0 0
        %756 = vmatpush1.bf16.msra.mxu0 0
        %757 = vmatprep.subr.bf16.mxu0 0
        %758 = vmatpush1.bf16.msra.mxu0 0
        %759 = vmatprep.subr.bf16.mxu0 0
        %760 = vmatpush1.bf16.msra.mxu0 0
        %761 = vmatprep.subr.bf16.mxu0 0
        %762 = vmatpush1.bf16.msra.mxu0 0
        %763 = vmatprep.subr.bf16.mxu0 0
        %764 = vmatpush1.bf16.msra.mxu0 0
        %765 = vmatprep.subr.bf16.mxu0 0
        %766 = vmatpush1.bf16.msra.mxu0 0
        %767 = vmatprep.subr.bf16.mxu0 0
        %768 = vmatpush1.bf16.msra.mxu0 0
        %769 = vmatprep.subr.bf16.mxu0 0
        %770 = vmatpush1.bf16.msra.mxu0 0
        %771 = vmatprep.subr.bf16.mxu0 0
        %772 = vmatpush1.bf16.msra.mxu0 0
        %773 = vmatprep.subr.bf16.mxu0 0
        %774 = vmatpush1.bf16.msra.mxu0 0
        %775 = vmatprep.subr.bf16.mxu0 0
        %776 = vmatpush1.bf16.msra.mxu0 0
        %777 = vmatprep.subr.bf16.mxu0 0
        %778 = vmatpush1.bf16.msra.mxu0 0
        %779 = vmatprep.mubr.bf16.mxu0 0
        %780 = vmatmul.mubr.bf16.gmra.mrb[0].mxu0 %v745
        %v781 = vpop.f32.mrb[0].mxu0
        %v782 = vadd.f32 0.0, %v781
        %v783 = vpop.f32.mrb[0].mxu0
        %v784 = vpop.f32.mrb[0].mxu0
        %v785 = vadd.f32 0.0, %v784
        %v786 = vpop.f32.mrb[0].mxu0
        %787 = vdwg.mxu0
        %v788 = vadd.f32 %v738, %v782
        %v789 = vadd.f32 %v741, %v785
        %v791 = vsel %vm310, %v539, 0
        %793 = vmatprep.subr.bf16.mxu0 0
        %794 = vmatpush1.bf16.msra.mxu0 %v658
        %795 = vmatprep.subr.bf16.mxu0 0
        %796 = vmatpush1.bf16.msra.mxu0 0
        %797 = vmatprep.subr.bf16.mxu0 0
        %798 = vmatpush1.bf16.msra.mxu0 0
        %799 = vmatprep.subr.bf16.mxu0 0
        %800 = vmatpush1.bf16.msra.mxu0 0
        %801 = vmatprep.subr.bf16.mxu0 0
        %802 = vmatpush1.bf16.msra.mxu0 0
        %803 = vmatprep.subr.bf16.mxu0 0
        %804 = vmatpush1.bf16.msra.mxu0 0
        %805 = vmatprep.subr.bf16.mxu0 0
        %806 = vmatpush1.bf16.msra.mxu0 0
        %807 = vmatprep.subr.bf16.mxu0 0
        %808 = vmatpush1.bf16.msra.mxu0 0
        %809 = vmatprep.subr.bf16.mxu0 0
        %810 = vmatpush1.bf16.msra.mxu0 0
        %811 = vmatprep.subr.bf16.mxu0 0
        %812 = vmatpush1.bf16.msra.mxu0 0
        %813 = vmatprep.subr.bf16.mxu0 0
        %814 = vmatpush1.bf16.msra.mxu0 0
        %815 = vmatprep.subr.bf16.mxu0 0
        %816 = vmatpush1.bf16.msra.mxu0 0
        %817 = vmatprep.subr.bf16.mxu0 0
        %818 = vmatpush1.bf16.msra.mxu0 0
        %819 = vmatprep.subr.bf16.mxu0 0
        %820 = vmatpush1.bf16.msra.mxu0 0
        %821 = vmatprep.subr.bf16.mxu0 0
        %822 = vmatpush1.bf16.msra.mxu0 0
        %823 = vmatprep.subr.bf16.mxu0 0
        %824 = vmatpush1.bf16.msra.mxu0 0
        %825 = vmatprep.mubr.bf16.mxu0 0
        %826 = vmatmul.mubr.bf16.gmra.mrb[0].mxu0 %v791
        %v827 = vpop.f32.mrb[0].mxu0
        %v828 = vadd.f32 0.0, %v827
        %v829 = vpop.f32.mrb[0].mxu0
        %v830 = vpop.f32.mrb[0].mxu0
        %v831 = vadd.f32 0.0, %v830
        %v832 = vpop.f32.mrb[0].mxu0
        %833 = vdwg.mxu0
        %834 = vmatprep.subr.bf16.mxu0 0
        %835 = vmatpush1.bf16.msra.mxu0 %v653
        %836 = vmatprep.subr.bf16.mxu0 0
        %837 = vmatpush1.bf16.msra.mxu0 0
        %838 = vmatprep.subr.bf16.mxu0 0
        %839 = vmatpush1.bf16.msra.mxu0 0
        %840 = vmatprep.subr.bf16.mxu0 0
        %841 = vmatpush1.bf16.msra.mxu0 0
        %842 = vmatprep.subr.bf16.mxu0 0
        %843 = vmatpush1.bf16.msra.mxu0 0
        %844 = vmatprep.subr.bf16.mxu0 0
        %845 = vmatpush1.bf16.msra.mxu0 0
        %846 = vmatprep.subr.bf16.mxu0 0
        %847 = vmatpush1.bf16.msra.mxu0 0
        %848 = vmatprep.subr.bf16.mxu0 0
        %849 = vmatpush1.bf16.msra.mxu0 0
        %850 = vmatprep.subr.bf16.mxu0 0
        %851 = vmatpush1.bf16.msra.mxu0 0
        %852 = vmatprep.subr.bf16.mxu0 0
        %853 = vmatpush1.bf16.msra.mxu0 0
        %854 = vmatprep.subr.bf16.mxu0 0
        %855 = vmatpush1.bf16.msra.mxu0 0
        %856 = vmatprep.subr.bf16.mxu0 0
        %857 = vmatpush1.bf16.msra.mxu0 0
        %858 = vmatprep.subr.bf16.mxu0 0
        %859 = vmatpush1.bf16.msra.mxu0 0
        %860 = vmatprep.subr.bf16.mxu0 0
        %861 = vmatpush1.bf16.msra.mxu0 0
        %862 = vmatprep.subr.bf16.mxu0 0
        %863 = vmatpush1.bf16.msra.mxu0 0
        %864 = vmatprep.subr.bf16.mxu0 0
        %865 = vmatpush1.bf16.msra.mxu0 0
        %866 = vmatprep.mubr.bf16.mxu0 0
        %867 = vmatmul.mubr.bf16.gmra.mrb[0].mxu0 %v791
        %v868 = vpop.f32.mrb[0].mxu0
        %v869 = vadd.f32 %v828, %v868
        %v870 = vpop.f32.mrb[0].mxu0
        %v871 = vpop.f32.mrb[0].mxu0
        %v872 = vadd.f32 %v831, %v871
        %v873 = vpop.f32.mrb[0].mxu0
        %874 = vdwg.mxu0
        %v876 = vsel %vm310, %v484, 0
        %878 = vmatprep.subr.bf16.mxu0 0
        %879 = vmatpush1.bf16.msra.mxu0 %v653
        %880 = vmatprep.subr.bf16.mxu0 0
        %881 = vmatpush1.bf16.msra.mxu0 0
        %882 = vmatprep.subr.bf16.mxu0 0
        %883 = vmatpush1.bf16.msra.mxu0 0
        %884 = vmatprep.subr.bf16.mxu0 0
        %885 = vmatpush1.bf16.msra.mxu0 0
        %886 = vmatprep.subr.bf16.mxu0 0
        %887 = vmatpush1.bf16.msra.mxu0 0
        %888 = vmatprep.subr.bf16.mxu0 0
        %889 = vmatpush1.bf16.msra.mxu0 0
        %890 = vmatprep.subr.bf16.mxu0 0
        %891 = vmatpush1.bf16.msra.mxu0 0
        %892 = vmatprep.subr.bf16.mxu0 0
        %893 = vmatpush1.bf16.msra.mxu0 0
        %894 = vmatprep.subr.bf16.mxu0 0
        %895 = vmatpush1.bf16.msra.mxu0 0
        %896 = vmatprep.subr.bf16.mxu0 0
        %897 = vmatpush1.bf16.msra.mxu0 0
        %898 = vmatprep.subr.bf16.mxu0 0
        %899 = vmatpush1.bf16.msra.mxu0 0
        %900 = vmatprep.subr.bf16.mxu0 0
        %901 = vmatpush1.bf16.msra.mxu0 0
        %902 = vmatprep.subr.bf16.mxu0 0
        %903 = vmatpush1.bf16.msra.mxu0 0
        %904 = vmatprep.subr.bf16.mxu0 0
        %905 = vmatpush1.bf16.msra.mxu0 0
        %906 = vmatprep.subr.bf16.mxu0 0
        %907 = vmatpush1.bf16.msra.mxu0 0
        %908 = vmatprep.subr.bf16.mxu0 0
        %909 = vmatpush1.bf16.msra.mxu0 0
        %910 = vmatprep.mubr.bf16.mxu0 0
        %911 = vmatmul.mubr.bf16.gmra.mrb[0].mxu0 %v876
        %v912 = vpop.f32.mrb[0].mxu0
        %v913 = vadd.f32 0.0, %v912
        %v914 = vpop.f32.mrb[0].mxu0
        %v915 = vpop.f32.mrb[0].mxu0
        %v916 = vadd.f32 0.0, %v915
        %v917 = vpop.f32.mrb[0].mxu0
        %918 = vdwg.mxu0
        %v919 = vadd.f32 %v869, %v913
        %v920 = vadd.f32 %v872, %v916
        %v921 = vsub.f32 %v788, %v919
        %v922 = vsub.f32 %v789, %v920
        %923 = vmatprep.subr.bf16.mxu0 0
        %924 = vmatpush1.bf16.msra.mxu0 %v658
        %925 = vmatprep.subr.bf16.mxu0 0
        %926 = vmatpush1.bf16.msra.mxu0 0
        %927 = vmatprep.subr.bf16.mxu0 0
        %928 = vmatpush1.bf16.msra.mxu0 0
        %929 = vmatprep.subr.bf16.mxu0 0
        %930 = vmatpush1.bf16.msra.mxu0 0
        %931 = vmatprep.subr.bf16.mxu0 0
        %932 = vmatpush1.bf16.msra.mxu0 0
        %933 = vmatprep.subr.bf16.mxu0 0
        %934 = vmatpush1.bf16.msra.mxu0 0
        %935 = vmatprep.subr.bf16.mxu0 0
        %936 = vmatpush1.bf16.msra.mxu0 0
        %937 = vmatprep.subr.bf16.mxu0 0
        %938 = vmatpush1.bf16.msra.mxu0 0
        %939 = vmatprep.subr.bf16.mxu0 0
        %940 = vmatpush1.bf16.msra.mxu0 0
        %941 = vmatprep.subr.bf16.mxu0 0
        %942 = vmatpush1.bf16.msra.mxu0 0
        %943 = vmatprep.subr.bf16.mxu0 0
        %944 = vmatpush1.bf16.msra.mxu0 0
        %945 = vmatprep.subr.bf16.mxu0 0
        %946 = vmatpush1.bf16.msra.mxu0 0
        %947 = vmatprep.subr.bf16.mxu0 0
        %948 = vmatpush1.bf16.msra.mxu0 0
        %949 = vmatprep.subr.bf16.mxu0 0
        %950 = vmatpush1.bf16.msra.mxu0 0
        %951 = vmatprep.subr.bf16.mxu0 0
        %952 = vmatpush1.bf16.msra.mxu0 0
        %953 = vmatprep.subr.bf16.mxu0 0
        %954 = vmatpush1.bf16.msra.mxu0 0
        %955 = vmatprep.mubr.bf16.mxu0 0
        %956 = vmatmul.mubr.bf16.gmra.mrb[0].mxu0 %v660
        %v957 = vpop.f32.mrb[0].mxu0
        %v958 = vadd.f32 0.0, %v957
        %v959 = vpop.f32.mrb[0].mxu0
        %v960 = vpop.f32.mrb[0].mxu0
        %v961 = vadd.f32 0.0, %v960
        %v962 = vpop.f32.mrb[0].mxu0
        %963 = vdwg.mxu0
        %964 = vmatprep.subr.bf16.mxu0 0
        %965 = vmatpush1.bf16.msra.mxu0 %v653
        %966 = vmatprep.subr.bf16.mxu0 0
        %967 = vmatpush1.bf16.msra.mxu0 0
        %968 = vmatprep.subr.bf16.mxu0 0
        %969 = vmatpush1.bf16.msra.mxu0 0
        %970 = vmatprep.subr.bf16.mxu0 0
        %971 = vmatpush1.bf16.msra.mxu0 0
        %972 = vmatprep.subr.bf16.mxu0 0
        %973 = vmatpush1.bf16.msra.mxu0 0
        %974 = vmatprep.subr.bf16.mxu0 0
        %975 = vmatpush1.bf16.msra.mxu0 0
        %976 = vmatprep.subr.bf16.mxu0 0
        %977 = vmatpush1.bf16.msra.mxu0 0
        %978 = vmatprep.subr.bf16.mxu0 0
        %979 = vmatpush1.bf16.msra.mxu0 0
        %980 = vmatprep.subr.bf16.mxu0 0
        %981 = vmatpush1.bf16.msra.mxu0 0
        %982 = vmatprep.subr.bf16.mxu0 0
        %983 = vmatpush1.bf16.msra.mxu0 0
        %984 = vmatprep.subr.bf16.mxu0 0
        %985 = vmatpush1.bf16.msra.mxu0 0
        %986 = vmatprep.subr.bf16.mxu0 0
        %987 = vmatpush1.bf16.msra.mxu0 0
        %988 = vmatprep.subr.bf16.mxu0 0
        %989 = vmatpush1.bf16.msra.mxu0 0
        %990 = vmatprep.subr.bf16.mxu0 0
        %991 = vmatpush1.bf16.msra.mxu0 0
        %992 = vmatprep.subr.bf16.mxu0 0
        %993 = vmatpush1.bf16.msra.mxu0 0
        %994 = vmatprep.subr.bf16.mxu0 0
        %995 = vmatpush1.bf16.msra.mxu0 0
        %996 = vmatprep.mubr.bf16.mxu0 0
        %997 = vmatmul.mubr.bf16.gmra.mrb[0].mxu0 %v660
        %v998 = vpop.f32.mrb[0].mxu0
        %v999 = vadd.f32 %v958, %v998
        %v1000 = vpop.f32.mrb[0].mxu0
        %v1001 = vpop.f32.mrb[0].mxu0
        %v1002 = vadd.f32 %v961, %v1001
        %v1003 = vpop.f32.mrb[0].mxu0
        %1004 = vdwg.mxu0
        %1005 = vmatprep.subr.bf16.mxu0 0
        %1006 = vmatpush1.bf16.msra.mxu0 %v653
        %1007 = vmatprep.subr.bf16.mxu0 0
        %1008 = vmatpush1.bf16.msra.mxu0 0
        %1009 = vmatprep.subr.bf16.mxu0 0
        %1010 = vmatpush1.bf16.msra.mxu0 0
        %1011 = vmatprep.subr.bf16.mxu0 0
        %1012 = vmatpush1.bf16.msra.mxu0 0
        %1013 = vmatprep.subr.bf16.mxu0 0
        %1014 = vmatpush1.bf16.msra.mxu0 0
        %1015 = vmatprep.subr.bf16.mxu0 0
        %1016 = vmatpush1.bf16.msra.mxu0 0
        %1017 = vmatprep.subr.bf16.mxu0 0
        %1018 = vmatpush1.bf16.msra.mxu0 0
        %1019 = vmatprep.subr.bf16.mxu0 0
        %1020 = vmatpush1.bf16.msra.mxu0 0
        %1021 = vmatprep.subr.bf16.mxu0 0
        %1022 = vmatpush1.bf16.msra.mxu0 0
        %1023 = vmatprep.subr.bf16.mxu0 0
        %1024 = vmatpush1.bf16.msra.mxu0 0
        %1025 = vmatprep.subr.bf16.mxu0 0
        %1026 = vmatpush1.bf16.msra.mxu0 0
        %1027 = vmatprep.subr.bf16.mxu0 0
        %1028 = vmatpush1.bf16.msra.mxu0 0
        %1029 = vmatprep.subr.bf16.mxu0 0
        %1030 = vmatpush1.bf16.msra.mxu0 0
        %1031 = vmatprep.subr.bf16.mxu0 0
        %1032 = vmatpush1.bf16.msra.mxu0 0
        %1033 = vmatprep.subr.bf16.mxu0 0
        %1034 = vmatpush1.bf16.msra.mxu0 0
        %1035 = vmatprep.subr.bf16.mxu0 0
        %1036 = vmatpush1.bf16.msra.mxu0 0
        %1037 = vmatprep.mubr.bf16.mxu0 0
        %1038 = vmatmul.mubr.bf16.gmra.mrb[0].mxu0 %v745
        %v1039 = vpop.f32.mrb[0].mxu0
        %v1040 = vadd.f32 0.0, %v1039
        %v1041 = vpop.f32.mrb[0].mxu0
        %v1042 = vpop.f32.mrb[0].mxu0
        %v1043 = vadd.f32 0.0, %v1042
        %v1044 = vpop.f32.mrb[0].mxu0
        %1045 = vdwg.mxu0
        %v1046 = vadd.f32 %v999, %v1040
        %v1047 = vadd.f32 %v1002, %v1043
        %1048 = vmatprep.subr.bf16.mxu0 0
        %1049 = vmatpush1.bf16.msra.mxu0 %v652
        %1050 = vmatprep.subr.bf16.mxu0 0
        %1051 = vmatpush1.bf16.msra.mxu0 0
        %1052 = vmatprep.subr.bf16.mxu0 0
        %1053 = vmatpush1.bf16.msra.mxu0 0
        %1054 = vmatprep.subr.bf16.mxu0 0
        %1055 = vmatpush1.bf16.msra.mxu0 0
        %1056 = vmatprep.subr.bf16.mxu0 0
        %1057 = vmatpush1.bf16.msra.mxu0 0
        %1058 = vmatprep.subr.bf16.mxu0 0
        %1059 = vmatpush1.bf16.msra.mxu0 0
        %1060 = vmatprep.subr.bf16.mxu0 0
        %1061 = vmatpush1.bf16.msra.mxu0 0
        %1062 = vmatprep.subr.bf16.mxu0 0
        %1063 = vmatpush1.bf16.msra.mxu0 0
        %1064 = vmatprep.subr.bf16.mxu0 0
        %1065 = vmatpush1.bf16.msra.mxu0 0
        %1066 = vmatprep.subr.bf16.mxu0 0
        %1067 = vmatpush1.bf16.msra.mxu0 0
        %1068 = vmatprep.subr.bf16.mxu0 0
        %1069 = vmatpush1.bf16.msra.mxu0 0
        %1070 = vmatprep.subr.bf16.mxu0 0
        %1071 = vmatpush1.bf16.msra.mxu0 0
        %1072 = vmatprep.subr.bf16.mxu0 0
        %1073 = vmatpush1.bf16.msra.mxu0 0
        %1074 = vmatprep.subr.bf16.mxu0 0
        %1075 = vmatpush1.bf16.msra.mxu0 0
        %1076 = vmatprep.subr.bf16.mxu0 0
        %1077 = vmatpush1.bf16.msra.mxu0 0
        %1078 = vmatprep.subr.bf16.mxu0 0
        %1079 = vmatpush1.bf16.msra.mxu0 0
        %1080 = vmatprep.mubr.bf16.mxu0 0
        %1081 = vmatmul.mubr.bf16.gmra.mrb[0].mxu0 %v791
        %v1082 = vpop.f32.mrb[0].mxu0
        %v1083 = vadd.f32 0.0, %v1082
        %v1084 = vpop.f32.mrb[0].mxu0
        %v1085 = vpop.f32.mrb[0].mxu0
        %v1086 = vadd.f32 0.0, %v1085
        %v1087 = vpop.f32.mrb[0].mxu0
        %1088 = vdwg.mxu0
        %1089 = vmatprep.subr.bf16.mxu0 0
        %1090 = vmatpush1.bf16.msra.mxu0 %v647
        %1091 = vmatprep.subr.bf16.mxu0 0
        %1092 = vmatpush1.bf16.msra.mxu0 0
        %1093 = vmatprep.subr.bf16.mxu0 0
        %1094 = vmatpush1.bf16.msra.mxu0 0
        %1095 = vmatprep.subr.bf16.mxu0 0
        %1096 = vmatpush1.bf16.msra.mxu0 0
        %1097 = vmatprep.subr.bf16.mxu0 0
        %1098 = vmatpush1.bf16.msra.mxu0 0
        %1099 = vmatprep.subr.bf16.mxu0 0
        %1100 = vmatpush1.bf16.msra.mxu0 0
        %1101 = vmatprep.subr.bf16.mxu0 0
        %1102 = vmatpush1.bf16.msra.mxu0 0
        %1103 = vmatprep.subr.bf16.mxu0 0
        %1104 = vmatpush1.bf16.msra.mxu0 0
        %1105 = vmatprep.subr.bf16.mxu0 0
        %1106 = vmatpush1.bf16.msra.mxu0 0
        %1107 = vmatprep.subr.bf16.mxu0 0
        %1108 = vmatpush1.bf16.msra.mxu0 0
        %1109 = vmatprep.subr.bf16.mxu0 0
        %1110 = vmatpush1.bf16.msra.mxu0 0
        %1111 = vmatprep.subr.bf16.mxu0 0
        %1112 = vmatpush1.bf16.msra.mxu0 0
        %1113 = vmatprep.subr.bf16.mxu0 0
        %1114 = vmatpush1.bf16.msra.mxu0 0
        %1115 = vmatprep.subr.bf16.mxu0 0
        %1116 = vmatpush1.bf16.msra.mxu0 0
        %1117 = vmatprep.subr.bf16.mxu0 0
        %1118 = vmatpush1.bf16.msra.mxu0 0
        %1119 = vmatprep.subr.bf16.mxu0 0
        %1120 = vmatpush1.bf16.msra.mxu0 0
        %1121 = vmatprep.mubr.bf16.mxu0 0
        %1122 = vmatmul.mubr.bf16.gmra.mrb[0].mxu0 %v791
        %v1123 = vpop.f32.mrb[0].mxu0
        %v1124 = vadd.f32 %v1083, %v1123
        %v1125 = vpop.f32.mrb[0].mxu0
        %v1126 = vpop.f32.mrb[0].mxu0
        %v1127 = vadd.f32 %v1086, %v1126
        %v1128 = vpop.f32.mrb[0].mxu0
        %1129 = vdwg.mxu0
        %1130 = vmatprep.subr.bf16.mxu0 0
        %1131 = vmatpush1.bf16.msra.mxu0 %v647
        %1132 = vmatprep.subr.bf16.mxu0 0
        %1133 = vmatpush1.bf16.msra.mxu0 0
        %1134 = vmatprep.subr.bf16.mxu0 0
        %1135 = vmatpush1.bf16.msra.mxu0 0
        %1136 = vmatprep.subr.bf16.mxu0 0
        %1137 = vmatpush1.bf16.msra.mxu0 0
        %1138 = vmatprep.subr.bf16.mxu0 0
        %1139 = vmatpush1.bf16.msra.mxu0 0
        %1140 = vmatprep.subr.bf16.mxu0 0
        %1141 = vmatpush1.bf16.msra.mxu0 0
        %1142 = vmatprep.subr.bf16.mxu0 0
        %1143 = vmatpush1.bf16.msra.mxu0 0
        %1144 = vmatprep.subr.bf16.mxu0 0
        %1145 = vmatpush1.bf16.msra.mxu0 0
        %1146 = vmatprep.subr.bf16.mxu0 0
        %1147 = vmatpush1.bf16.msra.mxu0 0
        %1148 = vmatprep.subr.bf16.mxu0 0
        %1149 = vmatpush1.bf16.msra.mxu0 0
        %1150 = vmatprep.subr.bf16.mxu0 0
        %1151 = vmatpush1.bf16.msra.mxu0 0
        %1152 = vmatprep.subr.bf16.mxu0 0
        %1153 = vmatpush1.bf16.msra.mxu0 0
        %1154 = vmatprep.subr.bf16.mxu0 0
        %1155 = vmatpush1.bf16.msra.mxu0 0
        %1156 = vmatprep.subr.bf16.mxu0 0
        %1157 = vmatpush1.bf16.msra.mxu0 0
        %1158 = vmatprep.subr.bf16.mxu0 0
        %1159 = vmatpush1.bf16.msra.mxu0 0
        %1160 = vmatprep.subr.bf16.mxu0 0
        %1161 = vmatpush1.bf16.msra.mxu0 0
        %1162 = vmatprep.mubr.bf16.mxu0 0
        %1163 = vmatmul.mubr.bf16.gmra.mrb[0].mxu0 %v876
        %v1164 = vpop.f32.mrb[0].mxu0
        %v1165 = vadd.f32 0.0, %v1164
        %v1166 = vpop.f32.mrb[0].mxu0
        %v1167 = vpop.f32.mrb[0].mxu0
        %v1168 = vadd.f32 0.0, %v1167
        %v1169 = vpop.f32.mrb[0].mxu0
        %1170 = vdwg.mxu0
        %v1171 = vadd.f32 %v1124, %v1165
        %v1172 = vadd.f32 %v1127, %v1168
        %v1173 = vadd.f32 %v1046, %v1171
        %v1174 = vadd.f32 %v1047, %v1172
        %v1175 = vmul.f32 %v921, %v287
        %v1176 = vmul.f32 %v922, %v288
        %v1177 = vmul.f32 %v1173, %v290
        %v1178 = vmul.f32 %v1174, %v291
        %v1179 = vsub.f32 %v1175, %v1177
        %v1180 = vsub.f32 %v1176, %v1178
        %v1181 = vmul.f32 %v921, %v290
        %v1182 = vmul.f32 %v922, %v291
        %v1183 = vmul.f32 %v1173, %v287
        %v1184 = vmul.f32 %v1174, %v288
        %v1185 = vadd.f32 %v1181, %v1183
        %v1186 = vadd.f32 %v1182, %v1184
        %v1187 = vpack.c.bf16 %v1180, %v1179
        %v1188 = vunpack.c.l.bf16 %v1187
        %v1189 = vunpack.c.h.bf16 %v1187
        %v1190 = vsub.f32 %v1179, %v1188
        %v1191 = vsub.f32 %v1180, %v1189
        %v1192 = vpack.c.bf16 %v1191, %v1190
        %v1193 = vpack.c.bf16 %v1186, %v1185
        %v1194 = vunpack.c.l.bf16 %v1193
        %v1195 = vunpack.c.h.bf16 %v1193
        %v1196 = vsub.f32 %v1185, %v1194
        %v1197 = vsub.f32 %v1186, %v1195
        %v1198 = vpack.c.bf16 %v1197, %v1196
        %1199 = vmatprep.subr.bf16.mxu0 0
        %1200 = vmatpush1.bf16.msra.mxu0 %v1192
        %1201 = vmatprep.subr.bf16.mxu0 0
        %1202 = vmatpush1.bf16.msra.mxu0 0
        %1203 = vmatprep.subr.bf16.mxu0 0
        %1204 = vmatpush1.bf16.msra.mxu0 0
        %1205 = vmatprep.subr.bf16.mxu0 0
        %1206 = vmatpush1.bf16.msra.mxu0 0
        %1207 = vmatprep.subr.bf16.mxu0 0
        %1208 = vmatpush1.bf16.msra.mxu0 0
        %1209 = vmatprep.subr.bf16.mxu0 0
        %1210 = vmatpush1.bf16.msra.mxu0 0
        %1211 = vmatprep.subr.bf16.mxu0 0
        %1212 = vmatpush1.bf16.msra.mxu0 0
        %1213 = vmatprep.subr.bf16.mxu0 0
        %1214 = vmatpush1.bf16.msra.mxu0 0
        %1215 = vmatprep.subr.bf16.mxu0 0
        %1216 = vmatpush1.bf16.msra.mxu0 0
        %1217 = vmatprep.subr.bf16.mxu0 0
        %1218 = vmatpush1.bf16.msra.mxu0 0
        %1219 = vmatprep.subr.bf16.mxu0 0
        %1220 = vmatpush1.bf16.msra.mxu0 0
        %1221 = vmatprep.subr.bf16.mxu0 0
        %1222 = vmatpush1.bf16.msra.mxu0 0
        %1223 = vmatprep.subr.bf16.mxu0 0
        %1224 = vmatpush1.bf16.msra.mxu0 0
        %1225 = vmatprep.subr.bf16.mxu0 0
        %1226 = vmatpush1.bf16.msra.mxu0 0
        %1227 = vmatprep.subr.bf16.mxu0 0
        %1228 = vmatpush1.bf16.msra.mxu0 0
        %1229 = vmatprep.subr.bf16.mxu0 0
        %1230 = vmatpush1.bf16.msra.mxu0 0
        %1231 = vmatprep.mubr.bf16.mxu0 0
        %1232 = vmatmul.mubr.bf16.gmra.mrb[0].mxu0 %v660
        %v1233 = vpop.f32.mrb[0].mxu0
        %v1234 = vadd.f32 0.0, %v1233
        %v1235 = vpop.f32.mrb[0].mxu0
        %v1236 = vpop.f32.mrb[0].mxu0
        %v1237 = vadd.f32 0.0, %v1236
        %v1238 = vpop.f32.mrb[0].mxu0
        %1239 = vdwg.mxu0
        %1240 = vmatprep.subr.bf16.mxu0 0
        %1241 = vmatpush1.bf16.msra.mxu0 %v1187
        %1242 = vmatprep.subr.bf16.mxu0 0
        %1243 = vmatpush1.bf16.msra.mxu0 0
        %1244 = vmatprep.subr.bf16.mxu0 0
        %1245 = vmatpush1.bf16.msra.mxu0 0
        %1246 = vmatprep.subr.bf16.mxu0 0
        %1247 = vmatpush1.bf16.msra.mxu0 0
        %1248 = vmatprep.subr.bf16.mxu0 0
        %1249 = vmatpush1.bf16.msra.mxu0 0
        %1250 = vmatprep.subr.bf16.mxu0 0
        %1251 = vmatpush1.bf16.msra.mxu0 0
        %1252 = vmatprep.subr.bf16.mxu0 0
        %1253 = vmatpush1.bf16.msra.mxu0 0
        %1254 = vmatprep.subr.bf16.mxu0 0
        %1255 = vmatpush1.bf16.msra.mxu0 0
        %1256 = vmatprep.subr.bf16.mxu0 0
        %1257 = vmatpush1.bf16.msra.mxu0 0
        %1258 = vmatprep.subr.bf16.mxu0 0
        %1259 = vmatpush1.bf16.msra.mxu0 0
        %1260 = vmatprep.subr.bf16.mxu0 0
        %1261 = vmatpush1.bf16.msra.mxu0 0
        %1262 = vmatprep.subr.bf16.mxu0 0
        %1263 = vmatpush1.bf16.msra.mxu0 0
        %1264 = vmatprep.subr.bf16.mxu0 0
        %1265 = vmatpush1.bf16.msra.mxu0 0
        %1266 = vmatprep.subr.bf16.mxu0 0
        %1267 = vmatpush1.bf16.msra.mxu0 0
        %1268 = vmatprep.subr.bf16.mxu0 0
        %1269 = vmatpush1.bf16.msra.mxu0 0
        %1270 = vmatprep.subr.bf16.mxu0 0
        %1271 = vmatpush1.bf16.msra.mxu0 0
        %1272 = vmatprep.mubr.bf16.mxu0 0
        %1273 = vmatmul.mubr.bf16.gmra.mrb[0].mxu0 %v660
        %v1274 = vpop.f32.mrb[0].mxu0
        %v1275 = vadd.f32 %v1234, %v1274
        %v1276 = vpop.f32.mrb[0].mxu0
        %v1277 = vpop.f32.mrb[0].mxu0
        %v1278 = vadd.f32 %v1237, %v1277
        %v1279 = vpop.f32.mrb[0].mxu0
        %1280 = vdwg.mxu0
        %1281 = vmatprep.subr.bf16.mxu0 0
        %1282 = vmatpush1.bf16.msra.mxu0 %v1187
        %1283 = vmatprep.subr.bf16.mxu0 0
        %1284 = vmatpush1.bf16.msra.mxu0 0
        %1285 = vmatprep.subr.bf16.mxu0 0
        %1286 = vmatpush1.bf16.msra.mxu0 0
        %1287 = vmatprep.subr.bf16.mxu0 0
        %1288 = vmatpush1.bf16.msra.mxu0 0
        %1289 = vmatprep.subr.bf16.mxu0 0
        %1290 = vmatpush1.bf16.msra.mxu0 0
        %1291 = vmatprep.subr.bf16.mxu0 0
        %1292 = vmatpush1.bf16.msra.mxu0 0
        %1293 = vmatprep.subr.bf16.mxu0 0
        %1294 = vmatpush1.bf16.msra.mxu0 0
        %1295 = vmatprep.subr.bf16.mxu0 0
        %1296 = vmatpush1.bf16.msra.mxu0 0
        %1297 = vmatprep.subr.bf16.mxu0 0
        %1298 = vmatpush1.bf16.msra.mxu0 0
        %1299 = vmatprep.subr.bf16.mxu0 0
        %1300 = vmatpush1.bf16.msra.mxu0 0
        %1301 = vmatprep.subr.bf16.mxu0 0
        %1302 = vmatpush1.bf16.msra.mxu0 0
        %1303 = vmatprep.subr.bf16.mxu0 0
        %1304 = vmatpush1.bf16.msra.mxu0 0
        %1305 = vmatprep.subr.bf16.mxu0 0
        %1306 = vmatpush1.bf16.msra.mxu0 0
        %1307 = vmatprep.subr.bf16.mxu0 0
        %1308 = vmatpush1.bf16.msra.mxu0 0
        %1309 = vmatprep.subr.bf16.mxu0 0
        %1310 = vmatpush1.bf16.msra.mxu0 0
        %1311 = vmatprep.subr.bf16.mxu0 0
        %1312 = vmatpush1.bf16.msra.mxu0 0
        %1313 = vmatprep.mubr.bf16.mxu0 0
        %1314 = vmatmul.mubr.bf16.gmra.mrb[0].mxu0 %v745
        %v1315 = vpop.f32.mrb[0].mxu0
        %v1316 = vadd.f32 0.0, %v1315
        %v1317 = vpop.f32.mrb[0].mxu0
        %v1318 = vpop.f32.mrb[0].mxu0
        %v1319 = vadd.f32 0.0, %v1318
        %v1320 = vpop.f32.mrb[0].mxu0
        %1321 = vdwg.mxu0
        %v1322 = vadd.f32 %v1275, %v1316
        %v1323 = vadd.f32 %v1278, %v1319
        %1324 = vmatprep.subr.bf16.mxu0 0
        %1325 = vmatpush1.bf16.msra.mxu0 %v1198
        %1326 = vmatprep.subr.bf16.mxu0 0
        %1327 = vmatpush1.bf16.msra.mxu0 0
        %1328 = vmatprep.subr.bf16.mxu0 0
        %1329 = vmatpush1.bf16.msra.mxu0 0
        %1330 = vmatprep.subr.bf16.mxu0 0
        %1331 = vmatpush1.bf16.msra.mxu0 0
        %1332 = vmatprep.subr.bf16.mxu0 0
        %1333 = vmatpush1.bf16.msra.mxu0 0
        %1334 = vmatprep.subr.bf16.mxu0 0
        %1335 = vmatpush1.bf16.msra.mxu0 0
        %1336 = vmatprep.subr.bf16.mxu0 0
        %1337 = vmatpush1.bf16.msra.mxu0 0
        %1338 = vmatprep.subr.bf16.mxu0 0
        %1339 = vmatpush1.bf16.msra.mxu0 0
        %1340 = vmatprep.subr.bf16.mxu0 0
        %1341 = vmatpush1.bf16.msra.mxu0 0
        %1342 = vmatprep.subr.bf16.mxu0 0
        %1343 = vmatpush1.bf16.msra.mxu0 0
        %1344 = vmatprep.subr.bf16.mxu0 0
        %1345 = vmatpush1.bf16.msra.mxu0 0
        %1346 = vmatprep.subr.bf16.mxu0 0
        %1347 = vmatpush1.bf16.msra.mxu0 0
        %1348 = vmatprep.subr.bf16.mxu0 0
        %1349 = vmatpush1.bf16.msra.mxu0 0
        %1350 = vmatprep.subr.bf16.mxu0 0
        %1351 = vmatpush1.bf16.msra.mxu0 0
        %1352 = vmatprep.subr.bf16.mxu0 0
        %1353 = vmatpush1.bf16.msra.mxu0 0
        %1354 = vmatprep.subr.bf16.mxu0 0
        %1355 = vmatpush1.bf16.msra.mxu0 0
        %1356 = vmatprep.mubr.bf16.mxu0 0
        %1357 = vmatmul.mubr.bf16.gmra.mrb[0].mxu0 %v791
        %v1358 = vpop.f32.mrb[0].mxu0
        %v1359 = vadd.f32 0.0, %v1358
        %v1360 = vpop.f32.mrb[0].mxu0
        %v1361 = vpop.f32.mrb[0].mxu0
        %v1362 = vadd.f32 0.0, %v1361
        %v1363 = vpop.f32.mrb[0].mxu0
        %1364 = vdwg.mxu0
        %1365 = vmatprep.subr.bf16.mxu0 0
        %1366 = vmatpush1.bf16.msra.mxu0 %v1193
        %1367 = vmatprep.subr.bf16.mxu0 0
        %1368 = vmatpush1.bf16.msra.mxu0 0
        %1369 = vmatprep.subr.bf16.mxu0 0
        %1370 = vmatpush1.bf16.msra.mxu0 0
        %1371 = vmatprep.subr.bf16.mxu0 0
        %1372 = vmatpush1.bf16.msra.mxu0 0
        %1373 = vmatprep.subr.bf16.mxu0 0
        %1374 = vmatpush1.bf16.msra.mxu0 0
        %1375 = vmatprep.subr.bf16.mxu0 0
        %1376 = vmatpush1.bf16.msra.mxu0 0
        %1377 = vmatprep.subr.bf16.mxu0 0
        %1378 = vmatpush1.bf16.msra.mxu0 0
        %1379 = vmatprep.subr.bf16.mxu0 0
        %1380 = vmatpush1.bf16.msra.mxu0 0
        %1381 = vmatprep.subr.bf16.mxu0 0
        %1382 = vmatpush1.bf16.msra.mxu0 0
        %1383 = vmatprep.subr.bf16.mxu0 0
        %1384 = vmatpush1.bf16.msra.mxu0 0
        %1385 = vmatprep.subr.bf16.mxu0 0
        %1386 = vmatpush1.bf16.msra.mxu0 0
        %1387 = vmatprep.subr.bf16.mxu0 0
        %1388 = vmatpush1.bf16.msra.mxu0 0
        %1389 = vmatprep.subr.bf16.mxu0 0
        %1390 = vmatpush1.bf16.msra.mxu0 0
        %1391 = vmatprep.subr.bf16.mxu0 0
        %1392 = vmatpush1.bf16.msra.mxu0 0
        %1393 = vmatprep.subr.bf16.mxu0 0
        %1394 = vmatpush1.bf16.msra.mxu0 0
        %1395 = vmatprep.subr.bf16.mxu0 0
        %1396 = vmatpush1.bf16.msra.mxu0 0
        %1397 = vmatprep.mubr.bf16.mxu0 0
        %1398 = vmatmul.mubr.bf16.gmra.mrb[0].mxu0 %v791
        %v1399 = vpop.f32.mrb[0].mxu0
        %v1400 = vadd.f32 %v1359, %v1399
        %v1401 = vpop.f32.mrb[0].mxu0
        %v1402 = vpop.f32.mrb[0].mxu0
        %v1403 = vadd.f32 %v1362, %v1402
        %v1404 = vpop.f32.mrb[0].mxu0
        %1405 = vdwg.mxu0
        %1406 = vmatprep.subr.bf16.mxu0 0
        %1407 = vmatpush1.bf16.msra.mxu0 %v1193
        %1408 = vmatprep.subr.bf16.mxu0 0
        %1409 = vmatpush1.bf16.msra.mxu0 0
        %1410 = vmatprep.subr.bf16.mxu0 0
        %1411 = vmatpush1.bf16.msra.mxu0 0
        %1412 = vmatprep.subr.bf16.mxu0 0
        %1413 = vmatpush1.bf16.msra.mxu0 0
        %1414 = vmatprep.subr.bf16.mxu0 0
        %1415 = vmatpush1.bf16.msra.mxu0 0
        %1416 = vmatprep.subr.bf16.mxu0 0
        %1417 = vmatpush1.bf16.msra.mxu0 0
        %1418 = vmatprep.subr.bf16.mxu0 0
        %1419 = vmatpush1.bf16.msra.mxu0 0
        %1420 = vmatprep.subr.bf16.mxu0 0
        %1421 = vmatpush1.bf16.msra.mxu0 0
        %1422 = vmatprep.subr.bf16.mxu0 0
        %1423 = vmatpush1.bf16.msra.mxu0 0
        %1424 = vmatprep.subr.bf16.mxu0 0
        %1425 = vmatpush1.bf16.msra.mxu0 0
        %1426 = vmatprep.subr.bf16.mxu0 0
        %1427 = vmatpush1.bf16.msra.mxu0 0
        %1428 = vmatprep.subr.bf16.mxu0 0
        %1429 = vmatpush1.bf16.msra.mxu0 0
        %1430 = vmatprep.subr.bf16.mxu0 0
        %1431 = vmatpush1.bf16.msra.mxu0 0
        %1432 = vmatprep.subr.bf16.mxu0 0
        %1433 = vmatpush1.bf16.msra.mxu0 0
        %1434 = vmatprep.subr.bf16.mxu0 0
        %1435 = vmatpush1.bf16.msra.mxu0 0
        %1436 = vmatprep.subr.bf16.mxu0 0
        %1437 = vmatpush1.bf16.msra.mxu0 0
        %1438 = vmatprep.mubr.bf16.mxu0 0
        %1439 = vmatmul.mubr.bf16.gmra.mrb[0].mxu0 %v876
        %v1440 = vpop.f32.mrb[0].mxu0
        %v1441 = vadd.f32 0.0, %v1440
        %v1442 = vpop.f32.mrb[0].mxu0
        %v1443 = vpop.f32.mrb[0].mxu0
        %v1444 = vadd.f32 0.0, %v1443
        %v1445 = vpop.f32.mrb[0].mxu0
        %1446 = vdwg.mxu0
        %v1447 = vadd.f32 %v1400, %v1441
        %v1448 = vadd.f32 %v1403, %v1444
        %v1449 = vadd.f32 %v1322, %v1447
        %v1450 = vadd.f32 %v1323, %v1448
        %1451 = vmatprep.subr.bf16.mxu0 0
        %1452 = vmatpush1.bf16.msra.mxu0 %v1198
        %1453 = vmatprep.subr.bf16.mxu0 0
        %1454 = vmatpush1.bf16.msra.mxu0 0
        %1455 = vmatprep.subr.bf16.mxu0 0
        %1456 = vmatpush1.bf16.msra.mxu0 0
        %1457 = vmatprep.subr.bf16.mxu0 0
        %1458 = vmatpush1.bf16.msra.mxu0 0
        %1459 = vmatprep.subr.bf16.mxu0 0
        %1460 = vmatpush1.bf16.msra.mxu0 0
        %1461 = vmatprep.subr.bf16.mxu0 0
        %1462 = vmatpush1.bf16.msra.mxu0 0
        %1463 = vmatprep.subr.bf16.mxu0 0
        %1464 = vmatpush1.bf16.msra.mxu0 0
        %1465 = vmatprep.subr.bf16.mxu0 0
        %1466 = vmatpush1.bf16.msra.mxu0 0
        %1467 = vmatprep.subr.bf16.mxu0 0
        %1468 = vmatpush1.bf16.msra.mxu0 0
        %1469 = vmatprep.subr.bf16.mxu0 0
        %1470 = vmatpush1.bf16.msra.mxu0 0
        %1471 = vmatprep.subr.bf16.mxu0 0
        %1472 = vmatpush1.bf16.msra.mxu0 0
        %1473 = vmatprep.subr.bf16.mxu0 0
        %1474 = vmatpush1.bf16.msra.mxu0 0
        %1475 = vmatprep.subr.bf16.mxu0 0
        %1476 = vmatpush1.bf16.msra.mxu0 0
        %1477 = vmatprep.subr.bf16.mxu0 0
        %1478 = vmatpush1.bf16.msra.mxu0 0
        %1479 = vmatprep.subr.bf16.mxu0 0
        %1480 = vmatpush1.bf16.msra.mxu0 0
        %1481 = vmatprep.subr.bf16.mxu0 0
        %1482 = vmatpush1.bf16.msra.mxu0 0
        %1483 = vmatprep.mubr.bf16.mxu0 0
        %1484 = vmatmul.mubr.bf16.gmra.mrb[0].mxu0 %v660
        %v1485 = vpop.f32.mrb[0].mxu0
        %v1486 = vadd.f32 0.0, %v1485
        %v1487 = vpop.f32.mrb[0].mxu0
        %v1488 = vpop.f32.mrb[0].mxu0
        %v1489 = vadd.f32 0.0, %v1488
        %v1490 = vpop.f32.mrb[0].mxu0
        %1491 = vdwg.mxu0
        %1492 = vmatprep.subr.bf16.mxu0 0
        %1493 = vmatpush1.bf16.msra.mxu0 %v1193
        %1494 = vmatprep.subr.bf16.mxu0 0
        %1495 = vmatpush1.bf16.msra.mxu0 0
        %1496 = vmatprep.subr.bf16.mxu0 0
        %1497 = vmatpush1.bf16.msra.mxu0 0
        %1498 = vmatprep.subr.bf16.mxu0 0
        %1499 = vmatpush1.bf16.msra.mxu0 0
        %1500 = vmatprep.subr.bf16.mxu0 0
        %1501 = vmatpush1.bf16.msra.mxu0 0
        %1502 = vmatprep.subr.bf16.mxu0 0
        %1503 = vmatpush1.bf16.msra.mxu0 0
        %1504 = vmatprep.subr.bf16.mxu0 0
        %1505 = vmatpush1.bf16.msra.mxu0 0
        %1506 = vmatprep.subr.bf16.mxu0 0
        %1507 = vmatpush1.bf16.msra.mxu0 0
        %1508 = vmatprep.subr.bf16.mxu0 0
        %1509 = vmatpush1.bf16.msra.mxu0 0
        %1510 = vmatprep.subr.bf16.mxu0 0
        %1511 = vmatpush1.bf16.msra.mxu0 0
        %1512 = vmatprep.subr.bf16.mxu0 0
        %1513 = vmatpush1.bf16.msra.mxu0 0
        %1514 = vmatprep.subr.bf16.mxu0 0
        %1515 = vmatpush1.bf16.msra.mxu0 0
        %1516 = vmatprep.subr.bf16.mxu0 0
        %1517 = vmatpush1.bf16.msra.mxu0 0
        %1518 = vmatprep.subr.bf16.mxu0 0
        %1519 = vmatpush1.bf16.msra.mxu0 0
        %1520 = vmatprep.subr.bf16.mxu0 0
        %1521 = vmatpush1.bf16.msra.mxu0 0
        %1522 = vmatprep.subr.bf16.mxu0 0
        %1523 = vmatpush1.bf16.msra.mxu0 0
        %1524 = vmatprep.mubr.bf16.mxu0 0
        %1525 = vmatmul.mubr.bf16.gmra.mrb[0].mxu0 %v660
        %v1526 = vpop.f32.mrb[0].mxu0
        %v1527 = vadd.f32 %v1486, %v1526
        %v1528 = vpop.f32.mrb[0].mxu0
        %v1529 = vpop.f32.mrb[0].mxu0
        %v1530 = vadd.f32 %v1489, %v1529
        %v1531 = vpop.f32.mrb[0].mxu0
        %1532 = vdwg.mxu0
        %1533 = vmatprep.subr.bf16.mxu0 0
        %1534 = vmatpush1.bf16.msra.mxu0 %v1193
        %1535 = vmatprep.subr.bf16.mxu0 0
        %1536 = vmatpush1.bf16.msra.mxu0 0
        %1537 = vmatprep.subr.bf16.mxu0 0
        %1538 = vmatpush1.bf16.msra.mxu0 0
        %1539 = vmatprep.subr.bf16.mxu0 0
        %1540 = vmatpush1.bf16.msra.mxu0 0
        %1541 = vmatprep.subr.bf16.mxu0 0
        %1542 = vmatpush1.bf16.msra.mxu0 0
        %1543 = vmatprep.subr.bf16.mxu0 0
        %1544 = vmatpush1.bf16.msra.mxu0 0
        %1545 = vmatprep.subr.bf16.mxu0 0
        %1546 = vmatpush1.bf16.msra.mxu0 0
        %1547 = vmatprep.subr.bf16.mxu0 0
        %1548 = vmatpush1.bf16.msra.mxu0 0
        %1549 = vmatprep.subr.bf16.mxu0 0
        %1550 = vmatpush1.bf16.msra.mxu0 0
        %1551 = vmatprep.subr.bf16.mxu0 0
        %1552 = vmatpush1.bf16.msra.mxu0 0
        %1553 = vmatprep.subr.bf16.mxu0 0
        %1554 = vmatpush1.bf16.msra.mxu0 0
        %1555 = vmatprep.subr.bf16.mxu0 0
        %1556 = vmatpush1.bf16.msra.mxu0 0
        %1557 = vmatprep.subr.bf16.mxu0 0
        %1558 = vmatpush1.bf16.msra.mxu0 0
        %1559 = vmatprep.subr.bf16.mxu0 0
        %1560 = vmatpush1.bf16.msra.mxu0 0
        %1561 = vmatprep.subr.bf16.mxu0 0
        %1562 = vmatpush1.bf16.msra.mxu0 0
        %1563 = vmatprep.subr.bf16.mxu0 0
        %1564 = vmatpush1.bf16.msra.mxu0 0
        %1565 = vmatprep.mubr.bf16.mxu0 0
        %1566 = vmatmul.mubr.bf16.gmra.mrb[0].mxu0 %v745
        %v1567 = vpop.f32.mrb[0].mxu0
        %v1568 = vadd.f32 0.0, %v1567
        %v1569 = vpop.f32.mrb[0].mxu0
        %v1570 = vpop.f32.mrb[0].mxu0
        %v1571 = vadd.f32 0.0, %v1570
        %v1572 = vpop.f32.mrb[0].mxu0
        %1573 = vdwg.mxu0
        %v1574 = vadd.f32 %v1527, %v1568
        %v1575 = vadd.f32 %v1530, %v1571
        %1576 = vmatprep.subr.bf16.mxu0 0
        %1577 = vmatpush1.bf16.msra.mxu0 %v1192
        %1578 = vmatprep.subr.bf16.mxu0 0
        %1579 = vmatpush1.bf16.msra.mxu0 0
        %1580 = vmatprep.subr.bf16.mxu0 0
        %1581 = vmatpush1.bf16.msra.mxu0 0
        %1582 = vmatprep.subr.bf16.mxu0 0
        %1583 = vmatpush1.bf16.msra.mxu0 0
        %1584 = vmatprep.subr.bf16.mxu0 0
        %1585 = vmatpush1.bf16.msra.mxu0 0
        %1586 = vmatprep.subr.bf16.mxu0 0
        %1587 = vmatpush1.bf16.msra.mxu0 0
        %1588 = vmatprep.subr.bf16.mxu0 0
        %1589 = vmatpush1.bf16.msra.mxu0 0
        %1590 = vmatprep.subr.bf16.mxu0 0
        %1591 = vmatpush1.bf16.msra.mxu0 0
        %1592 = vmatprep.subr.bf16.mxu0 0
        %1593 = vmatpush1.bf16.msra.mxu0 0
        %1594 = vmatprep.subr.bf16.mxu0 0
        %1595 = vmatpush1.bf16.msra.mxu0 0
        %1596 = vmatprep.subr.bf16.mxu0 0
        %1597 = vmatpush1.bf16.msra.mxu0 0
        %1598 = vmatprep.subr.bf16.mxu0 0
        %1599 = vmatpush1.bf16.msra.mxu0 0
        %1600 = vmatprep.subr.bf16.mxu0 0
        %1601 = vmatpush1.bf16.msra.mxu0 0
        %1602 = vmatprep.subr.bf16.mxu0 0
        %1603 = vmatpush1.bf16.msra.mxu0 0
        %1604 = vmatprep.subr.bf16.mxu0 0
        %1605 = vmatpush1.bf16.msra.mxu0 0
        %1606 = vmatprep.subr.bf16.mxu0 0
        %1607 = vmatpush1.bf16.msra.mxu0 0
        %1608 = vmatprep.mubr.bf16.mxu0 0
        %1609 = vmatmul.mubr.bf16.gmra.mrb[0].mxu0 %v791
        %v1610 = vpop.f32.mrb[0].mxu0
        %v1611 = vadd.f32 0.0, %v1610
        %v1612 = vpop.f32.mrb[0].mxu0
        %v1613 = vpop.f32.mrb[0].mxu0
        %v1614 = vadd.f32 0.0, %v1613
        %v1615 = vpop.f32.mrb[0].mxu0
        %1616 = vdwg.mxu0
        %1617 = vmatprep.subr.bf16.mxu0 0
        %1618 = vmatpush1.bf16.msra.mxu0 %v1187
        %1619 = vmatprep.subr.bf16.mxu0 0
        %1620 = vmatpush1.bf16.msra.mxu0 0
        %1621 = vmatprep.subr.bf16.mxu0 0
        %1622 = vmatpush1.bf16.msra.mxu0 0
        %1623 = vmatprep.subr.bf16.mxu0 0
        %1624 = vmatpush1.bf16.msra.mxu0 0
        %1625 = vmatprep.subr.bf16.mxu0 0
        %1626 = vmatpush1.bf16.msra.mxu0 0
        %1627 = vmatprep.subr.bf16.mxu0 0
        %1628 = vmatpush1.bf16.msra.mxu0 0
        %1629 = vmatprep.subr.bf16.mxu0 0
        %1630 = vmatpush1.bf16.msra.mxu0 0
        %1631 = vmatprep.subr.bf16.mxu0 0
        %1632 = vmatpush1.bf16.msra.mxu0 0
        %1633 = vmatprep.subr.bf16.mxu0 0
        %1634 = vmatpush1.bf16.msra.mxu0 0
        %1635 = vmatprep.subr.bf16.mxu0 0
        %1636 = vmatpush1.bf16.msra.mxu0 0
        %1637 = vmatprep.subr.bf16.mxu0 0
        %1638 = vmatpush1.bf16.msra.mxu0 0
        %1639 = vmatprep.subr.bf16.mxu0 0
        %1640 = vmatpush1.bf16.msra.mxu0 0
        %1641 = vmatprep.subr.bf16.mxu0 0
        %1642 = vmatpush1.bf16.msra.mxu0 0
        %1643 = vmatprep.subr.bf16.mxu0 0
        %1644 = vmatpush1.bf16.msra.mxu0 0
        %1645 = vmatprep.subr.bf16.mxu0 0
        %1646 = vmatpush1.bf16.msra.mxu0 0
        %1647 = vmatprep.subr.bf16.mxu0 0
        %1648 = vmatpush1.bf16.msra.mxu0 0
        %1649 = vmatprep.mubr.bf16.mxu0 0
        %1650 = vmatmul.mubr.bf16.gmra.mrb[0].mxu0 %v791
        %v1651 = vpop.f32.mrb[0].mxu0
        %v1652 = vadd.f32 %v1611, %v1651
        %v1653 = vpop.f32.mrb[0].mxu0
        %v1654 = vpop.f32.mrb[0].mxu0
        %v1655 = vadd.f32 %v1614, %v1654
        %v1656 = vpop.f32.mrb[0].mxu0
        %1657 = vdwg.mxu0
        %1658 = vmatprep.subr.bf16.mxu0 0
        %1659 = vmatpush1.bf16.msra.mxu0 %v1187
        %1660 = vmatprep.subr.bf16.mxu0 0
        %1661 = vmatpush1.bf16.msra.mxu0 0
        %1662 = vmatprep.subr.bf16.mxu0 0
        %1663 = vmatpush1.bf16.msra.mxu0 0
        %1664 = vmatprep.subr.bf16.mxu0 0
        %1665 = vmatpush1.bf16.msra.mxu0 0
        %1666 = vmatprep.subr.bf16.mxu0 0
        %1667 = vmatpush1.bf16.msra.mxu0 0
        %1668 = vmatprep.subr.bf16.mxu0 0
        %1669 = vmatpush1.bf16.msra.mxu0 0
        %1670 = vmatprep.subr.bf16.mxu0 0
        %1671 = vmatpush1.bf16.msra.mxu0 0
        %1672 = vmatprep.subr.bf16.mxu0 0
        %1673 = vmatpush1.bf16.msra.mxu0 0
        %1674 = vmatprep.subr.bf16.mxu0 0
        %1675 = vmatpush1.bf16.msra.mxu0 0
        %1676 = vmatprep.subr.bf16.mxu0 0
        %1677 = vmatpush1.bf16.msra.mxu0 0
        %1678 = vmatprep.subr.bf16.mxu0 0
        %1679 = vmatpush1.bf16.msra.mxu0 0
        %1680 = vmatprep.subr.bf16.mxu0 0
        %1681 = vmatpush1.bf16.msra.mxu0 0
        %1682 = vmatprep.subr.bf16.mxu0 0
        %1683 = vmatpush1.bf16.msra.mxu0 0
        %1684 = vmatprep.subr.bf16.mxu0 0
        %1685 = vmatpush1.bf16.msra.mxu0 0
        %1686 = vmatprep.subr.bf16.mxu0 0
        %1687 = vmatpush1.bf16.msra.mxu0 0
        %1688 = vmatprep.subr.bf16.mxu0 0
        %1689 = vmatpush1.bf16.msra.mxu0 0
        %1690 = vmatprep.mubr.bf16.mxu0 0
        %1691 = vmatmul.mubr.bf16.gmra.mrb[0].mxu0 %v876
        %v1692 = vpop.f32.mrb[0].mxu0
        %v1693 = vadd.f32 0.0, %v1692
        %v1694 = vpop.f32.mrb[0].mxu0
        %v1695 = vpop.f32.mrb[0].mxu0
        %v1696 = vadd.f32 0.0, %v1695
        %v1697 = vpop.f32.mrb[0].mxu0
        %1698 = vdwg.mxu0
        %v1699 = vadd.f32 %v1652, %v1693
        %v1700 = vadd.f32 %v1655, %v1696
        %v1701 = vsub.f32 %v1574, %v1699
        %v1702 = vsub.f32 %v1575, %v1700
        %v1703 = vpack.c.bf16 %v1450, %v1449
        %v1704 = vunpack.c.l.bf16 %v1703
        %v1705 = vunpack.c.h.bf16 %v1703
        %v1706 = vsub.f32 %v1449, %v1704
        %v1707 = vsub.f32 %v1450, %v1705
        %v1708 = vpack.c.bf16 %v1707, %v1706
        %v1709 = vpack.c.bf16 %v1702, %v1701
        %v1710 = vunpack.c.l.bf16 %v1709
        %v1711 = vunpack.c.h.bf16 %v1709
        %v1712 = vsub.f32 %v1701, %v1710
        %v1713 = vsub.f32 %v1702, %v1711
        %v1714 = vpack.c.bf16 %v1713, %v1712
        %v1716 = vsel %vm310, %v1703, 0
        %1718 = vmatprep.subr.bf16.mxu0 0
        %1719 = vmatpush1.bf16.msra.mxu0 %v308
        %1720 = vmatprep.subr.bf16.mxu0 0
        %1721 = vmatpush1.bf16.msra.mxu0 0
        %1722 = vmatprep.subr.bf16.mxu0 0
        %1723 = vmatpush1.bf16.msra.mxu0 0
        %1724 = vmatprep.subr.bf16.mxu0 0
        %1725 = vmatpush1.bf16.msra.mxu0 0
        %1726 = vmatprep.subr.bf16.mxu0 0
        %1727 = vmatpush1.bf16.msra.mxu0 0
        %1728 = vmatprep.subr.bf16.mxu0 0
        %1729 = vmatpush1.bf16.msra.mxu0 0
        %1730 = vmatprep.subr.bf16.mxu0 0
        %1731 = vmatpush1.bf16.msra.mxu0 0
        %1732 = vmatprep.subr.bf16.mxu0 0
        %1733 = vmatpush1.bf16.msra.mxu0 0
        %1734 = vmatprep.subr.bf16.mxu0 0
        %1735 = vmatpush1.bf16.msra.mxu0 0
        %1736 = vmatprep.subr.bf16.mxu0 0
        %1737 = vmatpush1.bf16.msra.mxu0 0
        %1738 = vmatprep.subr.bf16.mxu0 0
        %1739 = vmatpush1.bf16.msra.mxu0 0
        %1740 = vmatprep.subr.bf16.mxu0 0
        %1741 = vmatpush1.bf16.msra.mxu0 0
        %1742 = vmatprep.subr.bf16.mxu0 0
        %1743 = vmatpush1.bf16.msra.mxu0 0
        %1744 = vmatprep.subr.bf16.mxu0 0
        %1745 = vmatpush1.bf16.msra.mxu0 0
        %1746 = vmatprep.subr.bf16.mxu0 0
        %1747 = vmatpush1.bf16.msra.mxu0 0
        %1748 = vmatprep.subr.bf16.mxu0 0
        %1749 = vmatpush1.bf16.msra.mxu0 0
        %1750 = vmatprep.mubr.bf16.mxu0 0
        %1751 = vmatmul.mubr.bf16.gmra.mrb[0].mxu0 %v1716
        %v1752 = vpop.f32.mrb[0].mxu0
        %v1753 = vadd.f32 0.0, %v1752
        %v1754 = vpop.f32.mrb[0].mxu0
        %v1755 = vpop.f32.mrb[0].mxu0
        %v1756 = vadd.f32 0.0, %v1755
        %v1757 = vpop.f32.mrb[0].mxu0
        %1758 = vdwg.mxu0
        %1759 = vmatprep.subr.bf16.mxu0 0
        %1760 = vmatpush1.bf16.msra.mxu0 %v370
        %1761 = vmatprep.subr.bf16.mxu0 0
        %1762 = vmatpush1.bf16.msra.mxu0 0
        %1763 = vmatprep.subr.bf16.mxu0 0
        %1764 = vmatpush1.bf16.msra.mxu0 0
        %1765 = vmatprep.subr.bf16.mxu0 0
        %1766 = vmatpush1.bf16.msra.mxu0 0
        %1767 = vmatprep.subr.bf16.mxu0 0
        %1768 = vmatpush1.bf16.msra.mxu0 0
        %1769 = vmatprep.subr.bf16.mxu0 0
        %1770 = vmatpush1.bf16.msra.mxu0 0
        %1771 = vmatprep.subr.bf16.mxu0 0
        %1772 = vmatpush1.bf16.msra.mxu0 0
        %1773 = vmatprep.subr.bf16.mxu0 0
        %1774 = vmatpush1.bf16.msra.mxu0 0
        %1775 = vmatprep.subr.bf16.mxu0 0
        %1776 = vmatpush1.bf16.msra.mxu0 0
        %1777 = vmatprep.subr.bf16.mxu0 0
        %1778 = vmatpush1.bf16.msra.mxu0 0
        %1779 = vmatprep.subr.bf16.mxu0 0
        %1780 = vmatpush1.bf16.msra.mxu0 0
        %1781 = vmatprep.subr.bf16.mxu0 0
        %1782 = vmatpush1.bf16.msra.mxu0 0
        %1783 = vmatprep.subr.bf16.mxu0 0
        %1784 = vmatpush1.bf16.msra.mxu0 0
        %1785 = vmatprep.subr.bf16.mxu0 0
        %1786 = vmatpush1.bf16.msra.mxu0 0
        %1787 = vmatprep.subr.bf16.mxu0 0
        %1788 = vmatpush1.bf16.msra.mxu0 0
        %1789 = vmatprep.subr.bf16.mxu0 0
        %1790 = vmatpush1.bf16.msra.mxu0 0
        %1791 = vmatprep.mubr.bf16.mxu0 0
        %1792 = vmatmul.mubr.bf16.gmra.mrb[0].mxu0 %v1716
        %v1793 = vpop.f32.mrb[0].mxu0
        %v1794 = vadd.f32 %v1753, %v1793
        %v1795 = vpop.f32.mrb[0].mxu0
        %v1796 = vpop.f32.mrb[0].mxu0
        %v1797 = vadd.f32 %v1756, %v1796
        %v1798 = vpop.f32.mrb[0].mxu0
        %1799 = vdwg.mxu0
        %v1801 = vsel %vm310, %v1708, 0
        %1803 = vmatprep.subr.bf16.mxu0 0
        %1804 = vmatpush1.bf16.msra.mxu0 %v370
        %1805 = vmatprep.subr.bf16.mxu0 0
        %1806 = vmatpush1.bf16.msra.mxu0 0
        %1807 = vmatprep.subr.bf16.mxu0 0
        %1808 = vmatpush1.bf16.msra.mxu0 0
        %1809 = vmatprep.subr.bf16.mxu0 0
        %1810 = vmatpush1.bf16.msra.mxu0 0
        %1811 = vmatprep.subr.bf16.mxu0 0
        %1812 = vmatpush1.bf16.msra.mxu0 0
        %1813 = vmatprep.subr.bf16.mxu0 0
        %1814 = vmatpush1.bf16.msra.mxu0 0
        %1815 = vmatprep.subr.bf16.mxu0 0
        %1816 = vmatpush1.bf16.msra.mxu0 0
        %1817 = vmatprep.subr.bf16.mxu0 0
        %1818 = vmatpush1.bf16.msra.mxu0 0
        %1819 = vmatprep.subr.bf16.mxu0 0
        %1820 = vmatpush1.bf16.msra.mxu0 0
        %1821 = vmatprep.subr.bf16.mxu0 0
        %1822 = vmatpush1.bf16.msra.mxu0 0
        %1823 = vmatprep.subr.bf16.mxu0 0
        %1824 = vmatpush1.bf16.msra.mxu0 0
        %1825 = vmatprep.subr.bf16.mxu0 0
        %1826 = vmatpush1.bf16.msra.mxu0 0
        %1827 = vmatprep.subr.bf16.mxu0 0
        %1828 = vmatpush1.bf16.msra.mxu0 0
        %1829 = vmatprep.subr.bf16.mxu0 0
        %1830 = vmatpush1.bf16.msra.mxu0 0
        %1831 = vmatprep.subr.bf16.mxu0 0
        %1832 = vmatpush1.bf16.msra.mxu0 0
        %1833 = vmatprep.subr.bf16.mxu0 0
        %1834 = vmatpush1.bf16.msra.mxu0 0
        %1835 = vmatprep.mubr.bf16.mxu0 0
        %1836 = vmatmul.mubr.bf16.gmra.mrb[0].mxu0 %v1801
        %v1837 = vpop.f32.mrb[0].mxu0
        %v1838 = vadd.f32 0.0, %v1837
        %v1839 = vpop.f32.mrb[0].mxu0
        %v1840 = vpop.f32.mrb[0].mxu0
        %v1841 = vadd.f32 0.0, %v1840
        %v1842 = vpop.f32.mrb[0].mxu0
        %1843 = vdwg.mxu0
        %v1844 = vadd.f32 %v1794, %v1838
        %v1845 = vadd.f32 %v1797, %v1841
        %v1847 = vsel %vm310, %v1709, 0
        %1849 = vmatprep.subr.bf16.mxu0 0
        %1850 = vmatpush1.bf16.msra.mxu0 %v484
        %1851 = vmatprep.subr.bf16.mxu0 0
        %1852 = vmatpush1.bf16.msra.mxu0 0
        %1853 = vmatprep.subr.bf16.mxu0 0
        %1854 = vmatpush1.bf16.msra.mxu0 0
        %1855 = vmatprep.subr.bf16.mxu0 0
        %1856 = vmatpush1.bf16.msra.mxu0 0
        %1857 = vmatprep.subr.bf16.mxu0 0
        %1858 = vmatpush1.bf16.msra.mxu0 0
        %1859 = vmatprep.subr.bf16.mxu0 0
        %1860 = vmatpush1.bf16.msra.mxu0 0
        %1861 = vmatprep.subr.bf16.mxu0 0
        %1862 = vmatpush1.bf16.msra.mxu0 0
        %1863 = vmatprep.subr.bf16.mxu0 0
        %1864 = vmatpush1.bf16.msra.mxu0 0
        %1865 = vmatprep.subr.bf16.mxu0 0
        %1866 = vmatpush1.bf16.msra.mxu0 0
        %1867 = vmatprep.subr.bf16.mxu0 0
        %1868 = vmatpush1.bf16.msra.mxu0 0
        %1869 = vmatprep.subr.bf16.mxu0 0
        %1870 = vmatpush1.bf16.msra.mxu0 0
        %1871 = vmatprep.subr.bf16.mxu0 0
        %1872 = vmatpush1.bf16.msra.mxu0 0
        %1873 = vmatprep.subr.bf16.mxu0 0
        %1874 = vmatpush1.bf16.msra.mxu0 0
        %1875 = vmatprep.subr.bf16.mxu0 0
        %1876 = vmatpush1.bf16.msra.mxu0 0
        %1877 = vmatprep.subr.bf16.mxu0 0
        %1878 = vmatpush1.bf16.msra.mxu0 0
        %1879 = vmatprep.subr.bf16.mxu0 0
        %1880 = vmatpush1.bf16.msra.mxu0 0
        %1881 = vmatprep.mubr.bf16.mxu0 0
        %1882 = vmatmul.mubr.bf16.gmra.mrb[0].mxu0 %v1847
        %v1883 = vpop.f32.mrb[0].mxu0
        %v1884 = vadd.f32 0.0, %v1883
        %v1885 = vpop.f32.mrb[0].mxu0
        %v1886 = vpop.f32.mrb[0].mxu0
        %v1887 = vadd.f32 0.0, %v1886
        %v1888 = vpop.f32.mrb[0].mxu0
        %1889 = vdwg.mxu0
        %1890 = vmatprep.subr.bf16.mxu0 0
        %1891 = vmatpush1.bf16.msra.mxu0 %v539
        %1892 = vmatprep.subr.bf16.mxu0 0
        %1893 = vmatpush1.bf16.msra.mxu0 0
        %1894 = vmatprep.subr.bf16.mxu0 0
        %1895 = vmatpush1.bf16.msra.mxu0 0
        %1896 = vmatprep.subr.bf16.mxu0 0
        %1897 = vmatpush1.bf16.msra.mxu0 0
        %1898 = vmatprep.subr.bf16.mxu0 0
        %1899 = vmatpush1.bf16.msra.mxu0 0
        %1900 = vmatprep.subr.bf16.mxu0 0
        %1901 = vmatpush1.bf16.msra.mxu0 0
        %1902 = vmatprep.subr.bf16.mxu0 0
        %1903 = vmatpush1.bf16.msra.mxu0 0
        %1904 = vmatprep.subr.bf16.mxu0 0
        %1905 = vmatpush1.bf16.msra.mxu0 0
        %1906 = vmatprep.subr.bf16.mxu0 0
        %1907 = vmatpush1.bf16.msra.mxu0 0
        %1908 = vmatprep.subr.bf16.mxu0 0
        %1909 = vmatpush1.bf16.msra.mxu0 0
        %1910 = vmatprep.subr.bf16.mxu0 0
        %1911 = vmatpush1.bf16.msra.mxu0 0
        %1912 = vmatprep.subr.bf16.mxu0 0
        %1913 = vmatpush1.bf16.msra.mxu0 0
        %1914 = vmatprep.subr.bf16.mxu0 0
        %1915 = vmatpush1.bf16.msra.mxu0 0
        %1916 = vmatprep.subr.bf16.mxu0 0
        %1917 = vmatpush1.bf16.msra.mxu0 0
        %1918 = vmatprep.subr.bf16.mxu0 0
        %1919 = vmatpush1.bf16.msra.mxu0 0
        %1920 = vmatprep.subr.bf16.mxu0 0
        %1921 = vmatpush1.bf16.msra.mxu0 0
        %1922 = vmatprep.mubr.bf16.mxu0 0
        %1923 = vmatmul.mubr.bf16.gmra.mrb[0].mxu0 %v1847
        %v1924 = vpop.f32.mrb[0].mxu0
        %v1925 = vadd.f32 %v1884, %v1924
        %v1926 = vpop.f32.mrb[0].mxu0
        %v1927 = vpop.f32.mrb[0].mxu0
        %v1928 = vadd.f32 %v1887, %v1927
        %v1929 = vpop.f32.mrb[0].mxu0
        %1930 = vdwg.mxu0
        %v1932 = vsel %vm310, %v1714, 0
        %1934 = vmatprep.subr.bf16.mxu0 0
        %1935 = vmatpush1.bf16.msra.mxu0 %v539
        %1936 = vmatprep.subr.bf16.mxu0 0
        %1937 = vmatpush1.bf16.msra.mxu0 0
        %1938 = vmatprep.subr.bf16.mxu0 0
        %1939 = vmatpush1.bf16.msra.mxu0 0
        %1940 = vmatprep.subr.bf16.mxu0 0
        %1941 = vmatpush1.bf16.msra.mxu0 0
        %1942 = vmatprep.subr.bf16.mxu0 0
        %1943 = vmatpush1.bf16.msra.mxu0 0
        %1944 = vmatprep.subr.bf16.mxu0 0
        %1945 = vmatpush1.bf16.msra.mxu0 0
        %1946 = vmatprep.subr.bf16.mxu0 0
        %1947 = vmatpush1.bf16.msra.mxu0 0
        %1948 = vmatprep.subr.bf16.mxu0 0
        %1949 = vmatpush1.bf16.msra.mxu0 0
        %1950 = vmatprep.subr.bf16.mxu0 0
        %1951 = vmatpush1.bf16.msra.mxu0 0
        %1952 = vmatprep.subr.bf16.mxu0 0
        %1953 = vmatpush1.bf16.msra.mxu0 0
        %1954 = vmatprep.subr.bf16.mxu0 0
        %1955 = vmatpush1.bf16.msra.mxu0 0
        %1956 = vmatprep.subr.bf16.mxu0 0
        %1957 = vmatpush1.bf16.msra.mxu0 0
        %1958 = vmatprep.subr.bf16.mxu0 0
        %1959 = vmatpush1.bf16.msra.mxu0 0
        %1960 = vmatprep.subr.bf16.mxu0 0
        %1961 = vmatpush1.bf16.msra.mxu0 0
        %1962 = vmatprep.subr.bf16.mxu0 0
        %1963 = vmatpush1.bf16.msra.mxu0 0
        %1964 = vmatprep.subr.bf16.mxu0 0
        %1965 = vmatpush1.bf16.msra.mxu0 0
        %1966 = vmatprep.mubr.bf16.mxu0 0
        %1967 = vmatmul.mubr.bf16.gmra.mrb[0].mxu0 %v1932
        %v1968 = vpop.f32.mrb[0].mxu0
        %v1969 = vadd.f32 0.0, %v1968
        %v1970 = vpop.f32.mrb[0].mxu0
        %v1971 = vpop.f32.mrb[0].mxu0
        %v1972 = vadd.f32 0.0, %v1971
        %v1973 = vpop.f32.mrb[0].mxu0
        %1974 = vdwg.mxu0
        %v1975 = vadd.f32 %v1925, %v1969
        %v1976 = vadd.f32 %v1928, %v1972
        %v1977 = vadd.f32 %v1844, %v1975
        %v1978 = vadd.f32 %v1845, %v1976
        %v1979 = vld [vmem:[#allocation2] sm:$0xff]
        %v1980 = vsub.f32 %v1977, %v274
        %v1981 = vsub.f32 %v1978, %v275
        %v1982 = vand.u32 2147483647, %v1980
        %v1983 = vand.u32 2147483647, %v1981
        %v1984 = vsel %vm310, %v1982, 0.0
        %v1985 = vsel %vm310, %v1983, 0.0
        %v1986 = vadd.f32 %v1984, %v1985
        %1987 = vadd.xlane.f32.xlu0 %v1986
        %v1988 = vpop.xlane.xlu0 %1987
        %v1989 = vrot.slane %v1988, 4
        %v1990 = vadd.f32 %v1988, %v1989
        %v1991 = vrot.slane %v1990, 2
        %v1992 = vadd.f32 %v1990, %v1991
        %v1993 = vrot.slane %v1992, 1
        %v1994 = vadd.f32 %v1992, %v1993
        %s1995 = vtos %v1994
        %v1996 = vstv %s1995
        %v1997 = vadd.f32 %v1979, %v1996
        %1998 = vst [vmem:[#allocation2] sm:$0xff] %v1997
        %p1999 = scmp.eq.s32.totalorder %s22, 1
        // Predicated region
        $region45: #{tpu_custom_call.1} parent=35 // pred_check
          %p2000 = pneg %p1999
        $region46: #{tpu_custom_call.1} parent=35 // pred_check_branch
          %2002 = sbr.rel (%p2000) target = $region48
        $region47: #{tpu_custom_call.1} parent=35 // pred_region
          %v2003 = vld [vmem:[#allocation2] sm:$0xff]
          %2004 = vst [vmem:[#allocation6] sm:$0xff] %v2003
        $region48: #{tpu_custom_call.1} parent=35 // pred_fallthru
          _
        // Predicated region
        $region49: #{tpu_custom_call.1} parent=35 // pred_check
          %p2005 = pneg %p149
        $region50: #{tpu_custom_call.1} parent=35 // pred_check_branch
          %2007 = sbr.rel (%p2005) target = $region52
        $region51: #{tpu_custom_call.1} parent=35 // pred_region
          %s2009 = ssub.s32 128, 128
          %2010 = vsyncadd [#allocation5], %s2009
          %s2011 = smul.addr %s21, 128
          %s2012 = scalar_lea.hbm %s4, %s2011
          %s2014 = sshll.u32 [#allocation6], 4
          %s2015 = int_to_ptr.vmem [resolvable:$true] %s2014
          %2017 = dma.vmem_to_hbm [thread:$0]  %s2015, 128, %s2012, [#allocation5]
        $region52: #{tpu_custom_call.1} parent=35 // pred_fallthru
          _
        // Predicated region
        $region53: #{tpu_custom_call.1} parent=35 // pred_check
          %p2018 = pneg %p149
        $region54: #{tpu_custom_call.1} parent=35 // pred_check_branch
          %2020 = sbr.rel (%p2018) target = $region56
        $region55: #{tpu_custom_call.1} parent=35 // pred_region
          %2021 = dma.done [#allocation5], 128
        $region56: #{tpu_custom_call.1} parent=35 // pred_fallthru
          _
      $region36: #{tpu_custom_call.1} parent=5 // pred_fallthru
        _
      %p2022 = scmp.le.s32.totalorder 2, %s12
      // Predicated region
      $region57: #{tpu_custom_call.1} parent=5 // pred_check
        %p2023 = pneg %p2022
      $region58: #{tpu_custom_call.1} parent=5 // pred_check_branch
        %2025 = sbr.rel (%p2023) target = $region60
      $region59: #{tpu_custom_call.1} parent=5 // pred_region
        %s2026 = ssub.s32 %s12, 2
      $region60: #{tpu_custom_call.1} parent=5 // pred_fallthru
        _
    $region6: #{tpu_custom_call.1} parent=1 // loop_footer
      %s16 = sadd.s32 1, %s12
    $region7: #{tpu_custom_call.1} parent=1 // loop_footer_branch
      %11 = sbr.rel target = $region3
    $region8: #{tpu_custom_call.1} parent=1 // loop_exit
      _
    %2027 = vsyncpa [#allocation4], 1
    %s2028 = scalar_lea.sflag [#allocation4], 1
    %2029 = vsyncpa %s2028, 1
    %2030 = vsyncpa [#allocation5], 1
    %s2031 = scalar_lea.sflag [#allocation5], 1
    %2032 = vsyncpa %s2031, 1

</llo_original>
